<compile_context>
chip_gen: v7x
topology: tpu7x:2x2x1
jax: 0.10.0
libtpu: 0.0.40
codegen_flags: <defaults>
</compile_context>

<pallas_src>
import numpy as np
import jax
import jax.numpy as jnp
from jax.experimental import pallas as pl
from jax.experimental.pallas import tpu as pltpu

# ---- hyper-parameters (small shapes consistent with the module) -------------------
SEQ_LEN   = 16                     # sequence_length (S == T)
IN_CH     = 8                      # input_channels
OUT_CH    = 8                      # output_channels (FeatureMixing.attention hard-codes 8)
FF_DIM    = 32                     # ff_dim
HEADS     = 2
HDIM      = 4
TOTAL_DIM = HEADS * HDIM           # 8
QKV_CH    = 3 * TOTAL_DIM          # 24
SCALES    = (1, 3, 5)
N_SH      = len(SCALES) * HEADS    # 6  (scale-major, then head)  -> proj channel order
SHD       = N_SH * HDIM            # 24 (scale, head, dim) columns per q/k/v time step
FLAT      = SEQ_LEN * IN_CH        # 128 -> lane-dense activation width
PART_COLS = SEQ_LEN * SHD          # 384 columns per q/k/v part (lane-aligned)
AGG_COLS  = 3 * PART_COLS          # 1152 dw-operator output columns (part, t, scale, head, d)
LN_EPS    = 1e-5


# ---- in-kernel helpers -------------------------------------------------------------
def _layernorm_rows(y, gamma, beta):
    """nn.LayerNorm((S, C)) on a (TB, S*C) lane-flattened activation (biased var, f32)."""
    mu = jnp.mean(y, axis=1, keepdims=True)
    xc = y - mu
    var = jnp.mean(xc * xc, axis=1, keepdims=True)
    return xc * jax.lax.rsqrt(var + LN_EPS) * gamma + beta


def _mla_attention(agg, proj_w, proj_b_flat, sh_mask):
    """LiteMLA linear attention + 1x1 proj (+ReLU), all (scale, head) pairs fused.

    agg:         (TB, 1152) f32, columns ordered (part[q,k,v], t, scale, head, d)
    proj_w:      (24, OUT_CH) f32, rows ordered (scale, head, d)
    proj_b_flat: (1, S*OUT_CH) f32, columns ordered (t, c)
    sh_mask:     (24, 24) f32 block-diagonal mask (1 inside each (scale,head) 4x4 block)
    returns:     (TB, S*OUT_CH) f32, flattened (t, c)
    """
    tb = agg.shape[0]
    # Lane-aligned (multiple of 128) static slices, then one reshape per part.
    q = agg[:, 0 * PART_COLS:1 * PART_COLS].reshape(tb, SEQ_LEN, SHD)
    k = agg[:, 1 * PART_COLS:2 * PART_COLS].reshape(tb, SEQ_LEN, SHD)
    v = agg[:, 2 * PART_COLS:3 * PART_COLS].reshape(tb, SEQ_LEN, SHD)
    # K^T Q for every (scale,head) block at once; cross-block terms removed by the mask.
    m = jnp.einsum('bti,btj->bij', k, q,
                   preferred_element_type=jnp.float32) * sh_mask          # (TB, 24, 24)
    # Fold the 1x1 proj into the small side: W = (K^T Q) P.
    w = jnp.dot(m.reshape(tb * SHD, SHD), proj_w,
                preferred_element_type=jnp.float32).reshape(tb, SHD, OUT_CH)
    # att = V W; contracting (scale, head, dim) jointly == concat-over-scales then proj.
    att = jnp.einsum('bti,bic->btc', v, w,
                     preferred_element_type=jnp.float32)                  # (TB, S, OUT_CH)
    out = att.reshape(tb, SEQ_LEN * OUT_CH) + proj_b_flat
    return jnp.maximum(out, 0.0)


# ---- fused MixerLayer kernel --------------------------------------------------------
def _mixer_kernel(x_ref, *refs):
    (tm_fc1_op, tm_fc1_b, tm_qkv_op, tm_qkv_b, tm_dw_op, tm_dw_b, tm_proj_w, tm_proj_b,
     tm_gamma, tm_beta,
     fm_fc1_op, fm_fc1_b, fm_fc2qkv_op, fm_fc2qkv_b, fm_dw_op, fm_dw_b, fm_proj_w, fm_proj_b,
     fm_gamma, fm_beta, sh_mask) = [r[...] for r in refs[:-1]]
    out_ref = refs[-1]

    bf = jnp.bfloat16
    x = x_ref[...]                                         # (TB, 128) f32, columns (t, c)

    # ------------------ TimeMixing ------------------
    # fc1 over time (Kron-lifted to lane-flat (t,c) space), dropout = identity.
    xr = jnp.maximum(
        jnp.dot(x.astype(bf), tm_fc1_op, preferred_element_type=jnp.float32) + tm_fc1_b, 0.0)
    # LiteMLA qkv 1x1 conv (+ReLU), Kron-lifted: (TB,128)@(128,384).
    qkv = jnp.maximum(
        jnp.dot(xr.astype(bf), tm_qkv_op, preferred_element_type=jnp.float32) + tm_qkv_b, 0.0)
    # All three grouped temporal convs (scales 1/3/5) as ONE matmul (+bias +ReLU).
    agg = jnp.maximum(
        jnp.dot(qkv.astype(bf), tm_dw_op, preferred_element_type=jnp.float32) + tm_dw_b, 0.0)
    attn = _mla_attention(agg, tm_proj_w, tm_proj_b, sh_mask)             # (TB, 128)
    y = _layernorm_rows(x + attn, tm_gamma, tm_beta)                      # (TB, 128) f32

    # ------------------ FeatureMixing ------------------
    # projection == Identity (in_ch == out_ch == 8), norm_before == Identity.
    h = jnp.maximum(
        jnp.dot(y.astype(bf), fm_fc1_op, preferred_element_type=jnp.float32) + fm_fc1_b, 0.0)
    # fc2 and the LiteMLA qkv conv fused into one lifted linear map (exact; dropout identity).
    qkv2 = jnp.maximum(
        jnp.dot(h.astype(bf), fm_fc2qkv_op, preferred_element_type=jnp.float32) + fm_fc2qkv_b, 0.0)
    agg2 = jnp.maximum(
        jnp.dot(qkv2.astype(bf), fm_dw_op, preferred_element_type=jnp.float32) + fm_dw_b, 0.0)
    attn2 = _mla_attention(agg2, fm_proj_w, fm_proj_b, sh_mask)           # (TB, 128)
    out_ref[...] = _layernorm_rows(y + attn2, fm_gamma, fm_beta)


# ---- batch-tile selection & pallas_call wrapper ---------------------------------------
def _choose_tb(batch, tb_cap=256):
    """Largest batch tile <= tb_cap that divides B (no padding on the common path);
    tiles other than the full batch are kept multiples of 8 (sublane constraint); for
    batches big enough we keep >= 2 grid steps so ("parallel",) can use both v7x cores."""
    if batch <= tb_cap:
        if batch >= 64 and batch % 16 == 0:
            return batch // 2          # two tiles -> megacore sharding on v7x
        return batch                   # single full-batch tile (block dim == array dim)
    cap = tb_cap - tb_cap % 8
    for tb in range(cap, 7, -8):
        if batch % tb == 0:
            return tb
    return cap                         # rare fallback: pad batch up to a multiple of cap


def mixer_layer(x, kernel_params, *, tb_cap=256):
    """x: (B, S, C) channels-last. kernel_params: tuple from _build_kernel_params."""
    B, S, C = x.shape
    assert S == SEQ_LEN and C == IN_CH
    x2 = x.reshape(B, FLAT).astype(jnp.float32)            # lane-dense (B, 128)
    tb = _choose_tb(B, tb_cap)
    b_pad = -(-B // tb) * tb
    if b_pad != B:                                         # rare fallback only
        x2 = jnp.pad(x2, ((0, b_pad - B), (0, 0)))

    in_specs = [pl.BlockSpec((tb, FLAT), lambda i: (i, 0))]
    # Grid-invariant weights: constant (0,0) block index -> Pallas skips the re-DMA between
    # grid steps; total weights ~2.6 MiB (bf16 big operators), so even the default
    # double-buffer allocation stays far under the 32 MiB scoped-VMEM default (v6e/v7x).
    in_specs += [pl.BlockSpec(p.shape, lambda i: (0, 0)) for p in kernel_params]

    out = pl.pallas_call(
        _mixer_kernel,
        out_shape=jax.ShapeDtypeStruct((b_pad, SEQ_LEN * OUT_CH), jnp.float32),
        grid_spec=pltpu.PrefetchScalarGridSpec(
            num_scalar_prefetch=0,
            grid=(b_pad // tb,),
            in_specs=in_specs,
            out_specs=pl.BlockSpec((tb, SEQ_LEN * OUT_CH), lambda i: (i, 0))),
        compiler_params=pltpu.CompilerParams(dimension_semantics=("parallel",)),
    )(x2, *kernel_params)
    if b_pad != B:
        out = out[:B]
    return out.reshape(B, SEQ_LEN, OUT_CH)


# ---- parameter construction (synthetic, PyTorch layouts -> fused kernel operators) ----
def _init_mla_raw(key, in_ch, out_ch):
    ks = jax.random.split(key, 4 + 2 * len(SCALES))
    return dict(
        qkv_w=0.2 * jax.random.normal(ks[0], (QKV_CH, in_ch), jnp.float32),   # Conv1d (out,in,1)
        qkv_b=0.1 * jax.random.normal(ks[1], (QKV_CH,), jnp.float32),
        dw_w=[0.2 * jax.random.normal(ks[2 + i], (QKV_CH, K), jnp.float32)    # Conv1d (out,1,K)
              for i, K in enumerate(SCALES)],
        dw_b=[0.1 * jax.random.normal(ks[2 + len(SCALES) + i], (QKV_CH,), jnp.float32)
              for i, K in enumerate(SCALES)],
        proj_w=0.2 * jax.random.normal(ks[2 + 2 * len(SCALES)], (out_ch, QKV_CH), jnp.float32),
        proj_b=0.1 * jax.random.normal(ks[3 + 2 * len(SCALES)], (out_ch,), jnp.float32),
    )


def _init_raw_params(key):
    k = jax.random.split(key, 8)
    tm = dict(
        fc1_w=0.2 * jax.random.normal(k[0], (SEQ_LEN, SEQ_LEN), jnp.float32),  # Linear (out,in)
        fc1_b=0.1 * jax.random.normal(k[1], (SEQ_LEN,), jnp.float32),
        mla=_init_mla_raw(k[2], IN_CH, IN_CH),
    )
    fm = dict(
        fc1_w=0.2 * jax.random.normal(k[3], (FF_DIM, IN_CH), jnp.float32),
        fc1_b=0.1 * jax.random.normal(k[4], (FF_DIM,), jnp.float32),
        fc2_w=0.2 * jax.random.normal(k[5], (OUT_CH, FF_DIM), jnp.float32),
        fc2_b=0.1 * jax.random.normal(k[6], (OUT_CH,), jnp.float32),
        mla=_init_mla_raw(k[7], 8, 8),                     # FeatureMixing.attention is 8->8
    )
    return tm, fm


def _depthwise_operator(dw_w, dw_b):
    """Fold the three grouped Conv1d's (scales 1/3/5) into one (S*QKV_CH, 1152) matrix.

    Input rows are flattened (t_in, channel); output columns are ordered
    (part[q,k,v], t_out, scale, head, d) so each 384-wide part slice reshapes directly
    to (S, 24) with the proj channel order. Exact refactoring of the depthwise convs."""
    A = np.zeros((SEQ_LEN, QKV_CH, 3, SEQ_LEN, len(SCALES), HEADS, HDIM), np.float32)
    bias = np.zeros((3, SEQ_LEN, len(SCALES), HEADS, HDIM), np.float32)
    for si, K in enumerate(SCALES):
        pad = K // 2
        w = np.asarray(dw_w[si], np.float32)               # (QKV_CH, K)
        b = np.asarray(dw_b[si], np.float32)               # (QKV_CH,)
        for part in range(3):
            for h in range(HEADS):
                for d in range(HDIM):
                    c = part * TOTAL_DIM + h * HDIM + d
                    bias[part, :, si, h, d] = b[c]
                    for tout in range(SEQ_LEN):
                        for j in range(K):
                            tin = tout + j - pad
                            if 0 <= tin < SEQ_LEN:
                                A[tin, c, part, tout, si, h, d] = w[c, j]
    return (jnp.asarray(A.reshape(SEQ_LEN * QKV_CH, AGG_COLS), dtype=jnp.bfloat16),
            jnp.asarray(bias.reshape(1, AGG_COLS)))


def _build_kernel_params(tm, fm):
    f32 = np.float32
    eye_s = np.eye(SEQ_LEN, dtype=f32)

    def lift_channel_map(w, b):
        """Per-time linear map (out,in) -> lane-flat (S*in, S*out) bf16 operator + f32 bias."""
        op = np.kron(eye_s, np.asarray(w, f32).T)
        bias = np.tile(np.asarray(b, f32), SEQ_LEN)[None, :]
        return jnp.asarray(op, dtype=jnp.bfloat16), jnp.asarray(bias)

    # --- TimeMixing ---
    tm_fc1_op = jnp.asarray(np.kron(np.asarray(tm["fc1_w"], f32).T, np.eye(IN_CH, dtype=f32)),
                            dtype=jnp.bfloat16)                              # (128, 128)
    tm_fc1_b = jnp.asarray(np.repeat(np.asarray(tm["fc1_b"], f32), IN_CH)[None, :])
    tmm = tm["mla"]
    tm_qkv_op, tm_qkv_b = lift_channel_map(tmm["qkv_w"], tmm["qkv_b"])       # (128, 384)
    tm_dw_op, tm_dw_b = _depthwise_operator(tmm["dw_w"], tmm["dw_b"])        # (384, 1152)
    tm_proj_w = jnp.asarray(np.asarray(tmm["proj_w"], f32).T)                # (24, 8)
    tm_proj_b = jnp.asarray(np.tile(np.asarray(tmm["proj_b"], f32), SEQ_LEN)[None, :])
    tm_gamma = jnp.ones((1, FLAT), jnp.float32)                              # LN default affine
    tm_beta = jnp.zeros((1, FLAT), jnp.float32)

    # --- FeatureMixing ---
    fmm = fm["mla"]
    fm_fc1_op, fm_fc1_b = lift_channel_map(fm["fc1_w"], fm["fc1_b"])         # (128, 512)
    w_fused = np.asarray(fmm["qkv_w"], f32) @ np.asarray(fm["fc2_w"], f32)   # qkv(fc2(.)): (24, FF)
    b_fused = (np.asarray(fmm["qkv_w"], f32) @ np.asarray(fm["fc2_b"], f32)
               + np.asarray(fmm["qkv_b"], f32))
    fm_fc2qkv_op, fm_fc2qkv_b = lift_channel_map(w_fused, b_fused)           # (512, 384)
    fm_dw_op, fm_dw_b = _depthwise_operator(fmm["dw_w"], fmm["dw_b"])        # (384, 1152)
    fm_proj_w = jnp.asarray(np.asarray(fmm["proj_w"], f32).T)                # (24, 8)
    fm_proj_b = jnp.asarray(np.tile(np.asarray(fmm["proj_b"], f32), SEQ_LEN)[None, :])
    fm_gamma = jnp.ones((1, SEQ_LEN * OUT_CH), jnp.float32)
    fm_beta = jnp.zeros((1, SEQ_LEN * OUT_CH), jnp.float32)

    # Block-diagonal (scale,head) mask for the fused K^T Q contraction.
    sh_mask = jnp.asarray(np.kron(np.eye(N_SH, dtype=f32), np.ones((HDIM, HDIM), f32)))

    return (tm_fc1_op, tm_fc1_b, tm_qkv_op, tm_qkv_b, tm_dw_op, tm_dw_b, tm_proj_w, tm_proj_b,
            tm_gamma, tm_beta,
            fm_fc1_op, fm_fc1_b, fm_fc2qkv_op, fm_fc2qkv_b, fm_dw_op, fm_dw_b,
            fm_proj_w, fm_proj_b, fm_gamma, fm_beta, sh_mask)


if __name__ == "__main__":
    key = jax.random.PRNGKey(0)
    kx, kp = jax.random.split(key)
    x = jax.random.normal(kx, (2, SEQ_LEN, IN_CH), jnp.float32)              # (B, S, C)
    tm_raw, fm_raw = _init_raw_params(kp)
    kernel_params = _build_kernel_params(tm_raw, fm_raw)

    out = mixer_layer(x, kernel_params)
    jax.block_until_ready(out)
    assert out.shape == (2, SEQ_LEN, OUT_CH)
    assert bool(jnp.all(jnp.isfinite(out)))
    print("KERNEL_OK")
</pallas_src>

<mosaic_0001>
module attributes {stable_mosaic.version = 11 : i64} {
  func.func @_mixer_kernel(%arg0: i32, %arg1: memref<2x128xf32, #tpu.memory_space<vmem>>, %arg2: memref<128x128xbf16, #tpu.memory_space<vmem>>, %arg3: memref<1x128xf32, #tpu.memory_space<vmem>>, %arg4: memref<128x384xbf16, #tpu.memory_space<vmem>>, %arg5: memref<1x384xf32, #tpu.memory_space<vmem>>, %arg6: memref<384x1152xbf16, #tpu.memory_space<vmem>>, %arg7: memref<1x1152xf32, #tpu.memory_space<vmem>>, %arg8: memref<24x8xf32, #tpu.memory_space<vmem>>, %arg9: memref<1x128xf32, #tpu.memory_space<vmem>>, %arg10: memref<1x128xf32, #tpu.memory_space<vmem>>, %arg11: memref<1x128xf32, #tpu.memory_space<vmem>>, %arg12: memref<128x512xbf16, #tpu.memory_space<vmem>>, %arg13: memref<1x512xf32, #tpu.memory_space<vmem>>, %arg14: memref<512x384xbf16, #tpu.memory_space<vmem>>, %arg15: memref<1x384xf32, #tpu.memory_space<vmem>>, %arg16: memref<384x1152xbf16, #tpu.memory_space<vmem>>, %arg17: memref<1x1152xf32, #tpu.memory_space<vmem>>, %arg18: memref<24x8xf32, #tpu.memory_space<vmem>>, %arg19: memref<1x128xf32, #tpu.memory_space<vmem>>, %arg20: memref<1x128xf32, #tpu.memory_space<vmem>>, %arg21: memref<1x128xf32, #tpu.memory_space<vmem>>, %arg22: memref<24x24xf32, #tpu.memory_space<vmem>>, %arg23: memref<2x128xf32, #tpu.memory_space<vmem>>) attributes {dimension_semantics = [#tpu.dimension_semantics<parallel>], iteration_bounds = array<i64: 1>, scalar_prefetch = 0 : i64, scratch_operands = 0 : i64, tpu.core_type = #tpu.core_type<tc>, window_params = [{transform_indices = @transform_0, window_bounds = array<i64: 2, 128>}, {pipeline_mode = #tpu.pipeline_mode<synchronous>, transform_indices = @transform_1, window_bounds = array<i64: 128, 128>}, {pipeline_mode = #tpu.pipeline_mode<synchronous>, transform_indices = @transform_2, window_bounds = array<i64: 1, 128>}, {pipeline_mode = #tpu.pipeline_mode<synchronous>, transform_indices = @transform_3, window_bounds = array<i64: 128, 384>}, {pipeline_mode = #tpu.pipeline_mode<synchronous>, transform_indices = @transform_4, window_bounds = array<i64: 1, 384>}, {pipeline_mode = #tpu.pipeline_mode<synchronous>, transform_indices = @transform_5, window_bounds = array<i64: 384, 1152>}, {pipeline_mode = #tpu.pipeline_mode<synchronous>, transform_indices = @transform_6, window_bounds = array<i64: 1, 1152>}, {pipeline_mode = #tpu.pipeline_mode<synchronous>, transform_indices = @transform_7, window_bounds = array<i64: 24, 8>}, {pipeline_mode = #tpu.pipeline_mode<synchronous>, transform_indices = @transform_8, window_bounds = array<i64: 1, 128>}, {pipeline_mode = #tpu.pipeline_mode<synchronous>, transform_indices = @transform_9, window_bounds = array<i64: 1, 128>}, {pipeline_mode = #tpu.pipeline_mode<synchronous>, transform_indices = @transform_10, window_bounds = array<i64: 1, 128>}, {pipeline_mode = #tpu.pipeline_mode<synchronous>, transform_indices = @transform_11, window_bounds = array<i64: 128, 512>}, {pipeline_mode = #tpu.pipeline_mode<synchronous>, transform_indices = @transform_12, window_bounds = array<i64: 1, 512>}, {pipeline_mode = #tpu.pipeline_mode<synchronous>, transform_indices = @transform_13, window_bounds = array<i64: 512, 384>}, {pipeline_mode = #tpu.pipeline_mode<synchronous>, transform_indices = @transform_14, window_bounds = array<i64: 1, 384>}, {pipeline_mode = #tpu.pipeline_mode<synchronous>, transform_indices = @transform_15, window_bounds = array<i64: 384, 1152>}, {pipeline_mode = #tpu.pipeline_mode<synchronous>, transform_indices = @transform_16, window_bounds = array<i64: 1, 1152>}, {pipeline_mode = #tpu.pipeline_mode<synchronous>, transform_indices = @transform_17, window_bounds = array<i64: 24, 8>}, {pipeline_mode = #tpu.pipeline_mode<synchronous>, transform_indices = @transform_18, window_bounds = array<i64: 1, 128>}, {pipeline_mode = #tpu.pipeline_mode<synchronous>, transform_indices = @transform_19, window_bounds = array<i64: 1, 128>}, {pipeline_mode = #tpu.pipeline_mode<synchronous>, transform_indices = @transform_20, window_bounds = array<i64: 1, 128>}, {pipeline_mode = #tpu.pipeline_mode<synchronous>, transform_indices = @transform_21, window_bounds = array<i64: 24, 24>}, {transform_indices = @transform_22, window_bounds = array<i64: 2, 128>}]} {
    %c0 = arith.constant 0 : index
    %c0_0 = arith.constant 0 : index
    %0 = vector.load %arg2[%c0, %c0_0] : memref<128x128xbf16, #tpu.memory_space<vmem>>, vector<128x128xbf16>
    %c0_1 = arith.constant 0 : index
    %c0_2 = arith.constant 0 : index
    %1 = vector.load %arg3[%c0_1, %c0_2] : memref<1x128xf32, #tpu.memory_space<vmem>>, vector<1x128xf32>
    %c0_3 = arith.constant 0 : index
    %c0_4 = arith.constant 0 : index
    %2 = vector.load %arg4[%c0_3, %c0_4] : memref<128x384xbf16, #tpu.memory_space<vmem>>, vector<128x384xbf16>
    %c0_5 = arith.constant 0 : index
    %c0_6 = arith.constant 0 : index
    %3 = vector.load %arg5[%c0_5, %c0_6] : memref<1x384xf32, #tpu.memory_space<vmem>>, vector<1x384xf32>
    %c0_7 = arith.constant 0 : index
    %c0_8 = arith.constant 0 : index
    %4 = vector.load %arg6[%c0_7, %c0_8] : memref<384x1152xbf16, #tpu.memory_space<vmem>>, vector<384x1152xbf16>
    %c0_9 = arith.constant 0 : index
    %c0_10 = arith.constant 0 : index
    %5 = vector.load %arg7[%c0_9, %c0_10] : memref<1x1152xf32, #tpu.memory_space<vmem>>, vector<1x1152xf32>
    %c0_11 = arith.constant 0 : index
    %c0_12 = arith.constant 0 : index
    %6 = vector.load %arg8[%c0_11, %c0_12] : memref<24x8xf32, #tpu.memory_space<vmem>>, vector<24x8xf32>
    %c0_13 = arith.constant 0 : index
    %c0_14 = arith.constant 0 : index
    %7 = vector.load %arg9[%c0_13, %c0_14] : memref<1x128xf32, #tpu.memory_space<vmem>>, vector<1x128xf32>
    %c0_15 = arith.constant 0 : index
    %c0_16 = arith.constant 0 : index
    %8 = vector.load %arg10[%c0_15, %c0_16] : memref<1x128xf32, #tpu.memory_space<vmem>>, vector<1x128xf32>
    %c0_17 = arith.constant 0 : index
    %c0_18 = arith.constant 0 : index
    %9 = vector.load %arg11[%c0_17, %c0_18] : memref<1x128xf32, #tpu.memory_space<vmem>>, vector<1x128xf32>
    %c0_19 = arith.constant 0 : index
    %c0_20 = arith.constant 0 : index
    %10 = vector.load %arg12[%c0_19, %c0_20] : memref<128x512xbf16, #tpu.memory_space<vmem>>, vector<128x512xbf16>
    %c0_21 = arith.constant 0 : index
    %c0_22 = arith.constant 0 : index
    %11 = vector.load %arg13[%c0_21, %c0_22] : memref<1x512xf32, #tpu.memory_space<vmem>>, vector<1x512xf32>
    %c0_23 = arith.constant 0 : index
    %c0_24 = arith.constant 0 : index
    %12 = vector.load %arg14[%c0_23, %c0_24] : memref<512x384xbf16, #tpu.memory_space<vmem>>, vector<512x384xbf16>
    %c0_25 = arith.constant 0 : index
    %c0_26 = arith.constant 0 : index
    %13 = vector.load %arg15[%c0_25, %c0_26] : memref<1x384xf32, #tpu.memory_space<vmem>>, vector<1x384xf32>
    %c0_27 = arith.constant 0 : index
    %c0_28 = arith.constant 0 : index
    %14 = vector.load %arg16[%c0_27, %c0_28] : memref<384x1152xbf16, #tpu.memory_space<vmem>>, vector<384x1152xbf16>
    %c0_29 = arith.constant 0 : index
    %c0_30 = arith.constant 0 : index
    %15 = vector.load %arg17[%c0_29, %c0_30] : memref<1x1152xf32, #tpu.memory_space<vmem>>, vector<1x1152xf32>
    %c0_31 = arith.constant 0 : index
    %c0_32 = arith.constant 0 : index
    %16 = vector.load %arg18[%c0_31, %c0_32] : memref<24x8xf32, #tpu.memory_space<vmem>>, vector<24x8xf32>
    %c0_33 = arith.constant 0 : index
    %c0_34 = arith.constant 0 : index
    %17 = vector.load %arg19[%c0_33, %c0_34] : memref<1x128xf32, #tpu.memory_space<vmem>>, vector<1x128xf32>
    %c0_35 = arith.constant 0 : index
    %c0_36 = arith.constant 0 : index
    %18 = vector.load %arg20[%c0_35, %c0_36] : memref<1x128xf32, #tpu.memory_space<vmem>>, vector<1x128xf32>
    %c0_37 = arith.constant 0 : index
    %c0_38 = arith.constant 0 : index
    %19 = vector.load %arg21[%c0_37, %c0_38] : memref<1x128xf32, #tpu.memory_space<vmem>>, vector<1x128xf32>
    %c0_39 = arith.constant 0 : index
    %c0_40 = arith.constant 0 : index
    %20 = vector.load %arg22[%c0_39, %c0_40] : memref<24x24xf32, #tpu.memory_space<vmem>>, vector<24x24xf32>
    %c0_41 = arith.constant 0 : index
    %c0_42 = arith.constant 0 : index
    %21 = vector.load %arg1[%c0_41, %c0_42] : memref<2x128xf32, #tpu.memory_space<vmem>>, vector<2x128xf32>
    %22 = arith.truncf %21 : vector<2x128xf32> to vector<2x128xbf16>
    %cst = arith.constant dense<0.000000e+00> : vector<2x128xf32>
    %23 = tpu.matmul %22, %0, %cst {dimension_numbers = #tpu.dot_dimension_numbers<[1], [0], [0], [1], [0, 0, 1, 1], [], []>} : vector<2x128xbf16>, vector<128x128xbf16>, vector<2x128xf32> -> vector<2x128xf32>
    %24 = vector.broadcast %1 : vector<1x128xf32> to vector<2x128xf32>
    %25 = arith.addf %23, %24 : vector<2x128xf32>
    %cst_43 = arith.constant 0.000000e+00 : f32
    %26 = vector.broadcast %cst_43 : f32 to vector<2x128xf32>
    %27 = arith.maximumf %25, %26 : vector<2x128xf32>
    %28 = arith.truncf %27 : vector<2x128xf32> to vector<2x128xbf16>
    %cst_44 = arith.constant dense<0.000000e+00> : vector<2x384xf32>
    %29 = tpu.matmul %28, %2, %cst_44 {dimension_numbers = #tpu.dot_dimension_numbers<[1], [0], [0], [1], [0, 0, 1, 1], [], []>} : vector<2x128xbf16>, vector<128x384xbf16>, vector<2x384xf32> -> vector<2x384xf32>
    %30 = vector.broadcast %3 : vector<1x384xf32> to vector<2x384xf32>
    %31 = arith.addf %29, %30 : vector<2x384xf32>
    %cst_45 = arith.constant 0.000000e+00 : f32
    %32 = vector.broadcast %cst_45 : f32 to vector<2x384xf32>
    %33 = arith.maximumf %31, %32 : vector<2x384xf32>
    %34 = arith.truncf %33 : vector<2x384xf32> to vector<2x384xbf16>
    %cst_46 = arith.constant dense<0.000000e+00> : vector<2x1152xf32>
    %35 = tpu.matmul %34, %4, %cst_46 {dimension_numbers = #tpu.dot_dimension_numbers<[1], [0], [0], [1], [0, 0, 1, 1], [], []>} : vector<2x384xbf16>, vector<384x1152xbf16>, vector<2x1152xf32> -> vector<2x1152xf32>
    %36 = vector.broadcast %5 : vector<1x1152xf32> to vector<2x1152xf32>
    %37 = arith.addf %35, %36 : vector<2x1152xf32>
    %cst_47 = arith.constant 0.000000e+00 : f32
    %38 = vector.broadcast %cst_47 : f32 to vector<2x1152xf32>
    %39 = arith.maximumf %37, %38 : vector<2x1152xf32>
    %40 = vector.extract_strided_slice %39 {offsets = [0, 0], sizes = [2, 384], strides = [1, 1]} : vector<2x1152xf32> to vector<2x384xf32>
    %41 = vector.shape_cast %40 : vector<2x384xf32> to vector<2x16x24xf32>
    %42 = vector.extract_strided_slice %39 {offsets = [0, 384], sizes = [2, 384], strides = [1, 1]} : vector<2x1152xf32> to vector<2x384xf32>
    %43 = vector.shape_cast %42 : vector<2x384xf32> to vector<2x16x24xf32>
    %44 = vector.extract_strided_slice %39 {offsets = [0, 768], sizes = [2, 384], strides = [1, 1]} : vector<2x1152xf32> to vector<2x384xf32>
    %45 = vector.shape_cast %44 : vector<2x384xf32> to vector<2x16x24xf32>
    "tpu.trace_start"() <{level = 10 : i32, message = "bti,btj->bij"}> : () -> ()
    %cst_48 = arith.constant dense<0.000000e+00> : vector<2x24x24xf32>
    %46 = tpu.matmul %43, %41, %cst_48 {dimension_numbers = #tpu.dot_dimension_numbers<[1], [1], [2], [2], [0, 0, 0, 2, 1, 2], [0], [0]>} : vector<2x16x24xf32>, vector<2x16x24xf32>, vector<2x24x24xf32> -> vector<2x24x24xf32>
    "tpu.trace_stop"() : () -> ()
    %47 = vector.shape_cast %20 : vector<24x24xf32> to vector<1x24x24xf32>
    %48 = vector.broadcast %47 : vector<1x24x24xf32> to vector<2x24x24xf32>
    %49 = arith.mulf %46, %48 : vector<2x24x24xf32>
    %50 = vector.shape_cast %49 : vector<2x24x24xf32> to vector<48x24xf32>
    %cst_49 = arith.constant dense<0.000000e+00> : vector<48x8xf32>
    %51 = tpu.matmul %50, %6, %cst_49 {dimension_numbers = #tpu.dot_dimension_numbers<[1], [0], [0], [1], [0, 0, 1, 1], [], []>} : vector<48x24xf32>, vector<24x8xf32>, vector<48x8xf32> -> vector<48x8xf32>
    %52 = vector.shape_cast %51 : vector<48x8xf32> to vector<2x24x8xf32>
    "tpu.trace_start"() <{level = 10 : i32, message = "bti,bic->btc"}> : () -> ()
    %cst_50 = arith.constant dense<0.000000e+00> : vector<2x16x8xf32>
    %53 = tpu.matmul %45, %52, %cst_50 {dimension_numbers = #tpu.dot_dimension_numbers<[2], [1], [1], [2], [0, 0, 0, 1, 1, 2], [0], [0]>} : vector<2x16x24xf32>, vector<2x24x8xf32>, vector<2x16x8xf32> -> vector<2x16x8xf32>
    "tpu.trace_stop"() : () -> ()
    %54 = vector.shape_cast %53 : vector<2x16x8xf32> to vector<2x128xf32>
    %55 = vector.broadcast %7 : vector<1x128xf32> to vector<2x128xf32>
    %56 = arith.addf %54, %55 : vector<2x128xf32>
    %cst_51 = arith.constant 0.000000e+00 : f32
    %57 = vector.broadcast %cst_51 : f32 to vector<2x128xf32>
    %58 = arith.maximumf %56, %57 : vector<2x128xf32>
    %59 = arith.addf %21, %58 : vector<2x128xf32>
    %cst_52 = arith.constant dense<0.000000e+00> : vector<2xf32>
    %60 = vector.multi_reduction <add>, %59, %cst_52 [1] : vector<2x128xf32> to vector<2xf32>
    %61 = vector.shape_cast %60 : vector<2xf32> to vector<2x1xf32>
    %cst_53 = arith.constant 1.280000e+02 : f32
    %62 = vector.broadcast %cst_53 : f32 to vector<2x1xf32>
    %63 = arith.divf %61, %62 : vector<2x1xf32>
    %64 = vector.broadcast %63 : vector<2x1xf32> to vector<2x128xf32>
    %65 = arith.subf %59, %64 : vector<2x128xf32>
    %66 = arith.mulf %65, %65 : vector<2x128xf32>
    %cst_54 = arith.constant dense<0.000000e+00> : vector<2xf32>
    %67 = vector.multi_reduction <add>, %66, %cst_54 [1] : vector<2x128xf32> to vector<2xf32>
    %68 = vector.shape_cast %67 : vector<2xf32> to vector<2x1xf32>
    %cst_55 = arith.constant 1.280000e+02 : f32
    %69 = vector.broadcast %cst_55 : f32 to vector<2x1xf32>
    %70 = arith.divf %68, %69 : vector<2x1xf32>
    %cst_56 = arith.constant 9.99999974E-6 : f32
    %71 = vector.broadcast %cst_56 : f32 to vector<2x1xf32>
    %72 = arith.addf %70, %71 : vector<2x1xf32>
    %73 = math.rsqrt %72 : vector<2x1xf32>
    %74 = vector.broadcast %73 : vector<2x1xf32> to vector<2x128xf32>
    %75 = arith.mulf %65, %74 : vector<2x128xf32>
    %76 = vector.broadcast %8 : vector<1x128xf32> to vector<2x128xf32>
    %77 = arith.mulf %75, %76 : vector<2x128xf32>
    %78 = vector.broadcast %9 : vector<1x128xf32> to vector<2x128xf32>
    %79 = arith.addf %77, %78 : vector<2x128xf32>
    %80 = arith.truncf %79 : vector<2x128xf32> to vector<2x128xbf16>
    %cst_57 = arith.constant dense<0.000000e+00> : vector<2x512xf32>
    %81 = tpu.matmul %80, %10, %cst_57 {dimension_numbers = #tpu.dot_dimension_numbers<[1], [0], [0], [1], [0, 0, 1, 1], [], []>} : vector<2x128xbf16>, vector<128x512xbf16>, vector<2x512xf32> -> vector<2x512xf32>
    %82 = vector.broadcast %11 : vector<1x512xf32> to vector<2x512xf32>
    %83 = arith.addf %81, %82 : vector<2x512xf32>
    %cst_58 = arith.constant 0.000000e+00 : f32
    %84 = vector.broadcast %cst_58 : f32 to vector<2x512xf32>
    %85 = arith.maximumf %83, %84 : vector<2x512xf32>
    %86 = arith.truncf %85 : vector<2x512xf32> to vector<2x512xbf16>
    %cst_59 = arith.constant dense<0.000000e+00> : vector<2x384xf32>
    %87 = tpu.matmul %86, %12, %cst_59 {dimension_numbers = #tpu.dot_dimension_numbers<[1], [0], [0], [1], [0, 0, 1, 1], [], []>} : vector<2x512xbf16>, vector<512x384xbf16>, vector<2x384xf32> -> vector<2x384xf32>
    %88 = vector.broadcast %13 : vector<1x384xf32> to vector<2x384xf32>
    %89 = arith.addf %87, %88 : vector<2x384xf32>
    %cst_60 = arith.constant 0.000000e+00 : f32
    %90 = vector.broadcast %cst_60 : f32 to vector<2x384xf32>
    %91 = arith.maximumf %89, %90 : vector<2x384xf32>
    %92 = arith.truncf %91 : vector<2x384xf32> to vector<2x384xbf16>
    %cst_61 = arith.constant dense<0.000000e+00> : vector<2x1152xf32>
    %93 = tpu.matmul %92, %14, %cst_61 {dimension_numbers = #tpu.dot_dimension_numbers<[1], [0], [0], [1], [0, 0, 1, 1], [], []>} : vector<2x384xbf16>, vector<384x1152xbf16>, vector<2x1152xf32> -> vector<2x1152xf32>
    %94 = vector.broadcast %15 : vector<1x1152xf32> to vector<2x1152xf32>
    %95 = arith.addf %93, %94 : vector<2x1152xf32>
    %cst_62 = arith.constant 0.000000e+00 : f32
    %96 = vector.broadcast %cst_62 : f32 to vector<2x1152xf32>
    %97 = arith.maximumf %95, %96 : vector<2x1152xf32>
    %98 = vector.extract_strided_slice %97 {offsets = [0, 0], sizes = [2, 384], strides = [1, 1]} : vector<2x1152xf32> to vector<2x384xf32>
    %99 = vector.shape_cast %98 : vector<2x384xf32> to vector<2x16x24xf32>
    %100 = vector.extract_strided_slice %97 {offsets = [0, 384], sizes = [2, 384], strides = [1, 1]} : vector<2x1152xf32> to vector<2x384xf32>
    %101 = vector.shape_cast %100 : vector<2x384xf32> to vector<2x16x24xf32>
    %102 = vector.extract_strided_slice %97 {offsets = [0, 768], sizes = [2, 384], strides = [1, 1]} : vector<2x1152xf32> to vector<2x384xf32>
    %103 = vector.shape_cast %102 : vector<2x384xf32> to vector<2x16x24xf32>
    "tpu.trace_start"() <{level = 10 : i32, message = "bti,btj->bij"}> : () -> ()
    %cst_63 = arith.constant dense<0.000000e+00> : vector<2x24x24xf32>
    %104 = tpu.matmul %101, %99, %cst_63 {dimension_numbers = #tpu.dot_dimension_numbers<[1], [1], [2], [2], [0, 0, 0, 2, 1, 2], [0], [0]>} : vector<2x16x24xf32>, vector<2x16x24xf32>, vector<2x24x24xf32> -> vector<2x24x24xf32>
    "tpu.trace_stop"() : () -> ()
    %105 = vector.shape_cast %20 : vector<24x24xf32> to vector<1x24x24xf32>
    %106 = vector.broadcast %105 : vector<1x24x24xf32> to vector<2x24x24xf32>
    %107 = arith.mulf %104, %106 : vector<2x24x24xf32>
    %108 = vector.shape_cast %107 : vector<2x24x24xf32> to vector<48x24xf32>
    %cst_64 = arith.constant dense<0.000000e+00> : vector<48x8xf32>
    %109 = tpu.matmul %108, %16, %cst_64 {dimension_numbers = #tpu.dot_dimension_numbers<[1], [0], [0], [1], [0, 0, 1, 1], [], []>} : vector<48x24xf32>, vector<24x8xf32>, vector<48x8xf32> -> vector<48x8xf32>
    %110 = vector.shape_cast %109 : vector<48x8xf32> to vector<2x24x8xf32>
    "tpu.trace_start"() <{level = 10 : i32, message = "bti,bic->btc"}> : () -> ()
    %cst_65 = arith.constant dense<0.000000e+00> : vector<2x16x8xf32>
    %111 = tpu.matmul %103, %110, %cst_65 {dimension_numbers = #tpu.dot_dimension_numbers<[2], [1], [1], [2], [0, 0, 0, 1, 1, 2], [0], [0]>} : vector<2x16x24xf32>, vector<2x24x8xf32>, vector<2x16x8xf32> -> vector<2x16x8xf32>
    "tpu.trace_stop"() : () -> ()
    %112 = vector.shape_cast %111 : vector<2x16x8xf32> to vector<2x128xf32>
    %113 = vector.broadcast %17 : vector<1x128xf32> to vector<2x128xf32>
    %114 = arith.addf %112, %113 : vector<2x128xf32>
    %cst_66 = arith.constant 0.000000e+00 : f32
    %115 = vector.broadcast %cst_66 : f32 to vector<2x128xf32>
    %116 = arith.maximumf %114, %115 : vector<2x128xf32>
    %117 = arith.addf %79, %116 : vector<2x128xf32>
    %cst_67 = arith.constant dense<0.000000e+00> : vector<2xf32>
    %118 = vector.multi_reduction <add>, %117, %cst_67 [1] : vector<2x128xf32> to vector<2xf32>
    %119 = vector.shape_cast %118 : vector<2xf32> to vector<2x1xf32>
    %cst_68 = arith.constant 1.280000e+02 : f32
    %120 = vector.broadcast %cst_68 : f32 to vector<2x1xf32>
    %121 = arith.divf %119, %120 : vector<2x1xf32>
    %122 = vector.broadcast %121 : vector<2x1xf32> to vector<2x128xf32>
    %123 = arith.subf %117, %122 : vector<2x128xf32>
    %124 = arith.mulf %123, %123 : vector<2x128xf32>
    %cst_69 = arith.constant dense<0.000000e+00> : vector<2xf32>
    %125 = vector.multi_reduction <add>, %124, %cst_69 [1] : vector<2x128xf32> to vector<2xf32>
    %126 = vector.shape_cast %125 : vector<2xf32> to vector<2x1xf32>
    %cst_70 = arith.constant 1.280000e+02 : f32
    %127 = vector.broadcast %cst_70 : f32 to vector<2x1xf32>
    %128 = arith.divf %126, %127 : vector<2x1xf32>
    %cst_71 = arith.constant 9.99999974E-6 : f32
    %129 = vector.broadcast %cst_71 : f32 to vector<2x1xf32>
    %130 = arith.addf %128, %129 : vector<2x1xf32>
    %131 = math.rsqrt %130 : vector<2x1xf32>
    %132 = vector.broadcast %131 : vector<2x1xf32> to vector<2x128xf32>
    %133 = arith.mulf %123, %132 : vector<2x128xf32>
    %134 = vector.broadcast %18 : vector<1x128xf32> to vector<2x128xf32>
    %135 = arith.mulf %133, %134 : vector<2x128xf32>
    %136 = vector.broadcast %19 : vector<1x128xf32> to vector<2x128xf32>
    %137 = arith.addf %135, %136 : vector<2x128xf32>
    %c0_72 = arith.constant 0 : index
    %c0_73 = arith.constant 0 : index
    %138 = vector.load %arg23[%c0_72, %c0_73] : memref<2x128xf32, #tpu.memory_space<vmem>>, vector<2x128xf32>
    tpu.vector_store %arg23[%c0_72, %c0_73], %137 {strides = array<i32>} : memref<2x128xf32, #tpu.memory_space<vmem>>, vector<2x128xf32>,
    return
  }
  func.func @transform_0(%arg0: i32) -> (i32, i32) {
    %c0_i32 = arith.constant 0 : i32
    %c0_i32_0 = arith.constant 0 : i32
    return %arg0, %c0_i32 : i32, i32
  }
  func.func @transform_1(%arg0: i32) -> (i32, i32) {
    %c0_i32 = arith.constant 0 : i32
    %c0_i32_0 = arith.constant 0 : i32
    %c0_i32_1 = arith.constant 0 : i32
    return %c0_i32, %c0_i32_0 : i32, i32
  }
  func.func @transform_2(%arg0: i32) -> (i32, i32) {
    %c0_i32 = arith.constant 0 : i32
    %c0_i32_0 = arith.constant 0 : i32
    %c0_i32_1 = arith.constant 0 : i32
    return %c0_i32, %c0_i32_0 : i32, i32
  }
  func.func @transform_3(%arg0: i32) -> (i32, i32) {
    %c0_i32 = arith.constant 0 : i32
    %c0_i32_0 = arith.constant 0 : i32
    %c0_i32_1 = arith.constant 0 : i32
    return %c0_i32, %c0_i32_0 : i32, i32
  }
  func.func @transform_4(%arg0: i32) -> (i32, i32) {
    %c0_i32 = arith.constant 0 : i32
    %c0_i32_0 = arith.constant 0 : i32
    %c0_i32_1 = arith.constant 0 : i32
    return %c0_i32, %c0_i32_0 : i32, i32
  }
  func.func @transform_5(%arg0: i32) -> (i32, i32) {
    %c0_i32 = arith.constant 0 : i32
    %c0_i32_0 = arith.constant 0 : i32
    %c0_i32_1 = arith.constant 0 : i32
    return %c0_i32, %c0_i32_0 : i32, i32
  }
  func.func @transform_6(%arg0: i32) -> (i32, i32) {
    %c0_i32 = arith.constant 0 : i32
    %c0_i32_0 = arith.constant 0 : i32
    %c0_i32_1 = arith.constant 0 : i32
    return %c0_i32, %c0_i32_0 : i32, i32
  }
  func.func @transform_7(%arg0: i32) -> (i32, i32) {
    %c0_i32 = arith.constant 0 : i32
    %c0_i32_0 = arith.constant 0 : i32
    %c0_i32_1 = arith.constant 0 : i32
    return %c0_i32, %c0_i32_0 : i32, i32
  }
  func.func @transform_8(%arg0: i32) -> (i32, i32) {
    %c0_i32 = arith.constant 0 : i32
    %c0_i32_0 = arith.constant 0 : i32
    %c0_i32_1 = arith.constant 0 : i32
    return %c0_i32, %c0_i32_0 : i32, i32
  }
  func.func @transform_9(%arg0: i32) -> (i32, i32) {
    %c0_i32 = arith.constant 0 : i32
    %c0_i32_0 = arith.constant 0 : i32
    %c0_i32_1 = arith.constant 0 : i32
    return %c0_i32, %c0_i32_0 : i32, i32
  }
  func.func @transform_10(%arg0: i32) -> (i32, i32) {
    %c0_i32 = arith.constant 0 : i32
    %c0_i32_0 = arith.constant 0 : i32
    %c0_i32_1 = arith.constant 0 : i32
    return %c0_i32, %c0_i32_0 : i32, i32
  }
  func.func @transform_11(%arg0: i32) -> (i32, i32) {
    %c0_i32 = arith.constant 0 : i32
    %c0_i32_0 = arith.constant 0 : i32
    %c0_i32_1 = arith.constant 0 : i32
    return %c0_i32, %c0_i32_0 : i32, i32
  }
  func.func @transform_12(%arg0: i32) -> (i32, i32) {
    %c0_i32 = arith.constant 0 : i32
    %c0_i32_0 = arith.constant 0 : i32
    %c0_i32_1 = arith.constant 0 : i32
    return %c0_i32, %c0_i32_0 : i32, i32
  }
  func.func @transform_13(%arg0: i32) -> (i32, i32) {
    %c0_i32 = arith.constant 0 : i32
    %c0_i32_0 = arith.constant 0 : i32
    %c0_i32_1 = arith.constant 0 : i32
    return %c0_i32, %c0_i32_0 : i32, i32
  }
  func.func @transform_14(%arg0: i32) -> (i32, i32) {
    %c0_i32 = arith.constant 0 : i32
    %c0_i32_0 = arith.constant 0 : i32
    %c0_i32_1 = arith.constant 0 : i32
    return %c0_i32, %c0_i32_0 : i32, i32
  }
  func.func @transform_15(%arg0: i32) -> (i32, i32) {
    %c0_i32 = arith.constant 0 : i32
    %c0_i32_0 = arith.constant 0 : i32
    %c0_i32_1 = arith.constant 0 : i32
    return %c0_i32, %c0_i32_0 : i32, i32
  }
  func.func @transform_16(%arg0: i32) -> (i32, i32) {
    %c0_i32 = arith.constant 0 : i32
    %c0_i32_0 = arith.constant 0 : i32
    %c0_i32_1 = arith.constant 0 : i32
    return %c0_i32, %c0_i32_0 : i32, i32
  }
  func.func @transform_17(%arg0: i32) -> (i32, i32) {
    %c0_i32 = arith.constant 0 : i32
    %c0_i32_0 = arith.constant 0 : i32
    %c0_i32_1 = arith.constant 0 : i32
    return %c0_i32, %c0_i32_0 : i32, i32
  }
  func.func @transform_18(%arg0: i32) -> (i32, i32) {
    %c0_i32 = arith.constant 0 : i32
    %c0_i32_0 = arith.constant 0 : i32
    %c0_i32_1 = arith.constant 0 : i32
    return %c0_i32, %c0_i32_0 : i32, i32
  }
  func.func @transform_19(%arg0: i32) -> (i32, i32) {
    %c0_i32 = arith.constant 0 : i32
    %c0_i32_0 = arith.constant 0 : i32
    %c0_i32_1 = arith.constant 0 : i32
    return %c0_i32, %c0_i32_0 : i32, i32
  }
  func.func @transform_20(%arg0: i32) -> (i32, i32) {
    %c0_i32 = arith.constant 0 : i32
    %c0_i32_0 = arith.constant 0 : i32
    %c0_i32_1 = arith.constant 0 : i32
    return %c0_i32, %c0_i32_0 : i32, i32
  }
  func.func @transform_21(%arg0: i32) -> (i32, i32) {
    %c0_i32 = arith.constant 0 : i32
    %c0_i32_0 = arith.constant 0 : i32
    %c0_i32_1 = arith.constant 0 : i32
    return %c0_i32, %c0_i32_0 : i32, i32
  }
  func.func @transform_22(%arg0: i32) -> (i32, i32) {
    %c0_i32 = arith.constant 0 : i32
    %c0_i32_0 = arith.constant 0 : i32
    return %arg0, %c0_i32 : i32, i32
  }
}

</mosaic_0001>

<llo_original>
// kernel: tpu_custom_call.1
$region0: #{tpu_custom_call.1}
  #allocation0 [shape = 'u32[]', space=smem, size = 0x4, offset = 0x4, fixed_abs, tag = 'smem constant byte address 0x4 - core index']
  #allocation1 [shape = 'u32[144,128]{1,0:T(1,128)}', space=vmem, size = 0x12000, scoped, tag = 'internal scratch']
  %s0 = inlined_call_operand.hbm [shape: f32[2,128], index: 0, kind: input, shape index: {}]
  %s1 = inlined_call_operand.vmem [shape: bf16[128,128], index: 1, kind: input, shape index: {}]
  %s2 = inlined_call_operand.hbm [shape: f32[1,128], index: 2, kind: input, shape index: {}]
  %s3 = inlined_call_operand.hbm [shape: bf16[128,384], index: 3, kind: input, shape index: {}]
  %s4 = inlined_call_operand.hbm [shape: f32[1,384], index: 4, kind: input, shape index: {}]
  %s5 = inlined_call_operand.hbm [shape: bf16[384,1152], index: 5, kind: input, shape index: {}]
  %s6 = inlined_call_operand.hbm [shape: f32[1,1152], index: 6, kind: input, shape index: {}]
  %s7 = inlined_call_operand.vmem [shape: f32[24,8], index: 7, kind: input, shape index: {}]
  %s8 = inlined_call_operand.hbm [shape: f32[1,128], index: 8, kind: input, shape index: {}]
  %s9 = inlined_call_operand.hbm [shape: f32[1,128], index: 9, kind: input, shape index: {}]
  %s10 = inlined_call_operand.hbm [shape: f32[1,128], index: 10, kind: input, shape index: {}]
  %s11 = inlined_call_operand.hbm [shape: bf16[128,512], index: 11, kind: input, shape index: {}]
  %s12 = inlined_call_operand.vmem [shape: f32[1,512], index: 12, kind: input, shape index: {}]
  %s13 = inlined_call_operand.hbm [shape: bf16[512,384], index: 13, kind: input, shape index: {}]
  %s14 = inlined_call_operand.vmem [shape: f32[1,384], index: 14, kind: input, shape index: {}]
  %s15 = inlined_call_operand.hbm [shape: bf16[384,1152], index: 15, kind: input, shape index: {}]
  %s16 = inlined_call_operand.vmem [shape: f32[1,1152], index: 16, kind: input, shape index: {}]
  %s17 = inlined_call_operand.vmem [shape: f32[24,8], index: 17, kind: input, shape index: {}]
  %s18 = inlined_call_operand.vmem [shape: f32[1,128], index: 18, kind: input, shape index: {}]
  %s19 = inlined_call_operand.vmem [shape: f32[1,128], index: 19, kind: input, shape index: {}]
  %s20 = inlined_call_operand.vmem [shape: f32[1,128], index: 20, kind: input, shape index: {}]
  %s21 = inlined_call_operand.vmem [shape: f32[24,24], index: 21, kind: input, shape index: {}]
  %s22 = inlined_call_operand.hbm [shape: f32[2,128], index: 22, kind: output, shape index: {}]
  %s23 = sld [smem:[#allocation0]]
  $region146: #{tpu_custom_call.1} parent=0
    _
  %s25 = ssub.s32 1, %s23
  %s26 = scalar_select 0, %s25, %s23
  $region1: #{tpu_custom_call.1} parent=0
    #allocation2 [shape = 'u8[1024]{0}', space=vmem, size = 0x400, scoped, tag = 'input window, operand 0, single buffered']
    #allocation3 [shape = 's32[1]{0}', space=sflag, size = 0x4, scoped, tag = 'scoped memory for tpu_custom_call.1']
    #allocation4 [shape = 's32[1]{0}', space=sflag, size = 0x4, scoped, tag = 'scoped memory for tpu_custom_call.1']
    #allocation5 [shape = 'u8[512]{0}', space=vmem, size = 0x400, scoped, tag = 'input window, operand 2, single buffered']
    #allocation6 [shape = 's32[1]{0}', space=sflag, size = 0x4, scoped, tag = 'scoped memory for tpu_custom_call.1']
    #allocation7 [shape = 'u8[98304]{0}', space=vmem, size = 0x18000, scoped, tag = 'input window, operand 3, single buffered']
    #allocation8 [shape = 'u8[1536]{0}', space=vmem, size = 0x800, scoped, tag = 'input window, operand 4, single buffered']
    #allocation9 [shape = 's32[1]{0}', space=sflag, size = 0x4, scoped, tag = 'scoped memory for tpu_custom_call.1']
    #allocation10 [shape = 'u8[884736]{0}', space=vmem, size = 0xd8000, scoped, tag = 'input window, operand 5, single buffered']
    #allocation11 [shape = 'u8[4608]{0}', space=vmem, size = 0x1400, scoped, tag = 'input window, operand 6, single buffered']
    #allocation12 [shape = 's32[1]{0}', space=sflag, size = 0x4, scoped, tag = 'scoped memory for tpu_custom_call.1']
    #allocation13 [shape = 'u8[512]{0}', space=vmem, size = 0x400, scoped, tag = 'input window, operand 8, single buffered']
    #allocation14 [shape = 'u8[512]{0}', space=vmem, size = 0x400, scoped, tag = 'input window, operand 9, single buffered']
    #allocation15 [shape = 's32[1]{0}', space=sflag, size = 0x4, scoped, tag = 'scoped memory for tpu_custom_call.1']
    #allocation16 [shape = 'u8[512]{0}', space=vmem, size = 0x400, scoped, tag = 'input window, operand 10, single buffered']
    #allocation17 [shape = 'u8[131072]{0}', space=vmem, size = 0x20000, scoped, tag = 'input window, operand 11, single buffered']
    #allocation18 [shape = 's32[1]{0}', space=sflag, size = 0x4, scoped, tag = 'scoped memory for tpu_custom_call.1']
    #allocation19 [shape = 'u8[393216]{0}', space=vmem, size = 0x60000, scoped, tag = 'input window, operand 13, single buffered']
    #allocation20 [shape = 'u8[884736]{0}', space=vmem, size = 0xd8000, scoped, tag = 'input window, operand 15, single buffered']
    #allocation21 [shape = 's32[1]{0}', space=sflag, size = 0x4, scoped, tag = 'scoped memory for tpu_custom_call.1']
    #allocation22 [shape = 'u8[1024]{0}', space=vmem, size = 0x400, scoped, tag = 'output window, operand 0, single buffered']
    %27 = vsyncpa [#allocation3], 0
    %28 = vsyncpa [#allocation6], 0
    %29 = vsyncpa [#allocation9], 0
    %30 = vsyncpa [#allocation12], 0
    %31 = vsyncpa [#allocation15], 0
    %32 = vsyncpa [#allocation18], 0
    %33 = vsyncpa [#allocation21], 0
    %34 = vsyncpa [#allocation4], 0
    // Predicated region
    $region2: #{tpu_custom_call.1} parent=1 // pred_check
      _
    $region3: #{tpu_custom_call.1} parent=1 // pred_check_branch
      %36 = sbr.rel (0) target = $region5
    $region4: #{tpu_custom_call.1} parent=1 // pred_region
      %s38 = ssub.s32 32, 32
      %39 = vsyncadd [#allocation3], %s38
      %s41 = sshll.u32 [#allocation2], 4
      %s42 = int_to_ptr.vmem [resolvable:$true] %s41
      %44 = dma.hbm_to_vmem [thread:$0]  %s0, 32, %s42, [#allocation3]
    $region5: #{tpu_custom_call.1} parent=1 // pred_fallthru
      _
    // Predicated region
    $region6: #{tpu_custom_call.1} parent=1 // pred_check
      _
    $region7: #{tpu_custom_call.1} parent=1 // pred_check_branch
      %46 = sbr.rel (0) target = $region9
    $region8: #{tpu_custom_call.1} parent=1 // pred_region
      _
    $region9: #{tpu_custom_call.1} parent=1 // pred_fallthru
      _
    // Predicated region
    $region10: #{tpu_custom_call.1} parent=1 // pred_check
      _
    $region11: #{tpu_custom_call.1} parent=1 // pred_check_branch
      %48 = sbr.rel (0) target = $region13
    $region12: #{tpu_custom_call.1} parent=1 // pred_region
      %s50 = ssub.s32 16, 16
      %51 = vsyncadd [#allocation6], %s50
      %s53 = sshll.u32 [#allocation5], 4
      %s54 = int_to_ptr.vmem [resolvable:$true] %s53
      %56 = dma.hbm_to_vmem [thread:$0]  %s2, 16, %s54, [#allocation6]
    $region13: #{tpu_custom_call.1} parent=1 // pred_fallthru
      _
    // Predicated region
    $region14: #{tpu_custom_call.1} parent=1 // pred_check
      _
    $region15: #{tpu_custom_call.1} parent=1 // pred_check_branch
      %58 = sbr.rel (0) target = $region17
    $region16: #{tpu_custom_call.1} parent=1 // pred_region
      %s60 = ssub.s32 3072, 3072
      %61 = vsyncadd [#allocation6], %s60
      %s62 = sshll.u32 [#allocation7], 4
      %s63 = int_to_ptr.vmem [resolvable:$true] %s62
      %68 = dma.hbm_to_vmem [thread:$0]  %s3, 3072, %s63, [#allocation6], 192, 192, 12
    $region17: #{tpu_custom_call.1} parent=1 // pred_fallthru
      _
    // Predicated region
    $region18: #{tpu_custom_call.1} parent=1 // pred_check
      _
    $region19: #{tpu_custom_call.1} parent=1 // pred_check_branch
      %70 = sbr.rel (0) target = $region21
    $region20: #{tpu_custom_call.1} parent=1 // pred_region
      %s72 = ssub.s32 48, 48
      %73 = vsyncadd [#allocation9], %s72
      %s75 = sshll.u32 [#allocation8], 4
      %s76 = int_to_ptr.vmem [resolvable:$true] %s75
      %78 = dma.hbm_to_vmem [thread:$0]  %s4, 48, %s76, [#allocation9]
    $region21: #{tpu_custom_call.1} parent=1 // pred_fallthru
      _
    // Predicated region
    $region22: #{tpu_custom_call.1} parent=1 // pred_check
      _
    $region23: #{tpu_custom_call.1} parent=1 // pred_check_branch
      %80 = sbr.rel (0) target = $region25
    $region24: #{tpu_custom_call.1} parent=1 // pred_region
      %s82 = ssub.s32 27648, 27648
      %83 = vsyncadd [#allocation9], %s82
      %s84 = sshll.u32 [#allocation10], 4
      %s85 = int_to_ptr.vmem [resolvable:$true] %s84
      %90 = dma.hbm_to_vmem [thread:$0]  %s5, 27648, %s85, [#allocation9], 576, 576, 36
    $region25: #{tpu_custom_call.1} parent=1 // pred_fallthru
      _
    // Predicated region
    $region26: #{tpu_custom_call.1} parent=1 // pred_check
      _
    $region27: #{tpu_custom_call.1} parent=1 // pred_check_branch
      %92 = sbr.rel (0) target = $region29
    $region28: #{tpu_custom_call.1} parent=1 // pred_region
      %s94 = ssub.s32 144, 144
      %95 = vsyncadd [#allocation12], %s94
      %s97 = sshll.u32 [#allocation11], 4
      %s98 = int_to_ptr.vmem [resolvable:$true] %s97
      %100 = dma.hbm_to_vmem [thread:$0]  %s6, 144, %s98, [#allocation12]
    $region29: #{tpu_custom_call.1} parent=1 // pred_fallthru
      _
    // Predicated region
    $region30: #{tpu_custom_call.1} parent=1 // pred_check
      _
    $region31: #{tpu_custom_call.1} parent=1 // pred_check_branch
      %102 = sbr.rel (0) target = $region33
    $region32: #{tpu_custom_call.1} parent=1 // pred_region
      _
    $region33: #{tpu_custom_call.1} parent=1 // pred_fallthru
      _
    // Predicated region
    $region34: #{tpu_custom_call.1} parent=1 // pred_check
      _
    $region35: #{tpu_custom_call.1} parent=1 // pred_check_branch
      %104 = sbr.rel (0) target = $region37
    $region36: #{tpu_custom_call.1} parent=1 // pred_region
      %s106 = ssub.s32 16, 16
      %107 = vsyncadd [#allocation12], %s106
      %s109 = sshll.u32 [#allocation13], 4
      %s110 = int_to_ptr.vmem [resolvable:$true] %s109
      %112 = dma.hbm_to_vmem [thread:$0]  %s8, 16, %s110, [#allocation12]
    $region37: #{tpu_custom_call.1} parent=1 // pred_fallthru
      _
    // Predicated region
    $region38: #{tpu_custom_call.1} parent=1 // pred_check
      _
    $region39: #{tpu_custom_call.1} parent=1 // pred_check_branch
      %114 = sbr.rel (0) target = $region41
    $region40: #{tpu_custom_call.1} parent=1 // pred_region
      %s116 = ssub.s32 16, 16
      %117 = vsyncadd [#allocation15], %s116
      %s119 = sshll.u32 [#allocation14], 4
      %s120 = int_to_ptr.vmem [resolvable:$true] %s119
      %122 = dma.hbm_to_vmem [thread:$0]  %s9, 16, %s120, [#allocation15]
    $region41: #{tpu_custom_call.1} parent=1 // pred_fallthru
      _
    // Predicated region
    $region42: #{tpu_custom_call.1} parent=1 // pred_check
      _
    $region43: #{tpu_custom_call.1} parent=1 // pred_check_branch
      %124 = sbr.rel (0) target = $region45
    $region44: #{tpu_custom_call.1} parent=1 // pred_region
      %s126 = ssub.s32 16, 16
      %127 = vsyncadd [#allocation15], %s126
      %s129 = sshll.u32 [#allocation16], 4
      %s130 = int_to_ptr.vmem [resolvable:$true] %s129
      %132 = dma.hbm_to_vmem [thread:$0]  %s10, 16, %s130, [#allocation15]
    $region45: #{tpu_custom_call.1} parent=1 // pred_fallthru
      _
    // Predicated region
    $region46: #{tpu_custom_call.1} parent=1 // pred_check
      _
    $region47: #{tpu_custom_call.1} parent=1 // pred_check_branch
      %134 = sbr.rel (0) target = $region49
    $region48: #{tpu_custom_call.1} parent=1 // pred_region
      %s136 = ssub.s32 4096, 4096
      %137 = vsyncadd [#allocation18], %s136
      %s138 = sshll.u32 [#allocation17], 4
      %s139 = int_to_ptr.vmem [resolvable:$true] %s138
      %144 = dma.hbm_to_vmem [thread:$0]  %s11, 4096, %s139, [#allocation18], 256, 256, 16
    $region49: #{tpu_custom_call.1} parent=1 // pred_fallthru
      _
    // Predicated region
    $region50: #{tpu_custom_call.1} parent=1 // pred_check
      _
    $region51: #{tpu_custom_call.1} parent=1 // pred_check_branch
      %146 = sbr.rel (0) target = $region53
    $region52: #{tpu_custom_call.1} parent=1 // pred_region
      _
    $region53: #{tpu_custom_call.1} parent=1 // pred_fallthru
      _
    // Predicated region
    $region54: #{tpu_custom_call.1} parent=1 // pred_check
      _
    $region55: #{tpu_custom_call.1} parent=1 // pred_check_branch
      %148 = sbr.rel (0) target = $region57
    $region56: #{tpu_custom_call.1} parent=1 // pred_region
      %s150 = ssub.s32 12288, 12288
      %151 = vsyncadd [#allocation18], %s150
      %s152 = sshll.u32 [#allocation19], 4
      %s153 = int_to_ptr.vmem [resolvable:$true] %s152
      %158 = dma.hbm_to_vmem [thread:$0]  %s13, 12288, %s153, [#allocation18], 192, 192, 12
    $region57: #{tpu_custom_call.1} parent=1 // pred_fallthru
      _
    // Predicated region
    $region58: #{tpu_custom_call.1} parent=1 // pred_check
      _
    $region59: #{tpu_custom_call.1} parent=1 // pred_check_branch
      %160 = sbr.rel (0) target = $region61
    $region60: #{tpu_custom_call.1} parent=1 // pred_region
      _
    $region61: #{tpu_custom_call.1} parent=1 // pred_fallthru
      _
    // Predicated region
    $region62: #{tpu_custom_call.1} parent=1 // pred_check
      _
    $region63: #{tpu_custom_call.1} parent=1 // pred_check_branch
      %162 = sbr.rel (0) target = $region65
    $region64: #{tpu_custom_call.1} parent=1 // pred_region
      %s164 = ssub.s32 27648, 27648
      %165 = vsyncadd [#allocation21], %s164
      %s166 = sshll.u32 [#allocation20], 4
      %s167 = int_to_ptr.vmem [resolvable:$true] %s166
      %172 = dma.hbm_to_vmem [thread:$0]  %s15, 27648, %s167, [#allocation21], 576, 576, 36
    $region65: #{tpu_custom_call.1} parent=1 // pred_fallthru
      _
    // Predicated region
    $region66: #{tpu_custom_call.1} parent=1 // pred_check
      _
    $region67: #{tpu_custom_call.1} parent=1 // pred_check_branch
      %174 = sbr.rel (0) target = $region69
    $region68: #{tpu_custom_call.1} parent=1 // pred_region
      _
    $region69: #{tpu_custom_call.1} parent=1 // pred_fallthru
      _
    // Predicated region
    $region70: #{tpu_custom_call.1} parent=1 // pred_check
      _
    $region71: #{tpu_custom_call.1} parent=1 // pred_check_branch
      %176 = sbr.rel (0) target = $region73
    $region72: #{tpu_custom_call.1} parent=1 // pred_region
      _
    $region73: #{tpu_custom_call.1} parent=1 // pred_fallthru
      _
    // Predicated region
    $region74: #{tpu_custom_call.1} parent=1 // pred_check
      _
    $region75: #{tpu_custom_call.1} parent=1 // pred_check_branch
      %178 = sbr.rel (0) target = $region77
    $region76: #{tpu_custom_call.1} parent=1 // pred_region
      _
    $region77: #{tpu_custom_call.1} parent=1 // pred_fallthru
      _
    // Predicated region
    $region78: #{tpu_custom_call.1} parent=1 // pred_check
      _
    $region79: #{tpu_custom_call.1} parent=1 // pred_check_branch
      %180 = sbr.rel (0) target = $region81
    $region80: #{tpu_custom_call.1} parent=1 // pred_region
      _
    $region81: #{tpu_custom_call.1} parent=1 // pred_fallthru
      _
    // Predicated region
    $region82: #{tpu_custom_call.1} parent=1 // pred_check
      _
    $region83: #{tpu_custom_call.1} parent=1 // pred_check_branch
      %182 = sbr.rel (0) target = $region85
    $region84: #{tpu_custom_call.1} parent=1 // pred_region
      _
    $region85: #{tpu_custom_call.1} parent=1 // pred_fallthru
      _
    // Predicated region
    $region86: #{tpu_custom_call.1} parent=1 // pred_check
      _
    $region87: #{tpu_custom_call.1} parent=1 // pred_check_branch
      %184 = sbr.rel (0) target = $region89
    $region88: #{tpu_custom_call.1} parent=1 // pred_region
      _
    $region89: #{tpu_custom_call.1} parent=1 // pred_fallthru
      _
    // Predicated region
    $region90: #{tpu_custom_call.1} parent=1 // pred_check
      _
    $region91: #{tpu_custom_call.1} parent=1 // pred_check_branch
      %186 = sbr.rel (0) target = $region93
    $region92: #{tpu_custom_call.1} parent=1 // pred_region
      %187 = dma.done [#allocation3], 32
    $region93: #{tpu_custom_call.1} parent=1 // pred_fallthru
      _
    // Predicated region
    $region94: #{tpu_custom_call.1} parent=1 // pred_check
      _
    $region95: #{tpu_custom_call.1} parent=1 // pred_check_branch
      %189 = sbr.rel (0) target = $region97
    $region96: #{tpu_custom_call.1} parent=1 // pred_region
      %190 = dma.done [#allocation6], 16
    $region97: #{tpu_custom_call.1} parent=1 // pred_fallthru
      _
    // Predicated region
    $region98: #{tpu_custom_call.1} parent=1 // pred_check
      _
    $region99: #{tpu_custom_call.1} parent=1 // pred_check_branch
      %192 = sbr.rel (0) target = $region101
    $region100: #{tpu_custom_call.1} parent=1 // pred_region
      %193 = dma.done [#allocation6], 3072
    $region101: #{tpu_custom_call.1} parent=1 // pred_fallthru
      _
    // Predicated region
    $region102: #{tpu_custom_call.1} parent=1 // pred_check
      _
    $region103: #{tpu_custom_call.1} parent=1 // pred_check_branch
      %195 = sbr.rel (0) target = $region105
    $region104: #{tpu_custom_call.1} parent=1 // pred_region
      %196 = dma.done [#allocation9], 48
    $region105: #{tpu_custom_call.1} parent=1 // pred_fallthru
      _
    // Predicated region
    $region106: #{tpu_custom_call.1} parent=1 // pred_check
      _
    $region107: #{tpu_custom_call.1} parent=1 // pred_check_branch
      %198 = sbr.rel (0) target = $region109
    $region108: #{tpu_custom_call.1} parent=1 // pred_region
      %199 = dma.done [#allocation9], 27648
    $region109: #{tpu_custom_call.1} parent=1 // pred_fallthru
      _
    // Predicated region
    $region110: #{tpu_custom_call.1} parent=1 // pred_check
      _
    $region111: #{tpu_custom_call.1} parent=1 // pred_check_branch
      %201 = sbr.rel (0) target = $region113
    $region112: #{tpu_custom_call.1} parent=1 // pred_region
      %202 = dma.done [#allocation12], 144
    $region113: #{tpu_custom_call.1} parent=1 // pred_fallthru
      _
    // Predicated region
    $region114: #{tpu_custom_call.1} parent=1 // pred_check
      _
    $region115: #{tpu_custom_call.1} parent=1 // pred_check_branch
      %204 = sbr.rel (0) target = $region117
    $region116: #{tpu_custom_call.1} parent=1 // pred_region
      %205 = dma.done [#allocation12], 16
    $region117: #{tpu_custom_call.1} parent=1 // pred_fallthru
      _
    // Predicated region
    $region118: #{tpu_custom_call.1} parent=1 // pred_check
      _
    $region119: #{tpu_custom_call.1} parent=1 // pred_check_branch
      %207 = sbr.rel (0) target = $region121
    $region120: #{tpu_custom_call.1} parent=1 // pred_region
      %208 = dma.done [#allocation15], 16
    $region121: #{tpu_custom_call.1} parent=1 // pred_fallthru
      _
    // Predicated region
    $region122: #{tpu_custom_call.1} parent=1 // pred_check
      _
    $region123: #{tpu_custom_call.1} parent=1 // pred_check_branch
      %210 = sbr.rel (0) target = $region125
    $region124: #{tpu_custom_call.1} parent=1 // pred_region
      %211 = dma.done [#allocation15], 16
    $region125: #{tpu_custom_call.1} parent=1 // pred_fallthru
      _
    // Predicated region
    $region126: #{tpu_custom_call.1} parent=1 // pred_check
      _
    $region127: #{tpu_custom_call.1} parent=1 // pred_check_branch
      %213 = sbr.rel (0) target = $region129
    $region128: #{tpu_custom_call.1} parent=1 // pred_region
      %214 = dma.done [#allocation18], 4096
    $region129: #{tpu_custom_call.1} parent=1 // pred_fallthru
      _
    // Predicated region
    $region130: #{tpu_custom_call.1} parent=1 // pred_check
      _
    $region131: #{tpu_custom_call.1} parent=1 // pred_check_branch
      %216 = sbr.rel (0) target = $region133
    $region132: #{tpu_custom_call.1} parent=1 // pred_region
      %217 = dma.done [#allocation18], 12288
    $region133: #{tpu_custom_call.1} parent=1 // pred_fallthru
      _
    // Predicated region
    $region134: #{tpu_custom_call.1} parent=1 // pred_check
      _
    $region135: #{tpu_custom_call.1} parent=1 // pred_check_branch
      %219 = sbr.rel (0) target = $region137
    $region136: #{tpu_custom_call.1} parent=1 // pred_region
      %220 = dma.done [#allocation21], 27648
    $region137: #{tpu_custom_call.1} parent=1 // pred_fallthru
      _
    %v222 = vld [vmem:[%s1] sm:$0xf]
    %v223 = vld [vmem:[%s1 + $0x4] sm:$0xf]
    %v224 = vld [vmem:[%s1 + $0x8] sm:$0xf]
    %v225 = vld [vmem:[%s1 + $0xc] sm:$0xf]
    %v226 = vld [vmem:[%s1 + $0x10] sm:$0xf]
    %v227 = vld [vmem:[%s1 + $0x14] sm:$0xf]
    %v228 = vld [vmem:[%s1 + $0x18] sm:$0xf]
    %v229 = vld [vmem:[%s1 + $0x1c] sm:$0xf]
    %v230 = vld [vmem:[%s1 + $0x20] sm:$0xf]
    %v231 = vld [vmem:[%s1 + $0x24] sm:$0xf]
    %v232 = vld [vmem:[%s1 + $0x28] sm:$0xf]
    %v233 = vld [vmem:[%s1 + $0x2c] sm:$0xf]
    %v234 = vld [vmem:[%s1 + $0x30] sm:$0xf]
    %v235 = vld [vmem:[%s1 + $0x34] sm:$0xf]
    %v236 = vld [vmem:[%s1 + $0x38] sm:$0xf]
    %v237 = vld [vmem:[%s1 + $0x3c] sm:$0xf]
    %v238 = vld [vmem:[#allocation5] sm:$0x1]
    %v239 = vld [vmem:[#allocation7] sm:$0xff]
    %v240 = vld [vmem:[#allocation7 + $0x8] sm:$0xf]
    %v241 = vld [vmem:[#allocation7 + $0xc] sm:$0xff]
    %v242 = vld [vmem:[#allocation7 + $0x14] sm:$0xf]
    %v243 = vld [vmem:[#allocation7 + $0x18] sm:$0xff]
    %v244 = vld [vmem:[#allocation7 + $0x20] sm:$0xf]
    %v245 = vld [vmem:[#allocation7 + $0x24] sm:$0xff]
    %v246 = vld [vmem:[#allocation7 + $0x2c] sm:$0xf]
    %v247 = vld [vmem:[#allocation7 + $0x30] sm:$0xff]
    %v248 = vld [vmem:[#allocation7 + $0x38] sm:$0xf]
    %v249 = vld [vmem:[#allocation7 + $0x3c] sm:$0xff]
    %v250 = vld [vmem:[#allocation7 + $0x44] sm:$0xf]
    %v251 = vld [vmem:[#allocation7 + $0x48] sm:$0xff]
    %v252 = vld [vmem:[#allocation7 + $0x50] sm:$0xf]
    %v253 = vld [vmem:[#allocation7 + $0x54] sm:$0xff]
    %v254 = vld [vmem:[#allocation7 + $0x5c] sm:$0xf]
    %v255 = vld [vmem:[#allocation7 + $0x60] sm:$0xff]
    %v256 = vld [vmem:[#allocation7 + $0x68] sm:$0xf]
    %v257 = vld [vmem:[#allocation7 + $0x6c] sm:$0xff]
    %v258 = vld [vmem:[#allocation7 + $0x74] sm:$0xf]
    %v259 = vld [vmem:[#allocation7 + $0x78] sm:$0xff]
    %v260 = vld [vmem:[#allocation7 + $0x80] sm:$0xf]
    %v261 = vld [vmem:[#allocation7 + $0x84] sm:$0xff]
    %v262 = vld [vmem:[#allocation7 + $0x8c] sm:$0xf]
    %v263 = vld [vmem:[#allocation7 + $0x90] sm:$0xff]
    %v264 = vld [vmem:[#allocation7 + $0x98] sm:$0xf]
    %v265 = vld [vmem:[#allocation7 + $0x9c] sm:$0xff]
    %v266 = vld [vmem:[#allocation7 + $0xa4] sm:$0xf]
    %v267 = vld [vmem:[#allocation7 + $0xa8] sm:$0xff]
    %v268 = vld [vmem:[#allocation7 + $0xb0] sm:$0xf]
    %v269 = vld [vmem:[#allocation7 + $0xb4] sm:$0xff]
    %v270 = vld [vmem:[#allocation7 + $0xbc] sm:$0xf]
    %v271 = vld [vmem:[#allocation8] sm:$0x7]
    %v272 = vld [vmem:[#allocation10] sm:$0xff]
    %v273 = vld [vmem:[#allocation10 + $0x8] sm:$0xff]
    %v274 = vld [vmem:[#allocation10 + $0x10] sm:$0xff]
    %v275 = vld [vmem:[#allocation10 + $0x18] sm:$0xff]
    %v276 = vld [vmem:[#allocation10 + $0x20] sm:$0xf]
    %v277 = vld [vmem:[#allocation10 + $0x24] sm:$0xff]
    %v278 = vld [vmem:[#allocation10 + $0x2c] sm:$0xff]
    %v279 = vld [vmem:[#allocation10 + $0x34] sm:$0xff]
    %v280 = vld [vmem:[#allocation10 + $0x3c] sm:$0xff]
    %v281 = vld [vmem:[#allocation10 + $0x44] sm:$0xf]
    %v282 = vld [vmem:[#allocation10 + $0x48] sm:$0xff]
    %v283 = vld [vmem:[#allocation10 + $0x50] sm:$0xff]
    %v284 = vld [vmem:[#allocation10 + $0x58] sm:$0xff]
    %v285 = vld [vmem:[#allocation10 + $0x60] sm:$0xff]
    %v286 = vld [vmem:[#allocation10 + $0x68] sm:$0xf]
    %v287 = vld [vmem:[#allocation10 + $0x6c] sm:$0xff]
    %v288 = vld [vmem:[#allocation10 + $0x74] sm:$0xff]
    %v289 = vld [vmem:[#allocation10 + $0x7c] sm:$0xff]
    %v290 = vld [vmem:[#allocation10 + $0x84] sm:$0xff]
    %v291 = vld [vmem:[#allocation10 + $0x8c] sm:$0xf]
    %v292 = vld [vmem:[#allocation10 + $0x90] sm:$0xff]
    %v293 = vld [vmem:[#allocation10 + $0x98] sm:$0xff]
    %v294 = vld [vmem:[#allocation10 + $0xa0] sm:$0xff]
    %v295 = vld [vmem:[#allocation10 + $0xa8] sm:$0xff]
    %v296 = vld [vmem:[#allocation10 + $0xb0] sm:$0xf]
    %v297 = vld [vmem:[#allocation10 + $0xb4] sm:$0xff]
    %v298 = vld [vmem:[#allocation10 + $0xbc] sm:$0xff]
    %v299 = vld [vmem:[#allocation10 + $0xc4] sm:$0xff]
    %v300 = vld [vmem:[#allocation10 + $0xcc] sm:$0xff]
    %v301 = vld [vmem:[#allocation10 + $0xd4] sm:$0xf]
    %v302 = vld [vmem:[#allocation10 + $0xd8] sm:$0xff]
    %v303 = vld [vmem:[#allocation10 + $0xe0] sm:$0xff]
    %v304 = vld [vmem:[#allocation10 + $0xe8] sm:$0xff]
    %v305 = vld [vmem:[#allocation10 + $0xf0] sm:$0xff]
    %v306 = vld [vmem:[#allocation10 + $0xf8] sm:$0xf]
    %v307 = vld [vmem:[#allocation10 + $0xfc] sm:$0xff]
    %v308 = vld [vmem:[#allocation10 + $0x104] sm:$0xff]
    %v309 = vld [vmem:[#allocation10 + $0x10c] sm:$0xff]
    %v310 = vld [vmem:[#allocation10 + $0x114] sm:$0xff]
    %v311 = vld [vmem:[#allocation10 + $0x11c] sm:$0xf]
    %v312 = vld [vmem:[#allocation10 + $0x120] sm:$0xff]
    %v313 = vld [vmem:[#allocation10 + $0x128] sm:$0xff]
    %v314 = vld [vmem:[#allocation10 + $0x130] sm:$0xff]
    %v315 = vld [vmem:[#allocation10 + $0x138] sm:$0xff]
    %v316 = vld [vmem:[#allocation10 + $0x140] sm:$0xf]
    %v317 = vld [vmem:[#allocation10 + $0x144] sm:$0xff]
    %v318 = vld [vmem:[#allocation10 + $0x14c] sm:$0xff]
    %v319 = vld [vmem:[#allocation10 + $0x154] sm:$0xff]
    %v320 = vld [vmem:[#allocation10 + $0x15c] sm:$0xff]
    %v321 = vld [vmem:[#allocation10 + $0x164] sm:$0xf]
    %v322 = vld [vmem:[#allocation10 + $0x168] sm:$0xff]
    %v323 = vld [vmem:[#allocation10 + $0x170] sm:$0xff]
    %v324 = vld [vmem:[#allocation10 + $0x178] sm:$0xff]
    %v325 = vld [vmem:[#allocation10 + $0x180] sm:$0xff]
    %v326 = vld [vmem:[#allocation10 + $0x188] sm:$0xf]
    %v327 = vld [vmem:[#allocation10 + $0x18c] sm:$0xff]
    %v328 = vld [vmem:[#allocation10 + $0x194] sm:$0xff]
    %v329 = vld [vmem:[#allocation10 + $0x19c] sm:$0xff]
    %v330 = vld [vmem:[#allocation10 + $0x1a4] sm:$0xff]
    %v331 = vld [vmem:[#allocation10 + $0x1ac] sm:$0xf]
    %v332 = vld [vmem:[#allocation10 + $0x1b0] sm:$0xff]
    %v333 = vld [vmem:[#allocation10 + $0x1b8] sm:$0xff]
    %v334 = vld [vmem:[#allocation10 + $0x1c0] sm:$0xff]
    %v335 = vld [vmem:[#allocation10 + $0x1c8] sm:$0xff]
    %v336 = vld [vmem:[#allocation10 + $0x1d0] sm:$0xf]
    %v337 = vld [vmem:[#allocation10 + $0x1d4] sm:$0xff]
    %v338 = vld [vmem:[#allocation10 + $0x1dc] sm:$0xff]
    %v339 = vld [vmem:[#allocation10 + $0x1e4] sm:$0xff]
    %v340 = vld [vmem:[#allocation10 + $0x1ec] sm:$0xff]
    %v341 = vld [vmem:[#allocation10 + $0x1f4] sm:$0xf]
    %v342 = vld [vmem:[#allocation10 + $0x1f8] sm:$0xff]
    %v343 = vld [vmem:[#allocation10 + $0x200] sm:$0xff]
    %v344 = vld [vmem:[#allocation10 + $0x208] sm:$0xff]
    %v345 = vld [vmem:[#allocation10 + $0x210] sm:$0xff]
    %v346 = vld [vmem:[#allocation10 + $0x218] sm:$0xf]
    %v347 = vld [vmem:[#allocation10 + $0x21c] sm:$0xff]
    %v348 = vld [vmem:[#allocation10 + $0x224] sm:$0xff]
    %v349 = vld [vmem:[#allocation10 + $0x22c] sm:$0xff]
    %v350 = vld [vmem:[#allocation10 + $0x234] sm:$0xff]
    %v351 = vld [vmem:[#allocation10 + $0x23c] sm:$0xf]
    %v352 = vld [vmem:[#allocation10 + $0x240] sm:$0xff]
    %v353 = vld [vmem:[#allocation10 + $0x248] sm:$0xff]
    %v354 = vld [vmem:[#allocation10 + $0x250] sm:$0xff]
    %v355 = vld [vmem:[#allocation10 + $0x258] sm:$0xff]
    %v356 = vld [vmem:[#allocation10 + $0x260] sm:$0xf]
    %v357 = vld [vmem:[#allocation10 + $0x264] sm:$0xff]
    %v358 = vld [vmem:[#allocation10 + $0x26c] sm:$0xff]
    %v359 = vld [vmem:[#allocation10 + $0x274] sm:$0xff]
    %v360 = vld [vmem:[#allocation10 + $0x27c] sm:$0xff]
    %v361 = vld [vmem:[#allocation10 + $0x284] sm:$0xf]
    %v362 = vld [vmem:[#allocation10 + $0x288] sm:$0xff]
    %v363 = vld [vmem:[#allocation10 + $0x290] sm:$0xff]
    %v364 = vld [vmem:[#allocation10 + $0x298] sm:$0xff]
    %v365 = vld [vmem:[#allocation10 + $0x2a0] sm:$0xff]
    %v366 = vld [vmem:[#allocation10 + $0x2a8] sm:$0xf]
    %v367 = vld [vmem:[#allocation10 + $0x2ac] sm:$0xff]
    %v368 = vld [vmem:[#allocation10 + $0x2b4] sm:$0xff]
    %v369 = vld [vmem:[#allocation10 + $0x2bc] sm:$0xff]
    %v370 = vld [vmem:[#allocation10 + $0x2c4] sm:$0xff]
    %v371 = vld [vmem:[#allocation10 + $0x2cc] sm:$0xf]
    %v372 = vld [vmem:[#allocation10 + $0x2d0] sm:$0xff]
    %v373 = vld [vmem:[#allocation10 + $0x2d8] sm:$0xff]
    %v374 = vld [vmem:[#allocation10 + $0x2e0] sm:$0xff]
    %v375 = vld [vmem:[#allocation10 + $0x2e8] sm:$0xff]
    %v376 = vld [vmem:[#allocation10 + $0x2f0] sm:$0xf]
    %v377 = vld [vmem:[#allocation10 + $0x2f4] sm:$0xff]
    %v378 = vld [vmem:[#allocation10 + $0x2fc] sm:$0xff]
    %v379 = vld [vmem:[#allocation10 + $0x304] sm:$0xff]
    %v380 = vld [vmem:[#allocation10 + $0x30c] sm:$0xff]
    %v381 = vld [vmem:[#allocation10 + $0x314] sm:$0xf]
    %v382 = vld [vmem:[#allocation10 + $0x318] sm:$0xff]
    %v383 = vld [vmem:[#allocation10 + $0x320] sm:$0xff]
    %v384 = vld [vmem:[#allocation10 + $0x328] sm:$0xff]
    %v385 = vld [vmem:[#allocation10 + $0x330] sm:$0xff]
    %v386 = vld [vmem:[#allocation10 + $0x338] sm:$0xf]
    %v387 = vld [vmem:[#allocation10 + $0x33c] sm:$0xff]
    %v388 = vld [vmem:[#allocation10 + $0x344] sm:$0xff]
    %v389 = vld [vmem:[#allocation10 + $0x34c] sm:$0xff]
    %v390 = vld [vmem:[#allocation10 + $0x354] sm:$0xff]
    %v391 = vld [vmem:[#allocation10 + $0x35c] sm:$0xf]
    %v392 = vld [vmem:[#allocation10 + $0x360] sm:$0xff]
    %v393 = vld [vmem:[#allocation10 + $0x368] sm:$0xff]
    %v394 = vld [vmem:[#allocation10 + $0x370] sm:$0xff]
    %v395 = vld [vmem:[#allocation10 + $0x378] sm:$0xff]
    %v396 = vld [vmem:[#allocation10 + $0x380] sm:$0xf]
    %v397 = vld [vmem:[#allocation10 + $0x384] sm:$0xff]
    %v398 = vld [vmem:[#allocation10 + $0x38c] sm:$0xff]
    %v399 = vld [vmem:[#allocation10 + $0x394] sm:$0xff]
    %v400 = vld [vmem:[#allocation10 + $0x39c] sm:$0xff]
    %v401 = vld [vmem:[#allocation10 + $0x3a4] sm:$0xf]
    %v402 = vld [vmem:[#allocation10 + $0x3a8] sm:$0xff]
    %v403 = vld [vmem:[#allocation10 + $0x3b0] sm:$0xff]
    %v404 = vld [vmem:[#allocation10 + $0x3b8] sm:$0xff]
    %v405 = vld [vmem:[#allocation10 + $0x3c0] sm:$0xff]
    %v406 = vld [vmem:[#allocation10 + $0x3c8] sm:$0xf]
    %v407 = vld [vmem:[#allocation10 + $0x3cc] sm:$0xff]
    %v408 = vld [vmem:[#allocation10 + $0x3d4] sm:$0xff]
    %v409 = vld [vmem:[#allocation10 + $0x3dc] sm:$0xff]
    %v410 = vld [vmem:[#allocation10 + $0x3e4] sm:$0xff]
    %v411 = vld [vmem:[#allocation10 + $0x3ec] sm:$0xf]
    %v412 = vld [vmem:[#allocation10 + $0x3f0] sm:$0xff]
    %v413 = vld [vmem:[#allocation10 + $0x3f8] sm:$0xff]
    %v414 = vld [vmem:[#allocation10 + $0x400] sm:$0xff]
    %v415 = vld [vmem:[#allocation10 + $0x408] sm:$0xff]
    %v416 = vld [vmem:[#allocation10 + $0x410] sm:$0xf]
    %v417 = vld [vmem:[#allocation10 + $0x414] sm:$0xff]
    %v418 = vld [vmem:[#allocation10 + $0x41c] sm:$0xff]
    %v419 = vld [vmem:[#allocation10 + $0x424] sm:$0xff]
    %v420 = vld [vmem:[#allocation10 + $0x42c] sm:$0xff]
    %v421 = vld [vmem:[#allocation10 + $0x434] sm:$0xf]
    %v422 = vld [vmem:[#allocation10 + $0x438] sm:$0xff]
    %v423 = vld [vmem:[#allocation10 + $0x440] sm:$0xff]
    %v424 = vld [vmem:[#allocation10 + $0x448] sm:$0xff]
    %v425 = vld [vmem:[#allocation10 + $0x450] sm:$0xff]
    %v426 = vld [vmem:[#allocation10 + $0x458] sm:$0xf]
    %v427 = vld [vmem:[#allocation10 + $0x45c] sm:$0xff]
    %v428 = vld [vmem:[#allocation10 + $0x464] sm:$0xff]
    %v429 = vld [vmem:[#allocation10 + $0x46c] sm:$0xff]
    %v430 = vld [vmem:[#allocation10 + $0x474] sm:$0xff]
    %v431 = vld [vmem:[#allocation10 + $0x47c] sm:$0xf]
    %v432 = vld [vmem:[#allocation10 + $0x480] sm:$0xff]
    %v433 = vld [vmem:[#allocation10 + $0x488] sm:$0xff]
    %v434 = vld [vmem:[#allocation10 + $0x490] sm:$0xff]
    %v435 = vld [vmem:[#allocation10 + $0x498] sm:$0xff]
    %v436 = vld [vmem:[#allocation10 + $0x4a0] sm:$0xf]
    %v437 = vld [vmem:[#allocation10 + $0x4a4] sm:$0xff]
    %v438 = vld [vmem:[#allocation10 + $0x4ac] sm:$0xff]
    %v439 = vld [vmem:[#allocation10 + $0x4b4] sm:$0xff]
    %v440 = vld [vmem:[#allocation10 + $0x4bc] sm:$0xff]
    %v441 = vld [vmem:[#allocation10 + $0x4c4] sm:$0xf]
    %v442 = vld [vmem:[#allocation10 + $0x4c8] sm:$0xff]
    %v443 = vld [vmem:[#allocation10 + $0x4d0] sm:$0xff]
    %v444 = vld [vmem:[#allocation10 + $0x4d8] sm:$0xff]
    %v445 = vld [vmem:[#allocation10 + $0x4e0] sm:$0xff]
    %v446 = vld [vmem:[#allocation10 + $0x4e8] sm:$0xf]
    %v447 = vld [vmem:[#allocation10 + $0x4ec] sm:$0xff]
    %v448 = vld [vmem:[#allocation10 + $0x4f4] sm:$0xff]
    %v449 = vld [vmem:[#allocation10 + $0x4fc] sm:$0xff]
    %v450 = vld [vmem:[#allocation10 + $0x504] sm:$0xff]
    %v451 = vld [vmem:[#allocation10 + $0x50c] sm:$0xf]
    %v452 = vld [vmem:[#allocation10 + $0x510] sm:$0xff]
    %v453 = vld [vmem:[#allocation10 + $0x518] sm:$0xff]
    %v454 = vld [vmem:[#allocation10 + $0x520] sm:$0xff]
    %v455 = vld [vmem:[#allocation10 + $0x528] sm:$0xff]
    %v456 = vld [vmem:[#allocation10 + $0x530] sm:$0xf]
    %v457 = vld [vmem:[#allocation10 + $0x534] sm:$0xff]
    %v458 = vld [vmem:[#allocation10 + $0x53c] sm:$0xff]
    %v459 = vld [vmem:[#allocation10 + $0x544] sm:$0xff]
    %v460 = vld [vmem:[#allocation10 + $0x54c] sm:$0xff]
    %v461 = vld [vmem:[#allocation10 + $0x554] sm:$0xf]
    %v462 = vld [vmem:[#allocation10 + $0x558] sm:$0xff]
    %v463 = vld [vmem:[#allocation10 + $0x560] sm:$0xff]
    %v464 = vld [vmem:[#allocation10 + $0x568] sm:$0xff]
    %v465 = vld [vmem:[#allocation10 + $0x570] sm:$0xff]
    %v466 = vld [vmem:[#allocation10 + $0x578] sm:$0xf]
    %v467 = vld [vmem:[#allocation10 + $0x57c] sm:$0xff]
    %v468 = vld [vmem:[#allocation10 + $0x584] sm:$0xff]
    %v469 = vld [vmem:[#allocation10 + $0x58c] sm:$0xff]
    %v470 = vld [vmem:[#allocation10 + $0x594] sm:$0xff]
    %v471 = vld [vmem:[#allocation10 + $0x59c] sm:$0xf]
    %v472 = vld [vmem:[#allocation10 + $0x5a0] sm:$0xff]
    %v473 = vld [vmem:[#allocation10 + $0x5a8] sm:$0xff]
    %v474 = vld [vmem:[#allocation10 + $0x5b0] sm:$0xff]
    %v475 = vld [vmem:[#allocation10 + $0x5b8] sm:$0xff]
    %v476 = vld [vmem:[#allocation10 + $0x5c0] sm:$0xf]
    %v477 = vld [vmem:[#allocation10 + $0x5c4] sm:$0xff]
    %v478 = vld [vmem:[#allocation10 + $0x5cc] sm:$0xff]
    %v479 = vld [vmem:[#allocation10 + $0x5d4] sm:$0xff]
    %v480 = vld [vmem:[#allocation10 + $0x5dc] sm:$0xff]
    %v481 = vld [vmem:[#allocation10 + $0x5e4] sm:$0xf]
    %v482 = vld [vmem:[#allocation10 + $0x5e8] sm:$0xff]
    %v483 = vld [vmem:[#allocation10 + $0x5f0] sm:$0xff]
    %v484 = vld [vmem:[#allocation10 + $0x5f8] sm:$0xff]
    %v485 = vld [vmem:[#allocation10 + $0x600] sm:$0xff]
    %v486 = vld [vmem:[#allocation10 + $0x608] sm:$0xf]
    %v487 = vld [vmem:[#allocation10 + $0x60c] sm:$0xff]
    %v488 = vld [vmem:[#allocation10 + $0x614] sm:$0xff]
    %v489 = vld [vmem:[#allocation10 + $0x61c] sm:$0xff]
    %v490 = vld [vmem:[#allocation10 + $0x624] sm:$0xff]
    %v491 = vld [vmem:[#allocation10 + $0x62c] sm:$0xf]
    %v492 = vld [vmem:[#allocation10 + $0x630] sm:$0xff]
    %v493 = vld [vmem:[#allocation10 + $0x638] sm:$0xff]
    %v494 = vld [vmem:[#allocation10 + $0x640] sm:$0xff]
    %v495 = vld [vmem:[#allocation10 + $0x648] sm:$0xff]
    %v496 = vld [vmem:[#allocation10 + $0x650] sm:$0xf]
    %v497 = vld [vmem:[#allocation10 + $0x654] sm:$0xff]
    %v498 = vld [vmem:[#allocation10 + $0x65c] sm:$0xff]
    %v499 = vld [vmem:[#allocation10 + $0x664] sm:$0xff]
    %v500 = vld [vmem:[#allocation10 + $0x66c] sm:$0xff]
    %v501 = vld [vmem:[#allocation10 + $0x674] sm:$0xf]
    %v502 = vld [vmem:[#allocation10 + $0x678] sm:$0xff]
    %v503 = vld [vmem:[#allocation10 + $0x680] sm:$0xff]
    %v504 = vld [vmem:[#allocation10 + $0x688] sm:$0xff]
    %v505 = vld [vmem:[#allocation10 + $0x690] sm:$0xff]
    %v506 = vld [vmem:[#allocation10 + $0x698] sm:$0xf]
    %v507 = vld [vmem:[#allocation10 + $0x69c] sm:$0xff]
    %v508 = vld [vmem:[#allocation10 + $0x6a4] sm:$0xff]
    %v509 = vld [vmem:[#allocation10 + $0x6ac] sm:$0xff]
    %v510 = vld [vmem:[#allocation10 + $0x6b4] sm:$0xff]
    %v511 = vld [vmem:[#allocation10 + $0x6bc] sm:$0xf]
    %v512 = vld [vmem:[#allocation11] sm:$0xff]
    %v513 = vld [vmem:[#allocation11 + $0x8] sm:$0x1]
    %v514 = vld [vmem:[%s7] sm:$0xff]
    %v515 = vld [vmem:[%s7 + $0x8] sm:$0xff]
    %v516 = vld [vmem:[%s7 + $0x10] sm:$0xff]
    %v517 = vld [vmem:[#allocation13] sm:$0x1]
    %v518 = vld [vmem:[#allocation14] sm:$0x1]
    %v519 = vld [vmem:[#allocation16] sm:$0x1]
    %v520 = vld [vmem:[#allocation17] sm:$0xff]
    %v521 = vld [vmem:[#allocation17 + $0x8] sm:$0xff]
    %v522 = vld [vmem:[#allocation17 + $0x10] sm:$0xff]
    %v523 = vld [vmem:[#allocation17 + $0x18] sm:$0xff]
    %v524 = vld [vmem:[#allocation17 + $0x20] sm:$0xff]
    %v525 = vld [vmem:[#allocation17 + $0x28] sm:$0xff]
    %v526 = vld [vmem:[#allocation17 + $0x30] sm:$0xff]
    %v527 = vld [vmem:[#allocation17 + $0x38] sm:$0xff]
    %v528 = vld [vmem:[#allocation17 + $0x40] sm:$0xff]
    %v529 = vld [vmem:[#allocation17 + $0x48] sm:$0xff]
    %v530 = vld [vmem:[#allocation17 + $0x50] sm:$0xff]
    %v531 = vld [vmem:[#allocation17 + $0x58] sm:$0xff]
    %v532 = vld [vmem:[#allocation17 + $0x60] sm:$0xff]
    %v533 = vld [vmem:[#allocation17 + $0x68] sm:$0xff]
    %v534 = vld [vmem:[#allocation17 + $0x70] sm:$0xff]
    %v535 = vld [vmem:[#allocation17 + $0x78] sm:$0xff]
    %v536 = vld [vmem:[#allocation17 + $0x80] sm:$0xff]
    %v537 = vld [vmem:[#allocation17 + $0x88] sm:$0xff]
    %v538 = vld [vmem:[#allocation17 + $0x90] sm:$0xff]
    %v539 = vld [vmem:[#allocation17 + $0x98] sm:$0xff]
    %v540 = vld [vmem:[#allocation17 + $0xa0] sm:$0xff]
    %v541 = vld [vmem:[#allocation17 + $0xa8] sm:$0xff]
    %v542 = vld [vmem:[#allocation17 + $0xb0] sm:$0xff]
    %v543 = vld [vmem:[#allocation17 + $0xb8] sm:$0xff]
    %v544 = vld [vmem:[#allocation17 + $0xc0] sm:$0xff]
    %v545 = vld [vmem:[#allocation17 + $0xc8] sm:$0xff]
    %v546 = vld [vmem:[#allocation17 + $0xd0] sm:$0xff]
    %v547 = vld [vmem:[#allocation17 + $0xd8] sm:$0xff]
    %v548 = vld [vmem:[#allocation17 + $0xe0] sm:$0xff]
    %v549 = vld [vmem:[#allocation17 + $0xe8] sm:$0xff]
    %v550 = vld [vmem:[#allocation17 + $0xf0] sm:$0xff]
    %v551 = vld [vmem:[#allocation17 + $0xf8] sm:$0xff]
    %v552 = vld [vmem:[%s12] sm:$0xf]
    %v553 = vld [vmem:[#allocation19] sm:$0xff]
    %v554 = vld [vmem:[#allocation19 + $0x8] sm:$0xf]
    %v555 = vld [vmem:[#allocation19 + $0xc] sm:$0xff]
    %v556 = vld [vmem:[#allocation19 + $0x14] sm:$0xf]
    %v557 = vld [vmem:[#allocation19 + $0x18] sm:$0xff]
    %v558 = vld [vmem:[#allocation19 + $0x20] sm:$0xf]
    %v559 = vld [vmem:[#allocation19 + $0x24] sm:$0xff]
    %v560 = vld [vmem:[#allocation19 + $0x2c] sm:$0xf]
    %v561 = vld [vmem:[#allocation19 + $0x30] sm:$0xff]
    %v562 = vld [vmem:[#allocation19 + $0x38] sm:$0xf]
    %v563 = vld [vmem:[#allocation19 + $0x3c] sm:$0xff]
    %v564 = vld [vmem:[#allocation19 + $0x44] sm:$0xf]
    %v565 = vld [vmem:[#allocation19 + $0x48] sm:$0xff]
    %v566 = vld [vmem:[#allocation19 + $0x50] sm:$0xf]
    %v567 = vld [vmem:[#allocation19 + $0x54] sm:$0xff]
    %v568 = vld [vmem:[#allocation19 + $0x5c] sm:$0xf]
    %v569 = vld [vmem:[#allocation19 + $0x60] sm:$0xff]
    %v570 = vld [vmem:[#allocation19 + $0x68] sm:$0xf]
    %v571 = vld [vmem:[#allocation19 + $0x6c] sm:$0xff]
    %v572 = vld [vmem:[#allocation19 + $0x74] sm:$0xf]
    %v573 = vld [vmem:[#allocation19 + $0x78] sm:$0xff]
    %v574 = vld [vmem:[#allocation19 + $0x80] sm:$0xf]
    %v575 = vld [vmem:[#allocation19 + $0x84] sm:$0xff]
    %v576 = vld [vmem:[#allocation19 + $0x8c] sm:$0xf]
    %v577 = vld [vmem:[#allocation19 + $0x90] sm:$0xff]
    %v578 = vld [vmem:[#allocation19 + $0x98] sm:$0xf]
    %v579 = vld [vmem:[#allocation19 + $0x9c] sm:$0xff]
    %v580 = vld [vmem:[#allocation19 + $0xa4] sm:$0xf]
    %v581 = vld [vmem:[#allocation19 + $0xa8] sm:$0xff]
    %v582 = vld [vmem:[#allocation19 + $0xb0] sm:$0xf]
    %v583 = vld [vmem:[#allocation19 + $0xb4] sm:$0xff]
    %v584 = vld [vmem:[#allocation19 + $0xbc] sm:$0xf]
    %v585 = vld [vmem:[#allocation19 + $0xc0] sm:$0xff]
    %v586 = vld [vmem:[#allocation19 + $0xc8] sm:$0xf]
    %v587 = vld [vmem:[#allocation19 + $0xcc] sm:$0xff]
    %v588 = vld [vmem:[#allocation19 + $0xd4] sm:$0xf]
    %v589 = vld [vmem:[#allocation19 + $0xd8] sm:$0xff]
    %v590 = vld [vmem:[#allocation19 + $0xe0] sm:$0xf]
    %v591 = vld [vmem:[#allocation19 + $0xe4] sm:$0xff]
    %v592 = vld [vmem:[#allocation19 + $0xec] sm:$0xf]
    %v593 = vld [vmem:[#allocation19 + $0xf0] sm:$0xff]
    %v594 = vld [vmem:[#allocation19 + $0xf8] sm:$0xf]
    %v595 = vld [vmem:[#allocation19 + $0xfc] sm:$0xff]
    %v596 = vld [vmem:[#allocation19 + $0x104] sm:$0xf]
    %v597 = vld [vmem:[#allocation19 + $0x108] sm:$0xff]
    %v598 = vld [vmem:[#allocation19 + $0x110] sm:$0xf]
    %v599 = vld [vmem:[#allocation19 + $0x114] sm:$0xff]
    %v600 = vld [vmem:[#allocation19 + $0x11c] sm:$0xf]
    %v601 = vld [vmem:[#allocation19 + $0x120] sm:$0xff]
    %v602 = vld [vmem:[#allocation19 + $0x128] sm:$0xf]
    %v603 = vld [vmem:[#allocation19 + $0x12c] sm:$0xff]
    %v604 = vld [vmem:[#allocation19 + $0x134] sm:$0xf]
    %v605 = vld [vmem:[#allocation19 + $0x138] sm:$0xff]
    %v606 = vld [vmem:[#allocation19 + $0x140] sm:$0xf]
    %v607 = vld [vmem:[#allocation19 + $0x144] sm:$0xff]
    %v608 = vld [vmem:[#allocation19 + $0x14c] sm:$0xf]
    %v609 = vld [vmem:[#allocation19 + $0x150] sm:$0xff]
    %v610 = vld [vmem:[#allocation19 + $0x158] sm:$0xf]
    %v611 = vld [vmem:[#allocation19 + $0x15c] sm:$0xff]
    %v612 = vld [vmem:[#allocation19 + $0x164] sm:$0xf]
    %v613 = vld [vmem:[#allocation19 + $0x168] sm:$0xff]
    %v614 = vld [vmem:[#allocation19 + $0x170] sm:$0xf]
    %v615 = vld [vmem:[#allocation19 + $0x174] sm:$0xff]
    %v616 = vld [vmem:[#allocation19 + $0x17c] sm:$0xf]
    %v617 = vld [vmem:[#allocation19 + $0x180] sm:$0xff]
    %v618 = vld [vmem:[#allocation19 + $0x188] sm:$0xf]
    %v619 = vld [vmem:[#allocation19 + $0x18c] sm:$0xff]
    %v620 = vld [vmem:[#allocation19 + $0x194] sm:$0xf]
    %v621 = vld [vmem:[#allocation19 + $0x198] sm:$0xff]
    %v622 = vld [vmem:[#allocation19 + $0x1a0] sm:$0xf]
    %v623 = vld [vmem:[#allocation19 + $0x1a4] sm:$0xff]
    %v624 = vld [vmem:[#allocation19 + $0x1ac] sm:$0xf]
    %v625 = vld [vmem:[#allocation19 + $0x1b0] sm:$0xff]
    %v626 = vld [vmem:[#allocation19 + $0x1b8] sm:$0xf]
    %v627 = vld [vmem:[#allocation19 + $0x1bc] sm:$0xff]
    %v628 = vld [vmem:[#allocation19 + $0x1c4] sm:$0xf]
    %v629 = vld [vmem:[#allocation19 + $0x1c8] sm:$0xff]
    %v630 = vld [vmem:[#allocation19 + $0x1d0] sm:$0xf]
    %v631 = vld [vmem:[#allocation19 + $0x1d4] sm:$0xff]
    %v632 = vld [vmem:[#allocation19 + $0x1dc] sm:$0xf]
    %v633 = vld [vmem:[#allocation19 + $0x1e0] sm:$0xff]
    %v634 = vld [vmem:[#allocation19 + $0x1e8] sm:$0xf]
    %v635 = vld [vmem:[#allocation19 + $0x1ec] sm:$0xff]
    %v636 = vld [vmem:[#allocation19 + $0x1f4] sm:$0xf]
    %v637 = vld [vmem:[#allocation19 + $0x1f8] sm:$0xff]
    %v638 = vld [vmem:[#allocation19 + $0x200] sm:$0xf]
    %v639 = vld [vmem:[#allocation19 + $0x204] sm:$0xff]
    %v640 = vld [vmem:[#allocation19 + $0x20c] sm:$0xf]
    %v641 = vld [vmem:[#allocation19 + $0x210] sm:$0xff]
    %v642 = vld [vmem:[#allocation19 + $0x218] sm:$0xf]
    %v643 = vld [vmem:[#allocation19 + $0x21c] sm:$0xff]
    %v644 = vld [vmem:[#allocation19 + $0x224] sm:$0xf]
    %v645 = vld [vmem:[#allocation19 + $0x228] sm:$0xff]
    %v646 = vld [vmem:[#allocation19 + $0x230] sm:$0xf]
    %v647 = vld [vmem:[#allocation19 + $0x234] sm:$0xff]
    %v648 = vld [vmem:[#allocation19 + $0x23c] sm:$0xf]
    %v649 = vld [vmem:[#allocation19 + $0x240] sm:$0xff]
    %v650 = vld [vmem:[#allocation19 + $0x248] sm:$0xf]
    %v651 = vld [vmem:[#allocation19 + $0x24c] sm:$0xff]
    %v652 = vld [vmem:[#allocation19 + $0x254] sm:$0xf]
    %v653 = vld [vmem:[#allocation19 + $0x258] sm:$0xff]
    %v654 = vld [vmem:[#allocation19 + $0x260] sm:$0xf]
    %v655 = vld [vmem:[#allocation19 + $0x264] sm:$0xff]
    %v656 = vld [vmem:[#allocation19 + $0x26c] sm:$0xf]
    %v657 = vld [vmem:[#allocation19 + $0x270] sm:$0xff]
    %v658 = vld [vmem:[#allocation19 + $0x278] sm:$0xf]
    %v659 = vld [vmem:[#allocation19 + $0x27c] sm:$0xff]
    %v660 = vld [vmem:[#allocation19 + $0x284] sm:$0xf]
    %v661 = vld [vmem:[#allocation19 + $0x288] sm:$0xff]
    %v662 = vld [vmem:[#allocation19 + $0x290] sm:$0xf]
    %v663 = vld [vmem:[#allocation19 + $0x294] sm:$0xff]
    %v664 = vld [vmem:[#allocation19 + $0x29c] sm:$0xf]
    %v665 = vld [vmem:[#allocation19 + $0x2a0] sm:$0xff]
    %v666 = vld [vmem:[#allocation19 + $0x2a8] sm:$0xf]
    %v667 = vld [vmem:[#allocation19 + $0x2ac] sm:$0xff]
    %v668 = vld [vmem:[#allocation19 + $0x2b4] sm:$0xf]
    %v669 = vld [vmem:[#allocation19 + $0x2b8] sm:$0xff]
    %v670 = vld [vmem:[#allocation19 + $0x2c0] sm:$0xf]
    %v671 = vld [vmem:[#allocation19 + $0x2c4] sm:$0xff]
    %v672 = vld [vmem:[#allocation19 + $0x2cc] sm:$0xf]
    %v673 = vld [vmem:[#allocation19 + $0x2d0] sm:$0xff]
    %v674 = vld [vmem:[#allocation19 + $0x2d8] sm:$0xf]
    %v675 = vld [vmem:[#allocation19 + $0x2dc] sm:$0xff]
    %v676 = vld [vmem:[#allocation19 + $0x2e4] sm:$0xf]
    %v677 = vld [vmem:[#allocation19 + $0x2e8] sm:$0xff]
    %v678 = vld [vmem:[#allocation19 + $0x2f0] sm:$0xf]
    %v679 = vld [vmem:[#allocation19 + $0x2f4] sm:$0xff]
    %v680 = vld [vmem:[#allocation19 + $0x2fc] sm:$0xf]
    %v681 = vld [vmem:[%s14] sm:$0x7]
    %v682 = vld [vmem:[#allocation20] sm:$0xff]
    %v683 = vld [vmem:[#allocation20 + $0x8] sm:$0xff]
    %v684 = vld [vmem:[#allocation20 + $0x10] sm:$0xff]
    %v685 = vld [vmem:[#allocation20 + $0x18] sm:$0xff]
    %v686 = vld [vmem:[#allocation20 + $0x20] sm:$0xf]
    %v687 = vld [vmem:[#allocation20 + $0x24] sm:$0xff]
    %v688 = vld [vmem:[#allocation20 + $0x2c] sm:$0xff]
    %v689 = vld [vmem:[#allocation20 + $0x34] sm:$0xff]
    %v690 = vld [vmem:[#allocation20 + $0x3c] sm:$0xff]
    %v691 = vld [vmem:[#allocation20 + $0x44] sm:$0xf]
    %v692 = vld [vmem:[#allocation20 + $0x48] sm:$0xff]
    %v693 = vld [vmem:[#allocation20 + $0x50] sm:$0xff]
    %v694 = vld [vmem:[#allocation20 + $0x58] sm:$0xff]
    %v695 = vld [vmem:[#allocation20 + $0x60] sm:$0xff]
    %v696 = vld [vmem:[#allocation20 + $0x68] sm:$0xf]
    %v697 = vld [vmem:[#allocation20 + $0x6c] sm:$0xff]
    %v698 = vld [vmem:[#allocation20 + $0x74] sm:$0xff]
    %v699 = vld [vmem:[#allocation20 + $0x7c] sm:$0xff]
    %v700 = vld [vmem:[#allocation20 + $0x84] sm:$0xff]
    %v701 = vld [vmem:[#allocation20 + $0x8c] sm:$0xf]
    %v702 = vld [vmem:[#allocation20 + $0x90] sm:$0xff]
    %v703 = vld [vmem:[#allocation20 + $0x98] sm:$0xff]
    %v704 = vld [vmem:[#allocation20 + $0xa0] sm:$0xff]
    %v705 = vld [vmem:[#allocation20 + $0xa8] sm:$0xff]
    %v706 = vld [vmem:[#allocation20 + $0xb0] sm:$0xf]
    %v707 = vld [vmem:[#allocation20 + $0xb4] sm:$0xff]
    %v708 = vld [vmem:[#allocation20 + $0xbc] sm:$0xff]
    %v709 = vld [vmem:[#allocation20 + $0xc4] sm:$0xff]
    %v710 = vld [vmem:[#allocation20 + $0xcc] sm:$0xff]
    %v711 = vld [vmem:[#allocation20 + $0xd4] sm:$0xf]
    %v712 = vld [vmem:[#allocation20 + $0xd8] sm:$0xff]
    %v713 = vld [vmem:[#allocation20 + $0xe0] sm:$0xff]
    %v714 = vld [vmem:[#allocation20 + $0xe8] sm:$0xff]
    %v715 = vld [vmem:[#allocation20 + $0xf0] sm:$0xff]
    %v716 = vld [vmem:[#allocation20 + $0xf8] sm:$0xf]
    %v717 = vld [vmem:[#allocation20 + $0xfc] sm:$0xff]
    %v718 = vld [vmem:[#allocation20 + $0x104] sm:$0xff]
    %v719 = vld [vmem:[#allocation20 + $0x10c] sm:$0xff]
    %v720 = vld [vmem:[#allocation20 + $0x114] sm:$0xff]
    %v721 = vld [vmem:[#allocation20 + $0x11c] sm:$0xf]
    %v722 = vld [vmem:[#allocation20 + $0x120] sm:$0xff]
    %v723 = vld [vmem:[#allocation20 + $0x128] sm:$0xff]
    %v724 = vld [vmem:[#allocation20 + $0x130] sm:$0xff]
    %v725 = vld [vmem:[#allocation20 + $0x138] sm:$0xff]
    %v726 = vld [vmem:[#allocation20 + $0x140] sm:$0xf]
    %v727 = vld [vmem:[#allocation20 + $0x144] sm:$0xff]
    %v728 = vld [vmem:[#allocation20 + $0x14c] sm:$0xff]
    %v729 = vld [vmem:[#allocation20 + $0x154] sm:$0xff]
    %v730 = vld [vmem:[#allocation20 + $0x15c] sm:$0xff]
    %v731 = vld [vmem:[#allocation20 + $0x164] sm:$0xf]
    %v732 = vld [vmem:[#allocation20 + $0x168] sm:$0xff]
    %v733 = vld [vmem:[#allocation20 + $0x170] sm:$0xff]
    %v734 = vld [vmem:[#allocation20 + $0x178] sm:$0xff]
    %v735 = vld [vmem:[#allocation20 + $0x180] sm:$0xff]
    %v736 = vld [vmem:[#allocation20 + $0x188] sm:$0xf]
    %v737 = vld [vmem:[#allocation20 + $0x18c] sm:$0xff]
    %v738 = vld [vmem:[#allocation20 + $0x194] sm:$0xff]
    %v739 = vld [vmem:[#allocation20 + $0x19c] sm:$0xff]
    %v740 = vld [vmem:[#allocation20 + $0x1a4] sm:$0xff]
    %v741 = vld [vmem:[#allocation20 + $0x1ac] sm:$0xf]
    %v742 = vld [vmem:[#allocation20 + $0x1b0] sm:$0xff]
    %v743 = vld [vmem:[#allocation20 + $0x1b8] sm:$0xff]
    %v744 = vld [vmem:[#allocation20 + $0x1c0] sm:$0xff]
    %v745 = vld [vmem:[#allocation20 + $0x1c8] sm:$0xff]
    %v746 = vld [vmem:[#allocation20 + $0x1d0] sm:$0xf]
    %v747 = vld [vmem:[#allocation20 + $0x1d4] sm:$0xff]
    %v748 = vld [vmem:[#allocation20 + $0x1dc] sm:$0xff]
    %v749 = vld [vmem:[#allocation20 + $0x1e4] sm:$0xff]
    %v750 = vld [vmem:[#allocation20 + $0x1ec] sm:$0xff]
    %v751 = vld [vmem:[#allocation20 + $0x1f4] sm:$0xf]
    %v752 = vld [vmem:[#allocation20 + $0x1f8] sm:$0xff]
    %v753 = vld [vmem:[#allocation20 + $0x200] sm:$0xff]
    %v754 = vld [vmem:[#allocation20 + $0x208] sm:$0xff]
    %v755 = vld [vmem:[#allocation20 + $0x210] sm:$0xff]
    %v756 = vld [vmem:[#allocation20 + $0x218] sm:$0xf]
    %v757 = vld [vmem:[#allocation20 + $0x21c] sm:$0xff]
    %v758 = vld [vmem:[#allocation20 + $0x224] sm:$0xff]
    %v759 = vld [vmem:[#allocation20 + $0x22c] sm:$0xff]
    %v760 = vld [vmem:[#allocation20 + $0x234] sm:$0xff]
    %v761 = vld [vmem:[#allocation20 + $0x23c] sm:$0xf]
    %v762 = vld [vmem:[#allocation20 + $0x240] sm:$0xff]
    %v763 = vld [vmem:[#allocation20 + $0x248] sm:$0xff]
    %v764 = vld [vmem:[#allocation20 + $0x250] sm:$0xff]
    %v765 = vld [vmem:[#allocation20 + $0x258] sm:$0xff]
    %v766 = vld [vmem:[#allocation20 + $0x260] sm:$0xf]
    %v767 = vld [vmem:[#allocation20 + $0x264] sm:$0xff]
    %v768 = vld [vmem:[#allocation20 + $0x26c] sm:$0xff]
    %v769 = vld [vmem:[#allocation20 + $0x274] sm:$0xff]
    %v770 = vld [vmem:[#allocation20 + $0x27c] sm:$0xff]
    %v771 = vld [vmem:[#allocation20 + $0x284] sm:$0xf]
    %v772 = vld [vmem:[#allocation20 + $0x288] sm:$0xff]
    %v773 = vld [vmem:[#allocation20 + $0x290] sm:$0xff]
    %v774 = vld [vmem:[#allocation20 + $0x298] sm:$0xff]
    %v775 = vld [vmem:[#allocation20 + $0x2a0] sm:$0xff]
    %v776 = vld [vmem:[#allocation20 + $0x2a8] sm:$0xf]
    %v777 = vld [vmem:[#allocation20 + $0x2ac] sm:$0xff]
    %v778 = vld [vmem:[#allocation20 + $0x2b4] sm:$0xff]
    %v779 = vld [vmem:[#allocation20 + $0x2bc] sm:$0xff]
    %v780 = vld [vmem:[#allocation20 + $0x2c4] sm:$0xff]
    %v781 = vld [vmem:[#allocation20 + $0x2cc] sm:$0xf]
    %v782 = vld [vmem:[#allocation20 + $0x2d0] sm:$0xff]
    %v783 = vld [vmem:[#allocation20 + $0x2d8] sm:$0xff]
    %v784 = vld [vmem:[#allocation20 + $0x2e0] sm:$0xff]
    %v785 = vld [vmem:[#allocation20 + $0x2e8] sm:$0xff]
    %v786 = vld [vmem:[#allocation20 + $0x2f0] sm:$0xf]
    %v787 = vld [vmem:[#allocation20 + $0x2f4] sm:$0xff]
    %v788 = vld [vmem:[#allocation20 + $0x2fc] sm:$0xff]
    %v789 = vld [vmem:[#allocation20 + $0x304] sm:$0xff]
    %v790 = vld [vmem:[#allocation20 + $0x30c] sm:$0xff]
    %v791 = vld [vmem:[#allocation20 + $0x314] sm:$0xf]
    %v792 = vld [vmem:[#allocation20 + $0x318] sm:$0xff]
    %v793 = vld [vmem:[#allocation20 + $0x320] sm:$0xff]
    %v794 = vld [vmem:[#allocation20 + $0x328] sm:$0xff]
    %v795 = vld [vmem:[#allocation20 + $0x330] sm:$0xff]
    %v796 = vld [vmem:[#allocation20 + $0x338] sm:$0xf]
    %v797 = vld [vmem:[#allocation20 + $0x33c] sm:$0xff]
    %v798 = vld [vmem:[#allocation20 + $0x344] sm:$0xff]
    %v799 = vld [vmem:[#allocation20 + $0x34c] sm:$0xff]
    %v800 = vld [vmem:[#allocation20 + $0x354] sm:$0xff]
    %v801 = vld [vmem:[#allocation20 + $0x35c] sm:$0xf]
    %v802 = vld [vmem:[#allocation20 + $0x360] sm:$0xff]
    %v803 = vld [vmem:[#allocation20 + $0x368] sm:$0xff]
    %v804 = vld [vmem:[#allocation20 + $0x370] sm:$0xff]
    %v805 = vld [vmem:[#allocation20 + $0x378] sm:$0xff]
    %v806 = vld [vmem:[#allocation20 + $0x380] sm:$0xf]
    %v807 = vld [vmem:[#allocation20 + $0x384] sm:$0xff]
    %v808 = vld [vmem:[#allocation20 + $0x38c] sm:$0xff]
    %v809 = vld [vmem:[#allocation20 + $0x394] sm:$0xff]
    %v810 = vld [vmem:[#allocation20 + $0x39c] sm:$0xff]
    %v811 = vld [vmem:[#allocation20 + $0x3a4] sm:$0xf]
    %v812 = vld [vmem:[#allocation20 + $0x3a8] sm:$0xff]
    %v813 = vld [vmem:[#allocation20 + $0x3b0] sm:$0xff]
    %v814 = vld [vmem:[#allocation20 + $0x3b8] sm:$0xff]
    %v815 = vld [vmem:[#allocation20 + $0x3c0] sm:$0xff]
    %v816 = vld [vmem:[#allocation20 + $0x3c8] sm:$0xf]
    %v817 = vld [vmem:[#allocation20 + $0x3cc] sm:$0xff]
    %v818 = vld [vmem:[#allocation20 + $0x3d4] sm:$0xff]
    %v819 = vld [vmem:[#allocation20 + $0x3dc] sm:$0xff]
    %v820 = vld [vmem:[#allocation20 + $0x3e4] sm:$0xff]
    %v821 = vld [vmem:[#allocation20 + $0x3ec] sm:$0xf]
    %v822 = vld [vmem:[#allocation20 + $0x3f0] sm:$0xff]
    %v823 = vld [vmem:[#allocation20 + $0x3f8] sm:$0xff]
    %v824 = vld [vmem:[#allocation20 + $0x400] sm:$0xff]
    %v825 = vld [vmem:[#allocation20 + $0x408] sm:$0xff]
    %v826 = vld [vmem:[#allocation20 + $0x410] sm:$0xf]
    %v827 = vld [vmem:[#allocation20 + $0x414] sm:$0xff]
    %v828 = vld [vmem:[#allocation20 + $0x41c] sm:$0xff]
    %v829 = vld [vmem:[#allocation20 + $0x424] sm:$0xff]
    %v830 = vld [vmem:[#allocation20 + $0x42c] sm:$0xff]
    %v831 = vld [vmem:[#allocation20 + $0x434] sm:$0xf]
    %v832 = vld [vmem:[#allocation20 + $0x438] sm:$0xff]
    %v833 = vld [vmem:[#allocation20 + $0x440] sm:$0xff]
    %v834 = vld [vmem:[#allocation20 + $0x448] sm:$0xff]
    %v835 = vld [vmem:[#allocation20 + $0x450] sm:$0xff]
    %v836 = vld [vmem:[#allocation20 + $0x458] sm:$0xf]
    %v837 = vld [vmem:[#allocation20 + $0x45c] sm:$0xff]
    %v838 = vld [vmem:[#allocation20 + $0x464] sm:$0xff]
    %v839 = vld [vmem:[#allocation20 + $0x46c] sm:$0xff]
    %v840 = vld [vmem:[#allocation20 + $0x474] sm:$0xff]
    %v841 = vld [vmem:[#allocation20 + $0x47c] sm:$0xf]
    %v842 = vld [vmem:[#allocation20 + $0x480] sm:$0xff]
    %v843 = vld [vmem:[#allocation20 + $0x488] sm:$0xff]
    %v844 = vld [vmem:[#allocation20 + $0x490] sm:$0xff]
    %v845 = vld [vmem:[#allocation20 + $0x498] sm:$0xff]
    %v846 = vld [vmem:[#allocation20 + $0x4a0] sm:$0xf]
    %v847 = vld [vmem:[#allocation20 + $0x4a4] sm:$0xff]
    %v848 = vld [vmem:[#allocation20 + $0x4ac] sm:$0xff]
    %v849 = vld [vmem:[#allocation20 + $0x4b4] sm:$0xff]
    %v850 = vld [vmem:[#allocation20 + $0x4bc] sm:$0xff]
    %v851 = vld [vmem:[#allocation20 + $0x4c4] sm:$0xf]
    %v852 = vld [vmem:[#allocation20 + $0x4c8] sm:$0xff]
    %v853 = vld [vmem:[#allocation20 + $0x4d0] sm:$0xff]
    %v854 = vld [vmem:[#allocation20 + $0x4d8] sm:$0xff]
    %v855 = vld [vmem:[#allocation20 + $0x4e0] sm:$0xff]
    %v856 = vld [vmem:[#allocation20 + $0x4e8] sm:$0xf]
    %v857 = vld [vmem:[#allocation20 + $0x4ec] sm:$0xff]
    %v858 = vld [vmem:[#allocation20 + $0x4f4] sm:$0xff]
    %v859 = vld [vmem:[#allocation20 + $0x4fc] sm:$0xff]
    %v860 = vld [vmem:[#allocation20 + $0x504] sm:$0xff]
    %v861 = vld [vmem:[#allocation20 + $0x50c] sm:$0xf]
    %v862 = vld [vmem:[#allocation20 + $0x510] sm:$0xff]
    %v863 = vld [vmem:[#allocation20 + $0x518] sm:$0xff]
    %v864 = vld [vmem:[#allocation20 + $0x520] sm:$0xff]
    %v865 = vld [vmem:[#allocation20 + $0x528] sm:$0xff]
    %v866 = vld [vmem:[#allocation20 + $0x530] sm:$0xf]
    %v867 = vld [vmem:[#allocation20 + $0x534] sm:$0xff]
    %v868 = vld [vmem:[#allocation20 + $0x53c] sm:$0xff]
    %v869 = vld [vmem:[#allocation20 + $0x544] sm:$0xff]
    %v870 = vld [vmem:[#allocation20 + $0x54c] sm:$0xff]
    %v871 = vld [vmem:[#allocation20 + $0x554] sm:$0xf]
    %v872 = vld [vmem:[#allocation20 + $0x558] sm:$0xff]
    %v873 = vld [vmem:[#allocation20 + $0x560] sm:$0xff]
    %v874 = vld [vmem:[#allocation20 + $0x568] sm:$0xff]
    %v875 = vld [vmem:[#allocation20 + $0x570] sm:$0xff]
    %v876 = vld [vmem:[#allocation20 + $0x578] sm:$0xf]
    %v877 = vld [vmem:[#allocation20 + $0x57c] sm:$0xff]
    %v878 = vld [vmem:[#allocation20 + $0x584] sm:$0xff]
    %v879 = vld [vmem:[#allocation20 + $0x58c] sm:$0xff]
    %v880 = vld [vmem:[#allocation20 + $0x594] sm:$0xff]
    %v881 = vld [vmem:[#allocation20 + $0x59c] sm:$0xf]
    %v882 = vld [vmem:[#allocation20 + $0x5a0] sm:$0xff]
    %v883 = vld [vmem:[#allocation20 + $0x5a8] sm:$0xff]
    %v884 = vld [vmem:[#allocation20 + $0x5b0] sm:$0xff]
    %v885 = vld [vmem:[#allocation20 + $0x5b8] sm:$0xff]
    %v886 = vld [vmem:[#allocation20 + $0x5c0] sm:$0xf]
    %v887 = vld [vmem:[#allocation20 + $0x5c4] sm:$0xff]
    %v888 = vld [vmem:[#allocation20 + $0x5cc] sm:$0xff]
    %v889 = vld [vmem:[#allocation20 + $0x5d4] sm:$0xff]
    %v890 = vld [vmem:[#allocation20 + $0x5dc] sm:$0xff]
    %v891 = vld [vmem:[#allocation20 + $0x5e4] sm:$0xf]
    %v892 = vld [vmem:[#allocation20 + $0x5e8] sm:$0xff]
    %v893 = vld [vmem:[#allocation20 + $0x5f0] sm:$0xff]
    %v894 = vld [vmem:[#allocation20 + $0x5f8] sm:$0xff]
    %v895 = vld [vmem:[#allocation20 + $0x600] sm:$0xff]
    %v896 = vld [vmem:[#allocation20 + $0x608] sm:$0xf]
    %v897 = vld [vmem:[#allocation20 + $0x60c] sm:$0xff]
    %v898 = vld [vmem:[#allocation20 + $0x614] sm:$0xff]
    %v899 = vld [vmem:[#allocation20 + $0x61c] sm:$0xff]
    %v900 = vld [vmem:[#allocation20 + $0x624] sm:$0xff]
    %v901 = vld [vmem:[#allocation20 + $0x62c] sm:$0xf]
    %v902 = vld [vmem:[#allocation20 + $0x630] sm:$0xff]
    %v903 = vld [vmem:[#allocation20 + $0x638] sm:$0xff]
    %v904 = vld [vmem:[#allocation20 + $0x640] sm:$0xff]
    %v905 = vld [vmem:[#allocation20 + $0x648] sm:$0xff]
    %v906 = vld [vmem:[#allocation20 + $0x650] sm:$0xf]
    %v907 = vld [vmem:[#allocation20 + $0x654] sm:$0xff]
    %v908 = vld [vmem:[#allocation20 + $0x65c] sm:$0xff]
    %v909 = vld [vmem:[#allocation20 + $0x664] sm:$0xff]
    %v910 = vld [vmem:[#allocation20 + $0x66c] sm:$0xff]
    %v911 = vld [vmem:[#allocation20 + $0x674] sm:$0xf]
    %v912 = vld [vmem:[#allocation20 + $0x678] sm:$0xff]
    %v913 = vld [vmem:[#allocation20 + $0x680] sm:$0xff]
    %v914 = vld [vmem:[#allocation20 + $0x688] sm:$0xff]
    %v915 = vld [vmem:[#allocation20 + $0x690] sm:$0xff]
    %v916 = vld [vmem:[#allocation20 + $0x698] sm:$0xf]
    %v917 = vld [vmem:[#allocation20 + $0x69c] sm:$0xff]
    %v918 = vld [vmem:[#allocation20 + $0x6a4] sm:$0xff]
    %v919 = vld [vmem:[#allocation20 + $0x6ac] sm:$0xff]
    %v920 = vld [vmem:[#allocation20 + $0x6b4] sm:$0xff]
    %v921 = vld [vmem:[#allocation20 + $0x6bc] sm:$0xf]
    %v922 = vld [vmem:[%s16] sm:$0xff]
    %v923 = vld [vmem:[%s16 + $0x8] sm:$0x1]
    %v924 = vld [vmem:[%s17] sm:$0xff]
    %v925 = vld [vmem:[%s17 + $0x8] sm:$0xff]
    %v926 = vld [vmem:[%s17 + $0x10] sm:$0xff]
    %v927 = vld [vmem:[%s18] sm:$0x1]
    %v928 = vld [vmem:[%s19] sm:$0x1]
    %v929 = vld [vmem:[%s20] sm:$0x1]
    %v930 = vld [vmem:[%s21] sm:$0xff]
    %v931 = vld [vmem:[%s21 + $0x8] sm:$0xff]
    %v932 = vld [vmem:[%s21 + $0x10] sm:$0xff]
    %v933 = vld [vmem:[#allocation2] sm:$0x3]
    %v934 = vpack.c.bf16 %v933, %v933
    %v936 = vlaneseq
    %v937 = vshrl.u32 %v936, 7
    %v938 = vsub.s32 0, %v937
    %v939 = vrot.slane %v238, %v938
    %v957 = vunpack.c.l.b16 %v222
    %v958 = vunpack.c.l.b16 %v223
    %v959 = vunpack.c.l.b16 %v224
    %v960 = vunpack.c.l.b16 %v225
    %v961 = vunpack.c.l.b16 %v226
    %v962 = vunpack.c.l.b16 %v227
    %v963 = vunpack.c.l.b16 %v228
    %v964 = vunpack.c.l.b16 %v229
    %v965 = vunpack.c.l.b16 %v230
    %v966 = vunpack.c.l.b16 %v231
    %v967 = vunpack.c.l.b16 %v232
    %v968 = vunpack.c.l.b16 %v233
    %v969 = vunpack.c.l.b16 %v234
    %v970 = vunpack.c.l.b16 %v235
    %v971 = vunpack.c.l.b16 %v236
    %v972 = vunpack.c.l.b16 %v237
    %v973 = vpack.c.b16 %v958, %v957
    %v974 = vpack.c.b16 %v960, %v959
    %v975 = vpack.c.b16 %v962, %v961
    %v976 = vpack.c.b16 %v964, %v963
    %v977 = vpack.c.b16 %v966, %v965
    %v978 = vpack.c.b16 %v968, %v967
    %v979 = vpack.c.b16 %v970, %v969
    %v980 = vpack.c.b16 %v972, %v971
    %989 = vmatprep.subr.bf16.mxu0 0
    %990 = vmatpush1.bf16.msra.mxu0 %v973
    %991 = vmatprep.subr.bf16.mxu0 0
    %992 = vmatpush1.bf16.msra.mxu0 %v974
    %993 = vmatprep.subr.bf16.mxu0 0
    %994 = vmatpush1.bf16.msra.mxu0 %v975
    %995 = vmatprep.subr.bf16.mxu0 0
    %996 = vmatpush1.bf16.msra.mxu0 %v976
    %997 = vmatprep.subr.bf16.mxu0 0
    %998 = vmatpush1.bf16.msra.mxu0 %v977
    %999 = vmatprep.subr.bf16.mxu0 0
    %1000 = vmatpush1.bf16.msra.mxu0 %v978
    %1001 = vmatprep.subr.bf16.mxu0 0
    %1002 = vmatpush1.bf16.msra.mxu0 %v979
    %1003 = vmatprep.subr.bf16.mxu0 0
    %1004 = vmatpush1.bf16.msra.mxu0 %v980
    %1005 = vmatprep.subr.bf16.mxu0 0
    %1006 = vmatpush1.bf16.msra.mxu0 0
    %1007 = vmatprep.subr.bf16.mxu0 0
    %1008 = vmatpush1.bf16.msra.mxu0 0
    %1009 = vmatprep.subr.bf16.mxu0 0
    %1010 = vmatpush1.bf16.msra.mxu0 0
    %1011 = vmatprep.subr.bf16.mxu0 0
    %1012 = vmatpush1.bf16.msra.mxu0 0
    %1013 = vmatprep.subr.bf16.mxu0 0
    %1014 = vmatpush1.bf16.msra.mxu0 0
    %1015 = vmatprep.subr.bf16.mxu0 0
    %1016 = vmatpush1.bf16.msra.mxu0 0
    %1017 = vmatprep.subr.bf16.mxu0 0
    %1018 = vmatpush1.bf16.msra.mxu0 0
    %1019 = vmatprep.subr.bf16.mxu0 0
    %1020 = vmatpush1.bf16.msra.mxu0 0
    %1021 = vmatprep.mubr.bf16.mxu0 0
    %1022 = vmatmul.mubr.bf16.gmra.mrb[0].mxu0 %v934
    %v1023 = vpop.f32.mrb[0].mxu0
    %v1024 = vadd.f32 %v939, %v1023
    %v1025 = vpop.f32.mrb[0].mxu0
    %v1026 = vpop.f32.mrb[0].mxu0
    %v1027 = vpop.f32.mrb[0].mxu0
    %1028 = vdwg.mxu0
    %v1029 = vmax.f32 %v1024, 0.0
    %v1030 = vpack.c.bf16 %v1029, %v1029
    %v1032 = vlaneseq
    %v1033 = vshrl.u32 %v1032, 7
    %v1034 = vsub.s32 0, %v1033
    %v1035 = vrot.slane %v271, %v1034
    %v1036 = vlaneseq
    %v1037 = vshrl.u32 %v1036, 7
    %v1038 = vsub.s32 1, %v1037
    %v1039 = vrot.slane %v271, %v1038
    %v1040 = vlaneseq
    %v1041 = vshrl.u32 %v1040, 7
    %v1042 = vsub.s32 2, %v1041
    %v1043 = vrot.slane %v271, %v1042
    %v1079 = vunpack.c.l.b16 %v239
    %v1080 = vunpack.c.h.b16 %v239
    %v1081 = vunpack.c.l.b16 %v240
    %v1082 = vunpack.c.l.b16 %v241
    %v1083 = vunpack.c.h.b16 %v241
    %v1084 = vunpack.c.l.b16 %v242
    %v1085 = vunpack.c.l.b16 %v243
    %v1086 = vunpack.c.h.b16 %v243
    %v1087 = vunpack.c.l.b16 %v244
    %v1088 = vunpack.c.l.b16 %v245
    %v1089 = vunpack.c.h.b16 %v245
    %v1090 = vunpack.c.l.b16 %v246
    %v1091 = vunpack.c.l.b16 %v247
    %v1092 = vunpack.c.h.b16 %v247
    %v1093 = vunpack.c.l.b16 %v248
    %v1094 = vunpack.c.l.b16 %v249
    %v1095 = vunpack.c.h.b16 %v249
    %v1096 = vunpack.c.l.b16 %v250
    %v1097 = vunpack.c.l.b16 %v251
    %v1098 = vunpack.c.h.b16 %v251
    %v1099 = vunpack.c.l.b16 %v252
    %v1100 = vunpack.c.l.b16 %v253
    %v1101 = vunpack.c.h.b16 %v253
    %v1102 = vunpack.c.l.b16 %v254
    %v1103 = vunpack.c.l.b16 %v255
    %v1104 = vunpack.c.h.b16 %v255
    %v1105 = vunpack.c.l.b16 %v256
    %v1106 = vunpack.c.l.b16 %v257
    %v1107 = vunpack.c.h.b16 %v257
    %v1108 = vunpack.c.l.b16 %v258
    %v1109 = vunpack.c.l.b16 %v259
    %v1110 = vunpack.c.h.b16 %v259
    %v1111 = vunpack.c.l.b16 %v260
    %v1112 = vunpack.c.l.b16 %v261
    %v1113 = vunpack.c.h.b16 %v261
    %v1114 = vunpack.c.l.b16 %v262
    %v1115 = vunpack.c.l.b16 %v263
    %v1116 = vunpack.c.h.b16 %v263
    %v1117 = vunpack.c.l.b16 %v264
    %v1118 = vunpack.c.l.b16 %v265
    %v1119 = vunpack.c.h.b16 %v265
    %v1120 = vunpack.c.l.b16 %v266
    %v1121 = vunpack.c.l.b16 %v267
    %v1122 = vunpack.c.h.b16 %v267
    %v1123 = vunpack.c.l.b16 %v268
    %v1124 = vunpack.c.l.b16 %v269
    %v1125 = vunpack.c.h.b16 %v269
    %v1126 = vunpack.c.l.b16 %v270
    %v1127 = vpack.c.b16 %v1082, %v1079
    %v1128 = vpack.c.b16 %v1083, %v1080
    %v1129 = vpack.c.b16 %v1084, %v1081
    %v1130 = vpack.c.b16 %v1088, %v1085
    %v1131 = vpack.c.b16 %v1089, %v1086
    %v1132 = vpack.c.b16 %v1090, %v1087
    %v1133 = vpack.c.b16 %v1094, %v1091
    %v1134 = vpack.c.b16 %v1095, %v1092
    %v1135 = vpack.c.b16 %v1096, %v1093
    %v1136 = vpack.c.b16 %v1100, %v1097
    %v1137 = vpack.c.b16 %v1101, %v1098
    %v1138 = vpack.c.b16 %v1102, %v1099
    %v1139 = vpack.c.b16 %v1106, %v1103
    %v1140 = vpack.c.b16 %v1107, %v1104
    %v1141 = vpack.c.b16 %v1108, %v1105
    %v1142 = vpack.c.b16 %v1112, %v1109
    %v1143 = vpack.c.b16 %v1113, %v1110
    %v1144 = vpack.c.b16 %v1114, %v1111
    %v1145 = vpack.c.b16 %v1118, %v1115
    %v1146 = vpack.c.b16 %v1119, %v1116
    %v1147 = vpack.c.b16 %v1120, %v1117
    %v1148 = vpack.c.b16 %v1124, %v1121
    %v1149 = vpack.c.b16 %v1125, %v1122
    %v1150 = vpack.c.b16 %v1126, %v1123
    %1175 = vmatprep.subr.bf16.mxu0 %v1128
    %1176 = vmatpush1.bf16.msra.mxu0 %v1127
    %1177 = vmatprep.subr.bf16.mxu0 %v1131
    %1178 = vmatpush1.bf16.msra.mxu0 %v1130
    %1179 = vmatprep.subr.bf16.mxu0 %v1134
    %1180 = vmatpush1.bf16.msra.mxu0 %v1133
    %1181 = vmatprep.subr.bf16.mxu0 %v1137
    %1182 = vmatpush1.bf16.msra.mxu0 %v1136
    %1183 = vmatprep.subr.bf16.mxu0 %v1140
    %1184 = vmatpush1.bf16.msra.mxu0 %v1139
    %1185 = vmatprep.subr.bf16.mxu0 %v1143
    %1186 = vmatpush1.bf16.msra.mxu0 %v1142
    %1187 = vmatprep.subr.bf16.mxu0 %v1146
    %1188 = vmatpush1.bf16.msra.mxu0 %v1145
    %1189 = vmatprep.subr.bf16.mxu0 %v1149
    %1190 = vmatpush1.bf16.msra.mxu0 %v1148
    %1191 = vmatprep.subr.bf16.mxu0 0
    %1192 = vmatpush1.bf16.msra.mxu0 0
    %1193 = vmatprep.subr.bf16.mxu0 0
    %1194 = vmatpush1.bf16.msra.mxu0 0
    %1195 = vmatprep.subr.bf16.mxu0 0
    %1196 = vmatpush1.bf16.msra.mxu0 0
    %1197 = vmatprep.subr.bf16.mxu0 0
    %1198 = vmatpush1.bf16.msra.mxu0 0
    %1199 = vmatprep.subr.bf16.mxu0 0
    %1200 = vmatpush1.bf16.msra.mxu0 0
    %1201 = vmatprep.subr.bf16.mxu0 0
    %1202 = vmatpush1.bf16.msra.mxu0 0
    %1203 = vmatprep.subr.bf16.mxu0 0
    %1204 = vmatpush1.bf16.msra.mxu0 0
    %1205 = vmatprep.subr.bf16.mxu0 0
    %1206 = vmatpush1.bf16.msra.mxu0 0
    %1207 = vmatprep.mubr.bf16.mxu0 0
    %1208 = vmatmul.mubr.bf16.gmra.mrb[0].mxu0 %v1030
    %v1209 = vpop.f32.mrb[0].mxu0
    %v1210 = vadd.f32 %v1035, %v1209
    %v1211 = vpop.f32.mrb[0].mxu0
    %v1212 = vadd.f32 %v1039, %v1211
    %v1213 = vpop.f32.mrb[0].mxu0
    %v1214 = vpop.f32.mrb[0].mxu0
    %1215 = vdwg.mxu0
    %1216 = vmatprep.subr.bf16.mxu0 0
    %1217 = vmatpush1.bf16.msra.mxu0 %v1129
    %1218 = vmatprep.subr.bf16.mxu0 0
    %1219 = vmatpush1.bf16.msra.mxu0 %v1132
    %1220 = vmatprep.subr.bf16.mxu0 0
    %1221 = vmatpush1.bf16.msra.mxu0 %v1135
    %1222 = vmatprep.subr.bf16.mxu0 0
    %1223 = vmatpush1.bf16.msra.mxu0 %v1138
    %1224 = vmatprep.subr.bf16.mxu0 0
    %1225 = vmatpush1.bf16.msra.mxu0 %v1141
    %1226 = vmatprep.subr.bf16.mxu0 0
    %1227 = vmatpush1.bf16.msra.mxu0 %v1144
    %1228 = vmatprep.subr.bf16.mxu0 0
    %1229 = vmatpush1.bf16.msra.mxu0 %v1147
    %1230 = vmatprep.subr.bf16.mxu0 0
    %1231 = vmatpush1.bf16.msra.mxu0 %v1150
    %1232 = vmatprep.subr.bf16.mxu0 0
    %1233 = vmatpush1.bf16.msra.mxu0 0
    %1234 = vmatprep.subr.bf16.mxu0 0
    %1235 = vmatpush1.bf16.msra.mxu0 0
    %1236 = vmatprep.subr.bf16.mxu0 0
    %1237 = vmatpush1.bf16.msra.mxu0 0
    %1238 = vmatprep.subr.bf16.mxu0 0
    %1239 = vmatpush1.bf16.msra.mxu0 0
    %1240 = vmatprep.subr.bf16.mxu0 0
    %1241 = vmatpush1.bf16.msra.mxu0 0
    %1242 = vmatprep.subr.bf16.mxu0 0
    %1243 = vmatpush1.bf16.msra.mxu0 0
    %1244 = vmatprep.subr.bf16.mxu0 0
    %1245 = vmatpush1.bf16.msra.mxu0 0
    %1246 = vmatprep.subr.bf16.mxu0 0
    %1247 = vmatpush1.bf16.msra.mxu0 0
    %1248 = vmatprep.mubr.bf16.mxu0 0
    %1249 = vmatmul.mubr.bf16.gmra.mrb[0].mxu0 %v1030
    %v1250 = vpop.f32.mrb[0].mxu0
    %v1251 = vadd.f32 %v1043, %v1250
    %v1252 = vpop.f32.mrb[0].mxu0
    %v1253 = vpop.f32.mrb[0].mxu0
    %v1254 = vpop.f32.mrb[0].mxu0
    %1255 = vdwg.mxu0
    %v1256 = vmax.f32 %v1210, 0.0
    %v1257 = vmax.f32 %v1212, 0.0
    %v1258 = vmax.f32 %v1251, 0.0
    %v1259 = vpack.c.bf16 %v1256, %v1256
    %v1260 = vpack.c.bf16 %v1257, %v1257
    %v1261 = vpack.c.bf16 %v1258, %v1258
    %v1264 = vlaneseq
    %v1265 = vshrl.u32 %v1264, 7
    %v1266 = vsub.s32 0, %v1265
    %v1267 = vrot.slane %v512, %v1266
    %v1268 = vlaneseq
    %v1269 = vshrl.u32 %v1268, 7
    %v1270 = vsub.s32 1, %v1269
    %v1271 = vrot.slane %v512, %v1270
    %v1272 = vlaneseq
    %v1273 = vshrl.u32 %v1272, 7
    %v1274 = vsub.s32 2, %v1273
    %v1275 = vrot.slane %v512, %v1274
    %v1276 = vlaneseq
    %v1277 = vshrl.u32 %v1276, 7
    %v1278 = vsub.s32 3, %v1277
    %v1279 = vrot.slane %v512, %v1278
    %v1280 = vlaneseq
    %v1281 = vshrl.u32 %v1280, 7
    %v1282 = vsub.s32 4, %v1281
    %v1283 = vrot.slane %v512, %v1282
    %v1284 = vlaneseq
    %v1285 = vshrl.u32 %v1284, 7
    %v1286 = vsub.s32 5, %v1285
    %v1287 = vrot.slane %v512, %v1286
    %v1288 = vlaneseq
    %v1289 = vshrl.u32 %v1288, 7
    %v1290 = vsub.s32 6, %v1289
    %v1291 = vrot.slane %v512, %v1290
    %v1292 = vlaneseq
    %v1293 = vshrl.u32 %v1292, 7
    %v1294 = vsub.s32 7, %v1293
    %v1295 = vrot.slane %v512, %v1294
    %v1296 = vlaneseq
    %v1297 = vshrl.u32 %v1296, 7
    %v1298 = vsub.s32 0, %v1297
    %v1299 = vrot.slane %v513, %v1298
    %v1549 = vunpack.c.l.b16 %v272
    %v1550 = vunpack.c.h.b16 %v272
    %v1551 = vunpack.c.l.b16 %v273
    %v1552 = vunpack.c.h.b16 %v273
    %v1553 = vunpack.c.l.b16 %v274
    %v1554 = vunpack.c.h.b16 %v274
    %v1555 = vunpack.c.l.b16 %v275
    %v1556 = vunpack.c.h.b16 %v275
    %v1557 = vunpack.c.l.b16 %v276
    %v1558 = vunpack.c.l.b16 %v277
    %v1559 = vunpack.c.h.b16 %v277
    %v1560 = vunpack.c.l.b16 %v278
    %v1561 = vunpack.c.h.b16 %v278
    %v1562 = vunpack.c.l.b16 %v279
    %v1563 = vunpack.c.h.b16 %v279
    %v1564 = vunpack.c.l.b16 %v280
    %v1565 = vunpack.c.h.b16 %v280
    %v1566 = vunpack.c.l.b16 %v281
    %v1567 = vunpack.c.l.b16 %v282
    %v1568 = vunpack.c.h.b16 %v282
    %v1569 = vunpack.c.l.b16 %v283
    %v1570 = vunpack.c.h.b16 %v283
    %v1571 = vunpack.c.l.b16 %v284
    %v1572 = vunpack.c.h.b16 %v284
    %v1573 = vunpack.c.l.b16 %v285
    %v1574 = vunpack.c.h.b16 %v285
    %v1575 = vunpack.c.l.b16 %v286
    %v1576 = vunpack.c.l.b16 %v287
    %v1577 = vunpack.c.h.b16 %v287
    %v1578 = vunpack.c.l.b16 %v288
    %v1579 = vunpack.c.h.b16 %v288
    %v1580 = vunpack.c.l.b16 %v289
    %v1581 = vunpack.c.h.b16 %v289
    %v1582 = vunpack.c.l.b16 %v290
    %v1583 = vunpack.c.h.b16 %v290
    %v1584 = vunpack.c.l.b16 %v291
    %v1585 = vunpack.c.l.b16 %v292
    %v1586 = vunpack.c.h.b16 %v292
    %v1587 = vunpack.c.l.b16 %v293
    %v1588 = vunpack.c.h.b16 %v293
    %v1589 = vunpack.c.l.b16 %v294
    %v1590 = vunpack.c.h.b16 %v294
    %v1591 = vunpack.c.l.b16 %v295
    %v1592 = vunpack.c.h.b16 %v295
    %v1593 = vunpack.c.l.b16 %v296
    %v1594 = vunpack.c.l.b16 %v297
    %v1595 = vunpack.c.h.b16 %v297
    %v1596 = vunpack.c.l.b16 %v298
    %v1597 = vunpack.c.h.b16 %v298
    %v1598 = vunpack.c.l.b16 %v299
    %v1599 = vunpack.c.h.b16 %v299
    %v1600 = vunpack.c.l.b16 %v300
    %v1601 = vunpack.c.h.b16 %v300
    %v1602 = vunpack.c.l.b16 %v301
    %v1603 = vunpack.c.l.b16 %v302
    %v1604 = vunpack.c.h.b16 %v302
    %v1605 = vunpack.c.l.b16 %v303
    %v1606 = vunpack.c.h.b16 %v303
    %v1607 = vunpack.c.l.b16 %v304
    %v1608 = vunpack.c.h.b16 %v304
    %v1609 = vunpack.c.l.b16 %v305
    %v1610 = vunpack.c.h.b16 %v305
    %v1611 = vunpack.c.l.b16 %v306
    %v1612 = vunpack.c.l.b16 %v307
    %v1613 = vunpack.c.h.b16 %v307
    %v1614 = vunpack.c.l.b16 %v308
    %v1615 = vunpack.c.h.b16 %v308
    %v1616 = vunpack.c.l.b16 %v309
    %v1617 = vunpack.c.h.b16 %v309
    %v1618 = vunpack.c.l.b16 %v310
    %v1619 = vunpack.c.h.b16 %v310
    %v1620 = vunpack.c.l.b16 %v311
    %v1621 = vunpack.c.l.b16 %v312
    %v1622 = vunpack.c.h.b16 %v312
    %v1623 = vunpack.c.l.b16 %v313
    %v1624 = vunpack.c.h.b16 %v313
    %v1625 = vunpack.c.l.b16 %v314
    %v1626 = vunpack.c.h.b16 %v314
    %v1627 = vunpack.c.l.b16 %v315
    %v1628 = vunpack.c.h.b16 %v315
    %v1629 = vunpack.c.l.b16 %v316
    %v1630 = vunpack.c.l.b16 %v317
    %v1631 = vunpack.c.h.b16 %v317
    %v1632 = vunpack.c.l.b16 %v318
    %v1633 = vunpack.c.h.b16 %v318
    %v1634 = vunpack.c.l.b16 %v319
    %v1635 = vunpack.c.h.b16 %v319
    %v1636 = vunpack.c.l.b16 %v320
    %v1637 = vunpack.c.h.b16 %v320
    %v1638 = vunpack.c.l.b16 %v321
    %v1639 = vunpack.c.l.b16 %v322
    %v1640 = vunpack.c.h.b16 %v322
    %v1641 = vunpack.c.l.b16 %v323
    %v1642 = vunpack.c.h.b16 %v323
    %v1643 = vunpack.c.l.b16 %v324
    %v1644 = vunpack.c.h.b16 %v324
    %v1645 = vunpack.c.l.b16 %v325
    %v1646 = vunpack.c.h.b16 %v325
    %v1647 = vunpack.c.l.b16 %v326
    %v1648 = vunpack.c.l.b16 %v327
    %v1649 = vunpack.c.h.b16 %v327
    %v1650 = vunpack.c.l.b16 %v328
    %v1651 = vunpack.c.h.b16 %v328
    %v1652 = vunpack.c.l.b16 %v329
    %v1653 = vunpack.c.h.b16 %v329
    %v1654 = vunpack.c.l.b16 %v330
    %v1655 = vunpack.c.h.b16 %v330
    %v1656 = vunpack.c.l.b16 %v331
    %v1657 = vunpack.c.l.b16 %v332
    %v1658 = vunpack.c.h.b16 %v332
    %v1659 = vunpack.c.l.b16 %v333
    %v1660 = vunpack.c.h.b16 %v333
    %v1661 = vunpack.c.l.b16 %v334
    %v1662 = vunpack.c.h.b16 %v334
    %v1663 = vunpack.c.l.b16 %v335
    %v1664 = vunpack.c.h.b16 %v335
    %v1665 = vunpack.c.l.b16 %v336
    %v1666 = vunpack.c.l.b16 %v337
    %v1667 = vunpack.c.h.b16 %v337
    %v1668 = vunpack.c.l.b16 %v338
    %v1669 = vunpack.c.h.b16 %v338
    %v1670 = vunpack.c.l.b16 %v339
    %v1671 = vunpack.c.h.b16 %v339
    %v1672 = vunpack.c.l.b16 %v340
    %v1673 = vunpack.c.h.b16 %v340
    %v1674 = vunpack.c.l.b16 %v341
    %v1675 = vunpack.c.l.b16 %v342
    %v1676 = vunpack.c.h.b16 %v342
    %v1677 = vunpack.c.l.b16 %v343
    %v1678 = vunpack.c.h.b16 %v343
    %v1679 = vunpack.c.l.b16 %v344
    %v1680 = vunpack.c.h.b16 %v344
    %v1681 = vunpack.c.l.b16 %v345
    %v1682 = vunpack.c.h.b16 %v345
    %v1683 = vunpack.c.l.b16 %v346
    %v1684 = vunpack.c.l.b16 %v347
    %v1685 = vunpack.c.h.b16 %v347
    %v1686 = vunpack.c.l.b16 %v348
    %v1687 = vunpack.c.h.b16 %v348
    %v1688 = vunpack.c.l.b16 %v349
    %v1689 = vunpack.c.h.b16 %v349
    %v1690 = vunpack.c.l.b16 %v350
    %v1691 = vunpack.c.h.b16 %v350
    %v1692 = vunpack.c.l.b16 %v351
    %v1693 = vunpack.c.l.b16 %v352
    %v1694 = vunpack.c.h.b16 %v352
    %v1695 = vunpack.c.l.b16 %v353
    %v1696 = vunpack.c.h.b16 %v353
    %v1697 = vunpack.c.l.b16 %v354
    %v1698 = vunpack.c.h.b16 %v354
    %v1699 = vunpack.c.l.b16 %v355
    %v1700 = vunpack.c.h.b16 %v355
    %v1701 = vunpack.c.l.b16 %v356
    %v1702 = vunpack.c.l.b16 %v357
    %v1703 = vunpack.c.h.b16 %v357
    %v1704 = vunpack.c.l.b16 %v358
    %v1705 = vunpack.c.h.b16 %v358
    %v1706 = vunpack.c.l.b16 %v359
    %v1707 = vunpack.c.h.b16 %v359
    %v1708 = vunpack.c.l.b16 %v360
    %v1709 = vunpack.c.h.b16 %v360
    %v1710 = vunpack.c.l.b16 %v361
    %v1711 = vunpack.c.l.b16 %v362
    %v1712 = vunpack.c.h.b16 %v362
    %v1713 = vunpack.c.l.b16 %v363
    %v1714 = vunpack.c.h.b16 %v363
    %v1715 = vunpack.c.l.b16 %v364
    %v1716 = vunpack.c.h.b16 %v364
    %v1717 = vunpack.c.l.b16 %v365
    %v1718 = vunpack.c.h.b16 %v365
    %v1719 = vunpack.c.l.b16 %v366
    %v1720 = vunpack.c.l.b16 %v367
    %v1721 = vunpack.c.h.b16 %v367
    %v1722 = vunpack.c.l.b16 %v368
    %v1723 = vunpack.c.h.b16 %v368
    %v1724 = vunpack.c.l.b16 %v369
    %v1725 = vunpack.c.h.b16 %v369
    %v1726 = vunpack.c.l.b16 %v370
    %v1727 = vunpack.c.h.b16 %v370
    %v1728 = vunpack.c.l.b16 %v371
    %v1729 = vunpack.c.l.b16 %v372
    %v1730 = vunpack.c.h.b16 %v372
    %v1731 = vunpack.c.l.b16 %v373
    %v1732 = vunpack.c.h.b16 %v373
    %v1733 = vunpack.c.l.b16 %v374
    %v1734 = vunpack.c.h.b16 %v374
    %v1735 = vunpack.c.l.b16 %v375
    %v1736 = vunpack.c.h.b16 %v375
    %v1737 = vunpack.c.l.b16 %v376
    %v1738 = vunpack.c.l.b16 %v377
    %v1739 = vunpack.c.h.b16 %v377
    %v1740 = vunpack.c.l.b16 %v378
    %v1741 = vunpack.c.h.b16 %v378
    %v1742 = vunpack.c.l.b16 %v379
    %v1743 = vunpack.c.h.b16 %v379
    %v1744 = vunpack.c.l.b16 %v380
    %v1745 = vunpack.c.h.b16 %v380
    %v1746 = vunpack.c.l.b16 %v381
    %v1747 = vunpack.c.l.b16 %v382
    %v1748 = vunpack.c.h.b16 %v382
    %v1749 = vunpack.c.l.b16 %v383
    %v1750 = vunpack.c.h.b16 %v383
    %v1751 = vunpack.c.l.b16 %v384
    %v1752 = vunpack.c.h.b16 %v384
    %v1753 = vunpack.c.l.b16 %v385
    %v1754 = vunpack.c.h.b16 %v385
    %v1755 = vunpack.c.l.b16 %v386
    %v1756 = vunpack.c.l.b16 %v387
    %v1757 = vunpack.c.h.b16 %v387
    %v1758 = vunpack.c.l.b16 %v388
    %v1759 = vunpack.c.h.b16 %v388
    %v1760 = vunpack.c.l.b16 %v389
    %v1761 = vunpack.c.h.b16 %v389
    %v1762 = vunpack.c.l.b16 %v390
    %v1763 = vunpack.c.h.b16 %v390
    %v1764 = vunpack.c.l.b16 %v391
    %v1765 = vunpack.c.l.b16 %v392
    %v1766 = vunpack.c.h.b16 %v392
    %v1767 = vunpack.c.l.b16 %v393
    %v1768 = vunpack.c.h.b16 %v393
    %v1769 = vunpack.c.l.b16 %v394
    %v1770 = vunpack.c.h.b16 %v394
    %v1771 = vunpack.c.l.b16 %v395
    %v1772 = vunpack.c.h.b16 %v395
    %v1773 = vunpack.c.l.b16 %v396
    %v1774 = vunpack.c.l.b16 %v397
    %v1775 = vunpack.c.h.b16 %v397
    %v1776 = vunpack.c.l.b16 %v398
    %v1777 = vunpack.c.h.b16 %v398
    %v1778 = vunpack.c.l.b16 %v399
    %v1779 = vunpack.c.h.b16 %v399
    %v1780 = vunpack.c.l.b16 %v400
    %v1781 = vunpack.c.h.b16 %v400
    %v1782 = vunpack.c.l.b16 %v401
    %v1783 = vunpack.c.l.b16 %v402
    %v1784 = vunpack.c.h.b16 %v402
    %v1785 = vunpack.c.l.b16 %v403
    %v1786 = vunpack.c.h.b16 %v403
    %v1787 = vunpack.c.l.b16 %v404
    %v1788 = vunpack.c.h.b16 %v404
    %v1789 = vunpack.c.l.b16 %v405
    %v1790 = vunpack.c.h.b16 %v405
    %v1791 = vunpack.c.l.b16 %v406
    %v1792 = vunpack.c.l.b16 %v407
    %v1793 = vunpack.c.h.b16 %v407
    %v1794 = vunpack.c.l.b16 %v408
    %v1795 = vunpack.c.h.b16 %v408
    %v1796 = vunpack.c.l.b16 %v409
    %v1797 = vunpack.c.h.b16 %v409
    %v1798 = vunpack.c.l.b16 %v410
    %v1799 = vunpack.c.h.b16 %v410
    %v1800 = vunpack.c.l.b16 %v411
    %v1801 = vunpack.c.l.b16 %v412
    %v1802 = vunpack.c.h.b16 %v412
    %v1803 = vunpack.c.l.b16 %v413
    %v1804 = vunpack.c.h.b16 %v413
    %v1805 = vunpack.c.l.b16 %v414
    %v1806 = vunpack.c.h.b16 %v414
    %v1807 = vunpack.c.l.b16 %v415
    %v1808 = vunpack.c.h.b16 %v415
    %v1809 = vunpack.c.l.b16 %v416
    %v1810 = vunpack.c.l.b16 %v417
    %v1811 = vunpack.c.h.b16 %v417
    %v1812 = vunpack.c.l.b16 %v418
    %v1813 = vunpack.c.h.b16 %v418
    %v1814 = vunpack.c.l.b16 %v419
    %v1815 = vunpack.c.h.b16 %v419
    %v1816 = vunpack.c.l.b16 %v420
    %v1817 = vunpack.c.h.b16 %v420
    %v1818 = vunpack.c.l.b16 %v421
    %v1819 = vunpack.c.l.b16 %v422
    %v1820 = vunpack.c.h.b16 %v422
    %v1821 = vunpack.c.l.b16 %v423
    %v1822 = vunpack.c.h.b16 %v423
    %v1823 = vunpack.c.l.b16 %v424
    %v1824 = vunpack.c.h.b16 %v424
    %v1825 = vunpack.c.l.b16 %v425
    %v1826 = vunpack.c.h.b16 %v425
    %v1827 = vunpack.c.l.b16 %v426
    %v1828 = vunpack.c.l.b16 %v427
    %v1829 = vunpack.c.h.b16 %v427
    %v1830 = vunpack.c.l.b16 %v428
    %v1831 = vunpack.c.h.b16 %v428
    %v1832 = vunpack.c.l.b16 %v429
    %v1833 = vunpack.c.h.b16 %v429
    %v1834 = vunpack.c.l.b16 %v430
    %v1835 = vunpack.c.h.b16 %v430
    %v1836 = vunpack.c.l.b16 %v431
    %v1837 = vunpack.c.l.b16 %v432
    %v1838 = vunpack.c.h.b16 %v432
    %v1839 = vunpack.c.l.b16 %v433
    %v1840 = vunpack.c.h.b16 %v433
    %v1841 = vunpack.c.l.b16 %v434
    %v1842 = vunpack.c.h.b16 %v434
    %v1843 = vunpack.c.l.b16 %v435
    %v1844 = vunpack.c.h.b16 %v435
    %v1845 = vunpack.c.l.b16 %v436
    %v1846 = vunpack.c.l.b16 %v437
    %v1847 = vunpack.c.h.b16 %v437
    %v1848 = vunpack.c.l.b16 %v438
    %v1849 = vunpack.c.h.b16 %v438
    %v1850 = vunpack.c.l.b16 %v439
    %v1851 = vunpack.c.h.b16 %v439
    %v1852 = vunpack.c.l.b16 %v440
    %v1853 = vunpack.c.h.b16 %v440
    %v1854 = vunpack.c.l.b16 %v441
    %v1855 = vunpack.c.l.b16 %v442
    %v1856 = vunpack.c.h.b16 %v442
    %v1857 = vunpack.c.l.b16 %v443
    %v1858 = vunpack.c.h.b16 %v443
    %v1859 = vunpack.c.l.b16 %v444
    %v1860 = vunpack.c.h.b16 %v444
    %v1861 = vunpack.c.l.b16 %v445
    %v1862 = vunpack.c.h.b16 %v445
    %v1863 = vunpack.c.l.b16 %v446
    %v1864 = vunpack.c.l.b16 %v447
    %v1865 = vunpack.c.h.b16 %v447
    %v1866 = vunpack.c.l.b16 %v448
    %v1867 = vunpack.c.h.b16 %v448
    %v1868 = vunpack.c.l.b16 %v449
    %v1869 = vunpack.c.h.b16 %v449
    %v1870 = vunpack.c.l.b16 %v450
    %v1871 = vunpack.c.h.b16 %v450
    %v1872 = vunpack.c.l.b16 %v451
    %v1873 = vunpack.c.l.b16 %v452
    %v1874 = vunpack.c.h.b16 %v452
    %v1875 = vunpack.c.l.b16 %v453
    %v1876 = vunpack.c.h.b16 %v453
    %v1877 = vunpack.c.l.b16 %v454
    %v1878 = vunpack.c.h.b16 %v454
    %v1879 = vunpack.c.l.b16 %v455
    %v1880 = vunpack.c.h.b16 %v455
    %v1881 = vunpack.c.l.b16 %v456
    %v1882 = vunpack.c.l.b16 %v457
    %v1883 = vunpack.c.h.b16 %v457
    %v1884 = vunpack.c.l.b16 %v458
    %v1885 = vunpack.c.h.b16 %v458
    %v1886 = vunpack.c.l.b16 %v459
    %v1887 = vunpack.c.h.b16 %v459
    %v1888 = vunpack.c.l.b16 %v460
    %v1889 = vunpack.c.h.b16 %v460
    %v1890 = vunpack.c.l.b16 %v461
    %v1891 = vunpack.c.l.b16 %v462
    %v1892 = vunpack.c.h.b16 %v462
    %v1893 = vunpack.c.l.b16 %v463
    %v1894 = vunpack.c.h.b16 %v463
    %v1895 = vunpack.c.l.b16 %v464
    %v1896 = vunpack.c.h.b16 %v464
    %v1897 = vunpack.c.l.b16 %v465
    %v1898 = vunpack.c.h.b16 %v465
    %v1899 = vunpack.c.l.b16 %v466
    %v1900 = vunpack.c.l.b16 %v467
    %v1901 = vunpack.c.h.b16 %v467
    %v1902 = vunpack.c.l.b16 %v468
    %v1903 = vunpack.c.h.b16 %v468
    %v1904 = vunpack.c.l.b16 %v469
    %v1905 = vunpack.c.h.b16 %v469
    %v1906 = vunpack.c.l.b16 %v470
    %v1907 = vunpack.c.h.b16 %v470
    %v1908 = vunpack.c.l.b16 %v471
    %v1909 = vunpack.c.l.b16 %v472
    %v1910 = vunpack.c.h.b16 %v472
    %v1911 = vunpack.c.l.b16 %v473
    %v1912 = vunpack.c.h.b16 %v473
    %v1913 = vunpack.c.l.b16 %v474
    %v1914 = vunpack.c.h.b16 %v474
    %v1915 = vunpack.c.l.b16 %v475
    %v1916 = vunpack.c.h.b16 %v475
    %v1917 = vunpack.c.l.b16 %v476
    %v1918 = vunpack.c.l.b16 %v477
    %v1919 = vunpack.c.h.b16 %v477
    %v1920 = vunpack.c.l.b16 %v478
    %v1921 = vunpack.c.h.b16 %v478
    %v1922 = vunpack.c.l.b16 %v479
    %v1923 = vunpack.c.h.b16 %v479
    %v1924 = vunpack.c.l.b16 %v480
    %v1925 = vunpack.c.h.b16 %v480
    %v1926 = vunpack.c.l.b16 %v481
    %v1927 = vunpack.c.l.b16 %v482
    %v1928 = vunpack.c.h.b16 %v482
    %v1929 = vunpack.c.l.b16 %v483
    %v1930 = vunpack.c.h.b16 %v483
    %v1931 = vunpack.c.l.b16 %v484
    %v1932 = vunpack.c.h.b16 %v484
    %v1933 = vunpack.c.l.b16 %v485
    %v1934 = vunpack.c.h.b16 %v485
    %v1935 = vunpack.c.l.b16 %v486
    %v1936 = vunpack.c.l.b16 %v487
    %v1937 = vunpack.c.h.b16 %v487
    %v1938 = vunpack.c.l.b16 %v488
    %v1939 = vunpack.c.h.b16 %v488
    %v1940 = vunpack.c.l.b16 %v489
    %v1941 = vunpack.c.h.b16 %v489
    %v1942 = vunpack.c.l.b16 %v490
    %v1943 = vunpack.c.h.b16 %v490
    %v1944 = vunpack.c.l.b16 %v491
    %v1945 = vunpack.c.l.b16 %v492
    %v1946 = vunpack.c.h.b16 %v492
    %v1947 = vunpack.c.l.b16 %v493
    %v1948 = vunpack.c.h.b16 %v493
    %v1949 = vunpack.c.l.b16 %v494
    %v1950 = vunpack.c.h.b16 %v494
    %v1951 = vunpack.c.l.b16 %v495
    %v1952 = vunpack.c.h.b16 %v495
    %v1953 = vunpack.c.l.b16 %v496
    %v1954 = vunpack.c.l.b16 %v497
    %v1955 = vunpack.c.h.b16 %v497
    %v1956 = vunpack.c.l.b16 %v498
    %v1957 = vunpack.c.h.b16 %v498
    %v1958 = vunpack.c.l.b16 %v499
    %v1959 = vunpack.c.h.b16 %v499
    %v1960 = vunpack.c.l.b16 %v500
    %v1961 = vunpack.c.h.b16 %v500
    %v1962 = vunpack.c.l.b16 %v501
    %v1963 = vunpack.c.l.b16 %v502
    %v1964 = vunpack.c.h.b16 %v502
    %v1965 = vunpack.c.l.b16 %v503
    %v1966 = vunpack.c.h.b16 %v503
    %v1967 = vunpack.c.l.b16 %v504
    %v1968 = vunpack.c.h.b16 %v504
    %v1969 = vunpack.c.l.b16 %v505
    %v1970 = vunpack.c.h.b16 %v505
    %v1971 = vunpack.c.l.b16 %v506
    %v1972 = vunpack.c.l.b16 %v507
    %v1973 = vunpack.c.h.b16 %v507
    %v1974 = vunpack.c.l.b16 %v508
    %v1975 = vunpack.c.h.b16 %v508
    %v1976 = vunpack.c.l.b16 %v509
    %v1977 = vunpack.c.h.b16 %v509
    %v1978 = vunpack.c.l.b16 %v510
    %v1979 = vunpack.c.h.b16 %v510
    %v1980 = vunpack.c.l.b16 %v511
    %v1981 = vpack.c.b16 %v1558, %v1549
    %v1982 = vpack.c.b16 %v1559, %v1550
    %v1983 = vpack.c.b16 %v1560, %v1551
    %v1984 = vpack.c.b16 %v1561, %v1552
    %v1985 = vpack.c.b16 %v1562, %v1553
    %v1986 = vpack.c.b16 %v1563, %v1554
    %v1987 = vpack.c.b16 %v1564, %v1555
    %v1988 = vpack.c.b16 %v1565, %v1556
    %v1989 = vpack.c.b16 %v1566, %v1557
    %v1990 = vpack.c.b16 %v1576, %v1567
    %v1991 = vpack.c.b16 %v1577, %v1568
    %v1992 = vpack.c.b16 %v1578, %v1569
    %v1993 = vpack.c.b16 %v1579, %v1570
    %v1994 = vpack.c.b16 %v1580, %v1571
    %v1995 = vpack.c.b16 %v1581, %v1572
    %v1996 = vpack.c.b16 %v1582, %v1573
    %v1997 = vpack.c.b16 %v1583, %v1574
    %v1998 = vpack.c.b16 %v1584, %v1575
    %v1999 = vpack.c.b16 %v1594, %v1585
    %v2000 = vpack.c.b16 %v1595, %v1586
    %v2001 = vpack.c.b16 %v1596, %v1587
    %v2002 = vpack.c.b16 %v1597, %v1588
    %v2003 = vpack.c.b16 %v1598, %v1589
    %v2004 = vpack.c.b16 %v1599, %v1590
    %v2005 = vpack.c.b16 %v1600, %v1591
    %v2006 = vpack.c.b16 %v1601, %v1592
    %v2007 = vpack.c.b16 %v1602, %v1593
    %v2008 = vpack.c.b16 %v1612, %v1603
    %v2009 = vpack.c.b16 %v1613, %v1604
    %v2010 = vpack.c.b16 %v1614, %v1605
    %v2011 = vpack.c.b16 %v1615, %v1606
    %v2012 = vpack.c.b16 %v1616, %v1607
    %v2013 = vpack.c.b16 %v1617, %v1608
    %v2014 = vpack.c.b16 %v1618, %v1609
    %v2015 = vpack.c.b16 %v1619, %v1610
    %v2016 = vpack.c.b16 %v1620, %v1611
    %v2017 = vpack.c.b16 %v1630, %v1621
    %v2018 = vpack.c.b16 %v1631, %v1622
    %v2019 = vpack.c.b16 %v1632, %v1623
    %v2020 = vpack.c.b16 %v1633, %v1624
    %v2021 = vpack.c.b16 %v1634, %v1625
    %v2022 = vpack.c.b16 %v1635, %v1626
    %v2023 = vpack.c.b16 %v1636, %v1627
    %v2024 = vpack.c.b16 %v1637, %v1628
    %v2025 = vpack.c.b16 %v1638, %v1629
    %v2026 = vpack.c.b16 %v1648, %v1639
    %v2027 = vpack.c.b16 %v1649, %v1640
    %v2028 = vpack.c.b16 %v1650, %v1641
    %v2029 = vpack.c.b16 %v1651, %v1642
    %v2030 = vpack.c.b16 %v1652, %v1643
    %v2031 = vpack.c.b16 %v1653, %v1644
    %v2032 = vpack.c.b16 %v1654, %v1645
    %v2033 = vpack.c.b16 %v1655, %v1646
    %v2034 = vpack.c.b16 %v1656, %v1647
    %v2035 = vpack.c.b16 %v1666, %v1657
    %v2036 = vpack.c.b16 %v1667, %v1658
    %v2037 = vpack.c.b16 %v1668, %v1659
    %v2038 = vpack.c.b16 %v1669, %v1660
    %v2039 = vpack.c.b16 %v1670, %v1661
    %v2040 = vpack.c.b16 %v1671, %v1662
    %v2041 = vpack.c.b16 %v1672, %v1663
    %v2042 = vpack.c.b16 %v1673, %v1664
    %v2043 = vpack.c.b16 %v1674, %v1665
    %v2044 = vpack.c.b16 %v1684, %v1675
    %v2045 = vpack.c.b16 %v1685, %v1676
    %v2046 = vpack.c.b16 %v1686, %v1677
    %v2047 = vpack.c.b16 %v1687, %v1678
    %v2048 = vpack.c.b16 %v1688, %v1679
    %v2049 = vpack.c.b16 %v1689, %v1680
    %v2050 = vpack.c.b16 %v1690, %v1681
    %v2051 = vpack.c.b16 %v1691, %v1682
    %v2052 = vpack.c.b16 %v1692, %v1683
    %v2053 = vpack.c.b16 %v1702, %v1693
    %v2054 = vpack.c.b16 %v1703, %v1694
    %v2055 = vpack.c.b16 %v1704, %v1695
    %v2056 = vpack.c.b16 %v1705, %v1696
    %v2057 = vpack.c.b16 %v1706, %v1697
    %v2058 = vpack.c.b16 %v1707, %v1698
    %v2059 = vpack.c.b16 %v1708, %v1699
    %v2060 = vpack.c.b16 %v1709, %v1700
    %v2061 = vpack.c.b16 %v1710, %v1701
    %v2062 = vpack.c.b16 %v1720, %v1711
    %v2063 = vpack.c.b16 %v1721, %v1712
    %v2064 = vpack.c.b16 %v1722, %v1713
    %v2065 = vpack.c.b16 %v1723, %v1714
    %v2066 = vpack.c.b16 %v1724, %v1715
    %v2067 = vpack.c.b16 %v1725, %v1716
    %v2068 = vpack.c.b16 %v1726, %v1717
    %v2069 = vpack.c.b16 %v1727, %v1718
    %v2070 = vpack.c.b16 %v1728, %v1719
    %v2071 = vpack.c.b16 %v1738, %v1729
    %v2072 = vpack.c.b16 %v1739, %v1730
    %v2073 = vpack.c.b16 %v1740, %v1731
    %v2074 = vpack.c.b16 %v1741, %v1732
    %v2075 = vpack.c.b16 %v1742, %v1733
    %v2076 = vpack.c.b16 %v1743, %v1734
    %v2077 = vpack.c.b16 %v1744, %v1735
    %v2078 = vpack.c.b16 %v1745, %v1736
    %v2079 = vpack.c.b16 %v1746, %v1737
    %v2080 = vpack.c.b16 %v1756, %v1747
    %v2081 = vpack.c.b16 %v1757, %v1748
    %v2082 = vpack.c.b16 %v1758, %v1749
    %v2083 = vpack.c.b16 %v1759, %v1750
    %v2084 = vpack.c.b16 %v1760, %v1751
    %v2085 = vpack.c.b16 %v1761, %v1752
    %v2086 = vpack.c.b16 %v1762, %v1753
    %v2087 = vpack.c.b16 %v1763, %v1754
    %v2088 = vpack.c.b16 %v1764, %v1755
    %v2089 = vpack.c.b16 %v1774, %v1765
    %v2090 = vpack.c.b16 %v1775, %v1766
    %v2091 = vpack.c.b16 %v1776, %v1767
    %v2092 = vpack.c.b16 %v1777, %v1768
    %v2093 = vpack.c.b16 %v1778, %v1769
    %v2094 = vpack.c.b16 %v1779, %v1770
    %v2095 = vpack.c.b16 %v1780, %v1771
    %v2096 = vpack.c.b16 %v1781, %v1772
    %v2097 = vpack.c.b16 %v1782, %v1773
    %v2098 = vpack.c.b16 %v1792, %v1783
    %v2099 = vpack.c.b16 %v1793, %v1784
    %v2100 = vpack.c.b16 %v1794, %v1785
    %v2101 = vpack.c.b16 %v1795, %v1786
    %v2102 = vpack.c.b16 %v1796, %v1787
    %v2103 = vpack.c.b16 %v1797, %v1788
    %v2104 = vpack.c.b16 %v1798, %v1789
    %v2105 = vpack.c.b16 %v1799, %v1790
    %v2106 = vpack.c.b16 %v1800, %v1791
    %v2107 = vpack.c.b16 %v1810, %v1801
    %v2108 = vpack.c.b16 %v1811, %v1802
    %v2109 = vpack.c.b16 %v1812, %v1803
    %v2110 = vpack.c.b16 %v1813, %v1804
    %v2111 = vpack.c.b16 %v1814, %v1805
    %v2112 = vpack.c.b16 %v1815, %v1806
    %v2113 = vpack.c.b16 %v1816, %v1807
    %v2114 = vpack.c.b16 %v1817, %v1808
    %v2115 = vpack.c.b16 %v1818, %v1809
    %v2116 = vpack.c.b16 %v1828, %v1819
    %v2117 = vpack.c.b16 %v1829, %v1820
    %v2118 = vpack.c.b16 %v1830, %v1821
    %v2119 = vpack.c.b16 %v1831, %v1822
    %v2120 = vpack.c.b16 %v1832, %v1823
    %v2121 = vpack.c.b16 %v1833, %v1824
    %v2122 = vpack.c.b16 %v1834, %v1825
    %v2123 = vpack.c.b16 %v1835, %v1826
    %v2124 = vpack.c.b16 %v1836, %v1827
    %v2125 = vpack.c.b16 %v1846, %v1837
    %v2126 = vpack.c.b16 %v1847, %v1838
    %v2127 = vpack.c.b16 %v1848, %v1839
    %v2128 = vpack.c.b16 %v1849, %v1840
    %v2129 = vpack.c.b16 %v1850, %v1841
    %v2130 = vpack.c.b16 %v1851, %v1842
    %v2131 = vpack.c.b16 %v1852, %v1843
    %v2132 = vpack.c.b16 %v1853, %v1844
    %v2133 = vpack.c.b16 %v1854, %v1845
    %v2134 = vpack.c.b16 %v1864, %v1855
    %v2135 = vpack.c.b16 %v1865, %v1856
    %v2136 = vpack.c.b16 %v1866, %v1857
    %v2137 = vpack.c.b16 %v1867, %v1858
    %v2138 = vpack.c.b16 %v1868, %v1859
    %v2139 = vpack.c.b16 %v1869, %v1860
    %v2140 = vpack.c.b16 %v1870, %v1861
    %v2141 = vpack.c.b16 %v1871, %v1862
    %v2142 = vpack.c.b16 %v1872, %v1863
    %v2143 = vpack.c.b16 %v1882, %v1873
    %v2144 = vpack.c.b16 %v1883, %v1874
    %v2145 = vpack.c.b16 %v1884, %v1875
    %v2146 = vpack.c.b16 %v1885, %v1876
    %v2147 = vpack.c.b16 %v1886, %v1877
    %v2148 = vpack.c.b16 %v1887, %v1878
    %v2149 = vpack.c.b16 %v1888, %v1879
    %v2150 = vpack.c.b16 %v1889, %v1880
    %v2151 = vpack.c.b16 %v1890, %v1881
    %v2152 = vpack.c.b16 %v1900, %v1891
    %v2153 = vpack.c.b16 %v1901, %v1892
    %v2154 = vpack.c.b16 %v1902, %v1893
    %v2155 = vpack.c.b16 %v1903, %v1894
    %v2156 = vpack.c.b16 %v1904, %v1895
    %v2157 = vpack.c.b16 %v1905, %v1896
    %v2158 = vpack.c.b16 %v1906, %v1897
    %v2159 = vpack.c.b16 %v1907, %v1898
    %v2160 = vpack.c.b16 %v1908, %v1899
    %v2161 = vpack.c.b16 %v1918, %v1909
    %v2162 = vpack.c.b16 %v1919, %v1910
    %v2163 = vpack.c.b16 %v1920, %v1911
    %v2164 = vpack.c.b16 %v1921, %v1912
    %v2165 = vpack.c.b16 %v1922, %v1913
    %v2166 = vpack.c.b16 %v1923, %v1914
    %v2167 = vpack.c.b16 %v1924, %v1915
    %v2168 = vpack.c.b16 %v1925, %v1916
    %v2169 = vpack.c.b16 %v1926, %v1917
    %v2170 = vpack.c.b16 %v1936, %v1927
    %v2171 = vpack.c.b16 %v1937, %v1928
    %v2172 = vpack.c.b16 %v1938, %v1929
    %v2173 = vpack.c.b16 %v1939, %v1930
    %v2174 = vpack.c.b16 %v1940, %v1931
    %v2175 = vpack.c.b16 %v1941, %v1932
    %v2176 = vpack.c.b16 %v1942, %v1933
    %v2177 = vpack.c.b16 %v1943, %v1934
    %v2178 = vpack.c.b16 %v1944, %v1935
    %v2179 = vpack.c.b16 %v1954, %v1945
    %v2180 = vpack.c.b16 %v1955, %v1946
    %v2181 = vpack.c.b16 %v1956, %v1947
    %v2182 = vpack.c.b16 %v1957, %v1948
    %v2183 = vpack.c.b16 %v1958, %v1949
    %v2184 = vpack.c.b16 %v1959, %v1950
    %v2185 = vpack.c.b16 %v1960, %v1951
    %v2186 = vpack.c.b16 %v1961, %v1952
    %v2187 = vpack.c.b16 %v1962, %v1953
    %v2188 = vpack.c.b16 %v1972, %v1963
    %v2189 = vpack.c.b16 %v1973, %v1964
    %v2190 = vpack.c.b16 %v1974, %v1965
    %v2191 = vpack.c.b16 %v1975, %v1966
    %v2192 = vpack.c.b16 %v1976, %v1967
    %v2193 = vpack.c.b16 %v1977, %v1968
    %v2194 = vpack.c.b16 %v1978, %v1969
    %v2195 = vpack.c.b16 %v1979, %v1970
    %v2196 = vpack.c.b16 %v1980, %v1971
    %2413 = vmatprep.subr.bf16.mxu0 %v1982
    %2414 = vmatpush1.bf16.msra.mxu0 %v1981
    %2415 = vmatprep.subr.bf16.mxu0 %v1991
    %2416 = vmatpush1.bf16.msra.mxu0 %v1990
    %2417 = vmatprep.subr.bf16.mxu0 %v2000
    %2418 = vmatpush1.bf16.msra.mxu0 %v1999
    %2419 = vmatprep.subr.bf16.mxu0 %v2009
    %2420 = vmatpush1.bf16.msra.mxu0 %v2008
    %2421 = vmatprep.subr.bf16.mxu0 %v2018
    %2422 = vmatpush1.bf16.msra.mxu0 %v2017
    %2423 = vmatprep.subr.bf16.mxu0 %v2027
    %2424 = vmatpush1.bf16.msra.mxu0 %v2026
    %2425 = vmatprep.subr.bf16.mxu0 %v2036
    %2426 = vmatpush1.bf16.msra.mxu0 %v2035
    %2427 = vmatprep.subr.bf16.mxu0 %v2045
    %2428 = vmatpush1.bf16.msra.mxu0 %v2044
    %2429 = vmatprep.subr.bf16.mxu0 %v2054
    %2430 = vmatpush1.bf16.msra.mxu0 %v2053
    %2431 = vmatprep.subr.bf16.mxu0 %v2063
    %2432 = vmatpush1.bf16.msra.mxu0 %v2062
    %2433 = vmatprep.subr.bf16.mxu0 %v2072
    %2434 = vmatpush1.bf16.msra.mxu0 %v2071
    %2435 = vmatprep.subr.bf16.mxu0 %v2081
    %2436 = vmatpush1.bf16.msra.mxu0 %v2080
    %2437 = vmatprep.subr.bf16.mxu0 %v2090
    %2438 = vmatpush1.bf16.msra.mxu0 %v2089
    %2439 = vmatprep.subr.bf16.mxu0 %v2099
    %2440 = vmatpush1.bf16.msra.mxu0 %v2098
    %2441 = vmatprep.subr.bf16.mxu0 %v2108
    %2442 = vmatpush1.bf16.msra.mxu0 %v2107
    %2443 = vmatprep.subr.bf16.mxu0 %v2117
    %2444 = vmatpush1.bf16.msra.mxu0 %v2116
    %2445 = vmatprep.mubr.bf16.mxu0 %v1260
    %2446 = vmatmul.mubr.bf16.gmra.mrb[0].mxu0 %v1259
    %v2447 = vpop.f32.mrb[0].mxu0
    %v2448 = vadd.f32 %v1267, %v2447
    %v2449 = vpop.f32.mrb[0].mxu0
    %v2450 = vadd.f32 %v1271, %v2449
    %v2451 = vpop.f32.mrb[0].mxu0
    %v2452 = vpop.f32.mrb[0].mxu0
    %2453 = vdwg.mxu0
    %2454 = vmatprep.subr.bf16.mxu0 %v2126
    %2455 = vmatpush1.bf16.msra.mxu0 %v2125
    %2456 = vmatprep.subr.bf16.mxu0 %v2135
    %2457 = vmatpush1.bf16.msra.mxu0 %v2134
    %2458 = vmatprep.subr.bf16.mxu0 %v2144
    %2459 = vmatpush1.bf16.msra.mxu0 %v2143
    %2460 = vmatprep.subr.bf16.mxu0 %v2153
    %2461 = vmatpush1.bf16.msra.mxu0 %v2152
    %2462 = vmatprep.subr.bf16.mxu0 %v2162
    %2463 = vmatpush1.bf16.msra.mxu0 %v2161
    %2464 = vmatprep.subr.bf16.mxu0 %v2171
    %2465 = vmatpush1.bf16.msra.mxu0 %v2170
    %2466 = vmatprep.subr.bf16.mxu0 %v2180
    %2467 = vmatpush1.bf16.msra.mxu0 %v2179
    %2468 = vmatprep.subr.bf16.mxu0 %v2189
    %2469 = vmatpush1.bf16.msra.mxu0 %v2188
    %2470 = vmatprep.subr.bf16.mxu0 0
    %2471 = vmatpush1.bf16.msra.mxu0 0
    %2472 = vmatprep.subr.bf16.mxu0 0
    %2473 = vmatpush1.bf16.msra.mxu0 0
    %2474 = vmatprep.subr.bf16.mxu0 0
    %2475 = vmatpush1.bf16.msra.mxu0 0
    %2476 = vmatprep.subr.bf16.mxu0 0
    %2477 = vmatpush1.bf16.msra.mxu0 0
    %2478 = vmatprep.subr.bf16.mxu0 0
    %2479 = vmatpush1.bf16.msra.mxu0 0
    %2480 = vmatprep.subr.bf16.mxu0 0
    %2481 = vmatpush1.bf16.msra.mxu0 0
    %2482 = vmatprep.subr.bf16.mxu0 0
    %2483 = vmatpush1.bf16.msra.mxu0 0
    %2484 = vmatprep.subr.bf16.mxu0 0
    %2485 = vmatpush1.bf16.msra.mxu0 0
    %2486 = vmatprep.mubr.bf16.mxu0 0
    %2487 = vmatmul.mubr.bf16.gmra.mrb[0].mxu0 %v1261
    %v2488 = vpop.f32.mrb[0].mxu0
    %v2489 = vadd.f32 %v2448, %v2488
    %v2490 = vpop.f32.mrb[0].mxu0
    %v2491 = vadd.f32 %v2450, %v2490
    %v2492 = vpop.f32.mrb[0].mxu0
    %v2493 = vpop.f32.mrb[0].mxu0
    %2494 = vdwg.mxu0
    %2495 = vmatprep.subr.bf16.mxu0 %v1984
    %2496 = vmatpush1.bf16.msra.mxu0 %v1983
    %2497 = vmatprep.subr.bf16.mxu0 %v1993
    %2498 = vmatpush1.bf16.msra.mxu0 %v1992
    %2499 = vmatprep.subr.bf16.mxu0 %v2002
    %2500 = vmatpush1.bf16.msra.mxu0 %v2001
    %2501 = vmatprep.subr.bf16.mxu0 %v2011
    %2502 = vmatpush1.bf16.msra.mxu0 %v2010
    %2503 = vmatprep.subr.bf16.mxu0 %v2020
    %2504 = vmatpush1.bf16.msra.mxu0 %v2019
    %2505 = vmatprep.subr.bf16.mxu0 %v2029
    %2506 = vmatpush1.bf16.msra.mxu0 %v2028
    %2507 = vmatprep.subr.bf16.mxu0 %v2038
    %2508 = vmatpush1.bf16.msra.mxu0 %v2037
    %2509 = vmatprep.subr.bf16.mxu0 %v2047
    %2510 = vmatpush1.bf16.msra.mxu0 %v2046
    %2511 = vmatprep.subr.bf16.mxu0 %v2056
    %2512 = vmatpush1.bf16.msra.mxu0 %v2055
    %2513 = vmatprep.subr.bf16.mxu0 %v2065
    %2514 = vmatpush1.bf16.msra.mxu0 %v2064
    %2515 = vmatprep.subr.bf16.mxu0 %v2074
    %2516 = vmatpush1.bf16.msra.mxu0 %v2073
    %2517 = vmatprep.subr.bf16.mxu0 %v2083
    %2518 = vmatpush1.bf16.msra.mxu0 %v2082
    %2519 = vmatprep.subr.bf16.mxu0 %v2092
    %2520 = vmatpush1.bf16.msra.mxu0 %v2091
    %2521 = vmatprep.subr.bf16.mxu0 %v2101
    %2522 = vmatpush1.bf16.msra.mxu0 %v2100
    %2523 = vmatprep.subr.bf16.mxu0 %v2110
    %2524 = vmatpush1.bf16.msra.mxu0 %v2109
    %2525 = vmatprep.subr.bf16.mxu0 %v2119
    %2526 = vmatpush1.bf16.msra.mxu0 %v2118
    %2527 = vmatprep.mubr.bf16.mxu0 %v1260
    %2528 = vmatmul.mubr.bf16.gmra.mrb[0].mxu0 %v1259
    %v2529 = vpop.f32.mrb[0].mxu0
    %v2530 = vadd.f32 %v1275, %v2529
    %v2531 = vpop.f32.mrb[0].mxu0
    %v2532 = vadd.f32 %v1279, %v2531
    %v2533 = vpop.f32.mrb[0].mxu0
    %v2534 = vpop.f32.mrb[0].mxu0
    %2535 = vdwg.mxu0
    %2536 = vmatprep.subr.bf16.mxu0 %v2128
    %2537 = vmatpush1.bf16.msra.mxu0 %v2127
    %2538 = vmatprep.subr.bf16.mxu0 %v2137
    %2539 = vmatpush1.bf16.msra.mxu0 %v2136
    %2540 = vmatprep.subr.bf16.mxu0 %v2146
    %2541 = vmatpush1.bf16.msra.mxu0 %v2145
    %2542 = vmatprep.subr.bf16.mxu0 %v2155
    %2543 = vmatpush1.bf16.msra.mxu0 %v2154
    %2544 = vmatprep.subr.bf16.mxu0 %v2164
    %2545 = vmatpush1.bf16.msra.mxu0 %v2163
    %2546 = vmatprep.subr.bf16.mxu0 %v2173
    %2547 = vmatpush1.bf16.msra.mxu0 %v2172
    %2548 = vmatprep.subr.bf16.mxu0 %v2182
    %2549 = vmatpush1.bf16.msra.mxu0 %v2181
    %2550 = vmatprep.subr.bf16.mxu0 %v2191
    %2551 = vmatpush1.bf16.msra.mxu0 %v2190
    %2552 = vmatprep.subr.bf16.mxu0 0
    %2553 = vmatpush1.bf16.msra.mxu0 0
    %2554 = vmatprep.subr.bf16.mxu0 0
    %2555 = vmatpush1.bf16.msra.mxu0 0
    %2556 = vmatprep.subr.bf16.mxu0 0
    %2557 = vmatpush1.bf16.msra.mxu0 0
    %2558 = vmatprep.subr.bf16.mxu0 0
    %2559 = vmatpush1.bf16.msra.mxu0 0
    %2560 = vmatprep.subr.bf16.mxu0 0
    %2561 = vmatpush1.bf16.msra.mxu0 0
    %2562 = vmatprep.subr.bf16.mxu0 0
    %2563 = vmatpush1.bf16.msra.mxu0 0
    %2564 = vmatprep.subr.bf16.mxu0 0
    %2565 = vmatpush1.bf16.msra.mxu0 0
    %2566 = vmatprep.subr.bf16.mxu0 0
    %2567 = vmatpush1.bf16.msra.mxu0 0
    %2568 = vmatprep.mubr.bf16.mxu0 0
    %2569 = vmatmul.mubr.bf16.gmra.mrb[0].mxu0 %v1261
    %v2570 = vpop.f32.mrb[0].mxu0
    %v2571 = vadd.f32 %v2530, %v2570
    %v2572 = vpop.f32.mrb[0].mxu0
    %v2573 = vadd.f32 %v2532, %v2572
    %v2574 = vpop.f32.mrb[0].mxu0
    %v2575 = vpop.f32.mrb[0].mxu0
    %2576 = vdwg.mxu0
    %2577 = vmatprep.subr.bf16.mxu0 %v1986
    %2578 = vmatpush1.bf16.msra.mxu0 %v1985
    %2579 = vmatprep.subr.bf16.mxu0 %v1995
    %2580 = vmatpush1.bf16.msra.mxu0 %v1994
    %2581 = vmatprep.subr.bf16.mxu0 %v2004
    %2582 = vmatpush1.bf16.msra.mxu0 %v2003
    %2583 = vmatprep.subr.bf16.mxu0 %v2013
    %2584 = vmatpush1.bf16.msra.mxu0 %v2012
    %2585 = vmatprep.subr.bf16.mxu0 %v2022
    %2586 = vmatpush1.bf16.msra.mxu0 %v2021
    %2587 = vmatprep.subr.bf16.mxu0 %v2031
    %2588 = vmatpush1.bf16.msra.mxu0 %v2030
    %2589 = vmatprep.subr.bf16.mxu0 %v2040
    %2590 = vmatpush1.bf16.msra.mxu0 %v2039
    %2591 = vmatprep.subr.bf16.mxu0 %v2049
    %2592 = vmatpush1.bf16.msra.mxu0 %v2048
    %2593 = vmatprep.subr.bf16.mxu0 %v2058
    %2594 = vmatpush1.bf16.msra.mxu0 %v2057
    %2595 = vmatprep.subr.bf16.mxu0 %v2067
    %2596 = vmatpush1.bf16.msra.mxu0 %v2066
    %2597 = vmatprep.subr.bf16.mxu0 %v2076
    %2598 = vmatpush1.bf16.msra.mxu0 %v2075
    %2599 = vmatprep.subr.bf16.mxu0 %v2085
    %2600 = vmatpush1.bf16.msra.mxu0 %v2084
    %2601 = vmatprep.subr.bf16.mxu0 %v2094
    %2602 = vmatpush1.bf16.msra.mxu0 %v2093
    %2603 = vmatprep.subr.bf16.mxu0 %v2103
    %2604 = vmatpush1.bf16.msra.mxu0 %v2102
    %2605 = vmatprep.subr.bf16.mxu0 %v2112
    %2606 = vmatpush1.bf16.msra.mxu0 %v2111
    %2607 = vmatprep.subr.bf16.mxu0 %v2121
    %2608 = vmatpush1.bf16.msra.mxu0 %v2120
    %2609 = vmatprep.mubr.bf16.mxu0 %v1260
    %2610 = vmatmul.mubr.bf16.gmra.mrb[0].mxu0 %v1259
    %v2611 = vpop.f32.mrb[0].mxu0
    %v2612 = vadd.f32 %v1283, %v2611
    %v2613 = vpop.f32.mrb[0].mxu0
    %v2614 = vadd.f32 %v1287, %v2613
    %v2615 = vpop.f32.mrb[0].mxu0
    %v2616 = vpop.f32.mrb[0].mxu0
    %2617 = vdwg.mxu0
    %2618 = vmatprep.subr.bf16.mxu0 %v2130
    %2619 = vmatpush1.bf16.msra.mxu0 %v2129
    %2620 = vmatprep.subr.bf16.mxu0 %v2139
    %2621 = vmatpush1.bf16.msra.mxu0 %v2138
    %2622 = vmatprep.subr.bf16.mxu0 %v2148
    %2623 = vmatpush1.bf16.msra.mxu0 %v2147
    %2624 = vmatprep.subr.bf16.mxu0 %v2157
    %2625 = vmatpush1.bf16.msra.mxu0 %v2156
    %2626 = vmatprep.subr.bf16.mxu0 %v2166
    %2627 = vmatpush1.bf16.msra.mxu0 %v2165
    %2628 = vmatprep.subr.bf16.mxu0 %v2175
    %2629 = vmatpush1.bf16.msra.mxu0 %v2174
    %2630 = vmatprep.subr.bf16.mxu0 %v2184
    %2631 = vmatpush1.bf16.msra.mxu0 %v2183
    %2632 = vmatprep.subr.bf16.mxu0 %v2193
    %2633 = vmatpush1.bf16.msra.mxu0 %v2192
    %2634 = vmatprep.subr.bf16.mxu0 0
    %2635 = vmatpush1.bf16.msra.mxu0 0
    %2636 = vmatprep.subr.bf16.mxu0 0
    %2637 = vmatpush1.bf16.msra.mxu0 0
    %2638 = vmatprep.subr.bf16.mxu0 0
    %2639 = vmatpush1.bf16.msra.mxu0 0
    %2640 = vmatprep.subr.bf16.mxu0 0
    %2641 = vmatpush1.bf16.msra.mxu0 0
    %2642 = vmatprep.subr.bf16.mxu0 0
    %2643 = vmatpush1.bf16.msra.mxu0 0
    %2644 = vmatprep.subr.bf16.mxu0 0
    %2645 = vmatpush1.bf16.msra.mxu0 0
    %2646 = vmatprep.subr.bf16.mxu0 0
    %2647 = vmatpush1.bf16.msra.mxu0 0
    %2648 = vmatprep.subr.bf16.mxu0 0
    %2649 = vmatpush1.bf16.msra.mxu0 0
    %2650 = vmatprep.mubr.bf16.mxu0 0
    %2651 = vmatmul.mubr.bf16.gmra.mrb[0].mxu0 %v1261
    %v2652 = vpop.f32.mrb[0].mxu0
    %v2653 = vadd.f32 %v2612, %v2652
    %v2654 = vpop.f32.mrb[0].mxu0
    %v2655 = vadd.f32 %v2614, %v2654
    %v2656 = vpop.f32.mrb[0].mxu0
    %v2657 = vpop.f32.mrb[0].mxu0
    %2658 = vdwg.mxu0
    %2659 = vmatprep.subr.bf16.mxu0 %v1988
    %2660 = vmatpush1.bf16.msra.mxu0 %v1987
    %2661 = vmatprep.subr.bf16.mxu0 %v1997
    %2662 = vmatpush1.bf16.msra.mxu0 %v1996
    %2663 = vmatprep.subr.bf16.mxu0 %v2006
    %2664 = vmatpush1.bf16.msra.mxu0 %v2005
    %2665 = vmatprep.subr.bf16.mxu0 %v2015
    %2666 = vmatpush1.bf16.msra.mxu0 %v2014
    %2667 = vmatprep.subr.bf16.mxu0 %v2024
    %2668 = vmatpush1.bf16.msra.mxu0 %v2023
    %2669 = vmatprep.subr.bf16.mxu0 %v2033
    %2670 = vmatpush1.bf16.msra.mxu0 %v2032
    %2671 = vmatprep.subr.bf16.mxu0 %v2042
    %2672 = vmatpush1.bf16.msra.mxu0 %v2041
    %2673 = vmatprep.subr.bf16.mxu0 %v2051
    %2674 = vmatpush1.bf16.msra.mxu0 %v2050
    %2675 = vmatprep.subr.bf16.mxu0 %v2060
    %2676 = vmatpush1.bf16.msra.mxu0 %v2059
    %2677 = vmatprep.subr.bf16.mxu0 %v2069
    %2678 = vmatpush1.bf16.msra.mxu0 %v2068
    %2679 = vmatprep.subr.bf16.mxu0 %v2078
    %2680 = vmatpush1.bf16.msra.mxu0 %v2077
    %2681 = vmatprep.subr.bf16.mxu0 %v2087
    %2682 = vmatpush1.bf16.msra.mxu0 %v2086
    %2683 = vmatprep.subr.bf16.mxu0 %v2096
    %2684 = vmatpush1.bf16.msra.mxu0 %v2095
    %2685 = vmatprep.subr.bf16.mxu0 %v2105
    %2686 = vmatpush1.bf16.msra.mxu0 %v2104
    %2687 = vmatprep.subr.bf16.mxu0 %v2114
    %2688 = vmatpush1.bf16.msra.mxu0 %v2113
    %2689 = vmatprep.subr.bf16.mxu0 %v2123
    %2690 = vmatpush1.bf16.msra.mxu0 %v2122
    %2691 = vmatprep.mubr.bf16.mxu0 %v1260
    %2692 = vmatmul.mubr.bf16.gmra.mrb[0].mxu0 %v1259
    %v2693 = vpop.f32.mrb[0].mxu0
    %v2694 = vadd.f32 %v1291, %v2693
    %v2695 = vpop.f32.mrb[0].mxu0
    %v2696 = vadd.f32 %v1295, %v2695
    %v2697 = vpop.f32.mrb[0].mxu0
    %v2698 = vpop.f32.mrb[0].mxu0
    %2699 = vdwg.mxu0
    %2700 = vmatprep.subr.bf16.mxu0 %v2132
    %2701 = vmatpush1.bf16.msra.mxu0 %v2131
    %2702 = vmatprep.subr.bf16.mxu0 %v2141
    %2703 = vmatpush1.bf16.msra.mxu0 %v2140
    %2704 = vmatprep.subr.bf16.mxu0 %v2150
    %2705 = vmatpush1.bf16.msra.mxu0 %v2149
    %2706 = vmatprep.subr.bf16.mxu0 %v2159
    %2707 = vmatpush1.bf16.msra.mxu0 %v2158
    %2708 = vmatprep.subr.bf16.mxu0 %v2168
    %2709 = vmatpush1.bf16.msra.mxu0 %v2167
    %2710 = vmatprep.subr.bf16.mxu0 %v2177
    %2711 = vmatpush1.bf16.msra.mxu0 %v2176
    %2712 = vmatprep.subr.bf16.mxu0 %v2186
    %2713 = vmatpush1.bf16.msra.mxu0 %v2185
    %2714 = vmatprep.subr.bf16.mxu0 %v2195
    %2715 = vmatpush1.bf16.msra.mxu0 %v2194
    %2716 = vmatprep.subr.bf16.mxu0 0
    %2717 = vmatpush1.bf16.msra.mxu0 0
    %2718 = vmatprep.subr.bf16.mxu0 0
    %2719 = vmatpush1.bf16.msra.mxu0 0
    %2720 = vmatprep.subr.bf16.mxu0 0
    %2721 = vmatpush1.bf16.msra.mxu0 0
    %2722 = vmatprep.subr.bf16.mxu0 0
    %2723 = vmatpush1.bf16.msra.mxu0 0
    %2724 = vmatprep.subr.bf16.mxu0 0
    %2725 = vmatpush1.bf16.msra.mxu0 0
    %2726 = vmatprep.subr.bf16.mxu0 0
    %2727 = vmatpush1.bf16.msra.mxu0 0
    %2728 = vmatprep.subr.bf16.mxu0 0
    %2729 = vmatpush1.bf16.msra.mxu0 0
    %2730 = vmatprep.subr.bf16.mxu0 0
    %2731 = vmatpush1.bf16.msra.mxu0 0
    %2732 = vmatprep.mubr.bf16.mxu0 0
    %2733 = vmatmul.mubr.bf16.gmra.mrb[0].mxu0 %v1261
    %v2734 = vpop.f32.mrb[0].mxu0
    %v2735 = vadd.f32 %v2694, %v2734
    %v2736 = vpop.f32.mrb[0].mxu0
    %v2737 = vadd.f32 %v2696, %v2736
    %v2738 = vpop.f32.mrb[0].mxu0
    %v2739 = vpop.f32.mrb[0].mxu0
    %2740 = vdwg.mxu0
    %2741 = vmatprep.subr.bf16.mxu0 0
    %2742 = vmatpush1.bf16.msra.mxu0 %v1989
    %2743 = vmatprep.subr.bf16.mxu0 0
    %2744 = vmatpush1.bf16.msra.mxu0 %v1998
    %2745 = vmatprep.subr.bf16.mxu0 0
    %2746 = vmatpush1.bf16.msra.mxu0 %v2007
    %2747 = vmatprep.subr.bf16.mxu0 0
    %2748 = vmatpush1.bf16.msra.mxu0 %v2016
    %2749 = vmatprep.subr.bf16.mxu0 0
    %2750 = vmatpush1.bf16.msra.mxu0 %v2025
    %2751 = vmatprep.subr.bf16.mxu0 0
    %2752 = vmatpush1.bf16.msra.mxu0 %v2034
    %2753 = vmatprep.subr.bf16.mxu0 0
    %2754 = vmatpush1.bf16.msra.mxu0 %v2043
    %2755 = vmatprep.subr.bf16.mxu0 0
    %2756 = vmatpush1.bf16.msra.mxu0 %v2052
    %2757 = vmatprep.subr.bf16.mxu0 0
    %2758 = vmatpush1.bf16.msra.mxu0 %v2061
    %2759 = vmatprep.subr.bf16.mxu0 0
    %2760 = vmatpush1.bf16.msra.mxu0 %v2070
    %2761 = vmatprep.subr.bf16.mxu0 0
    %2762 = vmatpush1.bf16.msra.mxu0 %v2079
    %2763 = vmatprep.subr.bf16.mxu0 0
    %2764 = vmatpush1.bf16.msra.mxu0 %v2088
    %2765 = vmatprep.subr.bf16.mxu0 0
    %2766 = vmatpush1.bf16.msra.mxu0 %v2097
    %2767 = vmatprep.subr.bf16.mxu0 0
    %2768 = vmatpush1.bf16.msra.mxu0 %v2106
    %2769 = vmatprep.subr.bf16.mxu0 0
    %2770 = vmatpush1.bf16.msra.mxu0 %v2115
    %2771 = vmatprep.subr.bf16.mxu0 0
    %2772 = vmatpush1.bf16.msra.mxu0 %v2124
    %2773 = vmatprep.mubr.bf16.mxu0 %v1260
    %2774 = vmatmul.mubr.bf16.gmra.mrb[0].mxu0 %v1259
    %v2775 = vpop.f32.mrb[0].mxu0
    %v2776 = vadd.f32 %v1299, %v2775
    %v2777 = vpop.f32.mrb[0].mxu0
    %v2778 = vpop.f32.mrb[0].mxu0
    %v2779 = vpop.f32.mrb[0].mxu0
    %2780 = vdwg.mxu0
    %2781 = vmatprep.subr.bf16.mxu0 0
    %2782 = vmatpush1.bf16.msra.mxu0 %v2133
    %2783 = vmatprep.subr.bf16.mxu0 0
    %2784 = vmatpush1.bf16.msra.mxu0 %v2142
    %2785 = vmatprep.subr.bf16.mxu0 0
    %2786 = vmatpush1.bf16.msra.mxu0 %v2151
    %2787 = vmatprep.subr.bf16.mxu0 0
    %2788 = vmatpush1.bf16.msra.mxu0 %v2160
    %2789 = vmatprep.subr.bf16.mxu0 0
    %2790 = vmatpush1.bf16.msra.mxu0 %v2169
    %2791 = vmatprep.subr.bf16.mxu0 0
    %2792 = vmatpush1.bf16.msra.mxu0 %v2178
    %2793 = vmatprep.subr.bf16.mxu0 0
    %2794 = vmatpush1.bf16.msra.mxu0 %v2187
    %2795 = vmatprep.subr.bf16.mxu0 0
    %2796 = vmatpush1.bf16.msra.mxu0 %v2196
    %2797 = vmatprep.subr.bf16.mxu0 0
    %2798 = vmatpush1.bf16.msra.mxu0 0
    %2799 = vmatprep.subr.bf16.mxu0 0
    %2800 = vmatpush1.bf16.msra.mxu0 0
    %2801 = vmatprep.subr.bf16.mxu0 0
    %2802 = vmatpush1.bf16.msra.mxu0 0
    %2803 = vmatprep.subr.bf16.mxu0 0
    %2804 = vmatpush1.bf16.msra.mxu0 0
    %2805 = vmatprep.subr.bf16.mxu0 0
    %2806 = vmatpush1.bf16.msra.mxu0 0
    %2807 = vmatprep.subr.bf16.mxu0 0
    %2808 = vmatpush1.bf16.msra.mxu0 0
    %2809 = vmatprep.subr.bf16.mxu0 0
    %2810 = vmatpush1.bf16.msra.mxu0 0
    %2811 = vmatprep.subr.bf16.mxu0 0
    %2812 = vmatpush1.bf16.msra.mxu0 0
    %2813 = vmatprep.mubr.bf16.mxu0 0
    %2814 = vmatmul.mubr.bf16.gmra.mrb[0].mxu0 %v1261
    %v2815 = vpop.f32.mrb[0].mxu0
    %v2816 = vadd.f32 %v2776, %v2815
    %v2817 = vpop.f32.mrb[0].mxu0
    %v2818 = vpop.f32.mrb[0].mxu0
    %v2819 = vpop.f32.mrb[0].mxu0
    %2820 = vdwg.mxu0
    %v2821 = vmax.f32 %v2489, 0.0
    %v2822 = vmax.f32 %v2491, 0.0
    %v2823 = vmax.f32 %v2571, 0.0
    %v2824 = vmax.f32 %v2573, 0.0
    %v2825 = vmax.f32 %v2653, 0.0
    %v2826 = vmax.f32 %v2655, 0.0
    %v2827 = vmax.f32 %v2735, 0.0
    %v2828 = vmax.f32 %v2737, 0.0
    %v2829 = vmax.f32 %v2816, 0.0
    %2831 = vrot.lane.b32.xlu0 %v2821, 104
    %v2832 = vpop.permute.xlu0 %2831
    %2834 = vrot.lane.b32.xlu0 %v2821, 80
    %v2835 = vpop.permute.xlu0 %2834
    %2837 = vrot.lane.b32.xlu0 %v2821, 56
    %v2838 = vpop.permute.xlu0 %2837
    %2840 = vrot.lane.b32.xlu0 %v2821, 32
    %v2841 = vpop.permute.xlu0 %2840
    %2844 = vrot.lane.b32.xlu0 %v2821, 8
    %v2845 = vpop.permute.xlu0 %2844
    %2846 = vrot.lane.b32.xlu0 %v2822, 8
    %v2847 = vpop.permute.xlu0 %2846
    %vm2848 = vcmask 64512
    %v2849 = vsel %vm2848, %v2845, %v2847
    %2851 = vrot.lane.b32.xlu0 %v2822, 112
    %v2852 = vpop.permute.xlu0 %2851
    %2854 = vrot.lane.b32.xlu0 %v2822, 88
    %v2855 = vpop.permute.xlu0 %2854
    %2857 = vrot.lane.b32.xlu0 %v2822, 64
    %v2858 = vpop.permute.xlu0 %2857
    %2860 = vrot.lane.b32.xlu0 %v2822, 40
    %v2861 = vpop.permute.xlu0 %2860
    %2864 = vrot.lane.b32.xlu0 %v2822, 16
    %v2865 = vpop.permute.xlu0 %2864
    %2866 = vrot.lane.b32.xlu0 %v2823, 16
    %v2867 = vpop.permute.xlu0 %2866
    %vm2868 = vcmask 130048
    %v2869 = vsel %vm2868, %v2865, %v2867
    %2871 = vrot.lane.b32.xlu0 %v2823, 120
    %v2872 = vpop.permute.xlu0 %2871
    %2874 = vrot.lane.b32.xlu0 %v2823, 96
    %v2875 = vpop.permute.xlu0 %2874
    %2877 = vrot.lane.b32.xlu0 %v2823, 72
    %v2878 = vpop.permute.xlu0 %2877
    %2880 = vrot.lane.b32.xlu0 %v2823, 48
    %v2881 = vpop.permute.xlu0 %2880
    %2883 = vrot.lane.b32.xlu0 %v2823, 24
    %v2884 = vpop.permute.xlu0 %2883
    %v2886 = vcombine.low %v2821, %v2835
    %v2888 = vunpack.c.l.s4 1983009808
    %v2889 = vunpack.c.0.s8 %v2888
    %v2890 = vlaneseq
    %v2891 = vshrl.u32 %v2890, 7
    %v2892 = vsub.s32 %v2889, %v2891
    %v2893 = vrot.slane %v2886, %v2892
    %v2894 = vcombine.low %v2832, %v2838
    %v2896 = vunpack.c.l.s4 1983009808
    %v2897 = vunpack.c.0.s8 %v2896
    %v2898 = vlaneseq
    %v2899 = vshrl.u32 %v2898, 7
    %v2900 = vsub.s32 %v2897, %v2899
    %v2901 = vrot.slane %v2894, %v2900
    %v2902 = vcombine.low %v2841, %v2852
    %v2904 = vunpack.c.l.s4 1983009808
    %v2905 = vunpack.c.0.s8 %v2904
    %v2906 = vlaneseq
    %v2907 = vshrl.u32 %v2906, 7
    %v2908 = vsub.s32 %v2905, %v2907
    %v2909 = vrot.slane %v2902, %v2908
    %v2910 = vcombine.low %v2849, %v2855
    %v2912 = vunpack.c.l.s4 1983009808
    %v2913 = vunpack.c.0.s8 %v2912
    %v2914 = vlaneseq
    %v2915 = vshrl.u32 %v2914, 7
    %v2916 = vsub.s32 %v2913, %v2915
    %v2917 = vrot.slane %v2910, %v2916
    %v2918 = vcombine.low %v2893, %v2901
    %v2920 = vunpack.c.l.s4 1934713408
    %v2921 = vunpack.c.0.s8 %v2920
    %v2922 = vlaneseq
    %v2923 = vshrl.u32 %v2922, 7
    %v2924 = vsub.s32 %v2921, %v2923
    %v2925 = vrot.slane %v2918, %v2924
    %v2926 = vcombine.low %v2909, %v2917
    %v2928 = vunpack.c.l.s4 1934713408
    %v2929 = vunpack.c.0.s8 %v2928
    %v2930 = vlaneseq
    %v2931 = vshrl.u32 %v2930, 7
    %v2932 = vsub.s32 %v2929, %v2931
    %v2933 = vrot.slane %v2926, %v2932
    %v2934 = vcombine.low %v2925, %v2933
    %v2935 = vcombine.high %v2925, %v2933
    %v2936 = vcombine.low %v2858, %v2869
    %v2938 = vunpack.c.l.s4 1983009808
    %v2939 = vunpack.c.0.s8 %v2938
    %v2940 = vlaneseq
    %v2941 = vshrl.u32 %v2940, 7
    %v2942 = vsub.s32 %v2939, %v2941
    %v2943 = vrot.slane %v2936, %v2942
    %v2944 = vcombine.low %v2861, %v2872
    %v2946 = vunpack.c.l.s4 1983009808
    %v2947 = vunpack.c.0.s8 %v2946
    %v2948 = vlaneseq
    %v2949 = vshrl.u32 %v2948, 7
    %v2950 = vsub.s32 %v2947, %v2949
    %v2951 = vrot.slane %v2944, %v2950
    %v2952 = vcombine.low %v2875, %v2881
    %v2954 = vunpack.c.l.s4 1983009808
    %v2955 = vunpack.c.0.s8 %v2954
    %v2956 = vlaneseq
    %v2957 = vshrl.u32 %v2956, 7
    %v2958 = vsub.s32 %v2955, %v2957
    %v2959 = vrot.slane %v2952, %v2958
    %v2960 = vcombine.low %v2878, %v2884
    %v2962 = vunpack.c.l.s4 1983009808
    %v2963 = vunpack.c.0.s8 %v2962
    %v2964 = vlaneseq
    %v2965 = vshrl.u32 %v2964, 7
    %v2966 = vsub.s32 %v2963, %v2965
    %v2967 = vrot.slane %v2960, %v2966
    %v2968 = vcombine.low %v2943, %v2951
    %v2970 = vunpack.c.l.s4 1934713408
    %v2971 = vunpack.c.0.s8 %v2970
    %v2972 = vlaneseq
    %v2973 = vshrl.u32 %v2972, 7
    %v2974 = vsub.s32 %v2971, %v2973
    %v2975 = vrot.slane %v2968, %v2974
    %v2976 = vcombine.low %v2959, %v2967
    %v2978 = vunpack.c.l.s4 1934713408
    %v2979 = vunpack.c.0.s8 %v2978
    %v2980 = vlaneseq
    %v2981 = vshrl.u32 %v2980, 7
    %v2982 = vsub.s32 %v2979, %v2981
    %v2983 = vrot.slane %v2976, %v2982
    %v2984 = vcombine.low %v2975, %v2983
    %v2985 = vcombine.high %v2975, %v2983
    %2987 = vrot.lane.b32.xlu0 %v2824, 104
    %v2988 = vpop.permute.xlu0 %2987
    %2990 = vrot.lane.b32.xlu0 %v2824, 80
    %v2991 = vpop.permute.xlu0 %2990
    %2993 = vrot.lane.b32.xlu0 %v2824, 56
    %v2994 = vpop.permute.xlu0 %2993
    %2996 = vrot.lane.b32.xlu0 %v2824, 32
    %v2997 = vpop.permute.xlu0 %2996
    %3000 = vrot.lane.b32.xlu0 %v2824, 8
    %v3001 = vpop.permute.xlu0 %3000
    %3002 = vrot.lane.b32.xlu0 %v2825, 8
    %v3003 = vpop.permute.xlu0 %3002
    %v3004 = vsel %vm2848, %v3001, %v3003
    %3006 = vrot.lane.b32.xlu0 %v2825, 112
    %v3007 = vpop.permute.xlu0 %3006
    %3009 = vrot.lane.b32.xlu0 %v2825, 88
    %v3010 = vpop.permute.xlu0 %3009
    %3012 = vrot.lane.b32.xlu0 %v2825, 64
    %v3013 = vpop.permute.xlu0 %3012
    %3015 = vrot.lane.b32.xlu0 %v2825, 40
    %v3016 = vpop.permute.xlu0 %3015
    %3019 = vrot.lane.b32.xlu0 %v2825, 16
    %v3020 = vpop.permute.xlu0 %3019
    %3021 = vrot.lane.b32.xlu0 %v2826, 16
    %v3022 = vpop.permute.xlu0 %3021
    %v3023 = vsel %vm2868, %v3020, %v3022
    %3025 = vrot.lane.b32.xlu0 %v2826, 120
    %v3026 = vpop.permute.xlu0 %3025
    %3028 = vrot.lane.b32.xlu0 %v2826, 96
    %v3029 = vpop.permute.xlu0 %3028
    %3031 = vrot.lane.b32.xlu0 %v2826, 72
    %v3032 = vpop.permute.xlu0 %3031
    %3034 = vrot.lane.b32.xlu0 %v2826, 48
    %v3035 = vpop.permute.xlu0 %3034
    %3037 = vrot.lane.b32.xlu0 %v2826, 24
    %v3038 = vpop.permute.xlu0 %3037
    %v3040 = vcombine.low %v2824, %v2991
    %v3042 = vunpack.c.l.s4 1983009808
    %v3043 = vunpack.c.0.s8 %v3042
    %v3044 = vlaneseq
    %v3045 = vshrl.u32 %v3044, 7
    %v3046 = vsub.s32 %v3043, %v3045
    %v3047 = vrot.slane %v3040, %v3046
    %v3048 = vcombine.low %v2988, %v2994
    %v3050 = vunpack.c.l.s4 1983009808
    %v3051 = vunpack.c.0.s8 %v3050
    %v3052 = vlaneseq
    %v3053 = vshrl.u32 %v3052, 7
    %v3054 = vsub.s32 %v3051, %v3053
    %v3055 = vrot.slane %v3048, %v3054
    %v3056 = vcombine.low %v2997, %v3007
    %v3058 = vunpack.c.l.s4 1983009808
    %v3059 = vunpack.c.0.s8 %v3058
    %v3060 = vlaneseq
    %v3061 = vshrl.u32 %v3060, 7
    %v3062 = vsub.s32 %v3059, %v3061
    %v3063 = vrot.slane %v3056, %v3062
    %v3064 = vcombine.low %v3004, %v3010
    %v3066 = vunpack.c.l.s4 1983009808
    %v3067 = vunpack.c.0.s8 %v3066
    %v3068 = vlaneseq
    %v3069 = vshrl.u32 %v3068, 7
    %v3070 = vsub.s32 %v3067, %v3069
    %v3071 = vrot.slane %v3064, %v3070
    %v3072 = vcombine.low %v3047, %v3055
    %v3074 = vunpack.c.l.s4 1934713408
    %v3075 = vunpack.c.0.s8 %v3074
    %v3076 = vlaneseq
    %v3077 = vshrl.u32 %v3076, 7
    %v3078 = vsub.s32 %v3075, %v3077
    %v3079 = vrot.slane %v3072, %v3078
    %v3080 = vcombine.low %v3063, %v3071
    %v3082 = vunpack.c.l.s4 1934713408
    %v3083 = vunpack.c.0.s8 %v3082
    %v3084 = vlaneseq
    %v3085 = vshrl.u32 %v3084, 7
    %v3086 = vsub.s32 %v3083, %v3085
    %v3087 = vrot.slane %v3080, %v3086
    %v3088 = vcombine.low %v3079, %v3087
    %v3089 = vcombine.high %v3079, %v3087
    %v3090 = vcombine.low %v3013, %v3023
    %v3092 = vunpack.c.l.s4 1983009808
    %v3093 = vunpack.c.0.s8 %v3092
    %v3094 = vlaneseq
    %v3095 = vshrl.u32 %v3094, 7
    %v3096 = vsub.s32 %v3093, %v3095
    %v3097 = vrot.slane %v3090, %v3096
    %v3098 = vcombine.low %v3016, %v3026
    %v3100 = vunpack.c.l.s4 1983009808
    %v3101 = vunpack.c.0.s8 %v3100
    %v3102 = vlaneseq
    %v3103 = vshrl.u32 %v3102, 7
    %v3104 = vsub.s32 %v3101, %v3103
    %v3105 = vrot.slane %v3098, %v3104
    %v3106 = vcombine.low %v3029, %v3035
    %v3108 = vunpack.c.l.s4 1983009808
    %v3109 = vunpack.c.0.s8 %v3108
    %v3110 = vlaneseq
    %v3111 = vshrl.u32 %v3110, 7
    %v3112 = vsub.s32 %v3109, %v3111
    %v3113 = vrot.slane %v3106, %v3112
    %v3114 = vcombine.low %v3032, %v3038
    %v3116 = vunpack.c.l.s4 1983009808
    %v3117 = vunpack.c.0.s8 %v3116
    %v3118 = vlaneseq
    %v3119 = vshrl.u32 %v3118, 7
    %v3120 = vsub.s32 %v3117, %v3119
    %v3121 = vrot.slane %v3114, %v3120
    %v3122 = vcombine.low %v3097, %v3105
    %v3124 = vunpack.c.l.s4 1934713408
    %v3125 = vunpack.c.0.s8 %v3124
    %v3126 = vlaneseq
    %v3127 = vshrl.u32 %v3126, 7
    %v3128 = vsub.s32 %v3125, %v3127
    %v3129 = vrot.slane %v3122, %v3128
    %v3130 = vcombine.low %v3113, %v3121
    %v3132 = vunpack.c.l.s4 1934713408
    %v3133 = vunpack.c.0.s8 %v3132
    %v3134 = vlaneseq
    %v3135 = vshrl.u32 %v3134, 7
    %v3136 = vsub.s32 %v3133, %v3135
    %v3137 = vrot.slane %v3130, %v3136
    %v3138 = vcombine.low %v3129, %v3137
    %v3139 = vcombine.high %v3129, %v3137
    %3141 = vrot.lane.b32.xlu0 %v2827, 104
    %v3142 = vpop.permute.xlu0 %3141
    %3144 = vrot.lane.b32.xlu0 %v2827, 80
    %v3145 = vpop.permute.xlu0 %3144
    %3147 = vrot.lane.b32.xlu0 %v2827, 56
    %v3148 = vpop.permute.xlu0 %3147
    %3150 = vrot.lane.b32.xlu0 %v2827, 32
    %v3151 = vpop.permute.xlu0 %3150
    %3154 = vrot.lane.b32.xlu0 %v2827, 8
    %v3155 = vpop.permute.xlu0 %3154
    %3156 = vrot.lane.b32.xlu0 %v2828, 8
    %v3157 = vpop.permute.xlu0 %3156
    %v3158 = vsel %vm2848, %v3155, %v3157
    %3160 = vrot.lane.b32.xlu0 %v2828, 112
    %v3161 = vpop.permute.xlu0 %3160
    %3163 = vrot.lane.b32.xlu0 %v2828, 88
    %v3164 = vpop.permute.xlu0 %3163
    %3166 = vrot.lane.b32.xlu0 %v2828, 64
    %v3167 = vpop.permute.xlu0 %3166
    %3169 = vrot.lane.b32.xlu0 %v2828, 40
    %v3170 = vpop.permute.xlu0 %3169
    %3173 = vrot.lane.b32.xlu0 %v2828, 16
    %v3174 = vpop.permute.xlu0 %3173
    %3175 = vrot.lane.b32.xlu0 %v2829, 16
    %v3176 = vpop.permute.xlu0 %3175
    %v3177 = vsel %vm2868, %v3174, %v3176
    %3179 = vrot.lane.b32.xlu0 %v2829, 120
    %v3180 = vpop.permute.xlu0 %3179
    %3182 = vrot.lane.b32.xlu0 %v2829, 96
    %v3183 = vpop.permute.xlu0 %3182
    %3185 = vrot.lane.b32.xlu0 %v2829, 72
    %v3186 = vpop.permute.xlu0 %3185
    %3188 = vrot.lane.b32.xlu0 %v2829, 48
    %v3189 = vpop.permute.xlu0 %3188
    %3191 = vrot.lane.b32.xlu0 %v2829, 24
    %v3192 = vpop.permute.xlu0 %3191
    %v3194 = vcombine.low %v2827, %v3145
    %v3196 = vunpack.c.l.s4 1983009808
    %v3197 = vunpack.c.0.s8 %v3196
    %v3198 = vlaneseq
    %v3199 = vshrl.u32 %v3198, 7
    %v3200 = vsub.s32 %v3197, %v3199
    %v3201 = vrot.slane %v3194, %v3200
    %v3202 = vcombine.low %v3142, %v3148
    %v3204 = vunpack.c.l.s4 1983009808
    %v3205 = vunpack.c.0.s8 %v3204
    %v3206 = vlaneseq
    %v3207 = vshrl.u32 %v3206, 7
    %v3208 = vsub.s32 %v3205, %v3207
    %v3209 = vrot.slane %v3202, %v3208
    %v3210 = vcombine.low %v3151, %v3161
    %v3212 = vunpack.c.l.s4 1983009808
    %v3213 = vunpack.c.0.s8 %v3212
    %v3214 = vlaneseq
    %v3215 = vshrl.u32 %v3214, 7
    %v3216 = vsub.s32 %v3213, %v3215
    %v3217 = vrot.slane %v3210, %v3216
    %v3218 = vcombine.low %v3158, %v3164
    %v3220 = vunpack.c.l.s4 1983009808
    %v3221 = vunpack.c.0.s8 %v3220
    %v3222 = vlaneseq
    %v3223 = vshrl.u32 %v3222, 7
    %v3224 = vsub.s32 %v3221, %v3223
    %v3225 = vrot.slane %v3218, %v3224
    %v3226 = vcombine.low %v3201, %v3209
    %v3228 = vunpack.c.l.s4 1934713408
    %v3229 = vunpack.c.0.s8 %v3228
    %v3230 = vlaneseq
    %v3231 = vshrl.u32 %v3230, 7
    %v3232 = vsub.s32 %v3229, %v3231
    %v3233 = vrot.slane %v3226, %v3232
    %v3234 = vcombine.low %v3217, %v3225
    %v3236 = vunpack.c.l.s4 1934713408
    %v3237 = vunpack.c.0.s8 %v3236
    %v3238 = vlaneseq
    %v3239 = vshrl.u32 %v3238, 7
    %v3240 = vsub.s32 %v3237, %v3239
    %v3241 = vrot.slane %v3234, %v3240
    %v3242 = vcombine.low %v3233, %v3241
    %v3243 = vcombine.high %v3233, %v3241
    %v3244 = vcombine.low %v3167, %v3177
    %v3246 = vunpack.c.l.s4 1983009808
    %v3247 = vunpack.c.0.s8 %v3246
    %v3248 = vlaneseq
    %v3249 = vshrl.u32 %v3248, 7
    %v3250 = vsub.s32 %v3247, %v3249
    %v3251 = vrot.slane %v3244, %v3250
    %v3252 = vcombine.low %v3170, %v3180
    %v3254 = vunpack.c.l.s4 1983009808
    %v3255 = vunpack.c.0.s8 %v3254
    %v3256 = vlaneseq
    %v3257 = vshrl.u32 %v3256, 7
    %v3258 = vsub.s32 %v3255, %v3257
    %v3259 = vrot.slane %v3252, %v3258
    %v3260 = vcombine.low %v3183, %v3189
    %v3262 = vunpack.c.l.s4 1983009808
    %v3263 = vunpack.c.0.s8 %v3262
    %v3264 = vlaneseq
    %v3265 = vshrl.u32 %v3264, 7
    %v3266 = vsub.s32 %v3263, %v3265
    %v3267 = vrot.slane %v3260, %v3266
    %v3268 = vcombine.low %v3186, %v3192
    %v3270 = vunpack.c.l.s4 1983009808
    %v3271 = vunpack.c.0.s8 %v3270
    %v3272 = vlaneseq
    %v3273 = vshrl.u32 %v3272, 7
    %v3274 = vsub.s32 %v3271, %v3273
    %v3275 = vrot.slane %v3268, %v3274
    %v3276 = vcombine.low %v3251, %v3259
    %v3278 = vunpack.c.l.s4 1934713408
    %v3279 = vunpack.c.0.s8 %v3278
    %v3280 = vlaneseq
    %v3281 = vshrl.u32 %v3280, 7
    %v3282 = vsub.s32 %v3279, %v3281
    %v3283 = vrot.slane %v3276, %v3282
    %v3284 = vcombine.low %v3267, %v3275
    %v3286 = vunpack.c.l.s4 1934713408
    %v3287 = vunpack.c.0.s8 %v3286
    %v3288 = vlaneseq
    %v3289 = vshrl.u32 %v3288, 7
    %v3290 = vsub.s32 %v3287, %v3289
    %v3291 = vrot.slane %v3284, %v3290
    %v3292 = vcombine.low %v3283, %v3291
    %v3293 = vcombine.high %v3283, %v3291
    %3294 = vxpose.xlu0.b32.start [1/16] %v3088, 128
    %3295 = vxpose.xlu0.b32.cont [2/16] %v3138, 128
    %3296 = vxpose.xlu0.b32.cont [3/16] 0.0, 128
    %3297 = vxpose.xlu0.b32.cont [4/16] 0.0, 128
    %3298 = vxpose.xlu0.b32.cont [5/16] 0.0, 128
    %3299 = vxpose.xlu0.b32.cont [6/16] 0.0, 128
    %3300 = vxpose.xlu0.b32.cont [7/16] 0.0, 128
    %3301 = vxpose.xlu0.b32.cont [8/16] 0.0, 128
    %3302 = vxpose.xlu0.b32.cont [9/16] 0.0, 128
    %3303 = vxpose.xlu0.b32.cont [10/16] 0.0, 128
    %3304 = vxpose.xlu0.b32.cont [11/16] 0.0, 128
    %3305 = vxpose.xlu0.b32.cont [12/16] 0.0, 128
    %3306 = vxpose.xlu0.b32.cont [13/16] 0.0, 128
    %3307 = vxpose.xlu0.b32.cont [14/16] 0.0, 128
    %3308 = vxpose.xlu0.b32.cont [15/16] 0.0, 128
    %3309 = vxpose.xlu0.b32.end [16/16] 0.0, 128
    %v3310 = vpop.trf.xlu0
    %v3311 = vpop.trf.xlu0
    %v3312 = vpop.trf.xlu0
    %v3313 = vpop.trf.xlu0
    %v3314 = vpop.trf.xlu0
    %v3315 = vpop.trf.xlu0
    %v3316 = vpop.trf.xlu0
    %v3317 = vpop.trf.xlu0
    %v3318 = vpop.trf.xlu0
    %v3319 = vpop.trf.xlu0
    %v3320 = vpop.trf.xlu0
    %v3321 = vpop.trf.xlu0
    %v3322 = vpop.trf.xlu0
    %v3323 = vpop.trf.xlu0
    %v3324 = vpop.trf.xlu0
    %v3325 = vpop.trf.xlu0
    %v3327 = vsel %vm2868, %v3310, 0
    %v3330 = vsel %vm2868, %v3311, 0
    %v3333 = vsel %vm2868, %v3312, 0
    %3335 = vmatprep.subr.mxu0 0.0
    %3336 = vmatpush1.msra.mxu0 %v2934
    %3337 = vmatprep.subr.mxu0 0.0
    %3338 = vmatpush1.msra.mxu0 %v2984
    %3339 = vmatprep.subr.mxu0 0.0
    %3340 = vmatpush1.msra.mxu0 0.0
    %3341 = vmatprep.subr.mxu0 0.0
    %3342 = vmatpush1.msra.mxu0 0.0
    %3343 = vmatprep.subr.mxu0 0.0
    %3344 = vmatpush1.msra.mxu0 0.0
    %3345 = vmatprep.subr.mxu0 0.0
    %3346 = vmatpush1.msra.mxu0 0.0
    %3347 = vmatprep.subr.mxu0 0.0
    %3348 = vmatpush1.msra.mxu0 0.0
    %3349 = vmatprep.subr.mxu0 0.0
    %3350 = vmatpush1.msra.mxu0 0.0
    %3351 = vmatprep.subr.mxu0 0.0
    %3352 = vmatpush1.msra.mxu0 0.0
    %3353 = vmatprep.subr.mxu0 0.0
    %3354 = vmatpush1.msra.mxu0 0.0
    %3355 = vmatprep.subr.mxu0 0.0
    %3356 = vmatpush1.msra.mxu0 0.0
    %3357 = vmatprep.subr.mxu0 0.0
    %3358 = vmatpush1.msra.mxu0 0.0
    %3359 = vmatprep.subr.mxu0 0.0
    %3360 = vmatpush1.msra.mxu0 0.0
    %3361 = vmatprep.subr.mxu0 0.0
    %3362 = vmatpush1.msra.mxu0 0.0
    %3363 = vmatprep.subr.mxu0 0.0
    %3364 = vmatpush1.msra.mxu0 0.0
    %3365 = vmatprep.subr.mxu0 0.0
    %3366 = vmatpush1.msra.mxu0 0.0
    %3367 = vmatprep.subr.mxu0 0.0
    %3368 = vmatpush1.msra.mxu0 0.0
    %3369 = vmatprep.subr.mxu0 0.0
    %3370 = vmatpush1.msra.mxu0 0.0
    %3371 = vmatprep.subr.mxu0 0.0
    %3372 = vmatpush1.msra.mxu0 0.0
    %3373 = vmatprep.subr.mxu0 0.0
    %3374 = vmatpush1.msra.mxu0 0.0
    %3375 = vmatprep.subr.mxu0 0.0
    %3376 = vmatpush1.msra.mxu0 0.0
    %3377 = vmatprep.subr.mxu0 0.0
    %3378 = vmatpush1.msra.mxu0 0.0
    %3379 = vmatprep.subr.mxu0 0.0
    %3380 = vmatpush1.msra.mxu0 0.0
    %3381 = vmatprep.subr.mxu0 0.0
    %3382 = vmatpush1.msra.mxu0 0.0
    %3383 = vmatprep.subr.mxu0 0.0
    %3384 = vmatpush1.msra.mxu0 0.0
    %3385 = vmatprep.subr.mxu0 0.0
    %3386 = vmatpush1.msra.mxu0 0.0
    %3387 = vmatprep.subr.mxu0 0.0
    %3388 = vmatpush1.msra.mxu0 0.0
    %3389 = vmatprep.subr.mxu0 0.0
    %3390 = vmatpush1.msra.mxu0 0.0
    %3391 = vmatprep.subr.mxu0 0.0
    %3392 = vmatpush1.msra.mxu0 0.0
    %3393 = vmatprep.subr.mxu0 0.0
    %3394 = vmatpush1.msra.mxu0 0.0
    %3395 = vmatprep.subr.mxu0 0.0
    %3396 = vmatpush1.msra.mxu0 0.0
    %3397 = vmatprep.subr.mxu0 0.0
    %3398 = vmatpush1.msra.mxu0 0.0
    %3399 = vmatprep.mubr.f32.mxu0 0.0
    %3400 = vmatmul.mubr.f32.gmra.mrb[0].mxu0 %v3327
    %v3401 = vpop.f32.mrb[0].mxu0
    %v3402 = vadd.f32 0.0, %v3401
    %v3403 = vpop.f32.mrb[0].mxu0
    %3404 = vmatprep.mubr.f32.mxu0 0.0
    %3405 = vmatmul.mubr.f32.gmra.mrb[0].mxu0 %v3330
    %v3406 = vpop.f32.mrb[0].mxu0
    %v3407 = vadd.f32 0.0, %v3406
    %v3408 = vpop.f32.mrb[0].mxu0
    %3409 = vmatprep.mubr.f32.mxu0 0.0
    %3410 = vmatmul.mubr.f32.gmra.mrb[0].mxu0 %v3333
    %v3411 = vpop.f32.mrb[0].mxu0
    %v3412 = vadd.f32 0.0, %v3411
    %v3413 = vpop.f32.mrb[0].mxu0
    %3414 = vdwg.mxu0
    %3415 = vxpose.xlu0.b32.start [1/16] %v3089, 128
    %3416 = vxpose.xlu0.b32.cont [2/16] %v3139, 128
    %3417 = vxpose.xlu0.b32.cont [3/16] 0.0, 128
    %3418 = vxpose.xlu0.b32.cont [4/16] 0.0, 128
    %3419 = vxpose.xlu0.b32.cont [5/16] 0.0, 128
    %3420 = vxpose.xlu0.b32.cont [6/16] 0.0, 128
    %3421 = vxpose.xlu0.b32.cont [7/16] 0.0, 128
    %3422 = vxpose.xlu0.b32.cont [8/16] 0.0, 128
    %3423 = vxpose.xlu0.b32.cont [9/16] 0.0, 128
    %3424 = vxpose.xlu0.b32.cont [10/16] 0.0, 128
    %3425 = vxpose.xlu0.b32.cont [11/16] 0.0, 128
    %3426 = vxpose.xlu0.b32.cont [12/16] 0.0, 128
    %3427 = vxpose.xlu0.b32.cont [13/16] 0.0, 128
    %3428 = vxpose.xlu0.b32.cont [14/16] 0.0, 128
    %3429 = vxpose.xlu0.b32.cont [15/16] 0.0, 128
    %3430 = vxpose.xlu0.b32.end [16/16] 0.0, 128
    %v3431 = vpop.trf.xlu0
    %v3432 = vpop.trf.xlu0
    %v3433 = vpop.trf.xlu0
    %v3434 = vpop.trf.xlu0
    %v3435 = vpop.trf.xlu0
    %v3436 = vpop.trf.xlu0
    %v3437 = vpop.trf.xlu0
    %v3438 = vpop.trf.xlu0
    %v3439 = vpop.trf.xlu0
    %v3440 = vpop.trf.xlu0
    %v3441 = vpop.trf.xlu0
    %v3442 = vpop.trf.xlu0
    %v3443 = vpop.trf.xlu0
    %v3444 = vpop.trf.xlu0
    %v3445 = vpop.trf.xlu0
    %v3446 = vpop.trf.xlu0
    %v3448 = vsel %vm2868, %v3431, 0
    %v3451 = vsel %vm2868, %v3432, 0
    %v3454 = vsel %vm2868, %v3433, 0
    %3456 = vmatprep.subr.mxu0 0.0
    %3457 = vmatpush1.msra.mxu0 %v2935
    %3458 = vmatprep.subr.mxu0 0.0
    %3459 = vmatpush1.msra.mxu0 %v2985
    %3460 = vmatprep.subr.mxu0 0.0
    %3461 = vmatpush1.msra.mxu0 0.0
    %3462 = vmatprep.subr.mxu0 0.0
    %3463 = vmatpush1.msra.mxu0 0.0
    %3464 = vmatprep.subr.mxu0 0.0
    %3465 = vmatpush1.msra.mxu0 0.0
    %3466 = vmatprep.subr.mxu0 0.0
    %3467 = vmatpush1.msra.mxu0 0.0
    %3468 = vmatprep.subr.mxu0 0.0
    %3469 = vmatpush1.msra.mxu0 0.0
    %3470 = vmatprep.subr.mxu0 0.0
    %3471 = vmatpush1.msra.mxu0 0.0
    %3472 = vmatprep.subr.mxu0 0.0
    %3473 = vmatpush1.msra.mxu0 0.0
    %3474 = vmatprep.subr.mxu0 0.0
    %3475 = vmatpush1.msra.mxu0 0.0
    %3476 = vmatprep.subr.mxu0 0.0
    %3477 = vmatpush1.msra.mxu0 0.0
    %3478 = vmatprep.subr.mxu0 0.0
    %3479 = vmatpush1.msra.mxu0 0.0
    %3480 = vmatprep.subr.mxu0 0.0
    %3481 = vmatpush1.msra.mxu0 0.0
    %3482 = vmatprep.subr.mxu0 0.0
    %3483 = vmatpush1.msra.mxu0 0.0
    %3484 = vmatprep.subr.mxu0 0.0
    %3485 = vmatpush1.msra.mxu0 0.0
    %3486 = vmatprep.subr.mxu0 0.0
    %3487 = vmatpush1.msra.mxu0 0.0
    %3488 = vmatprep.subr.mxu0 0.0
    %3489 = vmatpush1.msra.mxu0 0.0
    %3490 = vmatprep.subr.mxu0 0.0
    %3491 = vmatpush1.msra.mxu0 0.0
    %3492 = vmatprep.subr.mxu0 0.0
    %3493 = vmatpush1.msra.mxu0 0.0
    %3494 = vmatprep.subr.mxu0 0.0
    %3495 = vmatpush1.msra.mxu0 0.0
    %3496 = vmatprep.subr.mxu0 0.0
    %3497 = vmatpush1.msra.mxu0 0.0
    %3498 = vmatprep.subr.mxu0 0.0
    %3499 = vmatpush1.msra.mxu0 0.0
    %3500 = vmatprep.subr.mxu0 0.0
    %3501 = vmatpush1.msra.mxu0 0.0
    %3502 = vmatprep.subr.mxu0 0.0
    %3503 = vmatpush1.msra.mxu0 0.0
    %3504 = vmatprep.subr.mxu0 0.0
    %3505 = vmatpush1.msra.mxu0 0.0
    %3506 = vmatprep.subr.mxu0 0.0
    %3507 = vmatpush1.msra.mxu0 0.0
    %3508 = vmatprep.subr.mxu0 0.0
    %3509 = vmatpush1.msra.mxu0 0.0
    %3510 = vmatprep.subr.mxu0 0.0
    %3511 = vmatpush1.msra.mxu0 0.0
    %3512 = vmatprep.subr.mxu0 0.0
    %3513 = vmatpush1.msra.mxu0 0.0
    %3514 = vmatprep.subr.mxu0 0.0
    %3515 = vmatpush1.msra.mxu0 0.0
    %3516 = vmatprep.subr.mxu0 0.0
    %3517 = vmatpush1.msra.mxu0 0.0
    %3518 = vmatprep.subr.mxu0 0.0
    %3519 = vmatpush1.msra.mxu0 0.0
    %3520 = vmatprep.mubr.f32.mxu0 0.0
    %3521 = vmatmul.mubr.f32.gmra.mrb[0].mxu0 %v3448
    %v3522 = vpop.f32.mrb[0].mxu0
    %v3523 = vadd.f32 0.0, %v3522
    %v3524 = vpop.f32.mrb[0].mxu0
    %3525 = vmatprep.mubr.f32.mxu0 0.0
    %3526 = vmatmul.mubr.f32.gmra.mrb[0].mxu0 %v3451
    %v3527 = vpop.f32.mrb[0].mxu0
    %v3528 = vadd.f32 0.0, %v3527
    %v3529 = vpop.f32.mrb[0].mxu0
    %3530 = vmatprep.mubr.f32.mxu0 0.0
    %3531 = vmatmul.mubr.f32.gmra.mrb[0].mxu0 %v3454
    %v3532 = vpop.f32.mrb[0].mxu0
    %v3533 = vadd.f32 0.0, %v3532
    %v3534 = vpop.f32.mrb[0].mxu0
    %3535 = vdwg.mxu0
    %v3536 = vmul.f32 %v3402, %v930
    %v3537 = vmul.f32 %v3407, %v931
    %v3538 = vmul.f32 %v3412, %v932
    %v3539 = vmul.f32 %v3523, %v930
    %v3540 = vmul.f32 %v3528, %v931
    %v3541 = vmul.f32 %v3533, %v932
    %vm3542 = vcmask 195584
    %v3544 = vsel %vm3542, %v3536, 0
    %v3547 = vsel %vm3542, %v3537, 0
    %v3550 = vsel %vm3542, %v3538, 0
    %v3553 = vsel %vm3542, %v3539, 0
    %v3556 = vsel %vm3542, %v3540, 0
    %v3559 = vsel %vm3542, %v3541, 0
    %3561 = vmatprep.subr.mxu0 0.0
    %3562 = vmatpush1.msra.mxu0 %v514
    %3563 = vmatprep.subr.mxu0 0.0
    %3564 = vmatpush1.msra.mxu0 %v515
    %3565 = vmatprep.subr.mxu0 0.0
    %3566 = vmatpush1.msra.mxu0 %v516
    %3567 = vmatprep.subr.mxu0 0.0
    %3568 = vmatpush1.msra.mxu0 0.0
    %3569 = vmatprep.subr.mxu0 0.0
    %3570 = vmatpush1.msra.mxu0 0.0
    %3571 = vmatprep.subr.mxu0 0.0
    %3572 = vmatpush1.msra.mxu0 0.0
    %3573 = vmatprep.subr.mxu0 0.0
    %3574 = vmatpush1.msra.mxu0 0.0
    %3575 = vmatprep.subr.mxu0 0.0
    %3576 = vmatpush1.msra.mxu0 0.0
    %3577 = vmatprep.subr.mxu0 0.0
    %3578 = vmatpush1.msra.mxu0 0.0
    %3579 = vmatprep.subr.mxu0 0.0
    %3580 = vmatpush1.msra.mxu0 0.0
    %3581 = vmatprep.subr.mxu0 0.0
    %3582 = vmatpush1.msra.mxu0 0.0
    %3583 = vmatprep.subr.mxu0 0.0
    %3584 = vmatpush1.msra.mxu0 0.0
    %3585 = vmatprep.subr.mxu0 0.0
    %3586 = vmatpush1.msra.mxu0 0.0
    %3587 = vmatprep.subr.mxu0 0.0
    %3588 = vmatpush1.msra.mxu0 0.0
    %3589 = vmatprep.subr.mxu0 0.0
    %3590 = vmatpush1.msra.mxu0 0.0
    %3591 = vmatprep.subr.mxu0 0.0
    %3592 = vmatpush1.msra.mxu0 0.0
    %3593 = vmatprep.subr.mxu0 0.0
    %3594 = vmatpush1.msra.mxu0 0.0
    %3595 = vmatprep.subr.mxu0 0.0
    %3596 = vmatpush1.msra.mxu0 0.0
    %3597 = vmatprep.subr.mxu0 0.0
    %3598 = vmatpush1.msra.mxu0 0.0
    %3599 = vmatprep.subr.mxu0 0.0
    %3600 = vmatpush1.msra.mxu0 0.0
    %3601 = vmatprep.subr.mxu0 0.0
    %3602 = vmatpush1.msra.mxu0 0.0
    %3603 = vmatprep.subr.mxu0 0.0
    %3604 = vmatpush1.msra.mxu0 0.0
    %3605 = vmatprep.subr.mxu0 0.0
    %3606 = vmatpush1.msra.mxu0 0.0
    %3607 = vmatprep.subr.mxu0 0.0
    %3608 = vmatpush1.msra.mxu0 0.0
    %3609 = vmatprep.subr.mxu0 0.0
    %3610 = vmatpush1.msra.mxu0 0.0
    %3611 = vmatprep.subr.mxu0 0.0
    %3612 = vmatpush1.msra.mxu0 0.0
    %3613 = vmatprep.subr.mxu0 0.0
    %3614 = vmatpush1.msra.mxu0 0.0
    %3615 = vmatprep.subr.mxu0 0.0
    %3616 = vmatpush1.msra.mxu0 0.0
    %3617 = vmatprep.subr.mxu0 0.0
    %3618 = vmatpush1.msra.mxu0 0.0
    %3619 = vmatprep.subr.mxu0 0.0
    %3620 = vmatpush1.msra.mxu0 0.0
    %3621 = vmatprep.subr.mxu0 0.0
    %3622 = vmatpush1.msra.mxu0 0.0
    %3623 = vmatprep.subr.mxu0 0.0
    %3624 = vmatpush1.msra.mxu0 0.0
    %3625 = vmatprep.mubr.f32.mxu0 0.0
    %3626 = vmatmul.mubr.f32.gmra.mrb[0].mxu0 %v3544
    %v3627 = vpop.f32.mrb[0].mxu0
    %v3628 = vadd.f32 0.0, %v3627
    %v3629 = vpop.f32.mrb[0].mxu0
    %3630 = vmatprep.mubr.f32.mxu0 0.0
    %3631 = vmatmul.mubr.f32.gmra.mrb[0].mxu0 %v3547
    %v3632 = vpop.f32.mrb[0].mxu0
    %v3633 = vadd.f32 0.0, %v3632
    %v3634 = vpop.f32.mrb[0].mxu0
    %3635 = vmatprep.mubr.f32.mxu0 0.0
    %3636 = vmatmul.mubr.f32.gmra.mrb[0].mxu0 %v3550
    %v3637 = vpop.f32.mrb[0].mxu0
    %v3638 = vadd.f32 0.0, %v3637
    %v3639 = vpop.f32.mrb[0].mxu0
    %3640 = vmatprep.mubr.f32.mxu0 0.0
    %3641 = vmatmul.mubr.f32.gmra.mrb[0].mxu0 %v3553
    %v3642 = vpop.f32.mrb[0].mxu0
    %v3643 = vadd.f32 0.0, %v3642
    %v3644 = vpop.f32.mrb[0].mxu0
    %3645 = vmatprep.mubr.f32.mxu0 0.0
    %3646 = vmatmul.mubr.f32.gmra.mrb[0].mxu0 %v3556
    %v3647 = vpop.f32.mrb[0].mxu0
    %v3648 = vadd.f32 0.0, %v3647
    %v3649 = vpop.f32.mrb[0].mxu0
    %3650 = vmatprep.mubr.f32.mxu0 0.0
    %3651 = vmatmul.mubr.f32.gmra.mrb[0].mxu0 %v3559
    %v3652 = vpop.f32.mrb[0].mxu0
    %v3653 = vadd.f32 0.0, %v3652
    %v3654 = vpop.f32.mrb[0].mxu0
    %3655 = vdwg.mxu0
    %v3657 = vsel %vm3542, %v3242, 0
    %v3660 = vsel %vm3542, %v3292, 0
    %3662 = vmatprep.subr.mxu0 0.0
    %3663 = vmatpush1.msra.mxu0 %v3628
    %3664 = vmatprep.subr.mxu0 0.0
    %3665 = vmatpush1.msra.mxu0 %v3633
    %3666 = vmatprep.subr.mxu0 0.0
    %3667 = vmatpush1.msra.mxu0 %v3638
    %3668 = vmatprep.subr.mxu0 0.0
    %3669 = vmatpush1.msra.mxu0 0.0
    %3670 = vmatprep.subr.mxu0 0.0
    %3671 = vmatpush1.msra.mxu0 0.0
    %3672 = vmatprep.subr.mxu0 0.0
    %3673 = vmatpush1.msra.mxu0 0.0
    %3674 = vmatprep.subr.mxu0 0.0
    %3675 = vmatpush1.msra.mxu0 0.0
    %3676 = vmatprep.subr.mxu0 0.0
    %3677 = vmatpush1.msra.mxu0 0.0
    %3678 = vmatprep.subr.mxu0 0.0
    %3679 = vmatpush1.msra.mxu0 0.0
    %3680 = vmatprep.subr.mxu0 0.0
    %3681 = vmatpush1.msra.mxu0 0.0
    %3682 = vmatprep.subr.mxu0 0.0
    %3683 = vmatpush1.msra.mxu0 0.0
    %3684 = vmatprep.subr.mxu0 0.0
    %3685 = vmatpush1.msra.mxu0 0.0
    %3686 = vmatprep.subr.mxu0 0.0
    %3687 = vmatpush1.msra.mxu0 0.0
    %3688 = vmatprep.subr.mxu0 0.0
    %3689 = vmatpush1.msra.mxu0 0.0
    %3690 = vmatprep.subr.mxu0 0.0
    %3691 = vmatpush1.msra.mxu0 0.0
    %3692 = vmatprep.subr.mxu0 0.0
    %3693 = vmatpush1.msra.mxu0 0.0
    %3694 = vmatprep.subr.mxu0 0.0
    %3695 = vmatpush1.msra.mxu0 0.0
    %3696 = vmatprep.subr.mxu0 0.0
    %3697 = vmatpush1.msra.mxu0 0.0
    %3698 = vmatprep.subr.mxu0 0.0
    %3699 = vmatpush1.msra.mxu0 0.0
    %3700 = vmatprep.subr.mxu0 0.0
    %3701 = vmatpush1.msra.mxu0 0.0
    %3702 = vmatprep.subr.mxu0 0.0
    %3703 = vmatpush1.msra.mxu0 0.0
    %3704 = vmatprep.subr.mxu0 0.0
    %3705 = vmatpush1.msra.mxu0 0.0
    %3706 = vmatprep.subr.mxu0 0.0
    %3707 = vmatpush1.msra.mxu0 0.0
    %3708 = vmatprep.subr.mxu0 0.0
    %3709 = vmatpush1.msra.mxu0 0.0
    %3710 = vmatprep.subr.mxu0 0.0
    %3711 = vmatpush1.msra.mxu0 0.0
    %3712 = vmatprep.subr.mxu0 0.0
    %3713 = vmatpush1.msra.mxu0 0.0
    %3714 = vmatprep.subr.mxu0 0.0
    %3715 = vmatpush1.msra.mxu0 0.0
    %3716 = vmatprep.subr.mxu0 0.0
    %3717 = vmatpush1.msra.mxu0 0.0
    %3718 = vmatprep.subr.mxu0 0.0
    %3719 = vmatpush1.msra.mxu0 0.0
    %3720 = vmatprep.subr.mxu0 0.0
    %3721 = vmatpush1.msra.mxu0 0.0
    %3722 = vmatprep.subr.mxu0 0.0
    %3723 = vmatpush1.msra.mxu0 0.0
    %3724 = vmatprep.subr.mxu0 0.0
    %3725 = vmatpush1.msra.mxu0 0.0
    %3726 = vmatprep.mubr.f32.mxu0 0.0
    %3727 = vmatmul.mubr.f32.gmra.mrb[0].mxu0 %v3657
    %v3728 = vpop.f32.mrb[0].mxu0
    %v3729 = vadd.f32 0.0, %v3728
    %v3730 = vpop.f32.mrb[0].mxu0
    %3731 = vmatprep.mubr.f32.mxu0 0.0
    %3732 = vmatmul.mubr.f32.gmra.mrb[0].mxu0 %v3660
    %v3733 = vpop.f32.mrb[0].mxu0
    %v3734 = vadd.f32 0.0, %v3733
    %v3735 = vpop.f32.mrb[0].mxu0
    %3736 = vdwg.mxu0
    %v3738 = vsel %vm3542, %v3243, 0
    %v3741 = vsel %vm3542, %v3293, 0
    %3743 = vmatprep.subr.mxu0 0.0
    %3744 = vmatpush1.msra.mxu0 %v3643
    %3745 = vmatprep.subr.mxu0 0.0
    %3746 = vmatpush1.msra.mxu0 %v3648
    %3747 = vmatprep.subr.mxu0 0.0
    %3748 = vmatpush1.msra.mxu0 %v3653
    %3749 = vmatprep.subr.mxu0 0.0
    %3750 = vmatpush1.msra.mxu0 0.0
    %3751 = vmatprep.subr.mxu0 0.0
    %3752 = vmatpush1.msra.mxu0 0.0
    %3753 = vmatprep.subr.mxu0 0.0
    %3754 = vmatpush1.msra.mxu0 0.0
    %3755 = vmatprep.subr.mxu0 0.0
    %3756 = vmatpush1.msra.mxu0 0.0
    %3757 = vmatprep.subr.mxu0 0.0
    %3758 = vmatpush1.msra.mxu0 0.0
    %3759 = vmatprep.subr.mxu0 0.0
    %3760 = vmatpush1.msra.mxu0 0.0
    %3761 = vmatprep.subr.mxu0 0.0
    %3762 = vmatpush1.msra.mxu0 0.0
    %3763 = vmatprep.subr.mxu0 0.0
    %3764 = vmatpush1.msra.mxu0 0.0
    %3765 = vmatprep.subr.mxu0 0.0
    %3766 = vmatpush1.msra.mxu0 0.0
    %3767 = vmatprep.subr.mxu0 0.0
    %3768 = vmatpush1.msra.mxu0 0.0
    %3769 = vmatprep.subr.mxu0 0.0
    %3770 = vmatpush1.msra.mxu0 0.0
    %3771 = vmatprep.subr.mxu0 0.0
    %3772 = vmatpush1.msra.mxu0 0.0
    %3773 = vmatprep.subr.mxu0 0.0
    %3774 = vmatpush1.msra.mxu0 0.0
    %3775 = vmatprep.subr.mxu0 0.0
    %3776 = vmatpush1.msra.mxu0 0.0
    %3777 = vmatprep.subr.mxu0 0.0
    %3778 = vmatpush1.msra.mxu0 0.0
    %3779 = vmatprep.subr.mxu0 0.0
    %3780 = vmatpush1.msra.mxu0 0.0
    %3781 = vmatprep.subr.mxu0 0.0
    %3782 = vmatpush1.msra.mxu0 0.0
    %3783 = vmatprep.subr.mxu0 0.0
    %3784 = vmatpush1.msra.mxu0 0.0
    %3785 = vmatprep.subr.mxu0 0.0
    %3786 = vmatpush1.msra.mxu0 0.0
    %3787 = vmatprep.subr.mxu0 0.0
    %3788 = vmatpush1.msra.mxu0 0.0
    %3789 = vmatprep.subr.mxu0 0.0
    %3790 = vmatpush1.msra.mxu0 0.0
    %3791 = vmatprep.subr.mxu0 0.0
    %3792 = vmatpush1.msra.mxu0 0.0
    %3793 = vmatprep.subr.mxu0 0.0
    %3794 = vmatpush1.msra.mxu0 0.0
    %3795 = vmatprep.subr.mxu0 0.0
    %3796 = vmatpush1.msra.mxu0 0.0
    %3797 = vmatprep.subr.mxu0 0.0
    %3798 = vmatpush1.msra.mxu0 0.0
    %3799 = vmatprep.subr.mxu0 0.0
    %3800 = vmatpush1.msra.mxu0 0.0
    %3801 = vmatprep.subr.mxu0 0.0
    %3802 = vmatpush1.msra.mxu0 0.0
    %3803 = vmatprep.subr.mxu0 0.0
    %3804 = vmatpush1.msra.mxu0 0.0
    %3805 = vmatprep.subr.mxu0 0.0
    %3806 = vmatpush1.msra.mxu0 0.0
    %3807 = vmatprep.mubr.f32.mxu0 0.0
    %3808 = vmatmul.mubr.f32.gmra.mrb[0].mxu0 %v3738
    %v3809 = vpop.f32.mrb[0].mxu0
    %v3810 = vadd.f32 0.0, %v3809
    %v3811 = vpop.f32.mrb[0].mxu0
    %3812 = vmatprep.mubr.f32.mxu0 0.0
    %3813 = vmatmul.mubr.f32.gmra.mrb[0].mxu0 %v3741
    %v3814 = vpop.f32.mrb[0].mxu0
    %v3815 = vadd.f32 0.0, %v3814
    %v3816 = vpop.f32.mrb[0].mxu0
    %3817 = vdwg.mxu0
    %v3818 = vcombine.high %v3729, 0.0
    %v3820 = vunpack.c.l.s4 1983009808
    %v3821 = vunpack.c.0.s8 %v3820
    %v3822 = vlaneseq
    %v3823 = vshrl.u32 %v3822, 7
    %v3824 = vsub.s32 %v3821, %v3823
    %v3825 = vrot.slane %v3729, %v3824
    %v3827 = vunpack.c.l.s4 1983009808
    %v3828 = vunpack.c.0.s8 %v3827
    %v3829 = vlaneseq
    %v3830 = vshrl.u32 %v3829, 7
    %v3831 = vsub.s32 %v3828, %v3830
    %v3832 = vrot.slane %v3818, %v3831
    %v3833 = vcombine.high %v3810, 0.0
    %v3835 = vunpack.c.l.s4 1983009808
    %v3836 = vunpack.c.0.s8 %v3835
    %v3837 = vlaneseq
    %v3838 = vshrl.u32 %v3837, 7
    %v3839 = vsub.s32 %v3836, %v3838
    %v3840 = vrot.slane %v3810, %v3839
    %v3842 = vunpack.c.l.s4 1983009808
    %v3843 = vunpack.c.0.s8 %v3842
    %v3844 = vlaneseq
    %v3845 = vshrl.u32 %v3844, 7
    %v3846 = vsub.s32 %v3843, %v3845
    %v3847 = vrot.slane %v3833, %v3846
    %v3848 = vcombine.low %v3825, %v3840
    %v3849 = vcombine.high %v3825, %v3840
    %v3851 = vunpack.c.l.s4 1934713408
    %v3852 = vunpack.c.0.s8 %v3851
    %v3853 = vlaneseq
    %v3854 = vshrl.u32 %v3853, 7
    %v3855 = vsub.s32 %v3852, %v3854
    %v3856 = vrot.slane %v3848, %v3855
    %v3858 = vunpack.c.l.s4 1934713408
    %v3859 = vunpack.c.0.s8 %v3858
    %v3860 = vlaneseq
    %v3861 = vshrl.u32 %v3860, 7
    %v3862 = vsub.s32 %v3859, %v3861
    %v3863 = vrot.slane %v3849, %v3862
    %v3864 = vcombine.low %v3832, %v3847
    %v3865 = vcombine.high %v3832, %v3847
    %v3867 = vunpack.c.l.s4 1934713408
    %v3868 = vunpack.c.0.s8 %v3867
    %v3869 = vlaneseq
    %v3870 = vshrl.u32 %v3869, 7
    %v3871 = vsub.s32 %v3868, %v3870
    %v3872 = vrot.slane %v3864, %v3871
    %v3874 = vunpack.c.l.s4 1934713408
    %v3875 = vunpack.c.0.s8 %v3874
    %v3876 = vlaneseq
    %v3877 = vshrl.u32 %v3876, 7
    %v3878 = vsub.s32 %v3875, %v3877
    %v3879 = vrot.slane %v3865, %v3878
    %v3880 = vcombine.high %v3856, 0.0
    %v3881 = vcombine.high %v3863, 0.0
    %v3882 = vcombine.high %v3872, 0.0
    %v3883 = vcombine.high %v3879, 0.0
    %v3884 = vcombine.high %v3734, 0.0
    %v3886 = vunpack.c.l.s4 1983009808
    %v3887 = vunpack.c.0.s8 %v3886
    %v3888 = vlaneseq
    %v3889 = vshrl.u32 %v3888, 7
    %v3890 = vsub.s32 %v3887, %v3889
    %v3891 = vrot.slane %v3734, %v3890
    %v3893 = vunpack.c.l.s4 1983009808
    %v3894 = vunpack.c.0.s8 %v3893
    %v3895 = vlaneseq
    %v3896 = vshrl.u32 %v3895, 7
    %v3897 = vsub.s32 %v3894, %v3896
    %v3898 = vrot.slane %v3884, %v3897
    %v3899 = vcombine.high %v3815, 0.0
    %v3901 = vunpack.c.l.s4 1983009808
    %v3902 = vunpack.c.0.s8 %v3901
    %v3903 = vlaneseq
    %v3904 = vshrl.u32 %v3903, 7
    %v3905 = vsub.s32 %v3902, %v3904
    %v3906 = vrot.slane %v3815, %v3905
    %v3908 = vunpack.c.l.s4 1983009808
    %v3909 = vunpack.c.0.s8 %v3908
    %v3910 = vlaneseq
    %v3911 = vshrl.u32 %v3910, 7
    %v3912 = vsub.s32 %v3909, %v3911
    %v3913 = vrot.slane %v3899, %v3912
    %v3914 = vcombine.low %v3891, %v3906
    %v3915 = vcombine.high %v3891, %v3906
    %v3917 = vunpack.c.l.s4 1934713408
    %v3918 = vunpack.c.0.s8 %v3917
    %v3919 = vlaneseq
    %v3920 = vshrl.u32 %v3919, 7
    %v3921 = vsub.s32 %v3918, %v3920
    %v3922 = vrot.slane %v3914, %v3921
    %v3924 = vunpack.c.l.s4 1934713408
    %v3925 = vunpack.c.0.s8 %v3924
    %v3926 = vlaneseq
    %v3927 = vshrl.u32 %v3926, 7
    %v3928 = vsub.s32 %v3925, %v3927
    %v3929 = vrot.slane %v3915, %v3928
    %v3930 = vcombine.low %v3898, %v3913
    %v3931 = vcombine.high %v3898, %v3913
    %v3933 = vunpack.c.l.s4 1934713408
    %v3934 = vunpack.c.0.s8 %v3933
    %v3935 = vlaneseq
    %v3936 = vshrl.u32 %v3935, 7
    %v3937 = vsub.s32 %v3934, %v3936
    %v3938 = vrot.slane %v3930, %v3937
    %v3940 = vunpack.c.l.s4 1934713408
    %v3941 = vunpack.c.0.s8 %v3940
    %v3942 = vlaneseq
    %v3943 = vshrl.u32 %v3942, 7
    %v3944 = vsub.s32 %v3941, %v3943
    %v3945 = vrot.slane %v3931, %v3944
    %v3946 = vcombine.high %v3922, 0.0
    %v3947 = vcombine.high %v3929, 0.0
    %v3948 = vcombine.high %v3938, 0.0
    %v3949 = vcombine.high %v3945, 0.0
    %3951 = vrot.lane.b32.xlu0 %v3880, 8
    %v3952 = vpop.permute.xlu0 %3951
    %3955 = vrot.lane.b32.xlu0 %v3863, 16
    %v3956 = vpop.permute.xlu0 %3955
    %3959 = vrot.lane.b32.xlu0 %v3881, 24
    %v3960 = vpop.permute.xlu0 %3959
    %3963 = vrot.lane.b32.xlu0 %v3872, 32
    %v3964 = vpop.permute.xlu0 %3963
    %3967 = vrot.lane.b32.xlu0 %v3882, 40
    %v3968 = vpop.permute.xlu0 %3967
    %3971 = vrot.lane.b32.xlu0 %v3879, 48
    %v3972 = vpop.permute.xlu0 %3971
    %3975 = vrot.lane.b32.xlu0 %v3883, 56
    %v3976 = vpop.permute.xlu0 %3975
    %3979 = vrot.lane.b32.xlu0 %v3922, 64
    %v3980 = vpop.permute.xlu0 %3979
    %3983 = vrot.lane.b32.xlu0 %v3946, 72
    %v3984 = vpop.permute.xlu0 %3983
    %3987 = vrot.lane.b32.xlu0 %v3929, 80
    %v3988 = vpop.permute.xlu0 %3987
    %3991 = vrot.lane.b32.xlu0 %v3947, 88
    %v3992 = vpop.permute.xlu0 %3991
    %3995 = vrot.lane.b32.xlu0 %v3938, 96
    %v3996 = vpop.permute.xlu0 %3995
    %3999 = vrot.lane.b32.xlu0 %v3948, 104
    %v4000 = vpop.permute.xlu0 %3999
    %4003 = vrot.lane.b32.xlu0 %v3945, 112
    %v4004 = vpop.permute.xlu0 %4003
    %4007 = vrot.lane.b32.xlu0 %v3949, 120
    %v4008 = vpop.permute.xlu0 %4007
    %v4010 = vsel %vm2848, %v3856, %v3952
    %v4011 = vsel %vm2868, %v4010, %v3956
    %v4012 = vsel %vm3542, %v4011, %v3960
    %vm4013 = vcmask 261120
    %v4014 = vsel %vm4013, %v4012, %v3964
    %vm4015 = vcmask 326656
    %v4016 = vsel %vm4015, %v4014, %v3968
    %vm4017 = vcmask 392192
    %v4018 = vsel %vm4017, %v4016, %v3972
    %vm4019 = vcmask 457728
    %v4020 = vsel %vm4019, %v4018, %v3976
    %vm4021 = vcmask 523264
    %v4022 = vsel %vm4021, %v4020, %v3980
    %vm4023 = vcmask 588800
    %v4024 = vsel %vm4023, %v4022, %v3984
    %vm4025 = vcmask 654336
    %v4026 = vsel %vm4025, %v4024, %v3988
    %vm4027 = vcmask 719872
    %v4028 = vsel %vm4027, %v4026, %v3992
    %vm4029 = vcmask 785408
    %v4030 = vsel %vm4029, %v4028, %v3996
    %vm4031 = vcmask 850944
    %v4032 = vsel %vm4031, %v4030, %v4000
    %vm4033 = vcmask 916480
    %v4034 = vsel %vm4033, %v4032, %v4004
    %vm4035 = vcmask 982016
    %v4036 = vsel %vm4035, %v4034, %v4008
    %v4038 = vlaneseq
    %v4039 = vshrl.u32 %v4038, 7
    %v4040 = vsub.s32 0, %v4039
    %v4041 = vrot.slane %v517, %v4040
    %v4043 = vadd.f32 %v4036, %v4041
    %v4044 = vmax.f32 %v4043, 0.0
    %v4045 = vadd.f32 %v933, %v4044
    %vm4046 = vcmask 1041408
    %v4047 = vsel %vm4046, %v4045, 0.0
    %4048 = vadd.xlane.f32.xlu0 %v4047
    %v4049 = vpop.xlane.xlu0 %4048
    %v4050 = vrcp.pop 128.0
    %v4051 = vmul.f32 %v4049, %v4050
    %v4052 = vsub.f32 %v4045, %v4051
    %v4053 = vmul.f32 %v4052, %v4052
    %v4054 = vsel %vm4046, %v4053, 0.0
    %4055 = vadd.xlane.f32.xlu0 %v4054
    %v4056 = vpop.xlane.xlu0 %4055
    %v4057 = vmul.f32 %v4056, %v4050
    %v4058 = vadd.f32 %v4057, 1e-05
    %v4059 = vrsqrt.pop %v4058
    %v4060 = vmul.f32 %v4052, %v4059
    %v4062 = vlaneseq
    %v4063 = vshrl.u32 %v4062, 7
    %v4064 = vsub.s32 0, %v4063
    %v4065 = vrot.slane %v518, %v4064
    %v4067 = vmul.f32 %v4060, %v4065
    %v4069 = vlaneseq
    %v4070 = vshrl.u32 %v4069, 7
    %v4071 = vsub.s32 0, %v4070
    %v4072 = vrot.slane %v519, %v4071
    %v4074 = vadd.f32 %v4067, %v4072
    %v4075 = vpack.c.bf16 %v4074, %v4074
    %v4077 = vlaneseq
    %v4078 = vshrl.u32 %v4077, 7
    %v4079 = vsub.s32 0, %v4078
    %v4080 = vrot.slane %v552, %v4079
    %v4081 = vlaneseq
    %v4082 = vshrl.u32 %v4081, 7
    %v4083 = vsub.s32 1, %v4082
    %v4084 = vrot.slane %v552, %v4083
    %v4085 = vlaneseq
    %v4086 = vshrl.u32 %v4085, 7
    %v4087 = vsub.s32 2, %v4086
    %v4088 = vrot.slane %v552, %v4087
    %v4089 = vlaneseq
    %v4090 = vshrl.u32 %v4089, 7
    %v4091 = vsub.s32 3, %v4090
    %v4092 = vrot.slane %v552, %v4091
    %v4129 = vunpack.c.l.b16 %v520
    %v4130 = vunpack.c.h.b16 %v520
    %v4131 = vunpack.c.l.b16 %v521
    %v4132 = vunpack.c.h.b16 %v521
    %v4133 = vunpack.c.l.b16 %v522
    %v4134 = vunpack.c.h.b16 %v522
    %v4135 = vunpack.c.l.b16 %v523
    %v4136 = vunpack.c.h.b16 %v523
    %v4137 = vunpack.c.l.b16 %v524
    %v4138 = vunpack.c.h.b16 %v524
    %v4139 = vunpack.c.l.b16 %v525
    %v4140 = vunpack.c.h.b16 %v525
    %v4141 = vunpack.c.l.b16 %v526
    %v4142 = vunpack.c.h.b16 %v526
    %v4143 = vunpack.c.l.b16 %v527
    %v4144 = vunpack.c.h.b16 %v527
    %v4145 = vunpack.c.l.b16 %v528
    %v4146 = vunpack.c.h.b16 %v528
    %v4147 = vunpack.c.l.b16 %v529
    %v4148 = vunpack.c.h.b16 %v529
    %v4149 = vunpack.c.l.b16 %v530
    %v4150 = vunpack.c.h.b16 %v530
    %v4151 = vunpack.c.l.b16 %v531
    %v4152 = vunpack.c.h.b16 %v531
    %v4153 = vunpack.c.l.b16 %v532
    %v4154 = vunpack.c.h.b16 %v532
    %v4155 = vunpack.c.l.b16 %v533
    %v4156 = vunpack.c.h.b16 %v533
    %v4157 = vunpack.c.l.b16 %v534
    %v4158 = vunpack.c.h.b16 %v534
    %v4159 = vunpack.c.l.b16 %v535
    %v4160 = vunpack.c.h.b16 %v535
    %v4161 = vunpack.c.l.b16 %v536
    %v4162 = vunpack.c.h.b16 %v536
    %v4163 = vunpack.c.l.b16 %v537
    %v4164 = vunpack.c.h.b16 %v537
    %v4165 = vunpack.c.l.b16 %v538
    %v4166 = vunpack.c.h.b16 %v538
    %v4167 = vunpack.c.l.b16 %v539
    %v4168 = vunpack.c.h.b16 %v539
    %v4169 = vunpack.c.l.b16 %v540
    %v4170 = vunpack.c.h.b16 %v540
    %v4171 = vunpack.c.l.b16 %v541
    %v4172 = vunpack.c.h.b16 %v541
    %v4173 = vunpack.c.l.b16 %v542
    %v4174 = vunpack.c.h.b16 %v542
    %v4175 = vunpack.c.l.b16 %v543
    %v4176 = vunpack.c.h.b16 %v543
    %v4177 = vunpack.c.l.b16 %v544
    %v4178 = vunpack.c.h.b16 %v544
    %v4179 = vunpack.c.l.b16 %v545
    %v4180 = vunpack.c.h.b16 %v545
    %v4181 = vunpack.c.l.b16 %v546
    %v4182 = vunpack.c.h.b16 %v546
    %v4183 = vunpack.c.l.b16 %v547
    %v4184 = vunpack.c.h.b16 %v547
    %v4185 = vunpack.c.l.b16 %v548
    %v4186 = vunpack.c.h.b16 %v548
    %v4187 = vunpack.c.l.b16 %v549
    %v4188 = vunpack.c.h.b16 %v549
    %v4189 = vunpack.c.l.b16 %v550
    %v4190 = vunpack.c.h.b16 %v550
    %v4191 = vunpack.c.l.b16 %v551
    %v4192 = vunpack.c.h.b16 %v551
    %v4193 = vpack.c.b16 %v4133, %v4129
    %v4194 = vpack.c.b16 %v4134, %v4130
    %v4195 = vpack.c.b16 %v4135, %v4131
    %v4196 = vpack.c.b16 %v4136, %v4132
    %v4197 = vpack.c.b16 %v4141, %v4137
    %v4198 = vpack.c.b16 %v4142, %v4138
    %v4199 = vpack.c.b16 %v4143, %v4139
    %v4200 = vpack.c.b16 %v4144, %v4140
    %v4201 = vpack.c.b16 %v4149, %v4145
    %v4202 = vpack.c.b16 %v4150, %v4146
    %v4203 = vpack.c.b16 %v4151, %v4147
    %v4204 = vpack.c.b16 %v4152, %v4148
    %v4205 = vpack.c.b16 %v4157, %v4153
    %v4206 = vpack.c.b16 %v4158, %v4154
    %v4207 = vpack.c.b16 %v4159, %v4155
    %v4208 = vpack.c.b16 %v4160, %v4156
    %v4209 = vpack.c.b16 %v4165, %v4161
    %v4210 = vpack.c.b16 %v4166, %v4162
    %v4211 = vpack.c.b16 %v4167, %v4163
    %v4212 = vpack.c.b16 %v4168, %v4164
    %v4213 = vpack.c.b16 %v4173, %v4169
    %v4214 = vpack.c.b16 %v4174, %v4170
    %v4215 = vpack.c.b16 %v4175, %v4171
    %v4216 = vpack.c.b16 %v4176, %v4172
    %v4217 = vpack.c.b16 %v4181, %v4177
    %v4218 = vpack.c.b16 %v4182, %v4178
    %v4219 = vpack.c.b16 %v4183, %v4179
    %v4220 = vpack.c.b16 %v4184, %v4180
    %v4221 = vpack.c.b16 %v4189, %v4185
    %v4222 = vpack.c.b16 %v4190, %v4186
    %v4223 = vpack.c.b16 %v4191, %v4187
    %v4224 = vpack.c.b16 %v4192, %v4188
    %4257 = vmatprep.subr.bf16.mxu0 %v4194
    %4258 = vmatpush1.bf16.msra.mxu0 %v4193
    %4259 = vmatprep.subr.bf16.mxu0 %v4198
    %4260 = vmatpush1.bf16.msra.mxu0 %v4197
    %4261 = vmatprep.subr.bf16.mxu0 %v4202
    %4262 = vmatpush1.bf16.msra.mxu0 %v4201
    %4263 = vmatprep.subr.bf16.mxu0 %v4206
    %4264 = vmatpush1.bf16.msra.mxu0 %v4205
    %4265 = vmatprep.subr.bf16.mxu0 %v4210
    %4266 = vmatpush1.bf16.msra.mxu0 %v4209
    %4267 = vmatprep.subr.bf16.mxu0 %v4214
    %4268 = vmatpush1.bf16.msra.mxu0 %v4213
    %4269 = vmatprep.subr.bf16.mxu0 %v4218
    %4270 = vmatpush1.bf16.msra.mxu0 %v4217
    %4271 = vmatprep.subr.bf16.mxu0 %v4222
    %4272 = vmatpush1.bf16.msra.mxu0 %v4221
    %4273 = vmatprep.subr.bf16.mxu0 0
    %4274 = vmatpush1.bf16.msra.mxu0 0
    %4275 = vmatprep.subr.bf16.mxu0 0
    %4276 = vmatpush1.bf16.msra.mxu0 0
    %4277 = vmatprep.subr.bf16.mxu0 0
    %4278 = vmatpush1.bf16.msra.mxu0 0
    %4279 = vmatprep.subr.bf16.mxu0 0
    %4280 = vmatpush1.bf16.msra.mxu0 0
    %4281 = vmatprep.subr.bf16.mxu0 0
    %4282 = vmatpush1.bf16.msra.mxu0 0
    %4283 = vmatprep.subr.bf16.mxu0 0
    %4284 = vmatpush1.bf16.msra.mxu0 0
    %4285 = vmatprep.subr.bf16.mxu0 0
    %4286 = vmatpush1.bf16.msra.mxu0 0
    %4287 = vmatprep.subr.bf16.mxu0 0
    %4288 = vmatpush1.bf16.msra.mxu0 0
    %4289 = vmatprep.mubr.bf16.mxu0 0
    %4290 = vmatmul.mubr.bf16.gmra.mrb[0].mxu0 %v4075
    %v4291 = vpop.f32.mrb[0].mxu0
    %v4292 = vadd.f32 %v4080, %v4291
    %v4293 = vpop.f32.mrb[0].mxu0
    %v4294 = vadd.f32 %v4084, %v4293
    %v4295 = vpop.f32.mrb[0].mxu0
    %v4296 = vpop.f32.mrb[0].mxu0
    %4297 = vdwg.mxu0
    %4298 = vmatprep.subr.bf16.mxu0 %v4196
    %4299 = vmatpush1.bf16.msra.mxu0 %v4195
    %4300 = vmatprep.subr.bf16.mxu0 %v4200
    %4301 = vmatpush1.bf16.msra.mxu0 %v4199
    %4302 = vmatprep.subr.bf16.mxu0 %v4204
    %4303 = vmatpush1.bf16.msra.mxu0 %v4203
    %4304 = vmatprep.subr.bf16.mxu0 %v4208
    %4305 = vmatpush1.bf16.msra.mxu0 %v4207
    %4306 = vmatprep.subr.bf16.mxu0 %v4212
    %4307 = vmatpush1.bf16.msra.mxu0 %v4211
    %4308 = vmatprep.subr.bf16.mxu0 %v4216
    %4309 = vmatpush1.bf16.msra.mxu0 %v4215
    %4310 = vmatprep.subr.bf16.mxu0 %v4220
    %4311 = vmatpush1.bf16.msra.mxu0 %v4219
    %4312 = vmatprep.subr.bf16.mxu0 %v4224
    %4313 = vmatpush1.bf16.msra.mxu0 %v4223
    %4314 = vmatprep.subr.bf16.mxu0 0
    %4315 = vmatpush1.bf16.msra.mxu0 0
    %4316 = vmatprep.subr.bf16.mxu0 0
    %4317 = vmatpush1.bf16.msra.mxu0 0
    %4318 = vmatprep.subr.bf16.mxu0 0
    %4319 = vmatpush1.bf16.msra.mxu0 0
    %4320 = vmatprep.subr.bf16.mxu0 0
    %4321 = vmatpush1.bf16.msra.mxu0 0
    %4322 = vmatprep.subr.bf16.mxu0 0
    %4323 = vmatpush1.bf16.msra.mxu0 0
    %4324 = vmatprep.subr.bf16.mxu0 0
    %4325 = vmatpush1.bf16.msra.mxu0 0
    %4326 = vmatprep.subr.bf16.mxu0 0
    %4327 = vmatpush1.bf16.msra.mxu0 0
    %4328 = vmatprep.subr.bf16.mxu0 0
    %4329 = vmatpush1.bf16.msra.mxu0 0
    %4330 = vmatprep.mubr.bf16.mxu0 0
    %4331 = vmatmul.mubr.bf16.gmra.mrb[0].mxu0 %v4075
    %v4332 = vpop.f32.mrb[0].mxu0
    %v4333 = vadd.f32 %v4088, %v4332
    %v4334 = vpop.f32.mrb[0].mxu0
    %v4335 = vadd.f32 %v4092, %v4334
    %v4336 = vpop.f32.mrb[0].mxu0
    %v4337 = vpop.f32.mrb[0].mxu0
    %4338 = vdwg.mxu0
    %v4339 = vmax.f32 %v4292, 0.0
    %v4340 = vmax.f32 %v4294, 0.0
    %v4341 = vmax.f32 %v4333, 0.0
    %v4342 = vmax.f32 %v4335, 0.0
    %v4343 = vpack.c.bf16 %v4339, %v4339
    %v4344 = vpack.c.bf16 %v4340, %v4340
    %v4345 = vpack.c.bf16 %v4341, %v4341
    %v4346 = vpack.c.bf16 %v4342, %v4342
    %v4348 = vlaneseq
    %v4349 = vshrl.u32 %v4348, 7
    %v4350 = vsub.s32 0, %v4349
    %v4351 = vrot.slane %v681, %v4350
    %v4352 = vlaneseq
    %v4353 = vshrl.u32 %v4352, 7
    %v4354 = vsub.s32 1, %v4353
    %v4355 = vrot.slane %v681, %v4354
    %v4356 = vlaneseq
    %v4357 = vshrl.u32 %v4356, 7
    %v4358 = vsub.s32 2, %v4357
    %v4359 = vrot.slane %v681, %v4358
    %v4491 = vunpack.c.l.b16 %v553
    %v4492 = vunpack.c.h.b16 %v553
    %v4493 = vunpack.c.l.b16 %v554
    %v4494 = vunpack.c.l.b16 %v555
    %v4495 = vunpack.c.h.b16 %v555
    %v4496 = vunpack.c.l.b16 %v556
    %v4497 = vunpack.c.l.b16 %v557
    %v4498 = vunpack.c.h.b16 %v557
    %v4499 = vunpack.c.l.b16 %v558
    %v4500 = vunpack.c.l.b16 %v559
    %v4501 = vunpack.c.h.b16 %v559
    %v4502 = vunpack.c.l.b16 %v560
    %v4503 = vunpack.c.l.b16 %v561
    %v4504 = vunpack.c.h.b16 %v561
    %v4505 = vunpack.c.l.b16 %v562
    %v4506 = vunpack.c.l.b16 %v563
    %v4507 = vunpack.c.h.b16 %v563
    %v4508 = vunpack.c.l.b16 %v564
    %v4509 = vunpack.c.l.b16 %v565
    %v4510 = vunpack.c.h.b16 %v565
    %v4511 = vunpack.c.l.b16 %v566
    %v4512 = vunpack.c.l.b16 %v567
    %v4513 = vunpack.c.h.b16 %v567
    %v4514 = vunpack.c.l.b16 %v568
    %v4515 = vunpack.c.l.b16 %v569
    %v4516 = vunpack.c.h.b16 %v569
    %v4517 = vunpack.c.l.b16 %v570
    %v4518 = vunpack.c.l.b16 %v571
    %v4519 = vunpack.c.h.b16 %v571
    %v4520 = vunpack.c.l.b16 %v572
    %v4521 = vunpack.c.l.b16 %v573
    %v4522 = vunpack.c.h.b16 %v573
    %v4523 = vunpack.c.l.b16 %v574
    %v4524 = vunpack.c.l.b16 %v575
    %v4525 = vunpack.c.h.b16 %v575
    %v4526 = vunpack.c.l.b16 %v576
    %v4527 = vunpack.c.l.b16 %v577
    %v4528 = vunpack.c.h.b16 %v577
    %v4529 = vunpack.c.l.b16 %v578
    %v4530 = vunpack.c.l.b16 %v579
    %v4531 = vunpack.c.h.b16 %v579
    %v4532 = vunpack.c.l.b16 %v580
    %v4533 = vunpack.c.l.b16 %v581
    %v4534 = vunpack.c.h.b16 %v581
    %v4535 = vunpack.c.l.b16 %v582
    %v4536 = vunpack.c.l.b16 %v583
    %v4537 = vunpack.c.h.b16 %v583
    %v4538 = vunpack.c.l.b16 %v584
    %v4539 = vunpack.c.l.b16 %v585
    %v4540 = vunpack.c.h.b16 %v585
    %v4541 = vunpack.c.l.b16 %v586
    %v4542 = vunpack.c.l.b16 %v587
    %v4543 = vunpack.c.h.b16 %v587
    %v4544 = vunpack.c.l.b16 %v588
    %v4545 = vunpack.c.l.b16 %v589
    %v4546 = vunpack.c.h.b16 %v589
    %v4547 = vunpack.c.l.b16 %v590
    %v4548 = vunpack.c.l.b16 %v591
    %v4549 = vunpack.c.h.b16 %v591
    %v4550 = vunpack.c.l.b16 %v592
    %v4551 = vunpack.c.l.b16 %v593
    %v4552 = vunpack.c.h.b16 %v593
    %v4553 = vunpack.c.l.b16 %v594
    %v4554 = vunpack.c.l.b16 %v595
    %v4555 = vunpack.c.h.b16 %v595
    %v4556 = vunpack.c.l.b16 %v596
    %v4557 = vunpack.c.l.b16 %v597
    %v4558 = vunpack.c.h.b16 %v597
    %v4559 = vunpack.c.l.b16 %v598
    %v4560 = vunpack.c.l.b16 %v599
    %v4561 = vunpack.c.h.b16 %v599
    %v4562 = vunpack.c.l.b16 %v600
    %v4563 = vunpack.c.l.b16 %v601
    %v4564 = vunpack.c.h.b16 %v601
    %v4565 = vunpack.c.l.b16 %v602
    %v4566 = vunpack.c.l.b16 %v603
    %v4567 = vunpack.c.h.b16 %v603
    %v4568 = vunpack.c.l.b16 %v604
    %v4569 = vunpack.c.l.b16 %v605
    %v4570 = vunpack.c.h.b16 %v605
    %v4571 = vunpack.c.l.b16 %v606
    %v4572 = vunpack.c.l.b16 %v607
    %v4573 = vunpack.c.h.b16 %v607
    %v4574 = vunpack.c.l.b16 %v608
    %v4575 = vunpack.c.l.b16 %v609
    %v4576 = vunpack.c.h.b16 %v609
    %v4577 = vunpack.c.l.b16 %v610
    %v4578 = vunpack.c.l.b16 %v611
    %v4579 = vunpack.c.h.b16 %v611
    %v4580 = vunpack.c.l.b16 %v612
    %v4581 = vunpack.c.l.b16 %v613
    %v4582 = vunpack.c.h.b16 %v613
    %v4583 = vunpack.c.l.b16 %v614
    %v4584 = vunpack.c.l.b16 %v615
    %v4585 = vunpack.c.h.b16 %v615
    %v4586 = vunpack.c.l.b16 %v616
    %v4587 = vunpack.c.l.b16 %v617
    %v4588 = vunpack.c.h.b16 %v617
    %v4589 = vunpack.c.l.b16 %v618
    %v4590 = vunpack.c.l.b16 %v619
    %v4591 = vunpack.c.h.b16 %v619
    %v4592 = vunpack.c.l.b16 %v620
    %v4593 = vunpack.c.l.b16 %v621
    %v4594 = vunpack.c.h.b16 %v621
    %v4595 = vunpack.c.l.b16 %v622
    %v4596 = vunpack.c.l.b16 %v623
    %v4597 = vunpack.c.h.b16 %v623
    %v4598 = vunpack.c.l.b16 %v624
    %v4599 = vunpack.c.l.b16 %v625
    %v4600 = vunpack.c.h.b16 %v625
    %v4601 = vunpack.c.l.b16 %v626
    %v4602 = vunpack.c.l.b16 %v627
    %v4603 = vunpack.c.h.b16 %v627
    %v4604 = vunpack.c.l.b16 %v628
    %v4605 = vunpack.c.l.b16 %v629
    %v4606 = vunpack.c.h.b16 %v629
    %v4607 = vunpack.c.l.b16 %v630
    %v4608 = vunpack.c.l.b16 %v631
    %v4609 = vunpack.c.h.b16 %v631
    %v4610 = vunpack.c.l.b16 %v632
    %v4611 = vunpack.c.l.b16 %v633
    %v4612 = vunpack.c.h.b16 %v633
    %v4613 = vunpack.c.l.b16 %v634
    %v4614 = vunpack.c.l.b16 %v635
    %v4615 = vunpack.c.h.b16 %v635
    %v4616 = vunpack.c.l.b16 %v636
    %v4617 = vunpack.c.l.b16 %v637
    %v4618 = vunpack.c.h.b16 %v637
    %v4619 = vunpack.c.l.b16 %v638
    %v4620 = vunpack.c.l.b16 %v639
    %v4621 = vunpack.c.h.b16 %v639
    %v4622 = vunpack.c.l.b16 %v640
    %v4623 = vunpack.c.l.b16 %v641
    %v4624 = vunpack.c.h.b16 %v641
    %v4625 = vunpack.c.l.b16 %v642
    %v4626 = vunpack.c.l.b16 %v643
    %v4627 = vunpack.c.h.b16 %v643
    %v4628 = vunpack.c.l.b16 %v644
    %v4629 = vunpack.c.l.b16 %v645
    %v4630 = vunpack.c.h.b16 %v645
    %v4631 = vunpack.c.l.b16 %v646
    %v4632 = vunpack.c.l.b16 %v647
    %v4633 = vunpack.c.h.b16 %v647
    %v4634 = vunpack.c.l.b16 %v648
    %v4635 = vunpack.c.l.b16 %v649
    %v4636 = vunpack.c.h.b16 %v649
    %v4637 = vunpack.c.l.b16 %v650
    %v4638 = vunpack.c.l.b16 %v651
    %v4639 = vunpack.c.h.b16 %v651
    %v4640 = vunpack.c.l.b16 %v652
    %v4641 = vunpack.c.l.b16 %v653
    %v4642 = vunpack.c.h.b16 %v653
    %v4643 = vunpack.c.l.b16 %v654
    %v4644 = vunpack.c.l.b16 %v655
    %v4645 = vunpack.c.h.b16 %v655
    %v4646 = vunpack.c.l.b16 %v656
    %v4647 = vunpack.c.l.b16 %v657
    %v4648 = vunpack.c.h.b16 %v657
    %v4649 = vunpack.c.l.b16 %v658
    %v4650 = vunpack.c.l.b16 %v659
    %v4651 = vunpack.c.h.b16 %v659
    %v4652 = vunpack.c.l.b16 %v660
    %v4653 = vunpack.c.l.b16 %v661
    %v4654 = vunpack.c.h.b16 %v661
    %v4655 = vunpack.c.l.b16 %v662
    %v4656 = vunpack.c.l.b16 %v663
    %v4657 = vunpack.c.h.b16 %v663
    %v4658 = vunpack.c.l.b16 %v664
    %v4659 = vunpack.c.l.b16 %v665
    %v4660 = vunpack.c.h.b16 %v665
    %v4661 = vunpack.c.l.b16 %v666
    %v4662 = vunpack.c.l.b16 %v667
    %v4663 = vunpack.c.h.b16 %v667
    %v4664 = vunpack.c.l.b16 %v668
    %v4665 = vunpack.c.l.b16 %v669
    %v4666 = vunpack.c.h.b16 %v669
    %v4667 = vunpack.c.l.b16 %v670
    %v4668 = vunpack.c.l.b16 %v671
    %v4669 = vunpack.c.h.b16 %v671
    %v4670 = vunpack.c.l.b16 %v672
    %v4671 = vunpack.c.l.b16 %v673
    %v4672 = vunpack.c.h.b16 %v673
    %v4673 = vunpack.c.l.b16 %v674
    %v4674 = vunpack.c.l.b16 %v675
    %v4675 = vunpack.c.h.b16 %v675
    %v4676 = vunpack.c.l.b16 %v676
    %v4677 = vunpack.c.l.b16 %v677
    %v4678 = vunpack.c.h.b16 %v677
    %v4679 = vunpack.c.l.b16 %v678
    %v4680 = vunpack.c.l.b16 %v679
    %v4681 = vunpack.c.h.b16 %v679
    %v4682 = vunpack.c.l.b16 %v680
    %v4683 = vpack.c.b16 %v4494, %v4491
    %v4684 = vpack.c.b16 %v4495, %v4492
    %v4685 = vpack.c.b16 %v4496, %v4493
    %v4686 = vpack.c.b16 %v4500, %v4497
    %v4687 = vpack.c.b16 %v4501, %v4498
    %v4688 = vpack.c.b16 %v4502, %v4499
    %v4689 = vpack.c.b16 %v4506, %v4503
    %v4690 = vpack.c.b16 %v4507, %v4504
    %v4691 = vpack.c.b16 %v4508, %v4505
    %v4692 = vpack.c.b16 %v4512, %v4509
    %v4693 = vpack.c.b16 %v4513, %v4510
    %v4694 = vpack.c.b16 %v4514, %v4511
    %v4695 = vpack.c.b16 %v4518, %v4515
    %v4696 = vpack.c.b16 %v4519, %v4516
    %v4697 = vpack.c.b16 %v4520, %v4517
    %v4698 = vpack.c.b16 %v4524, %v4521
    %v4699 = vpack.c.b16 %v4525, %v4522
    %v4700 = vpack.c.b16 %v4526, %v4523
    %v4701 = vpack.c.b16 %v4530, %v4527
    %v4702 = vpack.c.b16 %v4531, %v4528
    %v4703 = vpack.c.b16 %v4532, %v4529
    %v4704 = vpack.c.b16 %v4536, %v4533
    %v4705 = vpack.c.b16 %v4537, %v4534
    %v4706 = vpack.c.b16 %v4538, %v4535
    %v4707 = vpack.c.b16 %v4542, %v4539
    %v4708 = vpack.c.b16 %v4543, %v4540
    %v4709 = vpack.c.b16 %v4544, %v4541
    %v4710 = vpack.c.b16 %v4548, %v4545
    %v4711 = vpack.c.b16 %v4549, %v4546
    %v4712 = vpack.c.b16 %v4550, %v4547
    %v4713 = vpack.c.b16 %v4554, %v4551
    %v4714 = vpack.c.b16 %v4555, %v4552
    %v4715 = vpack.c.b16 %v4556, %v4553
    %v4716 = vpack.c.b16 %v4560, %v4557
    %v4717 = vpack.c.b16 %v4561, %v4558
    %v4718 = vpack.c.b16 %v4562, %v4559
    %v4719 = vpack.c.b16 %v4566, %v4563
    %v4720 = vpack.c.b16 %v4567, %v4564
    %v4721 = vpack.c.b16 %v4568, %v4565
    %v4722 = vpack.c.b16 %v4572, %v4569
    %v4723 = vpack.c.b16 %v4573, %v4570
    %v4724 = vpack.c.b16 %v4574, %v4571
    %v4725 = vpack.c.b16 %v4578, %v4575
    %v4726 = vpack.c.b16 %v4579, %v4576
    %v4727 = vpack.c.b16 %v4580, %v4577
    %v4728 = vpack.c.b16 %v4584, %v4581
    %v4729 = vpack.c.b16 %v4585, %v4582
    %v4730 = vpack.c.b16 %v4586, %v4583
    %v4731 = vpack.c.b16 %v4590, %v4587
    %v4732 = vpack.c.b16 %v4591, %v4588
    %v4733 = vpack.c.b16 %v4592, %v4589
    %v4734 = vpack.c.b16 %v4596, %v4593
    %v4735 = vpack.c.b16 %v4597, %v4594
    %v4736 = vpack.c.b16 %v4598, %v4595
    %v4737 = vpack.c.b16 %v4602, %v4599
    %v4738 = vpack.c.b16 %v4603, %v4600
    %v4739 = vpack.c.b16 %v4604, %v4601
    %v4740 = vpack.c.b16 %v4608, %v4605
    %v4741 = vpack.c.b16 %v4609, %v4606
    %v4742 = vpack.c.b16 %v4610, %v4607
    %v4743 = vpack.c.b16 %v4614, %v4611
    %v4744 = vpack.c.b16 %v4615, %v4612
    %v4745 = vpack.c.b16 %v4616, %v4613
    %v4746 = vpack.c.b16 %v4620, %v4617
    %v4747 = vpack.c.b16 %v4621, %v4618
    %v4748 = vpack.c.b16 %v4622, %v4619
    %v4749 = vpack.c.b16 %v4626, %v4623
    %v4750 = vpack.c.b16 %v4627, %v4624
    %v4751 = vpack.c.b16 %v4628, %v4625
    %v4752 = vpack.c.b16 %v4632, %v4629
    %v4753 = vpack.c.b16 %v4633, %v4630
    %v4754 = vpack.c.b16 %v4634, %v4631
    %v4755 = vpack.c.b16 %v4638, %v4635
    %v4756 = vpack.c.b16 %v4639, %v4636
    %v4757 = vpack.c.b16 %v4640, %v4637
    %v4758 = vpack.c.b16 %v4644, %v4641
    %v4759 = vpack.c.b16 %v4645, %v4642
    %v4760 = vpack.c.b16 %v4646, %v4643
    %v4761 = vpack.c.b16 %v4650, %v4647
    %v4762 = vpack.c.b16 %v4651, %v4648
    %v4763 = vpack.c.b16 %v4652, %v4649
    %v4764 = vpack.c.b16 %v4656, %v4653
    %v4765 = vpack.c.b16 %v4657, %v4654
    %v4766 = vpack.c.b16 %v4658, %v4655
    %v4767 = vpack.c.b16 %v4662, %v4659
    %v4768 = vpack.c.b16 %v4663, %v4660
    %v4769 = vpack.c.b16 %v4664, %v4661
    %v4770 = vpack.c.b16 %v4668, %v4665
    %v4771 = vpack.c.b16 %v4669, %v4666
    %v4772 = vpack.c.b16 %v4670, %v4667
    %v4773 = vpack.c.b16 %v4674, %v4671
    %v4774 = vpack.c.b16 %v4675, %v4672
    %v4775 = vpack.c.b16 %v4676, %v4673
    %v4776 = vpack.c.b16 %v4680, %v4677
    %v4777 = vpack.c.b16 %v4681, %v4678
    %v4778 = vpack.c.b16 %v4682, %v4679
    %4875 = vmatprep.subr.bf16.mxu0 %v4684
    %4876 = vmatpush1.bf16.msra.mxu0 %v4683
    %4877 = vmatprep.subr.bf16.mxu0 %v4687
    %4878 = vmatpush1.bf16.msra.mxu0 %v4686
    %4879 = vmatprep.subr.bf16.mxu0 %v4690
    %4880 = vmatpush1.bf16.msra.mxu0 %v4689
    %4881 = vmatprep.subr.bf16.mxu0 %v4693
    %4882 = vmatpush1.bf16.msra.mxu0 %v4692
    %4883 = vmatprep.subr.bf16.mxu0 %v4696
    %4884 = vmatpush1.bf16.msra.mxu0 %v4695
    %4885 = vmatprep.subr.bf16.mxu0 %v4699
    %4886 = vmatpush1.bf16.msra.mxu0 %v4698
    %4887 = vmatprep.subr.bf16.mxu0 %v4702
    %4888 = vmatpush1.bf16.msra.mxu0 %v4701
    %4889 = vmatprep.subr.bf16.mxu0 %v4705
    %4890 = vmatpush1.bf16.msra.mxu0 %v4704
    %4891 = vmatprep.subr.bf16.mxu0 %v4708
    %4892 = vmatpush1.bf16.msra.mxu0 %v4707
    %4893 = vmatprep.subr.bf16.mxu0 %v4711
    %4894 = vmatpush1.bf16.msra.mxu0 %v4710
    %4895 = vmatprep.subr.bf16.mxu0 %v4714
    %4896 = vmatpush1.bf16.msra.mxu0 %v4713
    %4897 = vmatprep.subr.bf16.mxu0 %v4717
    %4898 = vmatpush1.bf16.msra.mxu0 %v4716
    %4899 = vmatprep.subr.bf16.mxu0 %v4720
    %4900 = vmatpush1.bf16.msra.mxu0 %v4719
    %4901 = vmatprep.subr.bf16.mxu0 %v4723
    %4902 = vmatpush1.bf16.msra.mxu0 %v4722
    %4903 = vmatprep.subr.bf16.mxu0 %v4726
    %4904 = vmatpush1.bf16.msra.mxu0 %v4725
    %4905 = vmatprep.subr.bf16.mxu0 %v4729
    %4906 = vmatpush1.bf16.msra.mxu0 %v4728
    %4907 = vmatprep.mubr.bf16.mxu0 %v4344
    %4908 = vmatmul.mubr.bf16.gmra.mrb[0].mxu0 %v4343
    %v4909 = vpop.f32.mrb[0].mxu0
    %v4910 = vadd.f32 %v4351, %v4909
    %v4911 = vpop.f32.mrb[0].mxu0
    %v4912 = vadd.f32 %v4355, %v4911
    %v4913 = vpop.f32.mrb[0].mxu0
    %v4914 = vpop.f32.mrb[0].mxu0
    %4915 = vdwg.mxu0
    %4916 = vmatprep.subr.bf16.mxu0 %v4732
    %4917 = vmatpush1.bf16.msra.mxu0 %v4731
    %4918 = vmatprep.subr.bf16.mxu0 %v4735
    %4919 = vmatpush1.bf16.msra.mxu0 %v4734
    %4920 = vmatprep.subr.bf16.mxu0 %v4738
    %4921 = vmatpush1.bf16.msra.mxu0 %v4737
    %4922 = vmatprep.subr.bf16.mxu0 %v4741
    %4923 = vmatpush1.bf16.msra.mxu0 %v4740
    %4924 = vmatprep.subr.bf16.mxu0 %v4744
    %4925 = vmatpush1.bf16.msra.mxu0 %v4743
    %4926 = vmatprep.subr.bf16.mxu0 %v4747
    %4927 = vmatpush1.bf16.msra.mxu0 %v4746
    %4928 = vmatprep.subr.bf16.mxu0 %v4750
    %4929 = vmatpush1.bf16.msra.mxu0 %v4749
    %4930 = vmatprep.subr.bf16.mxu0 %v4753
    %4931 = vmatpush1.bf16.msra.mxu0 %v4752
    %4932 = vmatprep.subr.bf16.mxu0 %v4756
    %4933 = vmatpush1.bf16.msra.mxu0 %v4755
    %4934 = vmatprep.subr.bf16.mxu0 %v4759
    %4935 = vmatpush1.bf16.msra.mxu0 %v4758
    %4936 = vmatprep.subr.bf16.mxu0 %v4762
    %4937 = vmatpush1.bf16.msra.mxu0 %v4761
    %4938 = vmatprep.subr.bf16.mxu0 %v4765
    %4939 = vmatpush1.bf16.msra.mxu0 %v4764
    %4940 = vmatprep.subr.bf16.mxu0 %v4768
    %4941 = vmatpush1.bf16.msra.mxu0 %v4767
    %4942 = vmatprep.subr.bf16.mxu0 %v4771
    %4943 = vmatpush1.bf16.msra.mxu0 %v4770
    %4944 = vmatprep.subr.bf16.mxu0 %v4774
    %4945 = vmatpush1.bf16.msra.mxu0 %v4773
    %4946 = vmatprep.subr.bf16.mxu0 %v4777
    %4947 = vmatpush1.bf16.msra.mxu0 %v4776
    %4948 = vmatprep.mubr.bf16.mxu0 %v4346
    %4949 = vmatmul.mubr.bf16.gmra.mrb[0].mxu0 %v4345
    %v4950 = vpop.f32.mrb[0].mxu0
    %v4951 = vadd.f32 %v4910, %v4950
    %v4952 = vpop.f32.mrb[0].mxu0
    %v4953 = vadd.f32 %v4912, %v4952
    %v4954 = vpop.f32.mrb[0].mxu0
    %v4955 = vpop.f32.mrb[0].mxu0
    %4956 = vdwg.mxu0
    %4957 = vmatprep.subr.bf16.mxu0 0
    %4958 = vmatpush1.bf16.msra.mxu0 %v4685
    %4959 = vmatprep.subr.bf16.mxu0 0
    %4960 = vmatpush1.bf16.msra.mxu0 %v4688
    %4961 = vmatprep.subr.bf16.mxu0 0
    %4962 = vmatpush1.bf16.msra.mxu0 %v4691
    %4963 = vmatprep.subr.bf16.mxu0 0
    %4964 = vmatpush1.bf16.msra.mxu0 %v4694
    %4965 = vmatprep.subr.bf16.mxu0 0
    %4966 = vmatpush1.bf16.msra.mxu0 %v4697
    %4967 = vmatprep.subr.bf16.mxu0 0
    %4968 = vmatpush1.bf16.msra.mxu0 %v4700
    %4969 = vmatprep.subr.bf16.mxu0 0
    %4970 = vmatpush1.bf16.msra.mxu0 %v4703
    %4971 = vmatprep.subr.bf16.mxu0 0
    %4972 = vmatpush1.bf16.msra.mxu0 %v4706
    %4973 = vmatprep.subr.bf16.mxu0 0
    %4974 = vmatpush1.bf16.msra.mxu0 %v4709
    %4975 = vmatprep.subr.bf16.mxu0 0
    %4976 = vmatpush1.bf16.msra.mxu0 %v4712
    %4977 = vmatprep.subr.bf16.mxu0 0
    %4978 = vmatpush1.bf16.msra.mxu0 %v4715
    %4979 = vmatprep.subr.bf16.mxu0 0
    %4980 = vmatpush1.bf16.msra.mxu0 %v4718
    %4981 = vmatprep.subr.bf16.mxu0 0
    %4982 = vmatpush1.bf16.msra.mxu0 %v4721
    %4983 = vmatprep.subr.bf16.mxu0 0
    %4984 = vmatpush1.bf16.msra.mxu0 %v4724
    %4985 = vmatprep.subr.bf16.mxu0 0
    %4986 = vmatpush1.bf16.msra.mxu0 %v4727
    %4987 = vmatprep.subr.bf16.mxu0 0
    %4988 = vmatpush1.bf16.msra.mxu0 %v4730
    %4989 = vmatprep.mubr.bf16.mxu0 %v4344
    %4990 = vmatmul.mubr.bf16.gmra.mrb[0].mxu0 %v4343
    %v4991 = vpop.f32.mrb[0].mxu0
    %v4992 = vadd.f32 %v4359, %v4991
    %v4993 = vpop.f32.mrb[0].mxu0
    %v4994 = vpop.f32.mrb[0].mxu0
    %v4995 = vpop.f32.mrb[0].mxu0
    %4996 = vdwg.mxu0
    %4997 = vmatprep.subr.bf16.mxu0 0
    %4998 = vmatpush1.bf16.msra.mxu0 %v4733
    %4999 = vmatprep.subr.bf16.mxu0 0
    %5000 = vmatpush1.bf16.msra.mxu0 %v4736
    %5001 = vmatprep.subr.bf16.mxu0 0
    %5002 = vmatpush1.bf16.msra.mxu0 %v4739
    %5003 = vmatprep.subr.bf16.mxu0 0
    %5004 = vmatpush1.bf16.msra.mxu0 %v4742
    %5005 = vmatprep.subr.bf16.mxu0 0
    %5006 = vmatpush1.bf16.msra.mxu0 %v4745
    %5007 = vmatprep.subr.bf16.mxu0 0
    %5008 = vmatpush1.bf16.msra.mxu0 %v4748
    %5009 = vmatprep.subr.bf16.mxu0 0
    %5010 = vmatpush1.bf16.msra.mxu0 %v4751
    %5011 = vmatprep.subr.bf16.mxu0 0
    %5012 = vmatpush1.bf16.msra.mxu0 %v4754
    %5013 = vmatprep.subr.bf16.mxu0 0
    %5014 = vmatpush1.bf16.msra.mxu0 %v4757
    %5015 = vmatprep.subr.bf16.mxu0 0
    %5016 = vmatpush1.bf16.msra.mxu0 %v4760
    %5017 = vmatprep.subr.bf16.mxu0 0
    %5018 = vmatpush1.bf16.msra.mxu0 %v4763
    %5019 = vmatprep.subr.bf16.mxu0 0
    %5020 = vmatpush1.bf16.msra.mxu0 %v4766
    %5021 = vmatprep.subr.bf16.mxu0 0
    %5022 = vmatpush1.bf16.msra.mxu0 %v4769
    %5023 = vmatprep.subr.bf16.mxu0 0
    %5024 = vmatpush1.bf16.msra.mxu0 %v4772
    %5025 = vmatprep.subr.bf16.mxu0 0
    %5026 = vmatpush1.bf16.msra.mxu0 %v4775
    %5027 = vmatprep.subr.bf16.mxu0 0
    %5028 = vmatpush1.bf16.msra.mxu0 %v4778
    %5029 = vmatprep.mubr.bf16.mxu0 %v4346
    %5030 = vmatmul.mubr.bf16.gmra.mrb[0].mxu0 %v4345
    %v5031 = vpop.f32.mrb[0].mxu0
    %v5032 = vadd.f32 %v4992, %v5031
    %v5033 = vpop.f32.mrb[0].mxu0
    %v5034 = vpop.f32.mrb[0].mxu0
    %v5035 = vpop.f32.mrb[0].mxu0
    %5036 = vdwg.mxu0
    %v5037 = vmax.f32 %v4951, 0.0
    %v5038 = vmax.f32 %v4953, 0.0
    %v5039 = vmax.f32 %v5032, 0.0
    %v5040 = vpack.c.bf16 %v5037, %v5037
    %v5041 = vpack.c.bf16 %v5038, %v5038
    %v5042 = vpack.c.bf16 %v5039, %v5039
    %v5045 = vlaneseq
    %v5046 = vshrl.u32 %v5045, 7
    %v5047 = vsub.s32 0, %v5046
    %v5048 = vrot.slane %v922, %v5047
    %v5049 = vlaneseq
    %v5050 = vshrl.u32 %v5049, 7
    %v5051 = vsub.s32 1, %v5050
    %v5052 = vrot.slane %v922, %v5051
    %v5053 = vlaneseq
    %v5054 = vshrl.u32 %v5053, 7
    %v5055 = vsub.s32 2, %v5054
    %v5056 = vrot.slane %v922, %v5055
    %v5057 = vlaneseq
    %v5058 = vshrl.u32 %v5057, 7
    %v5059 = vsub.s32 3, %v5058
    %v5060 = vrot.slane %v922, %v5059
    %v5061 = vlaneseq
    %v5062 = vshrl.u32 %v5061, 7
    %v5063 = vsub.s32 4, %v5062
    %v5064 = vrot.slane %v922, %v5063
    %v5065 = vlaneseq
    %v5066 = vshrl.u32 %v5065, 7
    %v5067 = vsub.s32 5, %v5066
    %v5068 = vrot.slane %v922, %v5067
    %v5069 = vlaneseq
    %v5070 = vshrl.u32 %v5069, 7
    %v5071 = vsub.s32 6, %v5070
    %v5072 = vrot.slane %v922, %v5071
    %v5073 = vlaneseq
    %v5074 = vshrl.u32 %v5073, 7
    %v5075 = vsub.s32 7, %v5074
    %v5076 = vrot.slane %v922, %v5075
    %v5077 = vlaneseq
    %v5078 = vshrl.u32 %v5077, 7
    %v5079 = vsub.s32 0, %v5078
    %v5080 = vrot.slane %v923, %v5079
    %v5330 = vunpack.c.l.b16 %v682
    %v5331 = vunpack.c.h.b16 %v682
    %v5332 = vunpack.c.l.b16 %v683
    %v5333 = vunpack.c.h.b16 %v683
    %v5334 = vunpack.c.l.b16 %v684
    %v5335 = vunpack.c.h.b16 %v684
    %v5336 = vunpack.c.l.b16 %v685
    %v5337 = vunpack.c.h.b16 %v685
    %v5338 = vunpack.c.l.b16 %v686
    %v5339 = vunpack.c.l.b16 %v687
    %v5340 = vunpack.c.h.b16 %v687
    %v5341 = vunpack.c.l.b16 %v688
    %v5342 = vunpack.c.h.b16 %v688
    %v5343 = vunpack.c.l.b16 %v689
    %v5344 = vunpack.c.h.b16 %v689
    %v5345 = vunpack.c.l.b16 %v690
    %v5346 = vunpack.c.h.b16 %v690
    %v5347 = vunpack.c.l.b16 %v691
    %v5348 = vunpack.c.l.b16 %v692
    %v5349 = vunpack.c.h.b16 %v692
    %v5350 = vunpack.c.l.b16 %v693
    %v5351 = vunpack.c.h.b16 %v693
    %v5352 = vunpack.c.l.b16 %v694
    %v5353 = vunpack.c.h.b16 %v694
    %v5354 = vunpack.c.l.b16 %v695
    %v5355 = vunpack.c.h.b16 %v695
    %v5356 = vunpack.c.l.b16 %v696
    %v5357 = vunpack.c.l.b16 %v697
    %v5358 = vunpack.c.h.b16 %v697
    %v5359 = vunpack.c.l.b16 %v698
    %v5360 = vunpack.c.h.b16 %v698
    %v5361 = vunpack.c.l.b16 %v699
    %v5362 = vunpack.c.h.b16 %v699
    %v5363 = vunpack.c.l.b16 %v700
    %v5364 = vunpack.c.h.b16 %v700
    %v5365 = vunpack.c.l.b16 %v701
    %v5366 = vunpack.c.l.b16 %v702
    %v5367 = vunpack.c.h.b16 %v702
    %v5368 = vunpack.c.l.b16 %v703
    %v5369 = vunpack.c.h.b16 %v703
    %v5370 = vunpack.c.l.b16 %v704
    %v5371 = vunpack.c.h.b16 %v704
    %v5372 = vunpack.c.l.b16 %v705
    %v5373 = vunpack.c.h.b16 %v705
    %v5374 = vunpack.c.l.b16 %v706
    %v5375 = vunpack.c.l.b16 %v707
    %v5376 = vunpack.c.h.b16 %v707
    %v5377 = vunpack.c.l.b16 %v708
    %v5378 = vunpack.c.h.b16 %v708
    %v5379 = vunpack.c.l.b16 %v709
    %v5380 = vunpack.c.h.b16 %v709
    %v5381 = vunpack.c.l.b16 %v710
    %v5382 = vunpack.c.h.b16 %v710
    %v5383 = vunpack.c.l.b16 %v711
    %v5384 = vunpack.c.l.b16 %v712
    %v5385 = vunpack.c.h.b16 %v712
    %v5386 = vunpack.c.l.b16 %v713
    %v5387 = vunpack.c.h.b16 %v713
    %v5388 = vunpack.c.l.b16 %v714
    %v5389 = vunpack.c.h.b16 %v714
    %v5390 = vunpack.c.l.b16 %v715
    %v5391 = vunpack.c.h.b16 %v715
    %v5392 = vunpack.c.l.b16 %v716
    %v5393 = vunpack.c.l.b16 %v717
    %v5394 = vunpack.c.h.b16 %v717
    %v5395 = vunpack.c.l.b16 %v718
    %v5396 = vunpack.c.h.b16 %v718
    %v5397 = vunpack.c.l.b16 %v719
    %v5398 = vunpack.c.h.b16 %v719
    %v5399 = vunpack.c.l.b16 %v720
    %v5400 = vunpack.c.h.b16 %v720
    %v5401 = vunpack.c.l.b16 %v721
    %v5402 = vunpack.c.l.b16 %v722
    %v5403 = vunpack.c.h.b16 %v722
    %v5404 = vunpack.c.l.b16 %v723
    %v5405 = vunpack.c.h.b16 %v723
    %v5406 = vunpack.c.l.b16 %v724
    %v5407 = vunpack.c.h.b16 %v724
    %v5408 = vunpack.c.l.b16 %v725
    %v5409 = vunpack.c.h.b16 %v725
    %v5410 = vunpack.c.l.b16 %v726
    %v5411 = vunpack.c.l.b16 %v727
    %v5412 = vunpack.c.h.b16 %v727
    %v5413 = vunpack.c.l.b16 %v728
    %v5414 = vunpack.c.h.b16 %v728
    %v5415 = vunpack.c.l.b16 %v729
    %v5416 = vunpack.c.h.b16 %v729
    %v5417 = vunpack.c.l.b16 %v730
    %v5418 = vunpack.c.h.b16 %v730
    %v5419 = vunpack.c.l.b16 %v731
    %v5420 = vunpack.c.l.b16 %v732
    %v5421 = vunpack.c.h.b16 %v732
    %v5422 = vunpack.c.l.b16 %v733
    %v5423 = vunpack.c.h.b16 %v733
    %v5424 = vunpack.c.l.b16 %v734
    %v5425 = vunpack.c.h.b16 %v734
    %v5426 = vunpack.c.l.b16 %v735
    %v5427 = vunpack.c.h.b16 %v735
    %v5428 = vunpack.c.l.b16 %v736
    %v5429 = vunpack.c.l.b16 %v737
    %v5430 = vunpack.c.h.b16 %v737
    %v5431 = vunpack.c.l.b16 %v738
    %v5432 = vunpack.c.h.b16 %v738
    %v5433 = vunpack.c.l.b16 %v739
    %v5434 = vunpack.c.h.b16 %v739
    %v5435 = vunpack.c.l.b16 %v740
    %v5436 = vunpack.c.h.b16 %v740
    %v5437 = vunpack.c.l.b16 %v741
    %v5438 = vunpack.c.l.b16 %v742
    %v5439 = vunpack.c.h.b16 %v742
    %v5440 = vunpack.c.l.b16 %v743
    %v5441 = vunpack.c.h.b16 %v743
    %v5442 = vunpack.c.l.b16 %v744
    %v5443 = vunpack.c.h.b16 %v744
    %v5444 = vunpack.c.l.b16 %v745
    %v5445 = vunpack.c.h.b16 %v745
    %v5446 = vunpack.c.l.b16 %v746
    %v5447 = vunpack.c.l.b16 %v747
    %v5448 = vunpack.c.h.b16 %v747
    %v5449 = vunpack.c.l.b16 %v748
    %v5450 = vunpack.c.h.b16 %v748
    %v5451 = vunpack.c.l.b16 %v749
    %v5452 = vunpack.c.h.b16 %v749
    %v5453 = vunpack.c.l.b16 %v750
    %v5454 = vunpack.c.h.b16 %v750
    %v5455 = vunpack.c.l.b16 %v751
    %v5456 = vunpack.c.l.b16 %v752
    %v5457 = vunpack.c.h.b16 %v752
    %v5458 = vunpack.c.l.b16 %v753
    %v5459 = vunpack.c.h.b16 %v753
    %v5460 = vunpack.c.l.b16 %v754
    %v5461 = vunpack.c.h.b16 %v754
    %v5462 = vunpack.c.l.b16 %v755
    %v5463 = vunpack.c.h.b16 %v755
    %v5464 = vunpack.c.l.b16 %v756
    %v5465 = vunpack.c.l.b16 %v757
    %v5466 = vunpack.c.h.b16 %v757
    %v5467 = vunpack.c.l.b16 %v758
    %v5468 = vunpack.c.h.b16 %v758
    %v5469 = vunpack.c.l.b16 %v759
    %v5470 = vunpack.c.h.b16 %v759
    %v5471 = vunpack.c.l.b16 %v760
    %v5472 = vunpack.c.h.b16 %v760
    %v5473 = vunpack.c.l.b16 %v761
    %v5474 = vunpack.c.l.b16 %v762
    %v5475 = vunpack.c.h.b16 %v762
    %v5476 = vunpack.c.l.b16 %v763
    %v5477 = vunpack.c.h.b16 %v763
    %v5478 = vunpack.c.l.b16 %v764
    %v5479 = vunpack.c.h.b16 %v764
    %v5480 = vunpack.c.l.b16 %v765
    %v5481 = vunpack.c.h.b16 %v765
    %v5482 = vunpack.c.l.b16 %v766
    %v5483 = vunpack.c.l.b16 %v767
    %v5484 = vunpack.c.h.b16 %v767
    %v5485 = vunpack.c.l.b16 %v768
    %v5486 = vunpack.c.h.b16 %v768
    %v5487 = vunpack.c.l.b16 %v769
    %v5488 = vunpack.c.h.b16 %v769
    %v5489 = vunpack.c.l.b16 %v770
    %v5490 = vunpack.c.h.b16 %v770
    %v5491 = vunpack.c.l.b16 %v771
    %v5492 = vunpack.c.l.b16 %v772
    %v5493 = vunpack.c.h.b16 %v772
    %v5494 = vunpack.c.l.b16 %v773
    %v5495 = vunpack.c.h.b16 %v773
    %v5496 = vunpack.c.l.b16 %v774
    %v5497 = vunpack.c.h.b16 %v774
    %v5498 = vunpack.c.l.b16 %v775
    %v5499 = vunpack.c.h.b16 %v775
    %v5500 = vunpack.c.l.b16 %v776
    %v5501 = vunpack.c.l.b16 %v777
    %v5502 = vunpack.c.h.b16 %v777
    %v5503 = vunpack.c.l.b16 %v778
    %v5504 = vunpack.c.h.b16 %v778
    %v5505 = vunpack.c.l.b16 %v779
    %v5506 = vunpack.c.h.b16 %v779
    %v5507 = vunpack.c.l.b16 %v780
    %v5508 = vunpack.c.h.b16 %v780
    %v5509 = vunpack.c.l.b16 %v781
    %v5510 = vunpack.c.l.b16 %v782
    %v5511 = vunpack.c.h.b16 %v782
    %v5512 = vunpack.c.l.b16 %v783
    %v5513 = vunpack.c.h.b16 %v783
    %v5514 = vunpack.c.l.b16 %v784
    %v5515 = vunpack.c.h.b16 %v784
    %v5516 = vunpack.c.l.b16 %v785
    %v5517 = vunpack.c.h.b16 %v785
    %v5518 = vunpack.c.l.b16 %v786
    %v5519 = vunpack.c.l.b16 %v787
    %v5520 = vunpack.c.h.b16 %v787
    %v5521 = vunpack.c.l.b16 %v788
    %v5522 = vunpack.c.h.b16 %v788
    %v5523 = vunpack.c.l.b16 %v789
    %v5524 = vunpack.c.h.b16 %v789
    %v5525 = vunpack.c.l.b16 %v790
    %v5526 = vunpack.c.h.b16 %v790
    %v5527 = vunpack.c.l.b16 %v791
    %v5528 = vunpack.c.l.b16 %v792
    %v5529 = vunpack.c.h.b16 %v792
    %v5530 = vunpack.c.l.b16 %v793
    %v5531 = vunpack.c.h.b16 %v793
    %v5532 = vunpack.c.l.b16 %v794
    %v5533 = vunpack.c.h.b16 %v794
    %v5534 = vunpack.c.l.b16 %v795
    %v5535 = vunpack.c.h.b16 %v795
    %v5536 = vunpack.c.l.b16 %v796
    %v5537 = vunpack.c.l.b16 %v797
    %v5538 = vunpack.c.h.b16 %v797
    %v5539 = vunpack.c.l.b16 %v798
    %v5540 = vunpack.c.h.b16 %v798
    %v5541 = vunpack.c.l.b16 %v799
    %v5542 = vunpack.c.h.b16 %v799
    %v5543 = vunpack.c.l.b16 %v800
    %v5544 = vunpack.c.h.b16 %v800
    %v5545 = vunpack.c.l.b16 %v801
    %v5546 = vunpack.c.l.b16 %v802
    %v5547 = vunpack.c.h.b16 %v802
    %v5548 = vunpack.c.l.b16 %v803
    %v5549 = vunpack.c.h.b16 %v803
    %v5550 = vunpack.c.l.b16 %v804
    %v5551 = vunpack.c.h.b16 %v804
    %v5552 = vunpack.c.l.b16 %v805
    %v5553 = vunpack.c.h.b16 %v805
    %v5554 = vunpack.c.l.b16 %v806
    %v5555 = vunpack.c.l.b16 %v807
    %v5556 = vunpack.c.h.b16 %v807
    %v5557 = vunpack.c.l.b16 %v808
    %v5558 = vunpack.c.h.b16 %v808
    %v5559 = vunpack.c.l.b16 %v809
    %v5560 = vunpack.c.h.b16 %v809
    %v5561 = vunpack.c.l.b16 %v810
    %v5562 = vunpack.c.h.b16 %v810
    %v5563 = vunpack.c.l.b16 %v811
    %v5564 = vunpack.c.l.b16 %v812
    %v5565 = vunpack.c.h.b16 %v812
    %v5566 = vunpack.c.l.b16 %v813
    %v5567 = vunpack.c.h.b16 %v813
    %v5568 = vunpack.c.l.b16 %v814
    %v5569 = vunpack.c.h.b16 %v814
    %v5570 = vunpack.c.l.b16 %v815
    %v5571 = vunpack.c.h.b16 %v815
    %v5572 = vunpack.c.l.b16 %v816
    %v5573 = vunpack.c.l.b16 %v817
    %v5574 = vunpack.c.h.b16 %v817
    %v5575 = vunpack.c.l.b16 %v818
    %v5576 = vunpack.c.h.b16 %v818
    %v5577 = vunpack.c.l.b16 %v819
    %v5578 = vunpack.c.h.b16 %v819
    %v5579 = vunpack.c.l.b16 %v820
    %v5580 = vunpack.c.h.b16 %v820
    %v5581 = vunpack.c.l.b16 %v821
    %v5582 = vunpack.c.l.b16 %v822
    %v5583 = vunpack.c.h.b16 %v822
    %v5584 = vunpack.c.l.b16 %v823
    %v5585 = vunpack.c.h.b16 %v823
    %v5586 = vunpack.c.l.b16 %v824
    %v5587 = vunpack.c.h.b16 %v824
    %v5588 = vunpack.c.l.b16 %v825
    %v5589 = vunpack.c.h.b16 %v825
    %v5590 = vunpack.c.l.b16 %v826
    %v5591 = vunpack.c.l.b16 %v827
    %v5592 = vunpack.c.h.b16 %v827
    %v5593 = vunpack.c.l.b16 %v828
    %v5594 = vunpack.c.h.b16 %v828
    %v5595 = vunpack.c.l.b16 %v829
    %v5596 = vunpack.c.h.b16 %v829
    %v5597 = vunpack.c.l.b16 %v830
    %v5598 = vunpack.c.h.b16 %v830
    %v5599 = vunpack.c.l.b16 %v831
    %v5600 = vunpack.c.l.b16 %v832
    %v5601 = vunpack.c.h.b16 %v832
    %v5602 = vunpack.c.l.b16 %v833
    %v5603 = vunpack.c.h.b16 %v833
    %v5604 = vunpack.c.l.b16 %v834
    %v5605 = vunpack.c.h.b16 %v834
    %v5606 = vunpack.c.l.b16 %v835
    %v5607 = vunpack.c.h.b16 %v835
    %v5608 = vunpack.c.l.b16 %v836
    %v5609 = vunpack.c.l.b16 %v837
    %v5610 = vunpack.c.h.b16 %v837
    %v5611 = vunpack.c.l.b16 %v838
    %v5612 = vunpack.c.h.b16 %v838
    %v5613 = vunpack.c.l.b16 %v839
    %v5614 = vunpack.c.h.b16 %v839
    %v5615 = vunpack.c.l.b16 %v840
    %v5616 = vunpack.c.h.b16 %v840
    %v5617 = vunpack.c.l.b16 %v841
    %v5618 = vunpack.c.l.b16 %v842
    %v5619 = vunpack.c.h.b16 %v842
    %v5620 = vunpack.c.l.b16 %v843
    %v5621 = vunpack.c.h.b16 %v843
    %v5622 = vunpack.c.l.b16 %v844
    %v5623 = vunpack.c.h.b16 %v844
    %v5624 = vunpack.c.l.b16 %v845
    %v5625 = vunpack.c.h.b16 %v845
    %v5626 = vunpack.c.l.b16 %v846
    %v5627 = vunpack.c.l.b16 %v847
    %v5628 = vunpack.c.h.b16 %v847
    %v5629 = vunpack.c.l.b16 %v848
    %v5630 = vunpack.c.h.b16 %v848
    %v5631 = vunpack.c.l.b16 %v849
    %v5632 = vunpack.c.h.b16 %v849
    %v5633 = vunpack.c.l.b16 %v850
    %v5634 = vunpack.c.h.b16 %v850
    %v5635 = vunpack.c.l.b16 %v851
    %v5636 = vunpack.c.l.b16 %v852
    %v5637 = vunpack.c.h.b16 %v852
    %v5638 = vunpack.c.l.b16 %v853
    %v5639 = vunpack.c.h.b16 %v853
    %v5640 = vunpack.c.l.b16 %v854
    %v5641 = vunpack.c.h.b16 %v854
    %v5642 = vunpack.c.l.b16 %v855
    %v5643 = vunpack.c.h.b16 %v855
    %v5644 = vunpack.c.l.b16 %v856
    %v5645 = vunpack.c.l.b16 %v857
    %v5646 = vunpack.c.h.b16 %v857
    %v5647 = vunpack.c.l.b16 %v858
    %v5648 = vunpack.c.h.b16 %v858
    %v5649 = vunpack.c.l.b16 %v859
    %v5650 = vunpack.c.h.b16 %v859
    %v5651 = vunpack.c.l.b16 %v860
    %v5652 = vunpack.c.h.b16 %v860
    %v5653 = vunpack.c.l.b16 %v861
    %v5654 = vunpack.c.l.b16 %v862
    %v5655 = vunpack.c.h.b16 %v862
    %v5656 = vunpack.c.l.b16 %v863
    %v5657 = vunpack.c.h.b16 %v863
    %v5658 = vunpack.c.l.b16 %v864
    %v5659 = vunpack.c.h.b16 %v864
    %v5660 = vunpack.c.l.b16 %v865
    %v5661 = vunpack.c.h.b16 %v865
    %v5662 = vunpack.c.l.b16 %v866
    %v5663 = vunpack.c.l.b16 %v867
    %v5664 = vunpack.c.h.b16 %v867
    %v5665 = vunpack.c.l.b16 %v868
    %v5666 = vunpack.c.h.b16 %v868
    %v5667 = vunpack.c.l.b16 %v869
    %v5668 = vunpack.c.h.b16 %v869
    %v5669 = vunpack.c.l.b16 %v870
    %v5670 = vunpack.c.h.b16 %v870
    %v5671 = vunpack.c.l.b16 %v871
    %v5672 = vunpack.c.l.b16 %v872
    %v5673 = vunpack.c.h.b16 %v872
    %v5674 = vunpack.c.l.b16 %v873
    %v5675 = vunpack.c.h.b16 %v873
    %v5676 = vunpack.c.l.b16 %v874
    %v5677 = vunpack.c.h.b16 %v874
    %v5678 = vunpack.c.l.b16 %v875
    %v5679 = vunpack.c.h.b16 %v875
    %v5680 = vunpack.c.l.b16 %v876
    %v5681 = vunpack.c.l.b16 %v877
    %v5682 = vunpack.c.h.b16 %v877
    %v5683 = vunpack.c.l.b16 %v878
    %v5684 = vunpack.c.h.b16 %v878
    %v5685 = vunpack.c.l.b16 %v879
    %v5686 = vunpack.c.h.b16 %v879
    %v5687 = vunpack.c.l.b16 %v880
    %v5688 = vunpack.c.h.b16 %v880
    %v5689 = vunpack.c.l.b16 %v881
    %v5690 = vunpack.c.l.b16 %v882
    %v5691 = vunpack.c.h.b16 %v882
    %v5692 = vunpack.c.l.b16 %v883
    %v5693 = vunpack.c.h.b16 %v883
    %v5694 = vunpack.c.l.b16 %v884
    %v5695 = vunpack.c.h.b16 %v884
    %v5696 = vunpack.c.l.b16 %v885
    %v5697 = vunpack.c.h.b16 %v885
    %v5698 = vunpack.c.l.b16 %v886
    %v5699 = vunpack.c.l.b16 %v887
    %v5700 = vunpack.c.h.b16 %v887
    %v5701 = vunpack.c.l.b16 %v888
    %v5702 = vunpack.c.h.b16 %v888
    %v5703 = vunpack.c.l.b16 %v889
    %v5704 = vunpack.c.h.b16 %v889
    %v5705 = vunpack.c.l.b16 %v890
    %v5706 = vunpack.c.h.b16 %v890
    %v5707 = vunpack.c.l.b16 %v891
    %v5708 = vunpack.c.l.b16 %v892
    %v5709 = vunpack.c.h.b16 %v892
    %v5710 = vunpack.c.l.b16 %v893
    %v5711 = vunpack.c.h.b16 %v893
    %v5712 = vunpack.c.l.b16 %v894
    %v5713 = vunpack.c.h.b16 %v894
    %v5714 = vunpack.c.l.b16 %v895
    %v5715 = vunpack.c.h.b16 %v895
    %v5716 = vunpack.c.l.b16 %v896
    %v5717 = vunpack.c.l.b16 %v897
    %v5718 = vunpack.c.h.b16 %v897
    %v5719 = vunpack.c.l.b16 %v898
    %v5720 = vunpack.c.h.b16 %v898
    %v5721 = vunpack.c.l.b16 %v899
    %v5722 = vunpack.c.h.b16 %v899
    %v5723 = vunpack.c.l.b16 %v900
    %v5724 = vunpack.c.h.b16 %v900
    %v5725 = vunpack.c.l.b16 %v901
    %v5726 = vunpack.c.l.b16 %v902
    %v5727 = vunpack.c.h.b16 %v902
    %v5728 = vunpack.c.l.b16 %v903
    %v5729 = vunpack.c.h.b16 %v903
    %v5730 = vunpack.c.l.b16 %v904
    %v5731 = vunpack.c.h.b16 %v904
    %v5732 = vunpack.c.l.b16 %v905
    %v5733 = vunpack.c.h.b16 %v905
    %v5734 = vunpack.c.l.b16 %v906
    %v5735 = vunpack.c.l.b16 %v907
    %v5736 = vunpack.c.h.b16 %v907
    %v5737 = vunpack.c.l.b16 %v908
    %v5738 = vunpack.c.h.b16 %v908
    %v5739 = vunpack.c.l.b16 %v909
    %v5740 = vunpack.c.h.b16 %v909
    %v5741 = vunpack.c.l.b16 %v910
    %v5742 = vunpack.c.h.b16 %v910
    %v5743 = vunpack.c.l.b16 %v911
    %v5744 = vunpack.c.l.b16 %v912
    %v5745 = vunpack.c.h.b16 %v912
    %v5746 = vunpack.c.l.b16 %v913
    %v5747 = vunpack.c.h.b16 %v913
    %v5748 = vunpack.c.l.b16 %v914
    %v5749 = vunpack.c.h.b16 %v914
    %v5750 = vunpack.c.l.b16 %v915
    %v5751 = vunpack.c.h.b16 %v915
    %v5752 = vunpack.c.l.b16 %v916
    %v5753 = vunpack.c.l.b16 %v917
    %v5754 = vunpack.c.h.b16 %v917
    %v5755 = vunpack.c.l.b16 %v918
    %v5756 = vunpack.c.h.b16 %v918
    %v5757 = vunpack.c.l.b16 %v919
    %v5758 = vunpack.c.h.b16 %v919
    %v5759 = vunpack.c.l.b16 %v920
    %v5760 = vunpack.c.h.b16 %v920
    %v5761 = vunpack.c.l.b16 %v921
    %v5762 = vpack.c.b16 %v5339, %v5330
    %v5763 = vpack.c.b16 %v5340, %v5331
    %v5764 = vpack.c.b16 %v5341, %v5332
    %v5765 = vpack.c.b16 %v5342, %v5333
    %v5766 = vpack.c.b16 %v5343, %v5334
    %v5767 = vpack.c.b16 %v5344, %v5335
    %v5768 = vpack.c.b16 %v5345, %v5336
    %v5769 = vpack.c.b16 %v5346, %v5337
    %v5770 = vpack.c.b16 %v5347, %v5338
    %v5771 = vpack.c.b16 %v5357, %v5348
    %v5772 = vpack.c.b16 %v5358, %v5349
    %v5773 = vpack.c.b16 %v5359, %v5350
    %v5774 = vpack.c.b16 %v5360, %v5351
    %v5775 = vpack.c.b16 %v5361, %v5352
    %v5776 = vpack.c.b16 %v5362, %v5353
    %v5777 = vpack.c.b16 %v5363, %v5354
    %v5778 = vpack.c.b16 %v5364, %v5355
    %v5779 = vpack.c.b16 %v5365, %v5356
    %v5780 = vpack.c.b16 %v5375, %v5366
    %v5781 = vpack.c.b16 %v5376, %v5367
    %v5782 = vpack.c.b16 %v5377, %v5368
    %v5783 = vpack.c.b16 %v5378, %v5369
    %v5784 = vpack.c.b16 %v5379, %v5370
    %v5785 = vpack.c.b16 %v5380, %v5371
    %v5786 = vpack.c.b16 %v5381, %v5372
    %v5787 = vpack.c.b16 %v5382, %v5373
    %v5788 = vpack.c.b16 %v5383, %v5374
    %v5789 = vpack.c.b16 %v5393, %v5384
    %v5790 = vpack.c.b16 %v5394, %v5385
    %v5791 = vpack.c.b16 %v5395, %v5386
    %v5792 = vpack.c.b16 %v5396, %v5387
    %v5793 = vpack.c.b16 %v5397, %v5388
    %v5794 = vpack.c.b16 %v5398, %v5389
    %v5795 = vpack.c.b16 %v5399, %v5390
    %v5796 = vpack.c.b16 %v5400, %v5391
    %v5797 = vpack.c.b16 %v5401, %v5392
    %v5798 = vpack.c.b16 %v5411, %v5402
    %v5799 = vpack.c.b16 %v5412, %v5403
    %v5800 = vpack.c.b16 %v5413, %v5404
    %v5801 = vpack.c.b16 %v5414, %v5405
    %v5802 = vpack.c.b16 %v5415, %v5406
    %v5803 = vpack.c.b16 %v5416, %v5407
    %v5804 = vpack.c.b16 %v5417, %v5408
    %v5805 = vpack.c.b16 %v5418, %v5409
    %v5806 = vpack.c.b16 %v5419, %v5410
    %v5807 = vpack.c.b16 %v5429, %v5420
    %v5808 = vpack.c.b16 %v5430, %v5421
    %v5809 = vpack.c.b16 %v5431, %v5422
    %v5810 = vpack.c.b16 %v5432, %v5423
    %v5811 = vpack.c.b16 %v5433, %v5424
    %v5812 = vpack.c.b16 %v5434, %v5425
    %v5813 = vpack.c.b16 %v5435, %v5426
    %v5814 = vpack.c.b16 %v5436, %v5427
    %v5815 = vpack.c.b16 %v5437, %v5428
    %v5816 = vpack.c.b16 %v5447, %v5438
    %v5817 = vpack.c.b16 %v5448, %v5439
    %v5818 = vpack.c.b16 %v5449, %v5440
    %v5819 = vpack.c.b16 %v5450, %v5441
    %v5820 = vpack.c.b16 %v5451, %v5442
    %v5821 = vpack.c.b16 %v5452, %v5443
    %v5822 = vpack.c.b16 %v5453, %v5444
    %v5823 = vpack.c.b16 %v5454, %v5445
    %v5824 = vpack.c.b16 %v5455, %v5446
    %v5825 = vpack.c.b16 %v5465, %v5456
    %v5826 = vpack.c.b16 %v5466, %v5457
    %v5827 = vpack.c.b16 %v5467, %v5458
    %v5828 = vpack.c.b16 %v5468, %v5459
    %v5829 = vpack.c.b16 %v5469, %v5460
    %v5830 = vpack.c.b16 %v5470, %v5461
    %v5831 = vpack.c.b16 %v5471, %v5462
    %v5832 = vpack.c.b16 %v5472, %v5463
    %v5833 = vpack.c.b16 %v5473, %v5464
    %v5834 = vpack.c.b16 %v5483, %v5474
    %v5835 = vpack.c.b16 %v5484, %v5475
    %v5836 = vpack.c.b16 %v5485, %v5476
    %v5837 = vpack.c.b16 %v5486, %v5477
    %v5838 = vpack.c.b16 %v5487, %v5478
    %v5839 = vpack.c.b16 %v5488, %v5479
    %v5840 = vpack.c.b16 %v5489, %v5480
    %v5841 = vpack.c.b16 %v5490, %v5481
    %v5842 = vpack.c.b16 %v5491, %v5482
    %v5843 = vpack.c.b16 %v5501, %v5492
    %v5844 = vpack.c.b16 %v5502, %v5493
    %v5845 = vpack.c.b16 %v5503, %v5494
    %v5846 = vpack.c.b16 %v5504, %v5495
    %v5847 = vpack.c.b16 %v5505, %v5496
    %v5848 = vpack.c.b16 %v5506, %v5497
    %v5849 = vpack.c.b16 %v5507, %v5498
    %v5850 = vpack.c.b16 %v5508, %v5499
    %v5851 = vpack.c.b16 %v5509, %v5500
    %v5852 = vpack.c.b16 %v5519, %v5510
    %v5853 = vpack.c.b16 %v5520, %v5511
    %v5854 = vpack.c.b16 %v5521, %v5512
    %v5855 = vpack.c.b16 %v5522, %v5513
    %v5856 = vpack.c.b16 %v5523, %v5514
    %v5857 = vpack.c.b16 %v5524, %v5515
    %v5858 = vpack.c.b16 %v5525, %v5516
    %v5859 = vpack.c.b16 %v5526, %v5517
    %v5860 = vpack.c.b16 %v5527, %v5518
    %v5861 = vpack.c.b16 %v5537, %v5528
    %v5862 = vpack.c.b16 %v5538, %v5529
    %v5863 = vpack.c.b16 %v5539, %v5530
    %v5864 = vpack.c.b16 %v5540, %v5531
    %v5865 = vpack.c.b16 %v5541, %v5532
    %v5866 = vpack.c.b16 %v5542, %v5533
    %v5867 = vpack.c.b16 %v5543, %v5534
    %v5868 = vpack.c.b16 %v5544, %v5535
    %v5869 = vpack.c.b16 %v5545, %v5536
    %v5870 = vpack.c.b16 %v5555, %v5546
    %v5871 = vpack.c.b16 %v5556, %v5547
    %v5872 = vpack.c.b16 %v5557, %v5548
    %v5873 = vpack.c.b16 %v5558, %v5549
    %v5874 = vpack.c.b16 %v5559, %v5550
    %v5875 = vpack.c.b16 %v5560, %v5551
    %v5876 = vpack.c.b16 %v5561, %v5552
    %v5877 = vpack.c.b16 %v5562, %v5553
    %v5878 = vpack.c.b16 %v5563, %v5554
    %v5879 = vpack.c.b16 %v5573, %v5564
    %v5880 = vpack.c.b16 %v5574, %v5565
    %v5881 = vpack.c.b16 %v5575, %v5566
    %v5882 = vpack.c.b16 %v5576, %v5567
    %v5883 = vpack.c.b16 %v5577, %v5568
    %v5884 = vpack.c.b16 %v5578, %v5569
    %v5885 = vpack.c.b16 %v5579, %v5570
    %v5886 = vpack.c.b16 %v5580, %v5571
    %v5887 = vpack.c.b16 %v5581, %v5572
    %v5888 = vpack.c.b16 %v5591, %v5582
    %v5889 = vpack.c.b16 %v5592, %v5583
    %v5890 = vpack.c.b16 %v5593, %v5584
    %v5891 = vpack.c.b16 %v5594, %v5585
    %v5892 = vpack.c.b16 %v5595, %v5586
    %v5893 = vpack.c.b16 %v5596, %v5587
    %v5894 = vpack.c.b16 %v5597, %v5588
    %v5895 = vpack.c.b16 %v5598, %v5589
    %v5896 = vpack.c.b16 %v5599, %v5590
    %v5897 = vpack.c.b16 %v5609, %v5600
    %v5898 = vpack.c.b16 %v5610, %v5601
    %v5899 = vpack.c.b16 %v5611, %v5602
    %v5900 = vpack.c.b16 %v5612, %v5603
    %v5901 = vpack.c.b16 %v5613, %v5604
    %v5902 = vpack.c.b16 %v5614, %v5605
    %v5903 = vpack.c.b16 %v5615, %v5606
    %v5904 = vpack.c.b16 %v5616, %v5607
    %v5905 = vpack.c.b16 %v5617, %v5608
    %v5906 = vpack.c.b16 %v5627, %v5618
    %v5907 = vpack.c.b16 %v5628, %v5619
    %v5908 = vpack.c.b16 %v5629, %v5620
    %v5909 = vpack.c.b16 %v5630, %v5621
    %v5910 = vpack.c.b16 %v5631, %v5622
    %v5911 = vpack.c.b16 %v5632, %v5623
    %v5912 = vpack.c.b16 %v5633, %v5624
    %v5913 = vpack.c.b16 %v5634, %v5625
    %v5914 = vpack.c.b16 %v5635, %v5626
    %v5915 = vpack.c.b16 %v5645, %v5636
    %v5916 = vpack.c.b16 %v5646, %v5637
    %v5917 = vpack.c.b16 %v5647, %v5638
    %v5918 = vpack.c.b16 %v5648, %v5639
    %v5919 = vpack.c.b16 %v5649, %v5640
    %v5920 = vpack.c.b16 %v5650, %v5641
    %v5921 = vpack.c.b16 %v5651, %v5642
    %v5922 = vpack.c.b16 %v5652, %v5643
    %v5923 = vpack.c.b16 %v5653, %v5644
    %v5924 = vpack.c.b16 %v5663, %v5654
    %v5925 = vpack.c.b16 %v5664, %v5655
    %v5926 = vpack.c.b16 %v5665, %v5656
    %v5927 = vpack.c.b16 %v5666, %v5657
    %v5928 = vpack.c.b16 %v5667, %v5658
    %v5929 = vpack.c.b16 %v5668, %v5659
    %v5930 = vpack.c.b16 %v5669, %v5660
    %v5931 = vpack.c.b16 %v5670, %v5661
    %v5932 = vpack.c.b16 %v5671, %v5662
    %v5933 = vpack.c.b16 %v5681, %v5672
    %v5934 = vpack.c.b16 %v5682, %v5673
    %v5935 = vpack.c.b16 %v5683, %v5674
    %v5936 = vpack.c.b16 %v5684, %v5675
    %v5937 = vpack.c.b16 %v5685, %v5676
    %v5938 = vpack.c.b16 %v5686, %v5677
    %v5939 = vpack.c.b16 %v5687, %v5678
    %v5940 = vpack.c.b16 %v5688, %v5679
    %v5941 = vpack.c.b16 %v5689, %v5680
    %v5942 = vpack.c.b16 %v5699, %v5690
    %v5943 = vpack.c.b16 %v5700, %v5691
    %v5944 = vpack.c.b16 %v5701, %v5692
    %v5945 = vpack.c.b16 %v5702, %v5693
    %v5946 = vpack.c.b16 %v5703, %v5694
    %v5947 = vpack.c.b16 %v5704, %v5695
    %v5948 = vpack.c.b16 %v5705, %v5696
    %v5949 = vpack.c.b16 %v5706, %v5697
    %v5950 = vpack.c.b16 %v5707, %v5698
    %v5951 = vpack.c.b16 %v5717, %v5708
    %v5952 = vpack.c.b16 %v5718, %v5709
    %v5953 = vpack.c.b16 %v5719, %v5710
    %v5954 = vpack.c.b16 %v5720, %v5711
    %v5955 = vpack.c.b16 %v5721, %v5712
    %v5956 = vpack.c.b16 %v5722, %v5713
    %v5957 = vpack.c.b16 %v5723, %v5714
    %v5958 = vpack.c.b16 %v5724, %v5715
    %v5959 = vpack.c.b16 %v5725, %v5716
    %v5960 = vpack.c.b16 %v5735, %v5726
    %v5961 = vpack.c.b16 %v5736, %v5727
    %v5962 = vpack.c.b16 %v5737, %v5728
    %v5963 = vpack.c.b16 %v5738, %v5729
    %v5964 = vpack.c.b16 %v5739, %v5730
    %v5965 = vpack.c.b16 %v5740, %v5731
    %v5966 = vpack.c.b16 %v5741, %v5732
    %v5967 = vpack.c.b16 %v5742, %v5733
    %v5968 = vpack.c.b16 %v5743, %v5734
    %v5969 = vpack.c.b16 %v5753, %v5744
    %v5970 = vpack.c.b16 %v5754, %v5745
    %v5971 = vpack.c.b16 %v5755, %v5746
    %v5972 = vpack.c.b16 %v5756, %v5747
    %v5973 = vpack.c.b16 %v5757, %v5748
    %v5974 = vpack.c.b16 %v5758, %v5749
    %v5975 = vpack.c.b16 %v5759, %v5750
    %v5976 = vpack.c.b16 %v5760, %v5751
    %v5977 = vpack.c.b16 %v5761, %v5752
    %6194 = vmatprep.subr.bf16.mxu0 %v5763
    %6195 = vmatpush1.bf16.msra.mxu0 %v5762
    %6196 = vmatprep.subr.bf16.mxu0 %v5772
    %6197 = vmatpush1.bf16.msra.mxu0 %v5771
    %6198 = vmatprep.subr.bf16.mxu0 %v5781
    %6199 = vmatpush1.bf16.msra.mxu0 %v5780
    %6200 = vmatprep.subr.bf16.mxu0 %v5790
    %6201 = vmatpush1.bf16.msra.mxu0 %v5789
    %6202 = vmatprep.subr.bf16.mxu0 %v5799
    %6203 = vmatpush1.bf16.msra.mxu0 %v5798
    %6204 = vmatprep.subr.bf16.mxu0 %v5808
    %6205 = vmatpush1.bf16.msra.mxu0 %v5807
    %6206 = vmatprep.subr.bf16.mxu0 %v5817
    %6207 = vmatpush1.bf16.msra.mxu0 %v5816
    %6208 = vmatprep.subr.bf16.mxu0 %v5826
    %6209 = vmatpush1.bf16.msra.mxu0 %v5825
    %6210 = vmatprep.subr.bf16.mxu0 %v5835
    %6211 = vmatpush1.bf16.msra.mxu0 %v5834
    %6212 = vmatprep.subr.bf16.mxu0 %v5844
    %6213 = vmatpush1.bf16.msra.mxu0 %v5843
    %6214 = vmatprep.subr.bf16.mxu0 %v5853
    %6215 = vmatpush1.bf16.msra.mxu0 %v5852
    %6216 = vmatprep.subr.bf16.mxu0 %v5862
    %6217 = vmatpush1.bf16.msra.mxu0 %v5861
    %6218 = vmatprep.subr.bf16.mxu0 %v5871
    %6219 = vmatpush1.bf16.msra.mxu0 %v5870
    %6220 = vmatprep.subr.bf16.mxu0 %v5880
    %6221 = vmatpush1.bf16.msra.mxu0 %v5879
    %6222 = vmatprep.subr.bf16.mxu0 %v5889
    %6223 = vmatpush1.bf16.msra.mxu0 %v5888
    %6224 = vmatprep.subr.bf16.mxu0 %v5898
    %6225 = vmatpush1.bf16.msra.mxu0 %v5897
    %6226 = vmatprep.mubr.bf16.mxu0 %v5041
    %6227 = vmatmul.mubr.bf16.gmra.mrb[0].mxu0 %v5040
    %v6228 = vpop.f32.mrb[0].mxu0
    %v6229 = vadd.f32 %v5048, %v6228
    %v6230 = vpop.f32.mrb[0].mxu0
    %v6231 = vadd.f32 %v5052, %v6230
    %v6232 = vpop.f32.mrb[0].mxu0
    %v6233 = vpop.f32.mrb[0].mxu0
    %6234 = vdwg.mxu0
    %6235 = vmatprep.subr.bf16.mxu0 %v5907
    %6236 = vmatpush1.bf16.msra.mxu0 %v5906
    %6237 = vmatprep.subr.bf16.mxu0 %v5916
    %6238 = vmatpush1.bf16.msra.mxu0 %v5915
    %6239 = vmatprep.subr.bf16.mxu0 %v5925
    %6240 = vmatpush1.bf16.msra.mxu0 %v5924
    %6241 = vmatprep.subr.bf16.mxu0 %v5934
    %6242 = vmatpush1.bf16.msra.mxu0 %v5933
    %6243 = vmatprep.subr.bf16.mxu0 %v5943
    %6244 = vmatpush1.bf16.msra.mxu0 %v5942
    %6245 = vmatprep.subr.bf16.mxu0 %v5952
    %6246 = vmatpush1.bf16.msra.mxu0 %v5951
    %6247 = vmatprep.subr.bf16.mxu0 %v5961
    %6248 = vmatpush1.bf16.msra.mxu0 %v5960
    %6249 = vmatprep.subr.bf16.mxu0 %v5970
    %6250 = vmatpush1.bf16.msra.mxu0 %v5969
    %6251 = vmatprep.subr.bf16.mxu0 0
    %6252 = vmatpush1.bf16.msra.mxu0 0
    %6253 = vmatprep.subr.bf16.mxu0 0
    %6254 = vmatpush1.bf16.msra.mxu0 0
    %6255 = vmatprep.subr.bf16.mxu0 0
    %6256 = vmatpush1.bf16.msra.mxu0 0
    %6257 = vmatprep.subr.bf16.mxu0 0
    %6258 = vmatpush1.bf16.msra.mxu0 0
    %6259 = vmatprep.subr.bf16.mxu0 0
    %6260 = vmatpush1.bf16.msra.mxu0 0
    %6261 = vmatprep.subr.bf16.mxu0 0
    %6262 = vmatpush1.bf16.msra.mxu0 0
    %6263 = vmatprep.subr.bf16.mxu0 0
    %6264 = vmatpush1.bf16.msra.mxu0 0
    %6265 = vmatprep.subr.bf16.mxu0 0
    %6266 = vmatpush1.bf16.msra.mxu0 0
    %6267 = vmatprep.mubr.bf16.mxu0 0
    %6268 = vmatmul.mubr.bf16.gmra.mrb[0].mxu0 %v5042
    %v6269 = vpop.f32.mrb[0].mxu0
    %v6270 = vadd.f32 %v6229, %v6269
    %v6271 = vpop.f32.mrb[0].mxu0
    %v6272 = vadd.f32 %v6231, %v6271
    %v6273 = vpop.f32.mrb[0].mxu0
    %v6274 = vpop.f32.mrb[0].mxu0
    %6275 = vdwg.mxu0
    %6276 = vmatprep.subr.bf16.mxu0 %v5765
    %6277 = vmatpush1.bf16.msra.mxu0 %v5764
    %6278 = vmatprep.subr.bf16.mxu0 %v5774
    %6279 = vmatpush1.bf16.msra.mxu0 %v5773
    %6280 = vmatprep.subr.bf16.mxu0 %v5783
    %6281 = vmatpush1.bf16.msra.mxu0 %v5782
    %6282 = vmatprep.subr.bf16.mxu0 %v5792
    %6283 = vmatpush1.bf16.msra.mxu0 %v5791
    %6284 = vmatprep.subr.bf16.mxu0 %v5801
    %6285 = vmatpush1.bf16.msra.mxu0 %v5800
    %6286 = vmatprep.subr.bf16.mxu0 %v5810
    %6287 = vmatpush1.bf16.msra.mxu0 %v5809
    %6288 = vmatprep.subr.bf16.mxu0 %v5819
    %6289 = vmatpush1.bf16.msra.mxu0 %v5818
    %6290 = vmatprep.subr.bf16.mxu0 %v5828
    %6291 = vmatpush1.bf16.msra.mxu0 %v5827
    %6292 = vmatprep.subr.bf16.mxu0 %v5837
    %6293 = vmatpush1.bf16.msra.mxu0 %v5836
    %6294 = vmatprep.subr.bf16.mxu0 %v5846
    %6295 = vmatpush1.bf16.msra.mxu0 %v5845
    %6296 = vmatprep.subr.bf16.mxu0 %v5855
    %6297 = vmatpush1.bf16.msra.mxu0 %v5854
    %6298 = vmatprep.subr.bf16.mxu0 %v5864
    %6299 = vmatpush1.bf16.msra.mxu0 %v5863
    %6300 = vmatprep.subr.bf16.mxu0 %v5873
    %6301 = vmatpush1.bf16.msra.mxu0 %v5872
    %6302 = vmatprep.subr.bf16.mxu0 %v5882
    %6303 = vmatpush1.bf16.msra.mxu0 %v5881
    %6304 = vmatprep.subr.bf16.mxu0 %v5891
    %6305 = vmatpush1.bf16.msra.mxu0 %v5890
    %6306 = vmatprep.subr.bf16.mxu0 %v5900
    %6307 = vmatpush1.bf16.msra.mxu0 %v5899
    %6308 = vmatprep.mubr.bf16.mxu0 %v5041
    %6309 = vmatmul.mubr.bf16.gmra.mrb[0].mxu0 %v5040
    %v6310 = vpop.f32.mrb[0].mxu0
    %v6311 = vadd.f32 %v5056, %v6310
    %v6312 = vpop.f32.mrb[0].mxu0
    %v6313 = vadd.f32 %v5060, %v6312
    %v6314 = vpop.f32.mrb[0].mxu0
    %v6315 = vpop.f32.mrb[0].mxu0
    %6316 = vdwg.mxu0
    %6317 = vmatprep.subr.bf16.mxu0 %v5909
    %6318 = vmatpush1.bf16.msra.mxu0 %v5908
    %6319 = vmatprep.subr.bf16.mxu0 %v5918
    %6320 = vmatpush1.bf16.msra.mxu0 %v5917
    %6321 = vmatprep.subr.bf16.mxu0 %v5927
    %6322 = vmatpush1.bf16.msra.mxu0 %v5926
    %6323 = vmatprep.subr.bf16.mxu0 %v5936
    %6324 = vmatpush1.bf16.msra.mxu0 %v5935
    %6325 = vmatprep.subr.bf16.mxu0 %v5945
    %6326 = vmatpush1.bf16.msra.mxu0 %v5944
    %6327 = vmatprep.subr.bf16.mxu0 %v5954
    %6328 = vmatpush1.bf16.msra.mxu0 %v5953
    %6329 = vmatprep.subr.bf16.mxu0 %v5963
    %6330 = vmatpush1.bf16.msra.mxu0 %v5962
    %6331 = vmatprep.subr.bf16.mxu0 %v5972
    %6332 = vmatpush1.bf16.msra.mxu0 %v5971
    %6333 = vmatprep.subr.bf16.mxu0 0
    %6334 = vmatpush1.bf16.msra.mxu0 0
    %6335 = vmatprep.subr.bf16.mxu0 0
    %6336 = vmatpush1.bf16.msra.mxu0 0
    %6337 = vmatprep.subr.bf16.mxu0 0
    %6338 = vmatpush1.bf16.msra.mxu0 0
    %6339 = vmatprep.subr.bf16.mxu0 0
    %6340 = vmatpush1.bf16.msra.mxu0 0
    %6341 = vmatprep.subr.bf16.mxu0 0
    %6342 = vmatpush1.bf16.msra.mxu0 0
    %6343 = vmatprep.subr.bf16.mxu0 0
    %6344 = vmatpush1.bf16.msra.mxu0 0
    %6345 = vmatprep.subr.bf16.mxu0 0
    %6346 = vmatpush1.bf16.msra.mxu0 0
    %6347 = vmatprep.subr.bf16.mxu0 0
    %6348 = vmatpush1.bf16.msra.mxu0 0
    %6349 = vmatprep.mubr.bf16.mxu0 0
    %6350 = vmatmul.mubr.bf16.gmra.mrb[0].mxu0 %v5042
    %v6351 = vpop.f32.mrb[0].mxu0
    %v6352 = vadd.f32 %v6311, %v6351
    %v6353 = vpop.f32.mrb[0].mxu0
    %v6354 = vadd.f32 %v6313, %v6353
    %v6355 = vpop.f32.mrb[0].mxu0
    %v6356 = vpop.f32.mrb[0].mxu0
    %6357 = vdwg.mxu0
    %6358 = vmatprep.subr.bf16.mxu0 %v5767
    %6359 = vmatpush1.bf16.msra.mxu0 %v5766
    %6360 = vmatprep.subr.bf16.mxu0 %v5776
    %6361 = vmatpush1.bf16.msra.mxu0 %v5775
    %6362 = vmatprep.subr.bf16.mxu0 %v5785
    %6363 = vmatpush1.bf16.msra.mxu0 %v5784
    %6364 = vmatprep.subr.bf16.mxu0 %v5794
    %6365 = vmatpush1.bf16.msra.mxu0 %v5793
    %6366 = vmatprep.subr.bf16.mxu0 %v5803
    %6367 = vmatpush1.bf16.msra.mxu0 %v5802
    %6368 = vmatprep.subr.bf16.mxu0 %v5812
    %6369 = vmatpush1.bf16.msra.mxu0 %v5811
    %6370 = vmatprep.subr.bf16.mxu0 %v5821
    %6371 = vmatpush1.bf16.msra.mxu0 %v5820
    %6372 = vmatprep.subr.bf16.mxu0 %v5830
    %6373 = vmatpush1.bf16.msra.mxu0 %v5829
    %6374 = vmatprep.subr.bf16.mxu0 %v5839
    %6375 = vmatpush1.bf16.msra.mxu0 %v5838
    %6376 = vmatprep.subr.bf16.mxu0 %v5848
    %6377 = vmatpush1.bf16.msra.mxu0 %v5847
    %6378 = vmatprep.subr.bf16.mxu0 %v5857
    %6379 = vmatpush1.bf16.msra.mxu0 %v5856
    %6380 = vmatprep.subr.bf16.mxu0 %v5866
    %6381 = vmatpush1.bf16.msra.mxu0 %v5865
    %6382 = vmatprep.subr.bf16.mxu0 %v5875
    %6383 = vmatpush1.bf16.msra.mxu0 %v5874
    %6384 = vmatprep.subr.bf16.mxu0 %v5884
    %6385 = vmatpush1.bf16.msra.mxu0 %v5883
    %6386 = vmatprep.subr.bf16.mxu0 %v5893
    %6387 = vmatpush1.bf16.msra.mxu0 %v5892
    %6388 = vmatprep.subr.bf16.mxu0 %v5902
    %6389 = vmatpush1.bf16.msra.mxu0 %v5901
    %6390 = vmatprep.mubr.bf16.mxu0 %v5041
    %6391 = vmatmul.mubr.bf16.gmra.mrb[0].mxu0 %v5040
    %v6392 = vpop.f32.mrb[0].mxu0
    %v6393 = vadd.f32 %v5064, %v6392
    %v6394 = vpop.f32.mrb[0].mxu0
    %v6395 = vadd.f32 %v5068, %v6394
    %v6396 = vpop.f32.mrb[0].mxu0
    %v6397 = vpop.f32.mrb[0].mxu0
    %6398 = vdwg.mxu0
    %6399 = vmatprep.subr.bf16.mxu0 %v5911
    %6400 = vmatpush1.bf16.msra.mxu0 %v5910
    %6401 = vmatprep.subr.bf16.mxu0 %v5920
    %6402 = vmatpush1.bf16.msra.mxu0 %v5919
    %6403 = vmatprep.subr.bf16.mxu0 %v5929
    %6404 = vmatpush1.bf16.msra.mxu0 %v5928
    %6405 = vmatprep.subr.bf16.mxu0 %v5938
    %6406 = vmatpush1.bf16.msra.mxu0 %v5937
    %6407 = vmatprep.subr.bf16.mxu0 %v5947
    %6408 = vmatpush1.bf16.msra.mxu0 %v5946
    %6409 = vmatprep.subr.bf16.mxu0 %v5956
    %6410 = vmatpush1.bf16.msra.mxu0 %v5955
    %6411 = vmatprep.subr.bf16.mxu0 %v5965
    %6412 = vmatpush1.bf16.msra.mxu0 %v5964
    %6413 = vmatprep.subr.bf16.mxu0 %v5974
    %6414 = vmatpush1.bf16.msra.mxu0 %v5973
    %6415 = vmatprep.subr.bf16.mxu0 0
    %6416 = vmatpush1.bf16.msra.mxu0 0
    %6417 = vmatprep.subr.bf16.mxu0 0
    %6418 = vmatpush1.bf16.msra.mxu0 0
    %6419 = vmatprep.subr.bf16.mxu0 0
    %6420 = vmatpush1.bf16.msra.mxu0 0
    %6421 = vmatprep.subr.bf16.mxu0 0
    %6422 = vmatpush1.bf16.msra.mxu0 0
    %6423 = vmatprep.subr.bf16.mxu0 0
    %6424 = vmatpush1.bf16.msra.mxu0 0
    %6425 = vmatprep.subr.bf16.mxu0 0
    %6426 = vmatpush1.bf16.msra.mxu0 0
    %6427 = vmatprep.subr.bf16.mxu0 0
    %6428 = vmatpush1.bf16.msra.mxu0 0
    %6429 = vmatprep.subr.bf16.mxu0 0
    %6430 = vmatpush1.bf16.msra.mxu0 0
    %6431 = vmatprep.mubr.bf16.mxu0 0
    %6432 = vmatmul.mubr.bf16.gmra.mrb[0].mxu0 %v5042
    %v6433 = vpop.f32.mrb[0].mxu0
    %v6434 = vadd.f32 %v6393, %v6433
    %v6435 = vpop.f32.mrb[0].mxu0
    %v6436 = vadd.f32 %v6395, %v6435
    %v6437 = vpop.f32.mrb[0].mxu0
    %v6438 = vpop.f32.mrb[0].mxu0
    %6439 = vdwg.mxu0
    %6440 = vmatprep.subr.bf16.mxu0 %v5769
    %6441 = vmatpush1.bf16.msra.mxu0 %v5768
    %6442 = vmatprep.subr.bf16.mxu0 %v5778
    %6443 = vmatpush1.bf16.msra.mxu0 %v5777
    %6444 = vmatprep.subr.bf16.mxu0 %v5787
    %6445 = vmatpush1.bf16.msra.mxu0 %v5786
    %6446 = vmatprep.subr.bf16.mxu0 %v5796
    %6447 = vmatpush1.bf16.msra.mxu0 %v5795
    %6448 = vmatprep.subr.bf16.mxu0 %v5805
    %6449 = vmatpush1.bf16.msra.mxu0 %v5804
    %6450 = vmatprep.subr.bf16.mxu0 %v5814
    %6451 = vmatpush1.bf16.msra.mxu0 %v5813
    %6452 = vmatprep.subr.bf16.mxu0 %v5823
    %6453 = vmatpush1.bf16.msra.mxu0 %v5822
    %6454 = vmatprep.subr.bf16.mxu0 %v5832
    %6455 = vmatpush1.bf16.msra.mxu0 %v5831
    %6456 = vmatprep.subr.bf16.mxu0 %v5841
    %6457 = vmatpush1.bf16.msra.mxu0 %v5840
    %6458 = vmatprep.subr.bf16.mxu0 %v5850
    %6459 = vmatpush1.bf16.msra.mxu0 %v5849
    %6460 = vmatprep.subr.bf16.mxu0 %v5859
    %6461 = vmatpush1.bf16.msra.mxu0 %v5858
    %6462 = vmatprep.subr.bf16.mxu0 %v5868
    %6463 = vmatpush1.bf16.msra.mxu0 %v5867
    %6464 = vmatprep.subr.bf16.mxu0 %v5877
    %6465 = vmatpush1.bf16.msra.mxu0 %v5876
    %6466 = vmatprep.subr.bf16.mxu0 %v5886
    %6467 = vmatpush1.bf16.msra.mxu0 %v5885
    %6468 = vmatprep.subr.bf16.mxu0 %v5895
    %6469 = vmatpush1.bf16.msra.mxu0 %v5894
    %6470 = vmatprep.subr.bf16.mxu0 %v5904
    %6471 = vmatpush1.bf16.msra.mxu0 %v5903
    %6472 = vmatprep.mubr.bf16.mxu0 %v5041
    %6473 = vmatmul.mubr.bf16.gmra.mrb[0].mxu0 %v5040
    %v6474 = vpop.f32.mrb[0].mxu0
    %v6475 = vadd.f32 %v5072, %v6474
    %v6476 = vpop.f32.mrb[0].mxu0
    %v6477 = vadd.f32 %v5076, %v6476
    %v6478 = vpop.f32.mrb[0].mxu0
    %v6479 = vpop.f32.mrb[0].mxu0
    %6480 = vdwg.mxu0
    %6481 = vmatprep.subr.bf16.mxu0 %v5913
    %6482 = vmatpush1.bf16.msra.mxu0 %v5912
    %6483 = vmatprep.subr.bf16.mxu0 %v5922
    %6484 = vmatpush1.bf16.msra.mxu0 %v5921
    %6485 = vmatprep.subr.bf16.mxu0 %v5931
    %6486 = vmatpush1.bf16.msra.mxu0 %v5930
    %6487 = vmatprep.subr.bf16.mxu0 %v5940
    %6488 = vmatpush1.bf16.msra.mxu0 %v5939
    %6489 = vmatprep.subr.bf16.mxu0 %v5949
    %6490 = vmatpush1.bf16.msra.mxu0 %v5948
    %6491 = vmatprep.subr.bf16.mxu0 %v5958
    %6492 = vmatpush1.bf16.msra.mxu0 %v5957
    %6493 = vmatprep.subr.bf16.mxu0 %v5967
    %6494 = vmatpush1.bf16.msra.mxu0 %v5966
    %6495 = vmatprep.subr.bf16.mxu0 %v5976
    %6496 = vmatpush1.bf16.msra.mxu0 %v5975
    %6497 = vmatprep.subr.bf16.mxu0 0
    %6498 = vmatpush1.bf16.msra.mxu0 0
    %6499 = vmatprep.subr.bf16.mxu0 0
    %6500 = vmatpush1.bf16.msra.mxu0 0
    %6501 = vmatprep.subr.bf16.mxu0 0
    %6502 = vmatpush1.bf16.msra.mxu0 0
    %6503 = vmatprep.subr.bf16.mxu0 0
    %6504 = vmatpush1.bf16.msra.mxu0 0
    %6505 = vmatprep.subr.bf16.mxu0 0
    %6506 = vmatpush1.bf16.msra.mxu0 0
    %6507 = vmatprep.subr.bf16.mxu0 0
    %6508 = vmatpush1.bf16.msra.mxu0 0
    %6509 = vmatprep.subr.bf16.mxu0 0
    %6510 = vmatpush1.bf16.msra.mxu0 0
    %6511 = vmatprep.subr.bf16.mxu0 0
    %6512 = vmatpush1.bf16.msra.mxu0 0
    %6513 = vmatprep.mubr.bf16.mxu0 0
    %6514 = vmatmul.mubr.bf16.gmra.mrb[0].mxu0 %v5042
    %v6515 = vpop.f32.mrb[0].mxu0
    %v6516 = vadd.f32 %v6475, %v6515
    %v6517 = vpop.f32.mrb[0].mxu0
    %v6518 = vadd.f32 %v6477, %v6517
    %v6519 = vpop.f32.mrb[0].mxu0
    %v6520 = vpop.f32.mrb[0].mxu0
    %6521 = vdwg.mxu0
    %6522 = vmatprep.subr.bf16.mxu0 0
    %6523 = vmatpush1.bf16.msra.mxu0 %v5770
    %6524 = vmatprep.subr.bf16.mxu0 0
    %6525 = vmatpush1.bf16.msra.mxu0 %v5779
    %6526 = vmatprep.subr.bf16.mxu0 0
    %6527 = vmatpush1.bf16.msra.mxu0 %v5788
    %6528 = vmatprep.subr.bf16.mxu0 0
    %6529 = vmatpush1.bf16.msra.mxu0 %v5797
    %6530 = vmatprep.subr.bf16.mxu0 0
    %6531 = vmatpush1.bf16.msra.mxu0 %v5806
    %6532 = vmatprep.subr.bf16.mxu0 0
    %6533 = vmatpush1.bf16.msra.mxu0 %v5815
    %6534 = vmatprep.subr.bf16.mxu0 0
    %6535 = vmatpush1.bf16.msra.mxu0 %v5824
    %6536 = vmatprep.subr.bf16.mxu0 0
    %6537 = vmatpush1.bf16.msra.mxu0 %v5833
    %6538 = vmatprep.subr.bf16.mxu0 0
    %6539 = vmatpush1.bf16.msra.mxu0 %v5842
    %6540 = vmatprep.subr.bf16.mxu0 0
    %6541 = vmatpush1.bf16.msra.mxu0 %v5851
    %6542 = vmatprep.subr.bf16.mxu0 0
    %6543 = vmatpush1.bf16.msra.mxu0 %v5860
    %6544 = vmatprep.subr.bf16.mxu0 0
    %6545 = vmatpush1.bf16.msra.mxu0 %v5869
    %6546 = vmatprep.subr.bf16.mxu0 0
    %6547 = vmatpush1.bf16.msra.mxu0 %v5878
    %6548 = vmatprep.subr.bf16.mxu0 0
    %6549 = vmatpush1.bf16.msra.mxu0 %v5887
    %6550 = vmatprep.subr.bf16.mxu0 0
    %6551 = vmatpush1.bf16.msra.mxu0 %v5896
    %6552 = vmatprep.subr.bf16.mxu0 0
    %6553 = vmatpush1.bf16.msra.mxu0 %v5905
    %6554 = vmatprep.mubr.bf16.mxu0 %v5041
    %6555 = vmatmul.mubr.bf16.gmra.mrb[0].mxu0 %v5040
    %v6556 = vpop.f32.mrb[0].mxu0
    %v6557 = vadd.f32 %v5080, %v6556
    %v6558 = vpop.f32.mrb[0].mxu0
    %v6559 = vpop.f32.mrb[0].mxu0
    %v6560 = vpop.f32.mrb[0].mxu0
    %6561 = vdwg.mxu0
    %6562 = vmatprep.subr.bf16.mxu0 0
    %6563 = vmatpush1.bf16.msra.mxu0 %v5914
    %6564 = vmatprep.subr.bf16.mxu0 0
    %6565 = vmatpush1.bf16.msra.mxu0 %v5923
    %6566 = vmatprep.subr.bf16.mxu0 0
    %6567 = vmatpush1.bf16.msra.mxu0 %v5932
    %6568 = vmatprep.subr.bf16.mxu0 0
    %6569 = vmatpush1.bf16.msra.mxu0 %v5941
    %6570 = vmatprep.subr.bf16.mxu0 0
    %6571 = vmatpush1.bf16.msra.mxu0 %v5950
    %6572 = vmatprep.subr.bf16.mxu0 0
    %6573 = vmatpush1.bf16.msra.mxu0 %v5959
    %6574 = vmatprep.subr.bf16.mxu0 0
    %6575 = vmatpush1.bf16.msra.mxu0 %v5968
    %6576 = vmatprep.subr.bf16.mxu0 0
    %6577 = vmatpush1.bf16.msra.mxu0 %v5977
    %6578 = vmatprep.subr.bf16.mxu0 0
    %6579 = vmatpush1.bf16.msra.mxu0 0
    %6580 = vmatprep.subr.bf16.mxu0 0
    %6581 = vmatpush1.bf16.msra.mxu0 0
    %6582 = vmatprep.subr.bf16.mxu0 0
    %6583 = vmatpush1.bf16.msra.mxu0 0
    %6584 = vmatprep.subr.bf16.mxu0 0
    %6585 = vmatpush1.bf16.msra.mxu0 0
    %6586 = vmatprep.subr.bf16.mxu0 0
    %6587 = vmatpush1.bf16.msra.mxu0 0
    %6588 = vmatprep.subr.bf16.mxu0 0
    %6589 = vmatpush1.bf16.msra.mxu0 0
    %6590 = vmatprep.subr.bf16.mxu0 0
    %6591 = vmatpush1.bf16.msra.mxu0 0
    %6592 = vmatprep.subr.bf16.mxu0 0
    %6593 = vmatpush1.bf16.msra.mxu0 0
    %6594 = vmatprep.mubr.bf16.mxu0 0
    %6595 = vmatmul.mubr.bf16.gmra.mrb[0].mxu0 %v5042
    %v6596 = vpop.f32.mrb[0].mxu0
    %v6597 = vadd.f32 %v6557, %v6596
    %v6598 = vpop.f32.mrb[0].mxu0
    %v6599 = vpop.f32.mrb[0].mxu0
    %v6600 = vpop.f32.mrb[0].mxu0
    %6601 = vdwg.mxu0
    %v6602 = vmax.f32 %v6270, 0.0
    %v6603 = vmax.f32 %v6272, 0.0
    %v6604 = vmax.f32 %v6352, 0.0
    %v6605 = vmax.f32 %v6354, 0.0
    %v6606 = vmax.f32 %v6434, 0.0
    %v6607 = vmax.f32 %v6436, 0.0
    %v6608 = vmax.f32 %v6516, 0.0
    %v6609 = vmax.f32 %v6518, 0.0
    %v6610 = vmax.f32 %v6597, 0.0
    %6612 = vrot.lane.b32.xlu0 %v6602, 104
    %v6613 = vpop.permute.xlu0 %6612
    %6615 = vrot.lane.b32.xlu0 %v6602, 80
    %v6616 = vpop.permute.xlu0 %6615
    %6618 = vrot.lane.b32.xlu0 %v6602, 56
    %v6619 = vpop.permute.xlu0 %6618
    %6621 = vrot.lane.b32.xlu0 %v6602, 32
    %v6622 = vpop.permute.xlu0 %6621
    %6625 = vrot.lane.b32.xlu0 %v6602, 8
    %v6626 = vpop.permute.xlu0 %6625
    %6627 = vrot.lane.b32.xlu0 %v6603, 8
    %v6628 = vpop.permute.xlu0 %6627
    %v6629 = vsel %vm2848, %v6626, %v6628
    %6631 = vrot.lane.b32.xlu0 %v6603, 112
    %v6632 = vpop.permute.xlu0 %6631
    %6634 = vrot.lane.b32.xlu0 %v6603, 88
    %v6635 = vpop.permute.xlu0 %6634
    %6637 = vrot.lane.b32.xlu0 %v6603, 64
    %v6638 = vpop.permute.xlu0 %6637
    %6640 = vrot.lane.b32.xlu0 %v6603, 40
    %v6641 = vpop.permute.xlu0 %6640
    %6644 = vrot.lane.b32.xlu0 %v6603, 16
    %v6645 = vpop.permute.xlu0 %6644
    %6646 = vrot.lane.b32.xlu0 %v6604, 16
    %v6647 = vpop.permute.xlu0 %6646
    %v6648 = vsel %vm2868, %v6645, %v6647
    %6650 = vrot.lane.b32.xlu0 %v6604, 120
    %v6651 = vpop.permute.xlu0 %6650
    %6653 = vrot.lane.b32.xlu0 %v6604, 96
    %v6654 = vpop.permute.xlu0 %6653
    %6656 = vrot.lane.b32.xlu0 %v6604, 72
    %v6657 = vpop.permute.xlu0 %6656
    %6659 = vrot.lane.b32.xlu0 %v6604, 48
    %v6660 = vpop.permute.xlu0 %6659
    %6662 = vrot.lane.b32.xlu0 %v6604, 24
    %v6663 = vpop.permute.xlu0 %6662
    %v6665 = vcombine.low %v6602, %v6616
    %v6667 = vunpack.c.l.s4 1983009808
    %v6668 = vunpack.c.0.s8 %v6667
    %v6669 = vlaneseq
    %v6670 = vshrl.u32 %v6669, 7
    %v6671 = vsub.s32 %v6668, %v6670
    %v6672 = vrot.slane %v6665, %v6671
    %v6673 = vcombine.low %v6613, %v6619
    %v6675 = vunpack.c.l.s4 1983009808
    %v6676 = vunpack.c.0.s8 %v6675
    %v6677 = vlaneseq
    %v6678 = vshrl.u32 %v6677, 7
    %v6679 = vsub.s32 %v6676, %v6678
    %v6680 = vrot.slane %v6673, %v6679
    %v6681 = vcombine.low %v6622, %v6632
    %v6683 = vunpack.c.l.s4 1983009808
    %v6684 = vunpack.c.0.s8 %v6683
    %v6685 = vlaneseq
    %v6686 = vshrl.u32 %v6685, 7
    %v6687 = vsub.s32 %v6684, %v6686
    %v6688 = vrot.slane %v6681, %v6687
    %v6689 = vcombine.low %v6629, %v6635
    %v6691 = vunpack.c.l.s4 1983009808
    %v6692 = vunpack.c.0.s8 %v6691
    %v6693 = vlaneseq
    %v6694 = vshrl.u32 %v6693, 7
    %v6695 = vsub.s32 %v6692, %v6694
    %v6696 = vrot.slane %v6689, %v6695
    %v6697 = vcombine.low %v6672, %v6680
    %v6699 = vunpack.c.l.s4 1934713408
    %v6700 = vunpack.c.0.s8 %v6699
    %v6701 = vlaneseq
    %v6702 = vshrl.u32 %v6701, 7
    %v6703 = vsub.s32 %v6700, %v6702
    %v6704 = vrot.slane %v6697, %v6703
    %v6705 = vcombine.low %v6688, %v6696
    %v6707 = vunpack.c.l.s4 1934713408
    %v6708 = vunpack.c.0.s8 %v6707
    %v6709 = vlaneseq
    %v6710 = vshrl.u32 %v6709, 7
    %v6711 = vsub.s32 %v6708, %v6710
    %v6712 = vrot.slane %v6705, %v6711
    %v6713 = vcombine.low %v6704, %v6712
    %v6714 = vcombine.high %v6704, %v6712
    %v6715 = vcombine.low %v6638, %v6648
    %v6717 = vunpack.c.l.s4 1983009808
    %v6718 = vunpack.c.0.s8 %v6717
    %v6719 = vlaneseq
    %v6720 = vshrl.u32 %v6719, 7
    %v6721 = vsub.s32 %v6718, %v6720
    %v6722 = vrot.slane %v6715, %v6721
    %v6723 = vcombine.low %v6641, %v6651
    %v6725 = vunpack.c.l.s4 1983009808
    %v6726 = vunpack.c.0.s8 %v6725
    %v6727 = vlaneseq
    %v6728 = vshrl.u32 %v6727, 7
    %v6729 = vsub.s32 %v6726, %v6728
    %v6730 = vrot.slane %v6723, %v6729
    %v6731 = vcombine.low %v6654, %v6660
    %v6733 = vunpack.c.l.s4 1983009808
    %v6734 = vunpack.c.0.s8 %v6733
    %v6735 = vlaneseq
    %v6736 = vshrl.u32 %v6735, 7
    %v6737 = vsub.s32 %v6734, %v6736
    %v6738 = vrot.slane %v6731, %v6737
    %v6739 = vcombine.low %v6657, %v6663
    %v6741 = vunpack.c.l.s4 1983009808
    %v6742 = vunpack.c.0.s8 %v6741
    %v6743 = vlaneseq
    %v6744 = vshrl.u32 %v6743, 7
    %v6745 = vsub.s32 %v6742, %v6744
    %v6746 = vrot.slane %v6739, %v6745
    %v6747 = vcombine.low %v6722, %v6730
    %v6749 = vunpack.c.l.s4 1934713408
    %v6750 = vunpack.c.0.s8 %v6749
    %v6751 = vlaneseq
    %v6752 = vshrl.u32 %v6751, 7
    %v6753 = vsub.s32 %v6750, %v6752
    %v6754 = vrot.slane %v6747, %v6753
    %v6755 = vcombine.low %v6738, %v6746
    %v6757 = vunpack.c.l.s4 1934713408
    %v6758 = vunpack.c.0.s8 %v6757
    %v6759 = vlaneseq
    %v6760 = vshrl.u32 %v6759, 7
    %v6761 = vsub.s32 %v6758, %v6760
    %v6762 = vrot.slane %v6755, %v6761
    %v6763 = vcombine.low %v6754, %v6762
    %v6764 = vcombine.high %v6754, %v6762
    %6766 = vrot.lane.b32.xlu0 %v6605, 104
    %v6767 = vpop.permute.xlu0 %6766
    %6769 = vrot.lane.b32.xlu0 %v6605, 80
    %v6770 = vpop.permute.xlu0 %6769
    %6772 = vrot.lane.b32.xlu0 %v6605, 56
    %v6773 = vpop.permute.xlu0 %6772
    %6775 = vrot.lane.b32.xlu0 %v6605, 32
    %v6776 = vpop.permute.xlu0 %6775
    %6779 = vrot.lane.b32.xlu0 %v6605, 8
    %v6780 = vpop.permute.xlu0 %6779
    %6781 = vrot.lane.b32.xlu0 %v6606, 8
    %v6782 = vpop.permute.xlu0 %6781
    %v6783 = vsel %vm2848, %v6780, %v6782
    %6785 = vrot.lane.b32.xlu0 %v6606, 112
    %v6786 = vpop.permute.xlu0 %6785
    %6788 = vrot.lane.b32.xlu0 %v6606, 88
    %v6789 = vpop.permute.xlu0 %6788
    %6791 = vrot.lane.b32.xlu0 %v6606, 64
    %v6792 = vpop.permute.xlu0 %6791
    %6794 = vrot.lane.b32.xlu0 %v6606, 40
    %v6795 = vpop.permute.xlu0 %6794
    %6798 = vrot.lane.b32.xlu0 %v6606, 16
    %v6799 = vpop.permute.xlu0 %6798
    %6800 = vrot.lane.b32.xlu0 %v6607, 16
    %v6801 = vpop.permute.xlu0 %6800
    %v6802 = vsel %vm2868, %v6799, %v6801
    %6804 = vrot.lane.b32.xlu0 %v6607, 120
    %v6805 = vpop.permute.xlu0 %6804
    %6807 = vrot.lane.b32.xlu0 %v6607, 96
    %v6808 = vpop.permute.xlu0 %6807
    %6810 = vrot.lane.b32.xlu0 %v6607, 72
    %v6811 = vpop.permute.xlu0 %6810
    %6813 = vrot.lane.b32.xlu0 %v6607, 48
    %v6814 = vpop.permute.xlu0 %6813
    %6816 = vrot.lane.b32.xlu0 %v6607, 24
    %v6817 = vpop.permute.xlu0 %6816
    %v6819 = vcombine.low %v6605, %v6770
    %v6821 = vunpack.c.l.s4 1983009808
    %v6822 = vunpack.c.0.s8 %v6821
    %v6823 = vlaneseq
    %v6824 = vshrl.u32 %v6823, 7
    %v6825 = vsub.s32 %v6822, %v6824
    %v6826 = vrot.slane %v6819, %v6825
    %v6827 = vcombine.low %v6767, %v6773
    %v6829 = vunpack.c.l.s4 1983009808
    %v6830 = vunpack.c.0.s8 %v6829
    %v6831 = vlaneseq
    %v6832 = vshrl.u32 %v6831, 7
    %v6833 = vsub.s32 %v6830, %v6832
    %v6834 = vrot.slane %v6827, %v6833
    %v6835 = vcombine.low %v6776, %v6786
    %v6837 = vunpack.c.l.s4 1983009808
    %v6838 = vunpack.c.0.s8 %v6837
    %v6839 = vlaneseq
    %v6840 = vshrl.u32 %v6839, 7
    %v6841 = vsub.s32 %v6838, %v6840
    %v6842 = vrot.slane %v6835, %v6841
    %v6843 = vcombine.low %v6783, %v6789
    %v6845 = vunpack.c.l.s4 1983009808
    %v6846 = vunpack.c.0.s8 %v6845
    %v6847 = vlaneseq
    %v6848 = vshrl.u32 %v6847, 7
    %v6849 = vsub.s32 %v6846, %v6848
    %v6850 = vrot.slane %v6843, %v6849
    %v6851 = vcombine.low %v6826, %v6834
    %v6853 = vunpack.c.l.s4 1934713408
    %v6854 = vunpack.c.0.s8 %v6853
    %v6855 = vlaneseq
    %v6856 = vshrl.u32 %v6855, 7
    %v6857 = vsub.s32 %v6854, %v6856
    %v6858 = vrot.slane %v6851, %v6857
    %v6859 = vcombine.low %v6842, %v6850
    %v6861 = vunpack.c.l.s4 1934713408
    %v6862 = vunpack.c.0.s8 %v6861
    %v6863 = vlaneseq
    %v6864 = vshrl.u32 %v6863, 7
    %v6865 = vsub.s32 %v6862, %v6864
    %v6866 = vrot.slane %v6859, %v6865
    %v6867 = vcombine.low %v6858, %v6866
    %v6868 = vcombine.high %v6858, %v6866
    %v6869 = vcombine.low %v6792, %v6802
    %v6871 = vunpack.c.l.s4 1983009808
    %v6872 = vunpack.c.0.s8 %v6871
    %v6873 = vlaneseq
    %v6874 = vshrl.u32 %v6873, 7
    %v6875 = vsub.s32 %v6872, %v6874
    %v6876 = vrot.slane %v6869, %v6875
    %v6877 = vcombine.low %v6795, %v6805
    %v6879 = vunpack.c.l.s4 1983009808
    %v6880 = vunpack.c.0.s8 %v6879
    %v6881 = vlaneseq
    %v6882 = vshrl.u32 %v6881, 7
    %v6883 = vsub.s32 %v6880, %v6882
    %v6884 = vrot.slane %v6877, %v6883
    %v6885 = vcombine.low %v6808, %v6814
    %v6887 = vunpack.c.l.s4 1983009808
    %v6888 = vunpack.c.0.s8 %v6887
    %v6889 = vlaneseq
    %v6890 = vshrl.u32 %v6889, 7
    %v6891 = vsub.s32 %v6888, %v6890
    %v6892 = vrot.slane %v6885, %v6891
    %v6893 = vcombine.low %v6811, %v6817
    %v6895 = vunpack.c.l.s4 1983009808
    %v6896 = vunpack.c.0.s8 %v6895
    %v6897 = vlaneseq
    %v6898 = vshrl.u32 %v6897, 7
    %v6899 = vsub.s32 %v6896, %v6898
    %v6900 = vrot.slane %v6893, %v6899
    %v6901 = vcombine.low %v6876, %v6884
    %v6903 = vunpack.c.l.s4 1934713408
    %v6904 = vunpack.c.0.s8 %v6903
    %v6905 = vlaneseq
    %v6906 = vshrl.u32 %v6905, 7
    %v6907 = vsub.s32 %v6904, %v6906
    %v6908 = vrot.slane %v6901, %v6907
    %v6909 = vcombine.low %v6892, %v6900
    %v6911 = vunpack.c.l.s4 1934713408
    %v6912 = vunpack.c.0.s8 %v6911
    %v6913 = vlaneseq
    %v6914 = vshrl.u32 %v6913, 7
    %v6915 = vsub.s32 %v6912, %v6914
    %v6916 = vrot.slane %v6909, %v6915
    %v6917 = vcombine.low %v6908, %v6916
    %v6918 = vcombine.high %v6908, %v6916
    %6920 = vrot.lane.b32.xlu0 %v6608, 104
    %v6921 = vpop.permute.xlu0 %6920
    %6923 = vrot.lane.b32.xlu0 %v6608, 80
    %v6924 = vpop.permute.xlu0 %6923
    %6926 = vrot.lane.b32.xlu0 %v6608, 56
    %v6927 = vpop.permute.xlu0 %6926
    %6929 = vrot.lane.b32.xlu0 %v6608, 32
    %v6930 = vpop.permute.xlu0 %6929
    %6933 = vrot.lane.b32.xlu0 %v6608, 8
    %v6934 = vpop.permute.xlu0 %6933
    %6935 = vrot.lane.b32.xlu0 %v6609, 8
    %v6936 = vpop.permute.xlu0 %6935
    %v6937 = vsel %vm2848, %v6934, %v6936
    %6939 = vrot.lane.b32.xlu0 %v6609, 112
    %v6940 = vpop.permute.xlu0 %6939
    %6942 = vrot.lane.b32.xlu0 %v6609, 88
    %v6943 = vpop.permute.xlu0 %6942
    %6945 = vrot.lane.b32.xlu0 %v6609, 64
    %v6946 = vpop.permute.xlu0 %6945
    %6948 = vrot.lane.b32.xlu0 %v6609, 40
    %v6949 = vpop.permute.xlu0 %6948
    %6952 = vrot.lane.b32.xlu0 %v6609, 16
    %v6953 = vpop.permute.xlu0 %6952
    %6954 = vrot.lane.b32.xlu0 %v6610, 16
    %v6955 = vpop.permute.xlu0 %6954
    %v6956 = vsel %vm2868, %v6953, %v6955
    %6958 = vrot.lane.b32.xlu0 %v6610, 120
    %v6959 = vpop.permute.xlu0 %6958
    %6961 = vrot.lane.b32.xlu0 %v6610, 96
    %v6962 = vpop.permute.xlu0 %6961
    %6964 = vrot.lane.b32.xlu0 %v6610, 72
    %v6965 = vpop.permute.xlu0 %6964
    %6967 = vrot.lane.b32.xlu0 %v6610, 48
    %v6968 = vpop.permute.xlu0 %6967
    %6970 = vrot.lane.b32.xlu0 %v6610, 24
    %v6971 = vpop.permute.xlu0 %6970
    %v6973 = vcombine.low %v6608, %v6924
    %v6975 = vunpack.c.l.s4 1983009808
    %v6976 = vunpack.c.0.s8 %v6975
    %v6977 = vlaneseq
    %v6978 = vshrl.u32 %v6977, 7
    %v6979 = vsub.s32 %v6976, %v6978
    %v6980 = vrot.slane %v6973, %v6979
    %v6981 = vcombine.low %v6921, %v6927
    %v6983 = vunpack.c.l.s4 1983009808
    %v6984 = vunpack.c.0.s8 %v6983
    %v6985 = vlaneseq
    %v6986 = vshrl.u32 %v6985, 7
    %v6987 = vsub.s32 %v6984, %v6986
    %v6988 = vrot.slane %v6981, %v6987
    %v6989 = vcombine.low %v6930, %v6940
    %v6991 = vunpack.c.l.s4 1983009808
    %v6992 = vunpack.c.0.s8 %v6991
    %v6993 = vlaneseq
    %v6994 = vshrl.u32 %v6993, 7
    %v6995 = vsub.s32 %v6992, %v6994
    %v6996 = vrot.slane %v6989, %v6995
    %v6997 = vcombine.low %v6937, %v6943
    %v6999 = vunpack.c.l.s4 1983009808
    %v7000 = vunpack.c.0.s8 %v6999
    %v7001 = vlaneseq
    %v7002 = vshrl.u32 %v7001, 7
    %v7003 = vsub.s32 %v7000, %v7002
    %v7004 = vrot.slane %v6997, %v7003
    %v7005 = vcombine.low %v6980, %v6988
    %v7007 = vunpack.c.l.s4 1934713408
    %v7008 = vunpack.c.0.s8 %v7007
    %v7009 = vlaneseq
    %v7010 = vshrl.u32 %v7009, 7
    %v7011 = vsub.s32 %v7008, %v7010
    %v7012 = vrot.slane %v7005, %v7011
    %v7013 = vcombine.low %v6996, %v7004
    %v7015 = vunpack.c.l.s4 1934713408
    %v7016 = vunpack.c.0.s8 %v7015
    %v7017 = vlaneseq
    %v7018 = vshrl.u32 %v7017, 7
    %v7019 = vsub.s32 %v7016, %v7018
    %v7020 = vrot.slane %v7013, %v7019
    %v7021 = vcombine.low %v7012, %v7020
    %v7022 = vcombine.high %v7012, %v7020
    %v7023 = vcombine.low %v6946, %v6956
    %v7025 = vunpack.c.l.s4 1983009808
    %v7026 = vunpack.c.0.s8 %v7025
    %v7027 = vlaneseq
    %v7028 = vshrl.u32 %v7027, 7
    %v7029 = vsub.s32 %v7026, %v7028
    %v7030 = vrot.slane %v7023, %v7029
    %v7031 = vcombine.low %v6949, %v6959
    %v7033 = vunpack.c.l.s4 1983009808
    %v7034 = vunpack.c.0.s8 %v7033
    %v7035 = vlaneseq
    %v7036 = vshrl.u32 %v7035, 7
    %v7037 = vsub.s32 %v7034, %v7036
    %v7038 = vrot.slane %v7031, %v7037
    %v7039 = vcombine.low %v6962, %v6968
    %v7041 = vunpack.c.l.s4 1983009808
    %v7042 = vunpack.c.0.s8 %v7041
    %v7043 = vlaneseq
    %v7044 = vshrl.u32 %v7043, 7
    %v7045 = vsub.s32 %v7042, %v7044
    %v7046 = vrot.slane %v7039, %v7045
    %v7047 = vcombine.low %v6965, %v6971
    %v7049 = vunpack.c.l.s4 1983009808
    %v7050 = vunpack.c.0.s8 %v7049
    %v7051 = vlaneseq
    %v7052 = vshrl.u32 %v7051, 7
    %v7053 = vsub.s32 %v7050, %v7052
    %v7054 = vrot.slane %v7047, %v7053
    %v7055 = vcombine.low %v7030, %v7038
    %v7057 = vunpack.c.l.s4 1934713408
    %v7058 = vunpack.c.0.s8 %v7057
    %v7059 = vlaneseq
    %v7060 = vshrl.u32 %v7059, 7
    %v7061 = vsub.s32 %v7058, %v7060
    %v7062 = vrot.slane %v7055, %v7061
    %v7063 = vcombine.low %v7046, %v7054
    %v7065 = vunpack.c.l.s4 1934713408
    %v7066 = vunpack.c.0.s8 %v7065
    %v7067 = vlaneseq
    %v7068 = vshrl.u32 %v7067, 7
    %v7069 = vsub.s32 %v7066, %v7068
    %v7070 = vrot.slane %v7063, %v7069
    %v7071 = vcombine.low %v7062, %v7070
    %v7072 = vcombine.high %v7062, %v7070
    %7073 = vxpose.xlu0.b32.start [1/16] %v6867, 128
    %7074 = vxpose.xlu0.b32.cont [2/16] %v6917, 128
    %7075 = vxpose.xlu0.b32.cont [3/16] 0.0, 128
    %7076 = vxpose.xlu0.b32.cont [4/16] 0.0, 128
    %7077 = vxpose.xlu0.b32.cont [5/16] 0.0, 128
    %7078 = vxpose.xlu0.b32.cont [6/16] 0.0, 128
    %7079 = vxpose.xlu0.b32.cont [7/16] 0.0, 128
    %7080 = vxpose.xlu0.b32.cont [8/16] 0.0, 128
    %7081 = vxpose.xlu0.b32.cont [9/16] 0.0, 128
    %7082 = vxpose.xlu0.b32.cont [10/16] 0.0, 128
    %7083 = vxpose.xlu0.b32.cont [11/16] 0.0, 128
    %7084 = vxpose.xlu0.b32.cont [12/16] 0.0, 128
    %7085 = vxpose.xlu0.b32.cont [13/16] 0.0, 128
    %7086 = vxpose.xlu0.b32.cont [14/16] 0.0, 128
    %7087 = vxpose.xlu0.b32.cont [15/16] 0.0, 128
    %7088 = vxpose.xlu0.b32.end [16/16] 0.0, 128
    %v7089 = vpop.trf.xlu0
    %v7090 = vpop.trf.xlu0
    %v7091 = vpop.trf.xlu0
    %v7092 = vpop.trf.xlu0
    %v7093 = vpop.trf.xlu0
    %v7094 = vpop.trf.xlu0
    %v7095 = vpop.trf.xlu0
    %v7096 = vpop.trf.xlu0
    %v7097 = vpop.trf.xlu0
    %v7098 = vpop.trf.xlu0
    %v7099 = vpop.trf.xlu0
    %v7100 = vpop.trf.xlu0
    %v7101 = vpop.trf.xlu0
    %v7102 = vpop.trf.xlu0
    %v7103 = vpop.trf.xlu0
    %v7104 = vpop.trf.xlu0
    %v7106 = vsel %vm2868, %v7089, 0
    %v7109 = vsel %vm2868, %v7090, 0
    %v7112 = vsel %vm2868, %v7091, 0
    %7114 = vmatprep.subr.mxu0 0.0
    %7115 = vmatpush1.msra.mxu0 %v6713
    %7116 = vmatprep.subr.mxu0 0.0
    %7117 = vmatpush1.msra.mxu0 %v6763
    %7118 = vmatprep.subr.mxu0 0.0
    %7119 = vmatpush1.msra.mxu0 0.0
    %7120 = vmatprep.subr.mxu0 0.0
    %7121 = vmatpush1.msra.mxu0 0.0
    %7122 = vmatprep.subr.mxu0 0.0
    %7123 = vmatpush1.msra.mxu0 0.0
    %7124 = vmatprep.subr.mxu0 0.0
    %7125 = vmatpush1.msra.mxu0 0.0
    %7126 = vmatprep.subr.mxu0 0.0
    %7127 = vmatpush1.msra.mxu0 0.0
    %7128 = vmatprep.subr.mxu0 0.0
    %7129 = vmatpush1.msra.mxu0 0.0
    %7130 = vmatprep.subr.mxu0 0.0
    %7131 = vmatpush1.msra.mxu0 0.0
    %7132 = vmatprep.subr.mxu0 0.0
    %7133 = vmatpush1.msra.mxu0 0.0
    %7134 = vmatprep.subr.mxu0 0.0
    %7135 = vmatpush1.msra.mxu0 0.0
    %7136 = vmatprep.subr.mxu0 0.0
    %7137 = vmatpush1.msra.mxu0 0.0
    %7138 = vmatprep.subr.mxu0 0.0
    %7139 = vmatpush1.msra.mxu0 0.0
    %7140 = vmatprep.subr.mxu0 0.0
    %7141 = vmatpush1.msra.mxu0 0.0
    %7142 = vmatprep.subr.mxu0 0.0
    %7143 = vmatpush1.msra.mxu0 0.0
    %7144 = vmatprep.subr.mxu0 0.0
    %7145 = vmatpush1.msra.mxu0 0.0
    %7146 = vmatprep.subr.mxu0 0.0
    %7147 = vmatpush1.msra.mxu0 0.0
    %7148 = vmatprep.subr.mxu0 0.0
    %7149 = vmatpush1.msra.mxu0 0.0
    %7150 = vmatprep.subr.mxu0 0.0
    %7151 = vmatpush1.msra.mxu0 0.0
    %7152 = vmatprep.subr.mxu0 0.0
    %7153 = vmatpush1.msra.mxu0 0.0
    %7154 = vmatprep.subr.mxu0 0.0
    %7155 = vmatpush1.msra.mxu0 0.0
    %7156 = vmatprep.subr.mxu0 0.0
    %7157 = vmatpush1.msra.mxu0 0.0
    %7158 = vmatprep.subr.mxu0 0.0
    %7159 = vmatpush1.msra.mxu0 0.0
    %7160 = vmatprep.subr.mxu0 0.0
    %7161 = vmatpush1.msra.mxu0 0.0
    %7162 = vmatprep.subr.mxu0 0.0
    %7163 = vmatpush1.msra.mxu0 0.0
    %7164 = vmatprep.subr.mxu0 0.0
    %7165 = vmatpush1.msra.mxu0 0.0
    %7166 = vmatprep.subr.mxu0 0.0
    %7167 = vmatpush1.msra.mxu0 0.0
    %7168 = vmatprep.subr.mxu0 0.0
    %7169 = vmatpush1.msra.mxu0 0.0
    %7170 = vmatprep.subr.mxu0 0.0
    %7171 = vmatpush1.msra.mxu0 0.0
    %7172 = vmatprep.subr.mxu0 0.0
    %7173 = vmatpush1.msra.mxu0 0.0
    %7174 = vmatprep.subr.mxu0 0.0
    %7175 = vmatpush1.msra.mxu0 0.0
    %7176 = vmatprep.subr.mxu0 0.0
    %7177 = vmatpush1.msra.mxu0 0.0
    %7178 = vmatprep.mubr.f32.mxu0 0.0
    %7179 = vmatmul.mubr.f32.gmra.mrb[0].mxu0 %v7106
    %v7180 = vpop.f32.mrb[0].mxu0
    %v7181 = vadd.f32 0.0, %v7180
    %v7182 = vpop.f32.mrb[0].mxu0
    %7183 = vmatprep.mubr.f32.mxu0 0.0
    %7184 = vmatmul.mubr.f32.gmra.mrb[0].mxu0 %v7109
    %v7185 = vpop.f32.mrb[0].mxu0
    %v7186 = vadd.f32 0.0, %v7185
    %v7187 = vpop.f32.mrb[0].mxu0
    %7188 = vmatprep.mubr.f32.mxu0 0.0
    %7189 = vmatmul.mubr.f32.gmra.mrb[0].mxu0 %v7112
    %v7190 = vpop.f32.mrb[0].mxu0
    %v7191 = vadd.f32 0.0, %v7190
    %v7192 = vpop.f32.mrb[0].mxu0
    %7193 = vdwg.mxu0
    %7194 = vxpose.xlu0.b32.start [1/16] %v6868, 128
    %7195 = vxpose.xlu0.b32.cont [2/16] %v6918, 128
    %7196 = vxpose.xlu0.b32.cont [3/16] 0.0, 128
    %7197 = vxpose.xlu0.b32.cont [4/16] 0.0, 128
    %7198 = vxpose.xlu0.b32.cont [5/16] 0.0, 128
    %7199 = vxpose.xlu0.b32.cont [6/16] 0.0, 128
    %7200 = vxpose.xlu0.b32.cont [7/16] 0.0, 128
    %7201 = vxpose.xlu0.b32.cont [8/16] 0.0, 128
    %7202 = vxpose.xlu0.b32.cont [9/16] 0.0, 128
    %7203 = vxpose.xlu0.b32.cont [10/16] 0.0, 128
    %7204 = vxpose.xlu0.b32.cont [11/16] 0.0, 128
    %7205 = vxpose.xlu0.b32.cont [12/16] 0.0, 128
    %7206 = vxpose.xlu0.b32.cont [13/16] 0.0, 128
    %7207 = vxpose.xlu0.b32.cont [14/16] 0.0, 128
    %7208 = vxpose.xlu0.b32.cont [15/16] 0.0, 128
    %7209 = vxpose.xlu0.b32.end [16/16] 0.0, 128
    %v7210 = vpop.trf.xlu0
    %v7211 = vpop.trf.xlu0
    %v7212 = vpop.trf.xlu0
    %v7213 = vpop.trf.xlu0
    %v7214 = vpop.trf.xlu0
    %v7215 = vpop.trf.xlu0
    %v7216 = vpop.trf.xlu0
    %v7217 = vpop.trf.xlu0
    %v7218 = vpop.trf.xlu0
    %v7219 = vpop.trf.xlu0
    %v7220 = vpop.trf.xlu0
    %v7221 = vpop.trf.xlu0
    %v7222 = vpop.trf.xlu0
    %v7223 = vpop.trf.xlu0
    %v7224 = vpop.trf.xlu0
    %v7225 = vpop.trf.xlu0
    %v7227 = vsel %vm2868, %v7210, 0
    %v7230 = vsel %vm2868, %v7211, 0
    %v7233 = vsel %vm2868, %v7212, 0
    %7235 = vmatprep.subr.mxu0 0.0
    %7236 = vmatpush1.msra.mxu0 %v6714
    %7237 = vmatprep.subr.mxu0 0.0
    %7238 = vmatpush1.msra.mxu0 %v6764
    %7239 = vmatprep.subr.mxu0 0.0
    %7240 = vmatpush1.msra.mxu0 0.0
    %7241 = vmatprep.subr.mxu0 0.0
    %7242 = vmatpush1.msra.mxu0 0.0
    %7243 = vmatprep.subr.mxu0 0.0
    %7244 = vmatpush1.msra.mxu0 0.0
    %7245 = vmatprep.subr.mxu0 0.0
    %7246 = vmatpush1.msra.mxu0 0.0
    %7247 = vmatprep.subr.mxu0 0.0
    %7248 = vmatpush1.msra.mxu0 0.0
    %7249 = vmatprep.subr.mxu0 0.0
    %7250 = vmatpush1.msra.mxu0 0.0
    %7251 = vmatprep.subr.mxu0 0.0
    %7252 = vmatpush1.msra.mxu0 0.0
    %7253 = vmatprep.subr.mxu0 0.0
    %7254 = vmatpush1.msra.mxu0 0.0
    %7255 = vmatprep.subr.mxu0 0.0
    %7256 = vmatpush1.msra.mxu0 0.0
    %7257 = vmatprep.subr.mxu0 0.0
    %7258 = vmatpush1.msra.mxu0 0.0
    %7259 = vmatprep.subr.mxu0 0.0
    %7260 = vmatpush1.msra.mxu0 0.0
    %7261 = vmatprep.subr.mxu0 0.0
    %7262 = vmatpush1.msra.mxu0 0.0
    %7263 = vmatprep.subr.mxu0 0.0
    %7264 = vmatpush1.msra.mxu0 0.0
    %7265 = vmatprep.subr.mxu0 0.0
    %7266 = vmatpush1.msra.mxu0 0.0
    %7267 = vmatprep.subr.mxu0 0.0
    %7268 = vmatpush1.msra.mxu0 0.0
    %7269 = vmatprep.subr.mxu0 0.0
    %7270 = vmatpush1.msra.mxu0 0.0
    %7271 = vmatprep.subr.mxu0 0.0
    %7272 = vmatpush1.msra.mxu0 0.0
    %7273 = vmatprep.subr.mxu0 0.0
    %7274 = vmatpush1.msra.mxu0 0.0
    %7275 = vmatprep.subr.mxu0 0.0
    %7276 = vmatpush1.msra.mxu0 0.0
    %7277 = vmatprep.subr.mxu0 0.0
    %7278 = vmatpush1.msra.mxu0 0.0
    %7279 = vmatprep.subr.mxu0 0.0
    %7280 = vmatpush1.msra.mxu0 0.0
    %7281 = vmatprep.subr.mxu0 0.0
    %7282 = vmatpush1.msra.mxu0 0.0
    %7283 = vmatprep.subr.mxu0 0.0
    %7284 = vmatpush1.msra.mxu0 0.0
    %7285 = vmatprep.subr.mxu0 0.0
    %7286 = vmatpush1.msra.mxu0 0.0
    %7287 = vmatprep.subr.mxu0 0.0
    %7288 = vmatpush1.msra.mxu0 0.0
    %7289 = vmatprep.subr.mxu0 0.0
    %7290 = vmatpush1.msra.mxu0 0.0
    %7291 = vmatprep.subr.mxu0 0.0
    %7292 = vmatpush1.msra.mxu0 0.0
    %7293 = vmatprep.subr.mxu0 0.0
    %7294 = vmatpush1.msra.mxu0 0.0
    %7295 = vmatprep.subr.mxu0 0.0
    %7296 = vmatpush1.msra.mxu0 0.0
    %7297 = vmatprep.subr.mxu0 0.0
    %7298 = vmatpush1.msra.mxu0 0.0
    %7299 = vmatprep.mubr.f32.mxu0 0.0
    %7300 = vmatmul.mubr.f32.gmra.mrb[0].mxu0 %v7227
    %v7301 = vpop.f32.mrb[0].mxu0
    %v7302 = vadd.f32 0.0, %v7301
    %v7303 = vpop.f32.mrb[0].mxu0
    %7304 = vmatprep.mubr.f32.mxu0 0.0
    %7305 = vmatmul.mubr.f32.gmra.mrb[0].mxu0 %v7230
    %v7306 = vpop.f32.mrb[0].mxu0
    %v7307 = vadd.f32 0.0, %v7306
    %v7308 = vpop.f32.mrb[0].mxu0
    %7309 = vmatprep.mubr.f32.mxu0 0.0
    %7310 = vmatmul.mubr.f32.gmra.mrb[0].mxu0 %v7233
    %v7311 = vpop.f32.mrb[0].mxu0
    %v7312 = vadd.f32 0.0, %v7311
    %v7313 = vpop.f32.mrb[0].mxu0
    %7314 = vdwg.mxu0
    %v7315 = vmul.f32 %v7181, %v930
    %v7316 = vmul.f32 %v7186, %v931
    %v7317 = vmul.f32 %v7191, %v932
    %v7318 = vmul.f32 %v7302, %v930
    %v7319 = vmul.f32 %v7307, %v931
    %v7320 = vmul.f32 %v7312, %v932
    %v7322 = vsel %vm3542, %v7315, 0
    %v7325 = vsel %vm3542, %v7316, 0
    %v7328 = vsel %vm3542, %v7317, 0
    %v7331 = vsel %vm3542, %v7318, 0
    %v7334 = vsel %vm3542, %v7319, 0
    %v7337 = vsel %vm3542, %v7320, 0
    %7339 = vmatprep.subr.mxu0 0.0
    %7340 = vmatpush1.msra.mxu0 %v924
    %7341 = vmatprep.subr.mxu0 0.0
    %7342 = vmatpush1.msra.mxu0 %v925
    %7343 = vmatprep.subr.mxu0 0.0
    %7344 = vmatpush1.msra.mxu0 %v926
    %7345 = vmatprep.subr.mxu0 0.0
    %7346 = vmatpush1.msra.mxu0 0.0
    %7347 = vmatprep.subr.mxu0 0.0
    %7348 = vmatpush1.msra.mxu0 0.0
    %7349 = vmatprep.subr.mxu0 0.0
    %7350 = vmatpush1.msra.mxu0 0.0
    %7351 = vmatprep.subr.mxu0 0.0
    %7352 = vmatpush1.msra.mxu0 0.0
    %7353 = vmatprep.subr.mxu0 0.0
    %7354 = vmatpush1.msra.mxu0 0.0
    %7355 = vmatprep.subr.mxu0 0.0
    %7356 = vmatpush1.msra.mxu0 0.0
    %7357 = vmatprep.subr.mxu0 0.0
    %7358 = vmatpush1.msra.mxu0 0.0
    %7359 = vmatprep.subr.mxu0 0.0
    %7360 = vmatpush1.msra.mxu0 0.0
    %7361 = vmatprep.subr.mxu0 0.0
    %7362 = vmatpush1.msra.mxu0 0.0
    %7363 = vmatprep.subr.mxu0 0.0
    %7364 = vmatpush1.msra.mxu0 0.0
    %7365 = vmatprep.subr.mxu0 0.0
    %7366 = vmatpush1.msra.mxu0 0.0
    %7367 = vmatprep.subr.mxu0 0.0
    %7368 = vmatpush1.msra.mxu0 0.0
    %7369 = vmatprep.subr.mxu0 0.0
    %7370 = vmatpush1.msra.mxu0 0.0
    %7371 = vmatprep.subr.mxu0 0.0
    %7372 = vmatpush1.msra.mxu0 0.0
    %7373 = vmatprep.subr.mxu0 0.0
    %7374 = vmatpush1.msra.mxu0 0.0
    %7375 = vmatprep.subr.mxu0 0.0
    %7376 = vmatpush1.msra.mxu0 0.0
    %7377 = vmatprep.subr.mxu0 0.0
    %7378 = vmatpush1.msra.mxu0 0.0
    %7379 = vmatprep.subr.mxu0 0.0
    %7380 = vmatpush1.msra.mxu0 0.0
    %7381 = vmatprep.subr.mxu0 0.0
    %7382 = vmatpush1.msra.mxu0 0.0
    %7383 = vmatprep.subr.mxu0 0.0
    %7384 = vmatpush1.msra.mxu0 0.0
    %7385 = vmatprep.subr.mxu0 0.0
    %7386 = vmatpush1.msra.mxu0 0.0
    %7387 = vmatprep.subr.mxu0 0.0
    %7388 = vmatpush1.msra.mxu0 0.0
    %7389 = vmatprep.subr.mxu0 0.0
    %7390 = vmatpush1.msra.mxu0 0.0
    %7391 = vmatprep.subr.mxu0 0.0
    %7392 = vmatpush1.msra.mxu0 0.0
    %7393 = vmatprep.subr.mxu0 0.0
    %7394 = vmatpush1.msra.mxu0 0.0
    %7395 = vmatprep.subr.mxu0 0.0
    %7396 = vmatpush1.msra.mxu0 0.0
    %7397 = vmatprep.subr.mxu0 0.0
    %7398 = vmatpush1.msra.mxu0 0.0
    %7399 = vmatprep.subr.mxu0 0.0
    %7400 = vmatpush1.msra.mxu0 0.0
    %7401 = vmatprep.subr.mxu0 0.0
    %7402 = vmatpush1.msra.mxu0 0.0
    %7403 = vmatprep.mubr.f32.mxu0 0.0
    %7404 = vmatmul.mubr.f32.gmra.mrb[0].mxu0 %v7322
    %v7405 = vpop.f32.mrb[0].mxu0
    %v7406 = vadd.f32 0.0, %v7405
    %v7407 = vpop.f32.mrb[0].mxu0
    %7408 = vmatprep.mubr.f32.mxu0 0.0
    %7409 = vmatmul.mubr.f32.gmra.mrb[0].mxu0 %v7325
    %v7410 = vpop.f32.mrb[0].mxu0
    %v7411 = vadd.f32 0.0, %v7410
    %v7412 = vpop.f32.mrb[0].mxu0
    %7413 = vmatprep.mubr.f32.mxu0 0.0
    %7414 = vmatmul.mubr.f32.gmra.mrb[0].mxu0 %v7328
    %v7415 = vpop.f32.mrb[0].mxu0
    %v7416 = vadd.f32 0.0, %v7415
    %v7417 = vpop.f32.mrb[0].mxu0
    %7418 = vmatprep.mubr.f32.mxu0 0.0
    %7419 = vmatmul.mubr.f32.gmra.mrb[0].mxu0 %v7331
    %v7420 = vpop.f32.mrb[0].mxu0
    %v7421 = vadd.f32 0.0, %v7420
    %v7422 = vpop.f32.mrb[0].mxu0
    %7423 = vmatprep.mubr.f32.mxu0 0.0
    %7424 = vmatmul.mubr.f32.gmra.mrb[0].mxu0 %v7334
    %v7425 = vpop.f32.mrb[0].mxu0
    %v7426 = vadd.f32 0.0, %v7425
    %v7427 = vpop.f32.mrb[0].mxu0
    %7428 = vmatprep.mubr.f32.mxu0 0.0
    %7429 = vmatmul.mubr.f32.gmra.mrb[0].mxu0 %v7337
    %v7430 = vpop.f32.mrb[0].mxu0
    %v7431 = vadd.f32 0.0, %v7430
    %v7432 = vpop.f32.mrb[0].mxu0
    %7433 = vdwg.mxu0
    %v7435 = vsel %vm3542, %v7021, 0
    %v7438 = vsel %vm3542, %v7071, 0
    %7440 = vmatprep.subr.mxu0 0.0
    %7441 = vmatpush1.msra.mxu0 %v7406
    %7442 = vmatprep.subr.mxu0 0.0
    %7443 = vmatpush1.msra.mxu0 %v7411
    %7444 = vmatprep.subr.mxu0 0.0
    %7445 = vmatpush1.msra.mxu0 %v7416
    %7446 = vmatprep.subr.mxu0 0.0
    %7447 = vmatpush1.msra.mxu0 0.0
    %7448 = vmatprep.subr.mxu0 0.0
    %7449 = vmatpush1.msra.mxu0 0.0
    %7450 = vmatprep.subr.mxu0 0.0
    %7451 = vmatpush1.msra.mxu0 0.0
    %7452 = vmatprep.subr.mxu0 0.0
    %7453 = vmatpush1.msra.mxu0 0.0
    %7454 = vmatprep.subr.mxu0 0.0
    %7455 = vmatpush1.msra.mxu0 0.0
    %7456 = vmatprep.subr.mxu0 0.0
    %7457 = vmatpush1.msra.mxu0 0.0
    %7458 = vmatprep.subr.mxu0 0.0
    %7459 = vmatpush1.msra.mxu0 0.0
    %7460 = vmatprep.subr.mxu0 0.0
    %7461 = vmatpush1.msra.mxu0 0.0
    %7462 = vmatprep.subr.mxu0 0.0
    %7463 = vmatpush1.msra.mxu0 0.0
    %7464 = vmatprep.subr.mxu0 0.0
    %7465 = vmatpush1.msra.mxu0 0.0
    %7466 = vmatprep.subr.mxu0 0.0
    %7467 = vmatpush1.msra.mxu0 0.0
    %7468 = vmatprep.subr.mxu0 0.0
    %7469 = vmatpush1.msra.mxu0 0.0
    %7470 = vmatprep.subr.mxu0 0.0
    %7471 = vmatpush1.msra.mxu0 0.0
    %7472 = vmatprep.subr.mxu0 0.0
    %7473 = vmatpush1.msra.mxu0 0.0
    %7474 = vmatprep.subr.mxu0 0.0
    %7475 = vmatpush1.msra.mxu0 0.0
    %7476 = vmatprep.subr.mxu0 0.0
    %7477 = vmatpush1.msra.mxu0 0.0
    %7478 = vmatprep.subr.mxu0 0.0
    %7479 = vmatpush1.msra.mxu0 0.0
    %7480 = vmatprep.subr.mxu0 0.0
    %7481 = vmatpush1.msra.mxu0 0.0
    %7482 = vmatprep.subr.mxu0 0.0
    %7483 = vmatpush1.msra.mxu0 0.0
    %7484 = vmatprep.subr.mxu0 0.0
    %7485 = vmatpush1.msra.mxu0 0.0
    %7486 = vmatprep.subr.mxu0 0.0
    %7487 = vmatpush1.msra.mxu0 0.0
    %7488 = vmatprep.subr.mxu0 0.0
    %7489 = vmatpush1.msra.mxu0 0.0
    %7490 = vmatprep.subr.mxu0 0.0
    %7491 = vmatpush1.msra.mxu0 0.0
    %7492 = vmatprep.subr.mxu0 0.0
    %7493 = vmatpush1.msra.mxu0 0.0
    %7494 = vmatprep.subr.mxu0 0.0
    %7495 = vmatpush1.msra.mxu0 0.0
    %7496 = vmatprep.subr.mxu0 0.0
    %7497 = vmatpush1.msra.mxu0 0.0
    %7498 = vmatprep.subr.mxu0 0.0
    %7499 = vmatpush1.msra.mxu0 0.0
    %7500 = vmatprep.subr.mxu0 0.0
    %7501 = vmatpush1.msra.mxu0 0.0
    %7502 = vmatprep.subr.mxu0 0.0
    %7503 = vmatpush1.msra.mxu0 0.0
    %7504 = vmatprep.mubr.f32.mxu0 0.0
    %7505 = vmatmul.mubr.f32.gmra.mrb[0].mxu0 %v7435
    %v7506 = vpop.f32.mrb[0].mxu0
    %v7507 = vadd.f32 0.0, %v7506
    %v7508 = vpop.f32.mrb[0].mxu0
    %7509 = vmatprep.mubr.f32.mxu0 0.0
    %7510 = vmatmul.mubr.f32.gmra.mrb[0].mxu0 %v7438
    %v7511 = vpop.f32.mrb[0].mxu0
    %v7512 = vadd.f32 0.0, %v7511
    %v7513 = vpop.f32.mrb[0].mxu0
    %7514 = vdwg.mxu0
    %v7516 = vsel %vm3542, %v7022, 0
    %v7519 = vsel %vm3542, %v7072, 0
    %7521 = vmatprep.subr.mxu0 0.0
    %7522 = vmatpush1.msra.mxu0 %v7421
    %7523 = vmatprep.subr.mxu0 0.0
    %7524 = vmatpush1.msra.mxu0 %v7426
    %7525 = vmatprep.subr.mxu0 0.0
    %7526 = vmatpush1.msra.mxu0 %v7431
    %7527 = vmatprep.subr.mxu0 0.0
    %7528 = vmatpush1.msra.mxu0 0.0
    %7529 = vmatprep.subr.mxu0 0.0
    %7530 = vmatpush1.msra.mxu0 0.0
    %7531 = vmatprep.subr.mxu0 0.0
    %7532 = vmatpush1.msra.mxu0 0.0
    %7533 = vmatprep.subr.mxu0 0.0
    %7534 = vmatpush1.msra.mxu0 0.0
    %7535 = vmatprep.subr.mxu0 0.0
    %7536 = vmatpush1.msra.mxu0 0.0
    %7537 = vmatprep.subr.mxu0 0.0
    %7538 = vmatpush1.msra.mxu0 0.0
    %7539 = vmatprep.subr.mxu0 0.0
    %7540 = vmatpush1.msra.mxu0 0.0
    %7541 = vmatprep.subr.mxu0 0.0
    %7542 = vmatpush1.msra.mxu0 0.0
    %7543 = vmatprep.subr.mxu0 0.0
    %7544 = vmatpush1.msra.mxu0 0.0
    %7545 = vmatprep.subr.mxu0 0.0
    %7546 = vmatpush1.msra.mxu0 0.0
    %7547 = vmatprep.subr.mxu0 0.0
    %7548 = vmatpush1.msra.mxu0 0.0
    %7549 = vmatprep.subr.mxu0 0.0
    %7550 = vmatpush1.msra.mxu0 0.0
    %7551 = vmatprep.subr.mxu0 0.0
    %7552 = vmatpush1.msra.mxu0 0.0
    %7553 = vmatprep.subr.mxu0 0.0
    %7554 = vmatpush1.msra.mxu0 0.0
    %7555 = vmatprep.subr.mxu0 0.0
    %7556 = vmatpush1.msra.mxu0 0.0
    %7557 = vmatprep.subr.mxu0 0.0
    %7558 = vmatpush1.msra.mxu0 0.0
    %7559 = vmatprep.subr.mxu0 0.0
    %7560 = vmatpush1.msra.mxu0 0.0
    %7561 = vmatprep.subr.mxu0 0.0
    %7562 = vmatpush1.msra.mxu0 0.0
    %7563 = vmatprep.subr.mxu0 0.0
    %7564 = vmatpush1.msra.mxu0 0.0
    %7565 = vmatprep.subr.mxu0 0.0
    %7566 = vmatpush1.msra.mxu0 0.0
    %7567 = vmatprep.subr.mxu0 0.0
    %7568 = vmatpush1.msra.mxu0 0.0
    %7569 = vmatprep.subr.mxu0 0.0
    %7570 = vmatpush1.msra.mxu0 0.0
    %7571 = vmatprep.subr.mxu0 0.0
    %7572 = vmatpush1.msra.mxu0 0.0
    %7573 = vmatprep.subr.mxu0 0.0
    %7574 = vmatpush1.msra.mxu0 0.0
    %7575 = vmatprep.subr.mxu0 0.0
    %7576 = vmatpush1.msra.mxu0 0.0
    %7577 = vmatprep.subr.mxu0 0.0
    %7578 = vmatpush1.msra.mxu0 0.0
    %7579 = vmatprep.subr.mxu0 0.0
    %7580 = vmatpush1.msra.mxu0 0.0
    %7581 = vmatprep.subr.mxu0 0.0
    %7582 = vmatpush1.msra.mxu0 0.0
    %7583 = vmatprep.subr.mxu0 0.0
    %7584 = vmatpush1.msra.mxu0 0.0
    %7585 = vmatprep.mubr.f32.mxu0 0.0
    %7586 = vmatmul.mubr.f32.gmra.mrb[0].mxu0 %v7516
    %v7587 = vpop.f32.mrb[0].mxu0
    %v7588 = vadd.f32 0.0, %v7587
    %v7589 = vpop.f32.mrb[0].mxu0
    %7590 = vmatprep.mubr.f32.mxu0 0.0
    %7591 = vmatmul.mubr.f32.gmra.mrb[0].mxu0 %v7519
    %v7592 = vpop.f32.mrb[0].mxu0
    %v7593 = vadd.f32 0.0, %v7592
    %v7594 = vpop.f32.mrb[0].mxu0
    %7595 = vdwg.mxu0
    %v7596 = vcombine.high %v7507, 0.0
    %v7598 = vunpack.c.l.s4 1983009808
    %v7599 = vunpack.c.0.s8 %v7598
    %v7600 = vlaneseq
    %v7601 = vshrl.u32 %v7600, 7
    %v7602 = vsub.s32 %v7599, %v7601
    %v7603 = vrot.slane %v7507, %v7602
    %v7605 = vunpack.c.l.s4 1983009808
    %v7606 = vunpack.c.0.s8 %v7605
    %v7607 = vlaneseq
    %v7608 = vshrl.u32 %v7607, 7
    %v7609 = vsub.s32 %v7606, %v7608
    %v7610 = vrot.slane %v7596, %v7609
    %v7611 = vcombine.high %v7588, 0.0
    %v7613 = vunpack.c.l.s4 1983009808
    %v7614 = vunpack.c.0.s8 %v7613
    %v7615 = vlaneseq
    %v7616 = vshrl.u32 %v7615, 7
    %v7617 = vsub.s32 %v7614, %v7616
    %v7618 = vrot.slane %v7588, %v7617
    %v7620 = vunpack.c.l.s4 1983009808
    %v7621 = vunpack.c.0.s8 %v7620
    %v7622 = vlaneseq
    %v7623 = vshrl.u32 %v7622, 7
    %v7624 = vsub.s32 %v7621, %v7623
    %v7625 = vrot.slane %v7611, %v7624
    %v7626 = vcombine.low %v7603, %v7618
    %v7627 = vcombine.high %v7603, %v7618
    %v7629 = vunpack.c.l.s4 1934713408
    %v7630 = vunpack.c.0.s8 %v7629
    %v7631 = vlaneseq
    %v7632 = vshrl.u32 %v7631, 7
    %v7633 = vsub.s32 %v7630, %v7632
    %v7634 = vrot.slane %v7626, %v7633
    %v7636 = vunpack.c.l.s4 1934713408
    %v7637 = vunpack.c.0.s8 %v7636
    %v7638 = vlaneseq
    %v7639 = vshrl.u32 %v7638, 7
    %v7640 = vsub.s32 %v7637, %v7639
    %v7641 = vrot.slane %v7627, %v7640
    %v7642 = vcombine.low %v7610, %v7625
    %v7643 = vcombine.high %v7610, %v7625
    %v7645 = vunpack.c.l.s4 1934713408
    %v7646 = vunpack.c.0.s8 %v7645
    %v7647 = vlaneseq
    %v7648 = vshrl.u32 %v7647, 7
    %v7649 = vsub.s32 %v7646, %v7648
    %v7650 = vrot.slane %v7642, %v7649
    %v7652 = vunpack.c.l.s4 1934713408
    %v7653 = vunpack.c.0.s8 %v7652
    %v7654 = vlaneseq
    %v7655 = vshrl.u32 %v7654, 7
    %v7656 = vsub.s32 %v7653, %v7655
    %v7657 = vrot.slane %v7643, %v7656
    %v7658 = vcombine.high %v7634, 0.0
    %v7659 = vcombine.high %v7641, 0.0
    %v7660 = vcombine.high %v7650, 0.0
    %v7661 = vcombine.high %v7657, 0.0
    %v7662 = vcombine.high %v7512, 0.0
    %v7664 = vunpack.c.l.s4 1983009808
    %v7665 = vunpack.c.0.s8 %v7664
    %v7666 = vlaneseq
    %v7667 = vshrl.u32 %v7666, 7
    %v7668 = vsub.s32 %v7665, %v7667
    %v7669 = vrot.slane %v7512, %v7668
    %v7671 = vunpack.c.l.s4 1983009808
    %v7672 = vunpack.c.0.s8 %v7671
    %v7673 = vlaneseq
    %v7674 = vshrl.u32 %v7673, 7
    %v7675 = vsub.s32 %v7672, %v7674
    %v7676 = vrot.slane %v7662, %v7675
    %v7677 = vcombine.high %v7593, 0.0
    %v7679 = vunpack.c.l.s4 1983009808
    %v7680 = vunpack.c.0.s8 %v7679
    %v7681 = vlaneseq
    %v7682 = vshrl.u32 %v7681, 7
    %v7683 = vsub.s32 %v7680, %v7682
    %v7684 = vrot.slane %v7593, %v7683
    %v7686 = vunpack.c.l.s4 1983009808
    %v7687 = vunpack.c.0.s8 %v7686
    %v7688 = vlaneseq
    %v7689 = vshrl.u32 %v7688, 7
    %v7690 = vsub.s32 %v7687, %v7689
    %v7691 = vrot.slane %v7677, %v7690
    %v7692 = vcombine.low %v7669, %v7684
    %v7693 = vcombine.high %v7669, %v7684
    %v7695 = vunpack.c.l.s4 1934713408
    %v7696 = vunpack.c.0.s8 %v7695
    %v7697 = vlaneseq
    %v7698 = vshrl.u32 %v7697, 7
    %v7699 = vsub.s32 %v7696, %v7698
    %v7700 = vrot.slane %v7692, %v7699
    %v7702 = vunpack.c.l.s4 1934713408
    %v7703 = vunpack.c.0.s8 %v7702
    %v7704 = vlaneseq
    %v7705 = vshrl.u32 %v7704, 7
    %v7706 = vsub.s32 %v7703, %v7705
    %v7707 = vrot.slane %v7693, %v7706
    %v7708 = vcombine.low %v7676, %v7691
    %v7709 = vcombine.high %v7676, %v7691
    %v7711 = vunpack.c.l.s4 1934713408
    %v7712 = vunpack.c.0.s8 %v7711
    %v7713 = vlaneseq
    %v7714 = vshrl.u32 %v7713, 7
    %v7715 = vsub.s32 %v7712, %v7714
    %v7716 = vrot.slane %v7708, %v7715
    %v7718 = vunpack.c.l.s4 1934713408
    %v7719 = vunpack.c.0.s8 %v7718
    %v7720 = vlaneseq
    %v7721 = vshrl.u32 %v7720, 7
    %v7722 = vsub.s32 %v7719, %v7721
    %v7723 = vrot.slane %v7709, %v7722
    %v7724 = vcombine.high %v7700, 0.0
    %v7725 = vcombine.high %v7707, 0.0
    %v7726 = vcombine.high %v7716, 0.0
    %v7727 = vcombine.high %v7723, 0.0
    %7729 = vrot.lane.b32.xlu0 %v7658, 8
    %v7730 = vpop.permute.xlu0 %7729
    %7733 = vrot.lane.b32.xlu0 %v7641, 16
    %v7734 = vpop.permute.xlu0 %7733
    %7737 = vrot.lane.b32.xlu0 %v7659, 24
    %v7738 = vpop.permute.xlu0 %7737
    %7741 = vrot.lane.b32.xlu0 %v7650, 32
    %v7742 = vpop.permute.xlu0 %7741
    %7745 = vrot.lane.b32.xlu0 %v7660, 40
    %v7746 = vpop.permute.xlu0 %7745
    %7749 = vrot.lane.b32.xlu0 %v7657, 48
    %v7750 = vpop.permute.xlu0 %7749
    %7753 = vrot.lane.b32.xlu0 %v7661, 56
    %v7754 = vpop.permute.xlu0 %7753
    %7757 = vrot.lane.b32.xlu0 %v7700, 64
    %v7758 = vpop.permute.xlu0 %7757
    %7761 = vrot.lane.b32.xlu0 %v7724, 72
    %v7762 = vpop.permute.xlu0 %7761
    %7765 = vrot.lane.b32.xlu0 %v7707, 80
    %v7766 = vpop.permute.xlu0 %7765
    %7769 = vrot.lane.b32.xlu0 %v7725, 88
    %v7770 = vpop.permute.xlu0 %7769
    %7773 = vrot.lane.b32.xlu0 %v7716, 96
    %v7774 = vpop.permute.xlu0 %7773
    %7777 = vrot.lane.b32.xlu0 %v7726, 104
    %v7778 = vpop.permute.xlu0 %7777
    %7781 = vrot.lane.b32.xlu0 %v7723, 112
    %v7782 = vpop.permute.xlu0 %7781
    %7785 = vrot.lane.b32.xlu0 %v7727, 120
    %v7786 = vpop.permute.xlu0 %7785
    %v7788 = vsel %vm2848, %v7634, %v7730
    %v7789 = vsel %vm2868, %v7788, %v7734
    %v7790 = vsel %vm3542, %v7789, %v7738
    %v7791 = vsel %vm4013, %v7790, %v7742
    %v7792 = vsel %vm4015, %v7791, %v7746
    %v7793 = vsel %vm4017, %v7792, %v7750
    %v7794 = vsel %vm4019, %v7793, %v7754
    %v7795 = vsel %vm4021, %v7794, %v7758
    %v7796 = vsel %vm4023, %v7795, %v7762
    %v7797 = vsel %vm4025, %v7796, %v7766
    %v7798 = vsel %vm4027, %v7797, %v7770
    %v7799 = vsel %vm4029, %v7798, %v7774
    %v7800 = vsel %vm4031, %v7799, %v7778
    %v7801 = vsel %vm4033, %v7800, %v7782
    %v7802 = vsel %vm4035, %v7801, %v7786
    %v7804 = vlaneseq
    %v7805 = vshrl.u32 %v7804, 7
    %v7806 = vsub.s32 0, %v7805
    %v7807 = vrot.slane %v927, %v7806
    %v7809 = vadd.f32 %v7802, %v7807
    %v7810 = vmax.f32 %v7809, 0.0
    %v7811 = vadd.f32 %v4074, %v7810
    %v7812 = vsel %vm4046, %v7811, 0.0
    %7813 = vadd.xlane.f32.xlu0 %v7812
    %v7814 = vpop.xlane.xlu0 %7813
    %v7815 = vmul.f32 %v7814, %v4050
    %v7816 = vsub.f32 %v7811, %v7815
    %v7817 = vmul.f32 %v7816, %v7816
    %v7818 = vsel %vm4046, %v7817, 0.0
    %7819 = vadd.xlane.f32.xlu0 %v7818
    %v7820 = vpop.xlane.xlu0 %7819
    %v7821 = vmul.f32 %v7820, %v4050
    %v7822 = vadd.f32 %v7821, 1e-05
    %v7823 = vrsqrt.pop %v7822
    %v7824 = vmul.f32 %v7816, %v7823
    %v7826 = vlaneseq
    %v7827 = vshrl.u32 %v7826, 7
    %v7828 = vsub.s32 0, %v7827
    %v7829 = vrot.slane %v928, %v7828
    %v7831 = vmul.f32 %v7824, %v7829
    %v7833 = vlaneseq
    %v7834 = vshrl.u32 %v7833, 7
    %v7835 = vsub.s32 0, %v7834
    %v7836 = vrot.slane %v929, %v7835
    %v7838 = vadd.f32 %v7831, %v7836
    %7839 = vst [vmem:[#allocation22] sm:$0x3] %v7838
    // Predicated region
    $region138: #{tpu_custom_call.1} parent=1 // pred_check
      _
    $region139: #{tpu_custom_call.1} parent=1 // pred_check_branch
      %7841 = sbr.rel (0) target = $region141
    $region140: #{tpu_custom_call.1} parent=1 // pred_region
      %s7843 = ssub.s32 32, 32
      %7844 = vsyncadd [#allocation4], %s7843
      %s7846 = sshll.u32 [#allocation22], 4
      %s7847 = int_to_ptr.vmem [resolvable:$true] %s7846
      %7849 = dma.vmem_to_hbm [thread:$0]  %s7847, 32, %s22, [#allocation4]
    $region141: #{tpu_custom_call.1} parent=1 // pred_fallthru
      _
    // Predicated region
    $region142: #{tpu_custom_call.1} parent=1 // pred_check
      _
    $region143: #{tpu_custom_call.1} parent=1 // pred_check_branch
      %7851 = sbr.rel (0) target = $region145
    $region144: #{tpu_custom_call.1} parent=1 // pred_region
      %7852 = dma.done [#allocation4], 32
    $region145: #{tpu_custom_call.1} parent=1 // pred_fallthru
      _
    %7853 = vsyncpa [#allocation3], 1
    %7854 = vsyncpa [#allocation6], 1
    %7855 = vsyncpa [#allocation9], 1
    %7856 = vsyncpa [#allocation12], 1
    %7857 = vsyncpa [#allocation15], 1
    %7858 = vsyncpa [#allocation18], 1
    %7859 = vsyncpa [#allocation21], 1
    %7860 = vsyncpa [#allocation4], 1

</llo_original>
